<compile_context>
chip_gen: v7x
topology: tpu7x:2x2x1
jax: 0.10.0
libtpu: 0.0.40
codegen_flags: <defaults>
</compile_context>

<pallas_src>
import functools

import jax
import jax.numpy as jnp
from jax.experimental import pallas as pl
from jax.experimental.pallas import tpu as pltpu

BN_EPS = 1e-5
LANE = 128


def _round_up(x, m):
    return (x + m - 1) // m * m


def _pad_last(a, target):
    pad = target - a.shape[-1]
    if pad == 0:
        return a
    return jnp.pad(a, [(0, 0)] * (a.ndim - 1) + [(0, pad)])


# -----------------------------------------------------------------------------
# Shared in-kernel pieces.
# -----------------------------------------------------------------------------
def _zero_halo(xp_ref):
    """Zero the 4 one-pixel halo strips of the [H+2, W+2, Cin] scratch."""
    Hp2, Wp2, Cin = xp_ref.shape
    H, W = Hp2 - 2, Wp2 - 2
    zrow = jnp.zeros((1, Wp2, Cin), xp_ref.dtype)
    zcol = jnp.zeros((H, 1, Cin), xp_ref.dtype)
    xp_ref[0:1, :, :] = zrow
    xp_ref[H + 1:H + 2, :, :] = zrow
    xp_ref[1:H + 1, 0:1, :] = zcol
    xp_ref[1:H + 1, W + 1:W + 2, :] = zcol


def _conv_body(xp_ref, w_ref, acc_ref, conv_ref, stats_ref):
    """3x3 conv from the haloed bf16 scratch: 3 wide-K MXU matmuls + BN partials.

    xp_ref:    VMEM [H+2, W+2, Cin] bf16 (interior already filled, halo zeroed)
    w_ref:     [3, 3*Cin, Cout]     bf16 (ky-major; kx blocks of Cin along K)
    acc_ref:   VMEM [H*W, Cout]     f32 accumulator scratch
    conv_ref:  [1, H, W, Cout]      bf16 raw conv output tile
    stats_ref: [1, 8, Cout]         f32 per-image partials (row0=sum, row1=sumsq)
    """
    Hp2, Wp2, Cin = xp_ref.shape
    H, W = Hp2 - 2, Wp2 - 2
    Cout = conv_ref.shape[-1]

    for ky in range(3):
        strip = xp_ref[ky:ky + H, :, :]                       # [H, W+2, Cin] bf16
        win = jnp.concatenate(
            [strip[:, 0:W, :], strip[:, 1:W + 1, :], strip[:, 2:W + 2, :]],
            axis=-1).reshape(H * W, 3 * Cin)                  # K = 3*Cin
        contrib = jnp.dot(win, w_ref[ky], preferred_element_type=jnp.float32)
        if ky == 0:
            acc_ref[...] = contrib
        else:
            acc_ref[...] += contrib

    acc = acc_ref[...]
    conv_ref[...] = acc.reshape(1, H, W, Cout).astype(conv_ref.dtype)
    # Per-image BN partial stats from the f32 accumulator, written as one full
    # lane-dense [1, 8, Cout] block (no masked sub-row RMW stores).
    s_sum = jnp.sum(acc, axis=0, keepdims=True)
    s_sq = jnp.sum(acc * acc, axis=0, keepdims=True)
    stats_ref[...] = jnp.concatenate(
        [s_sum, s_sq, jnp.zeros((6, Cout), jnp.float32)], axis=0)[None]


# -----------------------------------------------------------------------------
# Conv kernels (one batch image per grid step, "parallel" semantics).
# -----------------------------------------------------------------------------
def _conv3x3_stats_kernel(x_ref, w_ref, conv_ref, stats_ref, xp_ref, acc_ref):
    """conv1: plain 3x3 conv of the bf16 input tile."""
    _, H, W, _ = x_ref.shape
    _zero_halo(xp_ref)
    xp_ref[1:H + 1, 1:W + 1, :] = x_ref[0]
    _conv_body(xp_ref, w_ref, acc_ref, conv_ref, stats_ref)


def _bn_relu_conv3x3_stats_kernel(x_ref, scale_ref, shift_ref, w_ref,
                                  conv_ref, stats_ref, xp_ref, acc_ref):
    """conv2 with fused prologue: relu(bn1(conv1)) applied while filling the halo."""
    _, H, W, _ = x_ref.shape
    _zero_halo(xp_ref)
    y = x_ref[0].astype(jnp.float32) * scale_ref[...] + shift_ref[...]
    xp_ref[1:H + 1, 1:W + 1, :] = jnp.maximum(y, 0.0).astype(xp_ref.dtype)
    _conv_body(xp_ref, w_ref, acc_ref, conv_ref, stats_ref)


def _conv3x3_with_stats(x_nhwc, w_folded, scale=None, shift=None):
    N, H, W, Cin = x_nhwc.shape
    Cout = w_folded.shape[-1]
    tile_in = pl.BlockSpec((1, H, W, Cin), lambda n: (n, 0, 0, 0))
    w_spec = pl.BlockSpec(w_folded.shape, lambda n: (0, 0, 0))
    vec = pl.BlockSpec((1, Cout), lambda n: (0, 0))

    if scale is None:
        kernel = _conv3x3_stats_kernel
        operands = (x_nhwc, w_folded)
        in_specs = [tile_in, w_spec]
    else:
        kernel = _bn_relu_conv3x3_stats_kernel
        operands = (x_nhwc, scale, shift, w_folded)
        in_specs = [tile_in, vec, vec, w_spec]

    return pl.pallas_call(
        kernel,
        grid=(N,),
        in_specs=in_specs,
        out_specs=[
            pl.BlockSpec((1, H, W, Cout), lambda n: (n, 0, 0, 0)),
            pl.BlockSpec((1, 8, Cout), lambda n: (n, 0, 0)),
        ],
        out_shape=[
            jax.ShapeDtypeStruct((N, H, W, Cout), jnp.bfloat16),
            jax.ShapeDtypeStruct((N, 8, Cout), jnp.float32),
        ],
        scratch_shapes=[
            pltpu.VMEM((H + 2, W + 2, Cin), jnp.bfloat16),   # haloed input tile
            pltpu.VMEM((H * W, Cout), jnp.float32),          # f32 conv accumulator
        ],
        compiler_params=pltpu.CompilerParams(
            dimension_semantics=("parallel",)),
    )(*operands)


# -----------------------------------------------------------------------------
# Final pass: BN2 affine + identity residual + ReLU.
# -----------------------------------------------------------------------------
def _bn_add_relu_kernel(conv_ref, scale_ref, shift_ref, res_ref, out_ref):
    y = (conv_ref[0].astype(jnp.float32) * scale_ref[...] + shift_ref[...]
         + res_ref[0].astype(jnp.float32))
    out_ref[...] = jnp.maximum(y, 0.0)[None].astype(out_ref.dtype)


def _bn_add_relu(conv, scale, shift, residual, out_dtype=jnp.float32):
    N, H, W, Cp = conv.shape
    tile = pl.BlockSpec((1, H, W, Cp), lambda n: (n, 0, 0, 0))
    vec = pl.BlockSpec((1, Cp), lambda n: (0, 0))
    return pl.pallas_call(
        _bn_add_relu_kernel,
        grid=(N,),
        in_specs=[tile, vec, vec, tile],
        out_specs=tile,
        out_shape=jax.ShapeDtypeStruct((N, H, W, Cp), out_dtype),
        compiler_params=pltpu.CompilerParams(
            dimension_semantics=("parallel",)),
    )(conv, scale, shift, residual)


# -----------------------------------------------------------------------------
# Small XLA glue.
# -----------------------------------------------------------------------------
def _bn_affine(stats, gamma_p, beta_p, count):
    # mean = sum/M, biased var = E[x^2] - E[x]^2 (training-mode BN), f32.
    # Note: stats come from the f32 conv accumulator; normalization is applied to the
    # bf16-rounded stored conv values (tiny mismatch, within tolerance).
    mean = stats[0:1, :] / count
    var = jnp.maximum(stats[1:2, :] / count - mean * mean, 0.0)
    scale = gamma_p * jax.lax.rsqrt(var + BN_EPS)
    shift = beta_p - mean * scale
    return scale, shift


def _prep_weight(w, cin_p, cout_p):
    """PyTorch conv weight [Cout, Cin, 3, 3] -> bf16 [3, 3*Cin_p, Cout_p] (ky-major,
    kx folded into K)."""
    w4 = jnp.transpose(w, (2, 3, 1, 0))                      # [ky, kx, Cin, Cout]
    cin, cout = w4.shape[2], w4.shape[3]
    w4 = jnp.pad(w4, ((0, 0), (0, 0), (0, cin_p - cin), (0, cout_p - cout)))
    return w4.reshape(3, 3 * cin_p, cout_p).astype(jnp.bfloat16)


# -----------------------------------------------------------------------------
# BasicCell forward.
# -----------------------------------------------------------------------------
@functools.partial(jax.jit, static_argnames=("stride",))
def basic_cell_forward(x, one_hot, params, stride=1):
    """BasicCell forward (identity shortcut: stride=1, in_planes == planes).

    x: [N, C_in, H, W] f32 (NCHW, like PyTorch); returns [N, planes, H, W] f32.
    """
    del one_hot  # TODO(synk): instance-aware quantization path not defined in source.
    if stride != 1:
        raise NotImplementedError("identity-shortcut BasicCell requires stride=1")

    N, C_in, H, W = x.shape
    planes = params["w1"].shape[0]
    if C_in != planes:
        raise NotImplementedError("identity shortcut requires in_planes == planes")

    cin_p = max(_round_up(C_in, LANE), LANE)
    cp = max(_round_up(planes, LANE), LANE)
    count = jnp.float32(N * H * W)

    # Layout glue only at the module boundary: NCHW -> NHWC, lane-dense channels,
    # bf16 (this one tensor is both the conv1 input and the residual stream).
    x_nhwc = _pad_last(x.transpose(0, 2, 3, 1), cin_p).astype(jnp.bfloat16)

    w1 = _prep_weight(params["w1"], cin_p, cp)
    w2 = _prep_weight(params["w2"], cp, cp)
    g1 = _pad_last(params["bn1_gamma"].reshape(1, -1), cp)
    b1 = _pad_last(params["bn1_beta"].reshape(1, -1), cp)
    g2 = _pad_last(params["bn2_gamma"].reshape(1, -1), cp)
    b2 = _pad_last(params["bn2_beta"].reshape(1, -1), cp)

    # conv1 (+ per-image BN1 partial stats, summed in XLA).
    conv1, st1 = _conv3x3_with_stats(x_nhwc, w1)
    sc1, sh1 = _bn_affine(jnp.sum(st1, axis=0), g1, b1, count)

    # bn1+relu fused into conv2's prologue; conv2 (+ BN2 partial stats).
    conv2, st2 = _conv3x3_with_stats(conv1, w2, sc1, sh1)
    sc2, sh2 = _bn_affine(jnp.sum(st2, axis=0), g2, b2, count)

    # bn2 + identity residual + relu (f32 output).
    out = _bn_add_relu(conv2, sc2, sh2, x_nhwc, out_dtype=jnp.float32)

    # NHWC (channel-padded) -> NCHW (unpadded).
    return out[:, :, :, :planes].transpose(0, 3, 1, 2)


def init_params(key, in_planes, planes):
    k1, k2, k3, k4, k5, k6 = jax.random.split(key, 6)
    return {
        "w1": 0.1 * jax.random.normal(k1, (planes, in_planes, 3, 3), jnp.float32),
        "w2": 0.1 * jax.random.normal(k2, (planes, planes, 3, 3), jnp.float32),
        "bn1_gamma": 1.0 + 0.1 * jax.random.normal(k3, (planes,), jnp.float32),
        "bn1_beta": 0.1 * jax.random.normal(k4, (planes,), jnp.float32),
        "bn2_gamma": 1.0 + 0.1 * jax.random.normal(k5, (planes,), jnp.float32),
        "bn2_beta": 0.1 * jax.random.normal(k6, (planes,), jnp.float32),
    }


@jax.jit
def _reference_forward(x, params):
    """Pure-XLA f32 reference with the same training-mode BN semantics."""
    def conv(inp, w):
        return jax.lax.conv_general_dilated(
            inp, w, window_strides=(1, 1), padding=((1, 1), (1, 1)),
            dimension_numbers=("NCHW", "OIHW", "NCHW"))

    def bn(z, gamma, beta):
        mean = jnp.mean(z, axis=(0, 2, 3), keepdims=True)
        var = jnp.mean((z - mean) ** 2, axis=(0, 2, 3), keepdims=True)
        zh = (z - mean) * jax.lax.rsqrt(var + BN_EPS)
        return zh * gamma.reshape(1, -1, 1, 1) + beta.reshape(1, -1, 1, 1)

    o = jax.nn.relu(bn(conv(x, params["w1"]), params["bn1_gamma"], params["bn1_beta"]))
    o = bn(conv(o, params["w2"]), params["bn2_gamma"], params["bn2_beta"])
    return jax.nn.relu(o + x)


if __name__ == "__main__":
    key = jax.random.PRNGKey(0)
    kx, kp = jax.random.split(key)

    N, C, H, W = 2, 4, 16, 16          # batch=2, in_planes=planes=4, spatial=16
    x = jax.random.normal(kx, (N, C, H, W), jnp.float32)
    one_hot = jax.nn.one_hot(jnp.zeros((N,), jnp.int32), 4, dtype=jnp.float32)
    params = init_params(kp, in_planes=C, planes=C)

    out = basic_cell_forward(x, one_hot, params, stride=1)
    jax.block_until_ready(out)
    assert out.shape == (N, C, H, W), out.shape

    # Loose tolerance: bf16 matmul operands + bf16 activation/residual storage.
    ref = _reference_forward(x, params)
    err = float(jnp.max(jnp.abs(out - ref)))
    assert err < 0.2, f"max abs error vs reference: {err}"
    print("KERNEL_OK")
</pallas_src>

<mosaic_0001>
module attributes {stable_mosaic.version = 11 : i64} {
  func.func @_conv3x3_stats_kernel(%arg0: i32, %arg1: memref<1x16x16x128xbf16, #tpu.memory_space<vmem>>, %arg2: memref<3x384x128xbf16, #tpu.memory_space<vmem>>, %arg3: memref<1x16x16x128xbf16, #tpu.memory_space<vmem>>, %arg4: memref<1x8x128xf32, #tpu.memory_space<vmem>>, %arg5: memref<18x18x128xbf16, #tpu.memory_space<vmem>>, %arg6: memref<256x128xf32, #tpu.memory_space<vmem>>) attributes {dimension_semantics = [#tpu.dimension_semantics<parallel>], iteration_bounds = array<i64: 2>, scalar_prefetch = 0 : i64, scratch_operands = 2 : i64, tpu.core_type = #tpu.core_type<tc>, window_params = [{transform_indices = @transform_0, window_bounds = array<i64: 1, 16, 16, 128>}, {pipeline_mode = #tpu.pipeline_mode<synchronous>, transform_indices = @transform_1, window_bounds = array<i64: 3, 384, 128>}, {transform_indices = @transform_2, window_bounds = array<i64: 1, 16, 16, 128>}, {transform_indices = @transform_3, window_bounds = array<i64: 1, 8, 128>}]} {
    %cst = arith.constant 0.000000e+00 : bf16
    %0 = vector.broadcast %cst : bf16 to vector<1x18x128xbf16>
    %cst_0 = arith.constant 0.000000e+00 : bf16
    %1 = vector.broadcast %cst_0 : bf16 to vector<16x1x128xbf16>
    %c0 = arith.constant 0 : index
    %c0_1 = arith.constant 0 : index
    %c0_2 = arith.constant 0 : index
    %2 = vector.load %arg5[%c0, %c0_1, %c0_2] : memref<18x18x128xbf16, #tpu.memory_space<vmem>>, vector<1x18x128xbf16>
    tpu.vector_store %arg5[%c0, %c0_1, %c0_2], %0 {strides = array<i32>} : memref<18x18x128xbf16, #tpu.memory_space<vmem>>, vector<1x18x128xbf16>,
    %c17 = arith.constant 17 : index
    %c0_3 = arith.constant 0 : index
    %c0_4 = arith.constant 0 : index
    %3 = vector.load %arg5[%c17, %c0_3, %c0_4] : memref<18x18x128xbf16, #tpu.memory_space<vmem>>, vector<1x18x128xbf16>
    tpu.vector_store %arg5[%c17, %c0_3, %c0_4], %0 {strides = array<i32>} : memref<18x18x128xbf16, #tpu.memory_space<vmem>>, vector<1x18x128xbf16>,
    %c1 = arith.constant 1 : index
    %c0_5 = arith.constant 0 : index
    %c0_6 = arith.constant 0 : index
    %4 = vector.load %arg5[%c1, %c0_5, %c0_6] : memref<18x18x128xbf16, #tpu.memory_space<vmem>>, vector<16x1x128xbf16>
    tpu.vector_store %arg5[%c1, %c0_5, %c0_6], %1 {strides = array<i32>} : memref<18x18x128xbf16, #tpu.memory_space<vmem>>, vector<16x1x128xbf16>,
    %c1_7 = arith.constant 1 : index
    %c17_8 = arith.constant 17 : index
    %c0_9 = arith.constant 0 : index
    %5 = vector.load %arg5[%c1_7, %c17_8, %c0_9] : memref<18x18x128xbf16, #tpu.memory_space<vmem>>, vector<16x1x128xbf16>
    tpu.vector_store %arg5[%c1_7, %c17_8, %c0_9], %1 {strides = array<i32>} : memref<18x18x128xbf16, #tpu.memory_space<vmem>>, vector<16x1x128xbf16>,
    %c0_10 = arith.constant 0 : index
    %c0_11 = arith.constant 0 : index
    %c0_12 = arith.constant 0 : index
    %c0_13 = arith.constant 0 : index
    %6 = vector.load %arg1[%c0_10, %c0_11, %c0_12, %c0_13] : memref<1x16x16x128xbf16, #tpu.memory_space<vmem>>, vector<1x16x16x128xbf16>
    %7 = vector.shape_cast %6 : vector<1x16x16x128xbf16> to vector<16x16x128xbf16>
    %c1_14 = arith.constant 1 : index
    %c1_15 = arith.constant 1 : index
    %c0_16 = arith.constant 0 : index
    %8 = vector.load %arg5[%c1_14, %c1_15, %c0_16] : memref<18x18x128xbf16, #tpu.memory_space<vmem>>, vector<16x16x128xbf16>
    tpu.vector_store %arg5[%c1_14, %c1_15, %c0_16], %7 {strides = array<i32>} : memref<18x18x128xbf16, #tpu.memory_space<vmem>>, vector<16x16x128xbf16>,
    %c0_17 = arith.constant 0 : index
    %c0_18 = arith.constant 0 : index
    %c0_19 = arith.constant 0 : index
    %9 = vector.load %arg5[%c0_17, %c0_18, %c0_19] : memref<18x18x128xbf16, #tpu.memory_space<vmem>>, vector<16x18x128xbf16>
    %10 = vector.extract_strided_slice %9 {offsets = [0, 0, 0], sizes = [16, 16, 128], strides = [1, 1, 1]} : vector<16x18x128xbf16> to vector<16x16x128xbf16>
    %11 = vector.extract_strided_slice %9 {offsets = [0, 1, 0], sizes = [16, 16, 128], strides = [1, 1, 1]} : vector<16x18x128xbf16> to vector<16x16x128xbf16>
    %12 = vector.extract_strided_slice %9 {offsets = [0, 2, 0], sizes = [16, 16, 128], strides = [1, 1, 1]} : vector<16x18x128xbf16> to vector<16x16x128xbf16>
    %13 = tpu.concatenate %10, %11, %12 in 2 : vector<16x16x128xbf16>, vector<16x16x128xbf16>, vector<16x16x128xbf16> -> vector<16x16x384xbf16>
    %14 = vector.shape_cast %13 : vector<16x16x384xbf16> to vector<256x384xbf16>
    %c0_20 = arith.constant 0 : index
    %c0_21 = arith.constant 0 : index
    %c0_22 = arith.constant 0 : index
    %15 = vector.load %arg2[%c0_20, %c0_21, %c0_22] : memref<3x384x128xbf16, #tpu.memory_space<vmem>>, vector<1x384x128xbf16>
    %16 = vector.shape_cast %15 : vector<1x384x128xbf16> to vector<384x128xbf16>
    %cst_23 = arith.constant dense<0.000000e+00> : vector<256x128xf32>
    %17 = tpu.matmul %14, %16, %cst_23 {dimension_numbers = #tpu.dot_dimension_numbers<[1], [0], [0], [1], [0, 0, 1, 1], [], []>} : vector<256x384xbf16>, vector<384x128xbf16>, vector<256x128xf32> -> vector<256x128xf32>
    %c0_24 = arith.constant 0 : index
    %c0_25 = arith.constant 0 : index
    %18 = vector.load %arg6[%c0_24, %c0_25] : memref<256x128xf32, #tpu.memory_space<vmem>>, vector<256x128xf32>
    tpu.vector_store %arg6[%c0_24, %c0_25], %17 {strides = array<i32>} : memref<256x128xf32, #tpu.memory_space<vmem>>, vector<256x128xf32>,
    %c1_26 = arith.constant 1 : index
    %c0_27 = arith.constant 0 : index
    %c0_28 = arith.constant 0 : index
    %19 = vector.load %arg5[%c1_26, %c0_27, %c0_28] : memref<18x18x128xbf16, #tpu.memory_space<vmem>>, vector<16x18x128xbf16>
    %20 = vector.extract_strided_slice %19 {offsets = [0, 0, 0], sizes = [16, 16, 128], strides = [1, 1, 1]} : vector<16x18x128xbf16> to vector<16x16x128xbf16>
    %21 = vector.extract_strided_slice %19 {offsets = [0, 1, 0], sizes = [16, 16, 128], strides = [1, 1, 1]} : vector<16x18x128xbf16> to vector<16x16x128xbf16>
    %22 = vector.extract_strided_slice %19 {offsets = [0, 2, 0], sizes = [16, 16, 128], strides = [1, 1, 1]} : vector<16x18x128xbf16> to vector<16x16x128xbf16>
    %23 = tpu.concatenate %20, %21, %22 in 2 : vector<16x16x128xbf16>, vector<16x16x128xbf16>, vector<16x16x128xbf16> -> vector<16x16x384xbf16>
    %24 = vector.shape_cast %23 : vector<16x16x384xbf16> to vector<256x384xbf16>
    %c1_29 = arith.constant 1 : index
    %c0_30 = arith.constant 0 : index
    %c0_31 = arith.constant 0 : index
    %25 = vector.load %arg2[%c1_29, %c0_30, %c0_31] : memref<3x384x128xbf16, #tpu.memory_space<vmem>>, vector<1x384x128xbf16>
    %26 = vector.shape_cast %25 : vector<1x384x128xbf16> to vector<384x128xbf16>
    %cst_32 = arith.constant dense<0.000000e+00> : vector<256x128xf32>
    %27 = tpu.matmul %24, %26, %cst_32 {dimension_numbers = #tpu.dot_dimension_numbers<[1], [0], [0], [1], [0, 0, 1, 1], [], []>} : vector<256x384xbf16>, vector<384x128xbf16>, vector<256x128xf32> -> vector<256x128xf32>
    %c0_33 = arith.constant 0 : index
    %c0_34 = arith.constant 0 : index
    %28 = vector.load %arg6[%c0_33, %c0_34] : memref<256x128xf32, #tpu.memory_space<vmem>>, vector<256x128xf32>
    %29 = arith.addf %28, %27 : vector<256x128xf32>
    %c0_35 = arith.constant 0 : index
    %c0_36 = arith.constant 0 : index
    %30 = vector.load %arg6[%c0_35, %c0_36] : memref<256x128xf32, #tpu.memory_space<vmem>>, vector<256x128xf32>
    tpu.vector_store %arg6[%c0_35, %c0_36], %29 {strides = array<i32>} : memref<256x128xf32, #tpu.memory_space<vmem>>, vector<256x128xf32>,
    %c2 = arith.constant 2 : index
    %c0_37 = arith.constant 0 : index
    %c0_38 = arith.constant 0 : index
    %31 = vector.load %arg5[%c2, %c0_37, %c0_38] : memref<18x18x128xbf16, #tpu.memory_space<vmem>>, vector<16x18x128xbf16>
    %32 = vector.extract_strided_slice %31 {offsets = [0, 0, 0], sizes = [16, 16, 128], strides = [1, 1, 1]} : vector<16x18x128xbf16> to vector<16x16x128xbf16>
    %33 = vector.extract_strided_slice %31 {offsets = [0, 1, 0], sizes = [16, 16, 128], strides = [1, 1, 1]} : vector<16x18x128xbf16> to vector<16x16x128xbf16>
    %34 = vector.extract_strided_slice %31 {offsets = [0, 2, 0], sizes = [16, 16, 128], strides = [1, 1, 1]} : vector<16x18x128xbf16> to vector<16x16x128xbf16>
    %35 = tpu.concatenate %32, %33, %34 in 2 : vector<16x16x128xbf16>, vector<16x16x128xbf16>, vector<16x16x128xbf16> -> vector<16x16x384xbf16>
    %36 = vector.shape_cast %35 : vector<16x16x384xbf16> to vector<256x384xbf16>
    %c2_39 = arith.constant 2 : index
    %c0_40 = arith.constant 0 : index
    %c0_41 = arith.constant 0 : index
    %37 = vector.load %arg2[%c2_39, %c0_40, %c0_41] : memref<3x384x128xbf16, #tpu.memory_space<vmem>>, vector<1x384x128xbf16>
    %38 = vector.shape_cast %37 : vector<1x384x128xbf16> to vector<384x128xbf16>
    %cst_42 = arith.constant dense<0.000000e+00> : vector<256x128xf32>
    %39 = tpu.matmul %36, %38, %cst_42 {dimension_numbers = #tpu.dot_dimension_numbers<[1], [0], [0], [1], [0, 0, 1, 1], [], []>} : vector<256x384xbf16>, vector<384x128xbf16>, vector<256x128xf32> -> vector<256x128xf32>
    %c0_43 = arith.constant 0 : index
    %c0_44 = arith.constant 0 : index
    %40 = vector.load %arg6[%c0_43, %c0_44] : memref<256x128xf32, #tpu.memory_space<vmem>>, vector<256x128xf32>
    %41 = arith.addf %40, %39 : vector<256x128xf32>
    %c0_45 = arith.constant 0 : index
    %c0_46 = arith.constant 0 : index
    %42 = vector.load %arg6[%c0_45, %c0_46] : memref<256x128xf32, #tpu.memory_space<vmem>>, vector<256x128xf32>
    tpu.vector_store %arg6[%c0_45, %c0_46], %41 {strides = array<i32>} : memref<256x128xf32, #tpu.memory_space<vmem>>, vector<256x128xf32>,
    %c0_47 = arith.constant 0 : index
    %c0_48 = arith.constant 0 : index
    %43 = vector.load %arg6[%c0_47, %c0_48] : memref<256x128xf32, #tpu.memory_space<vmem>>, vector<256x128xf32>
    %44 = vector.shape_cast %43 : vector<256x128xf32> to vector<1x16x16x128xf32>
    %45 = arith.truncf %44 : vector<1x16x16x128xf32> to vector<1x16x16x128xbf16>
    %c0_49 = arith.constant 0 : index
    %c0_50 = arith.constant 0 : index
    %c0_51 = arith.constant 0 : index
    %c0_52 = arith.constant 0 : index
    %46 = vector.load %arg3[%c0_49, %c0_50, %c0_51, %c0_52] : memref<1x16x16x128xbf16, #tpu.memory_space<vmem>>, vector<1x16x16x128xbf16>
    tpu.vector_store %arg3[%c0_49, %c0_50, %c0_51, %c0_52], %45 {strides = array<i32>} : memref<1x16x16x128xbf16, #tpu.memory_space<vmem>>, vector<1x16x16x128xbf16>,
    %cst_53 = arith.constant dense<0.000000e+00> : vector<128xf32>
    %47 = vector.multi_reduction <add>, %43, %cst_53 [0] : vector<256x128xf32> to vector<128xf32>
    %48 = vector.shape_cast %47 : vector<128xf32> to vector<1x128xf32>
    %49 = arith.mulf %43, %43 : vector<256x128xf32>
    %cst_54 = arith.constant dense<0.000000e+00> : vector<128xf32>
    %50 = vector.multi_reduction <add>, %49, %cst_54 [0] : vector<256x128xf32> to vector<128xf32>
    %51 = vector.shape_cast %50 : vector<128xf32> to vector<1x128xf32>
    %cst_55 = arith.constant 0.000000e+00 : f32
    %52 = vector.broadcast %cst_55 : f32 to vector<6x128xf32>
    %53 = tpu.concatenate %48, %51, %52 in 0 : vector<1x128xf32>, vector<1x128xf32>, vector<6x128xf32> -> vector<8x128xf32>
    %54 = vector.shape_cast %53 : vector<8x128xf32> to vector<1x8x128xf32>
    %c0_56 = arith.constant 0 : index
    %c0_57 = arith.constant 0 : index
    %c0_58 = arith.constant 0 : index
    %55 = vector.load %arg4[%c0_56, %c0_57, %c0_58] : memref<1x8x128xf32, #tpu.memory_space<vmem>>, vector<1x8x128xf32>
    tpu.vector_store %arg4[%c0_56, %c0_57, %c0_58], %54 {strides = array<i32>} : memref<1x8x128xf32, #tpu.memory_space<vmem>>, vector<1x8x128xf32>,
    return
  }
  func.func @transform_0(%arg0: i32) -> (i32, i32, i32, i32) {
    %c0_i32 = arith.constant 0 : i32
    %c0_i32_0 = arith.constant 0 : i32
    %c0_i32_1 = arith.constant 0 : i32
    %c0_i32_2 = arith.constant 0 : i32
    return %arg0, %c0_i32, %c0_i32_0, %c0_i32_1 : i32, i32, i32, i32
  }
  func.func @transform_1(%arg0: i32) -> (i32, i32, i32) {
    %c0_i32 = arith.constant 0 : i32
    %c0_i32_0 = arith.constant 0 : i32
    %c0_i32_1 = arith.constant 0 : i32
    %c0_i32_2 = arith.constant 0 : i32
    return %c0_i32, %c0_i32_0, %c0_i32_1 : i32, i32, i32
  }
  func.func @transform_2(%arg0: i32) -> (i32, i32, i32, i32) {
    %c0_i32 = arith.constant 0 : i32
    %c0_i32_0 = arith.constant 0 : i32
    %c0_i32_1 = arith.constant 0 : i32
    %c0_i32_2 = arith.constant 0 : i32
    return %arg0, %c0_i32, %c0_i32_0, %c0_i32_1 : i32, i32, i32, i32
  }
  func.func @transform_3(%arg0: i32) -> (i32, i32, i32) {
    %c0_i32 = arith.constant 0 : i32
    %c0_i32_0 = arith.constant 0 : i32
    %c0_i32_1 = arith.constant 0 : i32
    return %arg0, %c0_i32, %c0_i32_0 : i32, i32, i32
  }
}

module attributes {stable_mosaic.version = 11 : i64} {
  func.func @_bn_add_relu_kernel(%arg0: i32, %arg1: memref<1x16x16x128xbf16, #tpu.memory_space<vmem>>, %arg2: memref<1x128xf32, #tpu.memory_space<vmem>>, %arg3: memref<1x128xf32, #tpu.memory_space<vmem>>, %arg4: memref<1x16x16x128xbf16, #tpu.memory_space<vmem>>, %arg5: memref<1x16x16x128xf32, #tpu.memory_space<vmem>>) attributes {dimension_semantics = [#tpu.dimension_semantics<parallel>], iteration_bounds = array<i64: 2>, scalar_prefetch = 0 : i64, scratch_operands = 0 : i64, tpu.core_type = #tpu.core_type<tc>, window_params = [{transform_indices = @transform_0, window_bounds = array<i64: 1, 16, 16, 128>}, {pipeline_mode = #tpu.pipeline_mode<synchronous>, transform_indices = @transform_1, window_bounds = array<i64: 1, 128>}, {pipeline_mode = #tpu.pipeline_mode<synchronous>, transform_indices = @transform_2, window_bounds = array<i64: 1, 128>}, {transform_indices = @transform_3, window_bounds = array<i64: 1, 16, 16, 128>}, {transform_indices = @transform_4, window_bounds = array<i64: 1, 16, 16, 128>}]} {
    %c0 = arith.constant 0 : index
    %c0_0 = arith.constant 0 : index
    %c0_1 = arith.constant 0 : index
    %c0_2 = arith.constant 0 : index
    %0 = vector.load %arg1[%c0, %c0_0, %c0_1, %c0_2] : memref<1x16x16x128xbf16, #tpu.memory_space<vmem>>, vector<1x16x16x128xbf16>
    %1 = vector.shape_cast %0 : vector<1x16x16x128xbf16> to vector<16x16x128xbf16>
    %2 = arith.extf %1 : vector<16x16x128xbf16> to vector<16x16x128xf32>
    %c0_3 = arith.constant 0 : index
    %c0_4 = arith.constant 0 : index
    %3 = vector.load %arg2[%c0_3, %c0_4] : memref<1x128xf32, #tpu.memory_space<vmem>>, vector<1x128xf32>
    %4 = vector.shape_cast %3 : vector<1x128xf32> to vector<1x1x128xf32>
    %5 = vector.broadcast %4 : vector<1x1x128xf32> to vector<16x16x128xf32>
    %6 = arith.mulf %2, %5 : vector<16x16x128xf32>
    %c0_5 = arith.constant 0 : index
    %c0_6 = arith.constant 0 : index
    %7 = vector.load %arg3[%c0_5, %c0_6] : memref<1x128xf32, #tpu.memory_space<vmem>>, vector<1x128xf32>
    %8 = vector.shape_cast %7 : vector<1x128xf32> to vector<1x1x128xf32>
    %9 = vector.broadcast %8 : vector<1x1x128xf32> to vector<16x16x128xf32>
    %10 = arith.addf %6, %9 : vector<16x16x128xf32>
    %c0_7 = arith.constant 0 : index
    %c0_8 = arith.constant 0 : index
    %c0_9 = arith.constant 0 : index
    %c0_10 = arith.constant 0 : index
    %11 = vector.load %arg4[%c0_7, %c0_8, %c0_9, %c0_10] : memref<1x16x16x128xbf16, #tpu.memory_space<vmem>>, vector<1x16x16x128xbf16>
    %12 = vector.shape_cast %11 : vector<1x16x16x128xbf16> to vector<16x16x128xbf16>
    %13 = arith.extf %12 : vector<16x16x128xbf16> to vector<16x16x128xf32>
    %14 = arith.addf %10, %13 : vector<16x16x128xf32>
    %cst = arith.constant 0.000000e+00 : f32
    %15 = vector.broadcast %cst : f32 to vector<16x16x128xf32>
    %16 = arith.maximumf %14, %15 : vector<16x16x128xf32>
    %17 = vector.shape_cast %16 : vector<16x16x128xf32> to vector<1x16x16x128xf32>
    %c0_11 = arith.constant 0 : index
    %c0_12 = arith.constant 0 : index
    %c0_13 = arith.constant 0 : index
    %c0_14 = arith.constant 0 : index
    %18 = vector.load %arg5[%c0_11, %c0_12, %c0_13, %c0_14] : memref<1x16x16x128xf32, #tpu.memory_space<vmem>>, vector<1x16x16x128xf32>
    tpu.vector_store %arg5[%c0_11, %c0_12, %c0_13, %c0_14], %17 {strides = array<i32>} : memref<1x16x16x128xf32, #tpu.memory_space<vmem>>, vector<1x16x16x128xf32>,
    return
  }
  func.func @transform_0(%arg0: i32) -> (i32, i32, i32, i32) {
    %c0_i32 = arith.constant 0 : i32
    %c0_i32_0 = arith.constant 0 : i32
    %c0_i32_1 = arith.constant 0 : i32
    %c0_i32_2 = arith.constant 0 : i32
    return %arg0, %c0_i32, %c0_i32_0, %c0_i32_1 : i32, i32, i32, i32
  }
  func.func @transform_1(%arg0: i32) -> (i32, i32) {
    %c0_i32 = arith.constant 0 : i32
    %c0_i32_0 = arith.constant 0 : i32
    %c0_i32_1 = arith.constant 0 : i32
    return %c0_i32, %c0_i32_0 : i32, i32
  }
  func.func @transform_2(%arg0: i32) -> (i32, i32) {
    %c0_i32 = arith.constant 0 : i32
    %c0_i32_0 = arith.constant 0 : i32
    %c0_i32_1 = arith.constant 0 : i32
    return %c0_i32, %c0_i32_0 : i32, i32
  }
  func.func @transform_3(%arg0: i32) -> (i32, i32, i32, i32) {
    %c0_i32 = arith.constant 0 : i32
    %c0_i32_0 = arith.constant 0 : i32
    %c0_i32_1 = arith.constant 0 : i32
    %c0_i32_2 = arith.constant 0 : i32
    return %arg0, %c0_i32, %c0_i32_0, %c0_i32_1 : i32, i32, i32, i32
  }
  func.func @transform_4(%arg0: i32) -> (i32, i32, i32, i32) {
    %c0_i32 = arith.constant 0 : i32
    %c0_i32_0 = arith.constant 0 : i32
    %c0_i32_1 = arith.constant 0 : i32
    %c0_i32_2 = arith.constant 0 : i32
    return %arg0, %c0_i32, %c0_i32_0, %c0_i32_1 : i32, i32, i32, i32
  }
}

module attributes {stable_mosaic.version = 11 : i64} {
  func.func @_bn_relu_conv3x3_stats_kernel(%arg0: i32, %arg1: memref<1x16x16x128xbf16, #tpu.memory_space<vmem>>, %arg2: memref<1x128xf32, #tpu.memory_space<vmem>>, %arg3: memref<1x128xf32, #tpu.memory_space<vmem>>, %arg4: memref<3x384x128xbf16, #tpu.memory_space<vmem>>, %arg5: memref<1x16x16x128xbf16, #tpu.memory_space<vmem>>, %arg6: memref<1x8x128xf32, #tpu.memory_space<vmem>>, %arg7: memref<18x18x128xbf16, #tpu.memory_space<vmem>>, %arg8: memref<256x128xf32, #tpu.memory_space<vmem>>) attributes {dimension_semantics = [#tpu.dimension_semantics<parallel>], iteration_bounds = array<i64: 2>, scalar_prefetch = 0 : i64, scratch_operands = 2 : i64, tpu.core_type = #tpu.core_type<tc>, window_params = [{transform_indices = @transform_0, window_bounds = array<i64: 1, 16, 16, 128>}, {pipeline_mode = #tpu.pipeline_mode<synchronous>, transform_indices = @transform_1, window_bounds = array<i64: 1, 128>}, {pipeline_mode = #tpu.pipeline_mode<synchronous>, transform_indices = @transform_2, window_bounds = array<i64: 1, 128>}, {pipeline_mode = #tpu.pipeline_mode<synchronous>, transform_indices = @transform_3, window_bounds = array<i64: 3, 384, 128>}, {transform_indices = @transform_4, window_bounds = array<i64: 1, 16, 16, 128>}, {transform_indices = @transform_5, window_bounds = array<i64: 1, 8, 128>}]} {
    %cst = arith.constant 0.000000e+00 : bf16
    %0 = vector.broadcast %cst : bf16 to vector<1x18x128xbf16>
    %cst_0 = arith.constant 0.000000e+00 : bf16
    %1 = vector.broadcast %cst_0 : bf16 to vector<16x1x128xbf16>
    %c0 = arith.constant 0 : index
    %c0_1 = arith.constant 0 : index
    %c0_2 = arith.constant 0 : index
    %2 = vector.load %arg7[%c0, %c0_1, %c0_2] : memref<18x18x128xbf16, #tpu.memory_space<vmem>>, vector<1x18x128xbf16>
    tpu.vector_store %arg7[%c0, %c0_1, %c0_2], %0 {strides = array<i32>} : memref<18x18x128xbf16, #tpu.memory_space<vmem>>, vector<1x18x128xbf16>,
    %c17 = arith.constant 17 : index
    %c0_3 = arith.constant 0 : index
    %c0_4 = arith.constant 0 : index
    %3 = vector.load %arg7[%c17, %c0_3, %c0_4] : memref<18x18x128xbf16, #tpu.memory_space<vmem>>, vector<1x18x128xbf16>
    tpu.vector_store %arg7[%c17, %c0_3, %c0_4], %0 {strides = array<i32>} : memref<18x18x128xbf16, #tpu.memory_space<vmem>>, vector<1x18x128xbf16>,
    %c1 = arith.constant 1 : index
    %c0_5 = arith.constant 0 : index
    %c0_6 = arith.constant 0 : index
    %4 = vector.load %arg7[%c1, %c0_5, %c0_6] : memref<18x18x128xbf16, #tpu.memory_space<vmem>>, vector<16x1x128xbf16>
    tpu.vector_store %arg7[%c1, %c0_5, %c0_6], %1 {strides = array<i32>} : memref<18x18x128xbf16, #tpu.memory_space<vmem>>, vector<16x1x128xbf16>,
    %c1_7 = arith.constant 1 : index
    %c17_8 = arith.constant 17 : index
    %c0_9 = arith.constant 0 : index
    %5 = vector.load %arg7[%c1_7, %c17_8, %c0_9] : memref<18x18x128xbf16, #tpu.memory_space<vmem>>, vector<16x1x128xbf16>
    tpu.vector_store %arg7[%c1_7, %c17_8, %c0_9], %1 {strides = array<i32>} : memref<18x18x128xbf16, #tpu.memory_space<vmem>>, vector<16x1x128xbf16>,
    %c0_10 = arith.constant 0 : index
    %c0_11 = arith.constant 0 : index
    %c0_12 = arith.constant 0 : index
    %c0_13 = arith.constant 0 : index
    %6 = vector.load %arg1[%c0_10, %c0_11, %c0_12, %c0_13] : memref<1x16x16x128xbf16, #tpu.memory_space<vmem>>, vector<1x16x16x128xbf16>
    %7 = vector.shape_cast %6 : vector<1x16x16x128xbf16> to vector<16x16x128xbf16>
    %8 = arith.extf %7 : vector<16x16x128xbf16> to vector<16x16x128xf32>
    %c0_14 = arith.constant 0 : index
    %c0_15 = arith.constant 0 : index
    %9 = vector.load %arg2[%c0_14, %c0_15] : memref<1x128xf32, #tpu.memory_space<vmem>>, vector<1x128xf32>
    %10 = vector.shape_cast %9 : vector<1x128xf32> to vector<1x1x128xf32>
    %11 = vector.broadcast %10 : vector<1x1x128xf32> to vector<16x16x128xf32>
    %12 = arith.mulf %8, %11 : vector<16x16x128xf32>
    %c0_16 = arith.constant 0 : index
    %c0_17 = arith.constant 0 : index
    %13 = vector.load %arg3[%c0_16, %c0_17] : memref<1x128xf32, #tpu.memory_space<vmem>>, vector<1x128xf32>
    %14 = vector.shape_cast %13 : vector<1x128xf32> to vector<1x1x128xf32>
    %15 = vector.broadcast %14 : vector<1x1x128xf32> to vector<16x16x128xf32>
    %16 = arith.addf %12, %15 : vector<16x16x128xf32>
    %cst_18 = arith.constant 0.000000e+00 : f32
    %17 = vector.broadcast %cst_18 : f32 to vector<16x16x128xf32>
    %18 = arith.maximumf %16, %17 : vector<16x16x128xf32>
    %19 = arith.truncf %18 : vector<16x16x128xf32> to vector<16x16x128xbf16>
    %c1_19 = arith.constant 1 : index
    %c1_20 = arith.constant 1 : index
    %c0_21 = arith.constant 0 : index
    %20 = vector.load %arg7[%c1_19, %c1_20, %c0_21] : memref<18x18x128xbf16, #tpu.memory_space<vmem>>, vector<16x16x128xbf16>
    tpu.vector_store %arg7[%c1_19, %c1_20, %c0_21], %19 {strides = array<i32>} : memref<18x18x128xbf16, #tpu.memory_space<vmem>>, vector<16x16x128xbf16>,
    %c0_22 = arith.constant 0 : index
    %c0_23 = arith.constant 0 : index
    %c0_24 = arith.constant 0 : index
    %21 = vector.load %arg7[%c0_22, %c0_23, %c0_24] : memref<18x18x128xbf16, #tpu.memory_space<vmem>>, vector<16x18x128xbf16>
    %22 = vector.extract_strided_slice %21 {offsets = [0, 0, 0], sizes = [16, 16, 128], strides = [1, 1, 1]} : vector<16x18x128xbf16> to vector<16x16x128xbf16>
    %23 = vector.extract_strided_slice %21 {offsets = [0, 1, 0], sizes = [16, 16, 128], strides = [1, 1, 1]} : vector<16x18x128xbf16> to vector<16x16x128xbf16>
    %24 = vector.extract_strided_slice %21 {offsets = [0, 2, 0], sizes = [16, 16, 128], strides = [1, 1, 1]} : vector<16x18x128xbf16> to vector<16x16x128xbf16>
    %25 = tpu.concatenate %22, %23, %24 in 2 : vector<16x16x128xbf16>, vector<16x16x128xbf16>, vector<16x16x128xbf16> -> vector<16x16x384xbf16>
    %26 = vector.shape_cast %25 : vector<16x16x384xbf16> to vector<256x384xbf16>
    %c0_25 = arith.constant 0 : index
    %c0_26 = arith.constant 0 : index
    %c0_27 = arith.constant 0 : index
    %27 = vector.load %arg4[%c0_25, %c0_26, %c0_27] : memref<3x384x128xbf16, #tpu.memory_space<vmem>>, vector<1x384x128xbf16>
    %28 = vector.shape_cast %27 : vector<1x384x128xbf16> to vector<384x128xbf16>
    %cst_28 = arith.constant dense<0.000000e+00> : vector<256x128xf32>
    %29 = tpu.matmul %26, %28, %cst_28 {dimension_numbers = #tpu.dot_dimension_numbers<[1], [0], [0], [1], [0, 0, 1, 1], [], []>} : vector<256x384xbf16>, vector<384x128xbf16>, vector<256x128xf32> -> vector<256x128xf32>
    %c0_29 = arith.constant 0 : index
    %c0_30 = arith.constant 0 : index
    %30 = vector.load %arg8[%c0_29, %c0_30] : memref<256x128xf32, #tpu.memory_space<vmem>>, vector<256x128xf32>
    tpu.vector_store %arg8[%c0_29, %c0_30], %29 {strides = array<i32>} : memref<256x128xf32, #tpu.memory_space<vmem>>, vector<256x128xf32>,
    %c1_31 = arith.constant 1 : index
    %c0_32 = arith.constant 0 : index
    %c0_33 = arith.constant 0 : index
    %31 = vector.load %arg7[%c1_31, %c0_32, %c0_33] : memref<18x18x128xbf16, #tpu.memory_space<vmem>>, vector<16x18x128xbf16>
    %32 = vector.extract_strided_slice %31 {offsets = [0, 0, 0], sizes = [16, 16, 128], strides = [1, 1, 1]} : vector<16x18x128xbf16> to vector<16x16x128xbf16>
    %33 = vector.extract_strided_slice %31 {offsets = [0, 1, 0], sizes = [16, 16, 128], strides = [1, 1, 1]} : vector<16x18x128xbf16> to vector<16x16x128xbf16>
    %34 = vector.extract_strided_slice %31 {offsets = [0, 2, 0], sizes = [16, 16, 128], strides = [1, 1, 1]} : vector<16x18x128xbf16> to vector<16x16x128xbf16>
    %35 = tpu.concatenate %32, %33, %34 in 2 : vector<16x16x128xbf16>, vector<16x16x128xbf16>, vector<16x16x128xbf16> -> vector<16x16x384xbf16>
    %36 = vector.shape_cast %35 : vector<16x16x384xbf16> to vector<256x384xbf16>
    %c1_34 = arith.constant 1 : index
    %c0_35 = arith.constant 0 : index
    %c0_36 = arith.constant 0 : index
    %37 = vector.load %arg4[%c1_34, %c0_35, %c0_36] : memref<3x384x128xbf16, #tpu.memory_space<vmem>>, vector<1x384x128xbf16>
    %38 = vector.shape_cast %37 : vector<1x384x128xbf16> to vector<384x128xbf16>
    %cst_37 = arith.constant dense<0.000000e+00> : vector<256x128xf32>
    %39 = tpu.matmul %36, %38, %cst_37 {dimension_numbers = #tpu.dot_dimension_numbers<[1], [0], [0], [1], [0, 0, 1, 1], [], []>} : vector<256x384xbf16>, vector<384x128xbf16>, vector<256x128xf32> -> vector<256x128xf32>
    %c0_38 = arith.constant 0 : index
    %c0_39 = arith.constant 0 : index
    %40 = vector.load %arg8[%c0_38, %c0_39] : memref<256x128xf32, #tpu.memory_space<vmem>>, vector<256x128xf32>
    %41 = arith.addf %40, %39 : vector<256x128xf32>
    %c0_40 = arith.constant 0 : index
    %c0_41 = arith.constant 0 : index
    %42 = vector.load %arg8[%c0_40, %c0_41] : memref<256x128xf32, #tpu.memory_space<vmem>>, vector<256x128xf32>
    tpu.vector_store %arg8[%c0_40, %c0_41], %41 {strides = array<i32>} : memref<256x128xf32, #tpu.memory_space<vmem>>, vector<256x128xf32>,
    %c2 = arith.constant 2 : index
    %c0_42 = arith.constant 0 : index
    %c0_43 = arith.constant 0 : index
    %43 = vector.load %arg7[%c2, %c0_42, %c0_43] : memref<18x18x128xbf16, #tpu.memory_space<vmem>>, vector<16x18x128xbf16>
    %44 = vector.extract_strided_slice %43 {offsets = [0, 0, 0], sizes = [16, 16, 128], strides = [1, 1, 1]} : vector<16x18x128xbf16> to vector<16x16x128xbf16>
    %45 = vector.extract_strided_slice %43 {offsets = [0, 1, 0], sizes = [16, 16, 128], strides = [1, 1, 1]} : vector<16x18x128xbf16> to vector<16x16x128xbf16>
    %46 = vector.extract_strided_slice %43 {offsets = [0, 2, 0], sizes = [16, 16, 128], strides = [1, 1, 1]} : vector<16x18x128xbf16> to vector<16x16x128xbf16>
    %47 = tpu.concatenate %44, %45, %46 in 2 : vector<16x16x128xbf16>, vector<16x16x128xbf16>, vector<16x16x128xbf16> -> vector<16x16x384xbf16>
    %48 = vector.shape_cast %47 : vector<16x16x384xbf16> to vector<256x384xbf16>
    %c2_44 = arith.constant 2 : index
    %c0_45 = arith.constant 0 : index
    %c0_46 = arith.constant 0 : index
    %49 = vector.load %arg4[%c2_44, %c0_45, %c0_46] : memref<3x384x128xbf16, #tpu.memory_space<vmem>>, vector<1x384x128xbf16>
    %50 = vector.shape_cast %49 : vector<1x384x128xbf16> to vector<384x128xbf16>
    %cst_47 = arith.constant dense<0.000000e+00> : vector<256x128xf32>
    %51 = tpu.matmul %48, %50, %cst_47 {dimension_numbers = #tpu.dot_dimension_numbers<[1], [0], [0], [1], [0, 0, 1, 1], [], []>} : vector<256x384xbf16>, vector<384x128xbf16>, vector<256x128xf32> -> vector<256x128xf32>
    %c0_48 = arith.constant 0 : index
    %c0_49 = arith.constant 0 : index
    %52 = vector.load %arg8[%c0_48, %c0_49] : memref<256x128xf32, #tpu.memory_space<vmem>>, vector<256x128xf32>
    %53 = arith.addf %52, %51 : vector<256x128xf32>
    %c0_50 = arith.constant 0 : index
    %c0_51 = arith.constant 0 : index
    %54 = vector.load %arg8[%c0_50, %c0_51] : memref<256x128xf32, #tpu.memory_space<vmem>>, vector<256x128xf32>
    tpu.vector_store %arg8[%c0_50, %c0_51], %53 {strides = array<i32>} : memref<256x128xf32, #tpu.memory_space<vmem>>, vector<256x128xf32>,
    %c0_52 = arith.constant 0 : index
    %c0_53 = arith.constant 0 : index
    %55 = vector.load %arg8[%c0_52, %c0_53] : memref<256x128xf32, #tpu.memory_space<vmem>>, vector<256x128xf32>
    %56 = vector.shape_cast %55 : vector<256x128xf32> to vector<1x16x16x128xf32>
    %57 = arith.truncf %56 : vector<1x16x16x128xf32> to vector<1x16x16x128xbf16>
    %c0_54 = arith.constant 0 : index
    %c0_55 = arith.constant 0 : index
    %c0_56 = arith.constant 0 : index
    %c0_57 = arith.constant 0 : index
    %58 = vector.load %arg5[%c0_54, %c0_55, %c0_56, %c0_57] : memref<1x16x16x128xbf16, #tpu.memory_space<vmem>>, vector<1x16x16x128xbf16>
    tpu.vector_store %arg5[%c0_54, %c0_55, %c0_56, %c0_57], %57 {strides = array<i32>} : memref<1x16x16x128xbf16, #tpu.memory_space<vmem>>, vector<1x16x16x128xbf16>,
    %cst_58 = arith.constant dense<0.000000e+00> : vector<128xf32>
    %59 = vector.multi_reduction <add>, %55, %cst_58 [0] : vector<256x128xf32> to vector<128xf32>
    %60 = vector.shape_cast %59 : vector<128xf32> to vector<1x128xf32>
    %61 = arith.mulf %55, %55 : vector<256x128xf32>
    %cst_59 = arith.constant dense<0.000000e+00> : vector<128xf32>
    %62 = vector.multi_reduction <add>, %61, %cst_59 [0] : vector<256x128xf32> to vector<128xf32>
    %63 = vector.shape_cast %62 : vector<128xf32> to vector<1x128xf32>
    %cst_60 = arith.constant 0.000000e+00 : f32
    %64 = vector.broadcast %cst_60 : f32 to vector<6x128xf32>
    %65 = tpu.concatenate %60, %63, %64 in 0 : vector<1x128xf32>, vector<1x128xf32>, vector<6x128xf32> -> vector<8x128xf32>
    %66 = vector.shape_cast %65 : vector<8x128xf32> to vector<1x8x128xf32>
    %c0_61 = arith.constant 0 : index
    %c0_62 = arith.constant 0 : index
    %c0_63 = arith.constant 0 : index
    %67 = vector.load %arg6[%c0_61, %c0_62, %c0_63] : memref<1x8x128xf32, #tpu.memory_space<vmem>>, vector<1x8x128xf32>
    tpu.vector_store %arg6[%c0_61, %c0_62, %c0_63], %66 {strides = array<i32>} : memref<1x8x128xf32, #tpu.memory_space<vmem>>, vector<1x8x128xf32>,
    return
  }
  func.func @transform_0(%arg0: i32) -> (i32, i32, i32, i32) {
    %c0_i32 = arith.constant 0 : i32
    %c0_i32_0 = arith.constant 0 : i32
    %c0_i32_1 = arith.constant 0 : i32
    %c0_i32_2 = arith.constant 0 : i32
    return %arg0, %c0_i32, %c0_i32_0, %c0_i32_1 : i32, i32, i32, i32
  }
  func.func @transform_1(%arg0: i32) -> (i32, i32) {
    %c0_i32 = arith.constant 0 : i32
    %c0_i32_0 = arith.constant 0 : i32
    %c0_i32_1 = arith.constant 0 : i32
    return %c0_i32, %c0_i32_0 : i32, i32
  }
  func.func @transform_2(%arg0: i32) -> (i32, i32) {
    %c0_i32 = arith.constant 0 : i32
    %c0_i32_0 = arith.constant 0 : i32
    %c0_i32_1 = arith.constant 0 : i32
    return %c0_i32, %c0_i32_0 : i32, i32
  }
  func.func @transform_3(%arg0: i32) -> (i32, i32, i32) {
    %c0_i32 = arith.constant 0 : i32
    %c0_i32_0 = arith.constant 0 : i32
    %c0_i32_1 = arith.constant 0 : i32
    %c0_i32_2 = arith.constant 0 : i32
    return %c0_i32, %c0_i32_0, %c0_i32_1 : i32, i32, i32
  }
  func.func @transform_4(%arg0: i32) -> (i32, i32, i32, i32) {
    %c0_i32 = arith.constant 0 : i32
    %c0_i32_0 = arith.constant 0 : i32
    %c0_i32_1 = arith.constant 0 : i32
    %c0_i32_2 = arith.constant 0 : i32
    return %arg0, %c0_i32, %c0_i32_0, %c0_i32_1 : i32, i32, i32, i32
  }
  func.func @transform_5(%arg0: i32) -> (i32, i32, i32) {
    %c0_i32 = arith.constant 0 : i32
    %c0_i32_0 = arith.constant 0 : i32
    %c0_i32_1 = arith.constant 0 : i32
    return %arg0, %c0_i32, %c0_i32_0 : i32, i32, i32
  }
}

</mosaic_0001>

<llo_original>
// kernel: basic_cell_forward.5
$region0: #{basic_cell_forward.5}
  #allocation0 [shape = 'u32[]', space=smem, size = 0x4, offset = 0x4, fixed_abs, tag = 'smem constant byte address 0x4 - core index']
  #allocation1 [shape = 'u32[144,128]{1,0:T(1,128)}', space=vmem, size = 0x12000, scoped, tag = 'internal scratch']
  %s0 = inlined_call_operand.vmem [shape: bf16[2,16,16,128], index: 0, kind: input, shape index: {}]
  %s1 = inlined_call_operand.vmem [shape: f32[1,128], index: 1, kind: input, shape index: {}]
  %s2 = inlined_call_operand.vmem [shape: f32[1,128], index: 2, kind: input, shape index: {}]
  %s3 = inlined_call_operand.vmem [shape: bf16[2,16,16,128], index: 3, kind: input, shape index: {}]
  %s4 = inlined_call_operand.vmem [shape: f32[2,16,16,128], index: 4, kind: output, shape index: {}]
  %s5 = sld [smem:[#allocation0]]
  $region49: #{basic_cell_forward.5} parent=0
    _
  %s7 = ssub.s32 1, %s5
  %s8 = scalar_select 0, %s7, %s5
  loop: start=0, step=1, limit=4
  $region2: #{basic_cell_forward.5} parent=0 // loop_pre_header
    _
  $region3: #{basic_cell_forward.5} parent=0 // loop_header
    %s10 = sphi 0, %s14
    %p11 = scmp.ge.s32.totalorder %s10, 4
    %s20 = sphi 0, %s22
    %s23 = sphi 0, %s20
    %s24 = sphi 0, %s23
    %s40 = sphi 0, %s24
    %s44 = sphi 0, %s44
    %s46 = sphi 0, %s44
    %s47 = sphi 0, %s46
    %s61 = sphi 0, %s47
    %s65 = sphi 0, %s65
    %s67 = sphi 0, %s65
    %s68 = sphi 0, %s67
    %s82 = sphi 0, %s68
    %s88 = sphi 0, %s90
    %s91 = sphi 0, %s88
    %s92 = sphi 0, %s91
    %s108 = sphi 0, %s92
    %s114 = sphi 0, %s116
    %s117 = sphi 0, %s114
    %s118 = sphi 0, %s117
    %s134 = sphi 0, %s118
  $region4: #{basic_cell_forward.5} parent=0 // loop_header_branch
    %13 = sbr.rel (%p11) target = $region8
  $region5: #{basic_cell_forward.5} parent=0 // loop_body
    %s15 = ssub.s32 %s10, 1
    %s16 = ssub.s32 %s10, 2
    %s17 = sadd.s32 %s10, 1
    %s18 = ssub.s32 %s10, %s17
    %p19 = scmp.eq.s32.totalorder %s18, 0
    %s21 = sadd.s32 %s20, 1
    %s22 = scalar_select %p19, %s20, %s21
    %p25 = pneg %p19
    %p26 = scmp.eq.s32.totalorder %s10, 1
    %p27 = por %p25, %p26
    %p28 = scmp.ne.s32.totalorder %s20, %s23
    %p29 = scmp.eq.s32.totalorder %s10, 0
    %p30 = por %p28, %p29
    %p31 = scmp.ne.s32.totalorder %s20, %s23
    %p32 = scmp.eq.s32.totalorder %s15, 1
    %p33 = por %p31, %p32
    %p34 = scmp.ne.s32.totalorder %s23, %s24
    %p35 = scmp.eq.s32.totalorder %s15, 0
    %p36 = por %p34, %p35
    %p37 = scmp.ne.s32.totalorder %s23, %s24
    %p38 = scmp.eq.s32.totalorder %s16, 1
    %p39 = por %p37, %p38
    %p41 = scmp.ne.s32.totalorder %s24, %s40
    %p42 = scmp.eq.s32.totalorder %s16, 0
    %p43 = por %p41, %p42
    %s45 = sadd.s32 %s44, 1
    %p48 = scmp.eq.s32.totalorder %s10, 1
    %p49 = scmp.ne.s32.totalorder %s44, %s46
    %p50 = scmp.eq.s32.totalorder %s10, 0
    %p51 = por %p49, %p50
    %p52 = scmp.ne.s32.totalorder %s44, %s46
    %p53 = scmp.eq.s32.totalorder %s15, 1
    %p54 = por %p52, %p53
    %p55 = scmp.ne.s32.totalorder %s46, %s47
    %p56 = scmp.eq.s32.totalorder %s15, 0
    %p57 = por %p55, %p56
    %p58 = scmp.ne.s32.totalorder %s46, %s47
    %p59 = scmp.eq.s32.totalorder %s16, 1
    %p60 = por %p58, %p59
    %p62 = scmp.ne.s32.totalorder %s47, %s61
    %p63 = scmp.eq.s32.totalorder %s16, 0
    %p64 = por %p62, %p63
    %s66 = sadd.s32 %s65, 1
    %p69 = scmp.eq.s32.totalorder %s10, 1
    %p70 = scmp.ne.s32.totalorder %s65, %s67
    %p71 = scmp.eq.s32.totalorder %s10, 0
    %p72 = por %p70, %p71
    %p73 = scmp.ne.s32.totalorder %s65, %s67
    %p74 = scmp.eq.s32.totalorder %s15, 1
    %p75 = por %p73, %p74
    %p76 = scmp.ne.s32.totalorder %s67, %s68
    %p77 = scmp.eq.s32.totalorder %s15, 0
    %p78 = por %p76, %p77
    %p79 = scmp.ne.s32.totalorder %s67, %s68
    %p80 = scmp.eq.s32.totalorder %s16, 1
    %p81 = por %p79, %p80
    %p83 = scmp.ne.s32.totalorder %s68, %s82
    %p84 = scmp.eq.s32.totalorder %s16, 0
    %p85 = por %p83, %p84
    %s86 = ssub.s32 %s10, %s17
    %p87 = scmp.eq.s32.totalorder %s86, 0
    %s89 = sadd.s32 %s88, 1
    %s90 = scalar_select %p87, %s88, %s89
    %p93 = pneg %p87
    %p94 = scmp.eq.s32.totalorder %s10, 1
    %p95 = por %p93, %p94
    %p96 = scmp.ne.s32.totalorder %s88, %s91
    %p97 = scmp.eq.s32.totalorder %s10, 0
    %p98 = por %p96, %p97
    %p99 = scmp.ne.s32.totalorder %s88, %s91
    %p100 = scmp.eq.s32.totalorder %s15, 1
    %p101 = por %p99, %p100
    %p102 = scmp.ne.s32.totalorder %s91, %s92
    %p103 = scmp.eq.s32.totalorder %s15, 0
    %p104 = por %p102, %p103
    %p105 = scmp.ne.s32.totalorder %s91, %s92
    %p106 = scmp.eq.s32.totalorder %s16, 1
    %p107 = por %p105, %p106
    %p109 = scmp.ne.s32.totalorder %s92, %s108
    %p110 = scmp.eq.s32.totalorder %s16, 0
    %p111 = por %p109, %p110
    %s112 = ssub.s32 %s10, %s17
    %p113 = scmp.eq.s32.totalorder %s112, 0
    %s115 = sadd.s32 %s114, 1
    %s116 = scalar_select %p113, %s114, %s115
    %p119 = pneg %p113
    %p120 = scmp.eq.s32.totalorder %s10, 1
    %p121 = por %p119, %p120
    %p122 = scmp.ne.s32.totalorder %s114, %s117
    %p123 = scmp.eq.s32.totalorder %s10, 0
    %p124 = por %p122, %p123
    %p125 = scmp.ne.s32.totalorder %s114, %s117
    %p126 = scmp.eq.s32.totalorder %s15, 1
    %p127 = por %p125, %p126
    %p128 = scmp.ne.s32.totalorder %s117, %s118
    %p129 = scmp.eq.s32.totalorder %s15, 0
    %p130 = por %p128, %p129
    %p131 = scmp.ne.s32.totalorder %s117, %s118
    %p132 = scmp.eq.s32.totalorder %s16, 1
    %p133 = por %p131, %p132
    %p135 = scmp.ne.s32.totalorder %s118, %s134
    %p136 = scmp.eq.s32.totalorder %s16, 0
    %p137 = por %p135, %p136
    %p138 = scmp.le.s32.totalorder 1, %s10
    %p139 = scmp.lt.s32.totalorder %s10, 3
    %p140 = pnand %p138, %p139
    %p141 = pneg %p140
    // Predicated region
    $region9: #{basic_cell_forward.5} parent=5 // pred_check
      _
    $region10: #{basic_cell_forward.5} parent=5 // pred_check_branch
      %143 = sbr.rel (%p140) target = $region12
    $region11: #{basic_cell_forward.5} parent=5 // pred_region
      %s144 = ssub.s32 %s10, 1
      // Predicated region
      $region13: #{basic_cell_forward.5} parent=11 // pred_check
        %p145 = pneg %p57
      $region14: #{basic_cell_forward.5} parent=11 // pred_check_branch
        %147 = sbr.rel (%p145) target = $region16
      $region15: #{basic_cell_forward.5} parent=11 // pred_region
        _
      $region16: #{basic_cell_forward.5} parent=11 // pred_fallthru
        _
      // Predicated region
      $region17: #{basic_cell_forward.5} parent=11 // pred_check
        %p148 = pneg %p78
      $region18: #{basic_cell_forward.5} parent=11 // pred_check_branch
        %150 = sbr.rel (%p148) target = $region20
      $region19: #{basic_cell_forward.5} parent=11 // pred_region
        _
      $region20: #{basic_cell_forward.5} parent=11 // pred_fallthru
        _
    $region12: #{basic_cell_forward.5} parent=5 // pred_fallthru
      _
    %p151 = scmp.lt.s32.totalorder %s10, 2
    // Predicated region
    $region21: #{basic_cell_forward.5} parent=5 // pred_check
      %p152 = pneg %p151
    $region22: #{basic_cell_forward.5} parent=5 // pred_check_branch
      %154 = sbr.rel (%p152) target = $region24
    $region23: #{basic_cell_forward.5} parent=5 // pred_region
      // Predicated region
      $region25: #{basic_cell_forward.5} parent=23 // pred_check
        %p155 = pneg %p30
      $region26: #{basic_cell_forward.5} parent=23 // pred_check_branch
        %157 = sbr.rel (%p155) target = $region28
      $region27: #{basic_cell_forward.5} parent=23 // pred_region
        %p158 = scmp.lt.s32.totalorder %s10, 1
        %s159 = scalar_select %p158, %s10, 1
        %s160 = smul.addr %s159, 32
        %s161 = smul.addr %s160, 4
        %s162 = scalar_lea.vmem %s0, %s161
      $region28: #{basic_cell_forward.5} parent=23 // pred_fallthru
        _
      // Predicated region
      $region29: #{basic_cell_forward.5} parent=23 // pred_check
        %p163 = pneg %p98
      $region30: #{basic_cell_forward.5} parent=23 // pred_check_branch
        %165 = sbr.rel (%p163) target = $region32
      $region31: #{basic_cell_forward.5} parent=23 // pred_region
        %p166 = scmp.lt.s32.totalorder %s10, 1
        %s167 = scalar_select %p166, %s10, 1
        %s168 = smul.addr %s167, 32
        %s169 = smul.addr %s168, 4
        %s170 = scalar_lea.vmem %s3, %s169
      $region32: #{basic_cell_forward.5} parent=23 // pred_fallthru
        _
    $region24: #{basic_cell_forward.5} parent=5 // pred_fallthru
      _
    %p171 = scmp.le.s32.totalorder 1, %s10
    %p172 = scmp.lt.s32.totalorder %s10, 3
    %p173 = pnand %p171, %p172
    %p174 = pneg %p173
    // Predicated region
    $region33: #{basic_cell_forward.5} parent=5 // pred_check
      _
    $region34: #{basic_cell_forward.5} parent=5 // pred_check_branch
      %176 = sbr.rel (%p173) target = $region36
    $region35: #{basic_cell_forward.5} parent=5 // pred_region
      %s177 = ssub.s32 %s10, 1
      %p178 = scmp.lt.s32.totalorder %s15, 1
      %s179 = scalar_select %p178, %s15, 1
      %s180 = smul.addr %s179, 32
      %s181 = smul.addr %s180, 4
      %s182 = scalar_lea.vmem %s0, %s181
      %p183 = pneg %p36
      %p184 = pneg %p33
      %p185 = pneg %p57
      %p186 = pneg %p54
      %p187 = pneg %p78
      %p188 = pneg %p75
      %p189 = scmp.lt.s32.totalorder %s15, 1
      %s190 = scalar_select %p189, %s15, 1
      %s191 = smul.addr %s190, 32
      %s192 = smul.addr %s191, 4
      %s193 = scalar_lea.vmem %s3, %s192
      %p194 = pneg %p104
      %p195 = pneg %p101
      %p196 = pneg %p130
      %p197 = pneg %p127
      %p198 = scmp.lt.s32.totalorder %s15, 1
      %s199 = scalar_select %p198, %s15, 1
      %s200 = smul.addr %s199, 32
      %s201 = smul.addr %s200, 8
      %s202 = scalar_lea.vmem %s4, %s201
      %p203 = scmp.lt.s32.totalorder %s15, 1
      %s204 = scalar_select %p203, %s15, 1
      %s205 = smul.addr %s204, 32
      %s206 = smul.addr %s205, 4
      %s207 = scalar_lea.vmem %s0, %s206
      %p208 = scmp.lt.s32.totalorder %s15, 1
      %s209 = scalar_select %p208, %s15, 1
      %s210 = smul.addr %s209, 32
      %s211 = smul.addr %s210, 4
      %s212 = scalar_lea.vmem %s3, %s211
      %p213 = scmp.lt.s32.totalorder %s15, 1
      %s214 = scalar_select %p213, %s15, 1
      %s215 = smul.addr %s214, 32
      %s216 = smul.addr %s215, 8
      %s217 = scalar_lea.vmem %s4, %s216
      %v218 = vld [vmem:[%s207] sm:$0xf]
      %v219 = vld [vmem:[%s207 + $0x4] sm:$0xf]
      %v220 = vld [vmem:[%s207 + $0x8] sm:$0xf]
      %v221 = vld [vmem:[%s207 + $0xc] sm:$0xf]
      %v222 = vld [vmem:[%s207 + $0x10] sm:$0xf]
      %v223 = vld [vmem:[%s207 + $0x14] sm:$0xf]
      %v224 = vld [vmem:[%s207 + $0x18] sm:$0xf]
      %v225 = vld [vmem:[%s207 + $0x1c] sm:$0xf]
      %v226 = vld [vmem:[%s207 + $0x20] sm:$0xf]
      %v227 = vld [vmem:[%s207 + $0x24] sm:$0xf]
      %v228 = vld [vmem:[%s207 + $0x28] sm:$0xf]
      %v229 = vld [vmem:[%s207 + $0x2c] sm:$0xf]
      %v230 = vld [vmem:[%s207 + $0x30] sm:$0xf]
      %v231 = vld [vmem:[%s207 + $0x34] sm:$0xf]
      %v232 = vld [vmem:[%s207 + $0x38] sm:$0xf]
      %v233 = vld [vmem:[%s207 + $0x3c] sm:$0xf]
      %v234 = vld [vmem:[%s207 + $0x40] sm:$0xf]
      %v235 = vld [vmem:[%s207 + $0x44] sm:$0xf]
      %v236 = vld [vmem:[%s207 + $0x48] sm:$0xf]
      %v237 = vld [vmem:[%s207 + $0x4c] sm:$0xf]
      %v238 = vld [vmem:[%s207 + $0x50] sm:$0xf]
      %v239 = vld [vmem:[%s207 + $0x54] sm:$0xf]
      %v240 = vld [vmem:[%s207 + $0x58] sm:$0xf]
      %v241 = vld [vmem:[%s207 + $0x5c] sm:$0xf]
      %v242 = vld [vmem:[%s207 + $0x60] sm:$0xf]
      %v243 = vld [vmem:[%s207 + $0x64] sm:$0xf]
      %v244 = vld [vmem:[%s207 + $0x68] sm:$0xf]
      %v245 = vld [vmem:[%s207 + $0x6c] sm:$0xf]
      %v246 = vld [vmem:[%s207 + $0x70] sm:$0xf]
      %v247 = vld [vmem:[%s207 + $0x74] sm:$0xf]
      %v248 = vld [vmem:[%s207 + $0x78] sm:$0xf]
      %v249 = vld [vmem:[%s207 + $0x7c] sm:$0xf]
      %v250 = vunpack.c.l.bf16 %v218
      %v251 = vunpack.c.l.bf16 %v219
      %v252 = vunpack.c.l.bf16 %v220
      %v253 = vunpack.c.l.bf16 %v221
      %v254 = vunpack.c.l.bf16 %v222
      %v255 = vunpack.c.l.bf16 %v223
      %v256 = vunpack.c.l.bf16 %v224
      %v257 = vunpack.c.l.bf16 %v225
      %v258 = vunpack.c.l.bf16 %v226
      %v259 = vunpack.c.l.bf16 %v227
      %v260 = vunpack.c.l.bf16 %v228
      %v261 = vunpack.c.l.bf16 %v229
      %v262 = vunpack.c.l.bf16 %v230
      %v263 = vunpack.c.l.bf16 %v231
      %v264 = vunpack.c.l.bf16 %v232
      %v265 = vunpack.c.l.bf16 %v233
      %v266 = vunpack.c.l.bf16 %v234
      %v267 = vunpack.c.l.bf16 %v235
      %v268 = vunpack.c.l.bf16 %v236
      %v269 = vunpack.c.l.bf16 %v237
      %v270 = vunpack.c.l.bf16 %v238
      %v271 = vunpack.c.l.bf16 %v239
      %v272 = vunpack.c.l.bf16 %v240
      %v273 = vunpack.c.l.bf16 %v241
      %v274 = vunpack.c.l.bf16 %v242
      %v275 = vunpack.c.l.bf16 %v243
      %v276 = vunpack.c.l.bf16 %v244
      %v277 = vunpack.c.l.bf16 %v245
      %v278 = vunpack.c.l.bf16 %v246
      %v279 = vunpack.c.l.bf16 %v247
      %v280 = vunpack.c.l.bf16 %v248
      %v281 = vunpack.c.l.bf16 %v249
      %v282 = vld [vmem:[%s1] sm:$0x1]
      %v284 = vlaneseq
      %v285 = vshrl.u32 %v284, 7
      %v286 = vsub.s32 0, %v285
      %v287 = vrot.slane %v282, %v286
      %v289 = vmul.f32 %v250, %v287
      %v290 = vmul.f32 %v251, %v287
      %v291 = vmul.f32 %v252, %v287
      %v292 = vmul.f32 %v253, %v287
      %v293 = vmul.f32 %v254, %v287
      %v294 = vmul.f32 %v255, %v287
      %v295 = vmul.f32 %v256, %v287
      %v296 = vmul.f32 %v257, %v287
      %v297 = vmul.f32 %v258, %v287
      %v298 = vmul.f32 %v259, %v287
      %v299 = vmul.f32 %v260, %v287
      %v300 = vmul.f32 %v261, %v287
      %v301 = vmul.f32 %v262, %v287
      %v302 = vmul.f32 %v263, %v287
      %v303 = vmul.f32 %v264, %v287
      %v304 = vmul.f32 %v265, %v287
      %v305 = vmul.f32 %v266, %v287
      %v306 = vmul.f32 %v267, %v287
      %v307 = vmul.f32 %v268, %v287
      %v308 = vmul.f32 %v269, %v287
      %v309 = vmul.f32 %v270, %v287
      %v310 = vmul.f32 %v271, %v287
      %v311 = vmul.f32 %v272, %v287
      %v312 = vmul.f32 %v273, %v287
      %v313 = vmul.f32 %v274, %v287
      %v314 = vmul.f32 %v275, %v287
      %v315 = vmul.f32 %v276, %v287
      %v316 = vmul.f32 %v277, %v287
      %v317 = vmul.f32 %v278, %v287
      %v318 = vmul.f32 %v279, %v287
      %v319 = vmul.f32 %v280, %v287
      %v320 = vmul.f32 %v281, %v287
      %v321 = vld [vmem:[%s2] sm:$0x1]
      %v323 = vlaneseq
      %v324 = vshrl.u32 %v323, 7
      %v325 = vsub.s32 0, %v324
      %v326 = vrot.slane %v321, %v325
      %v328 = vadd.f32 %v289, %v326
      %v329 = vadd.f32 %v290, %v326
      %v330 = vadd.f32 %v291, %v326
      %v331 = vadd.f32 %v292, %v326
      %v332 = vadd.f32 %v293, %v326
      %v333 = vadd.f32 %v294, %v326
      %v334 = vadd.f32 %v295, %v326
      %v335 = vadd.f32 %v296, %v326
      %v336 = vadd.f32 %v297, %v326
      %v337 = vadd.f32 %v298, %v326
      %v338 = vadd.f32 %v299, %v326
      %v339 = vadd.f32 %v300, %v326
      %v340 = vadd.f32 %v301, %v326
      %v341 = vadd.f32 %v302, %v326
      %v342 = vadd.f32 %v303, %v326
      %v343 = vadd.f32 %v304, %v326
      %v344 = vadd.f32 %v305, %v326
      %v345 = vadd.f32 %v306, %v326
      %v346 = vadd.f32 %v307, %v326
      %v347 = vadd.f32 %v308, %v326
      %v348 = vadd.f32 %v309, %v326
      %v349 = vadd.f32 %v310, %v326
      %v350 = vadd.f32 %v311, %v326
      %v351 = vadd.f32 %v312, %v326
      %v352 = vadd.f32 %v313, %v326
      %v353 = vadd.f32 %v314, %v326
      %v354 = vadd.f32 %v315, %v326
      %v355 = vadd.f32 %v316, %v326
      %v356 = vadd.f32 %v317, %v326
      %v357 = vadd.f32 %v318, %v326
      %v358 = vadd.f32 %v319, %v326
      %v359 = vadd.f32 %v320, %v326
      %v360 = vld [vmem:[%s212] sm:$0xf]
      %v361 = vld [vmem:[%s212 + $0x4] sm:$0xf]
      %v362 = vld [vmem:[%s212 + $0x8] sm:$0xf]
      %v363 = vld [vmem:[%s212 + $0xc] sm:$0xf]
      %v364 = vld [vmem:[%s212 + $0x10] sm:$0xf]
      %v365 = vld [vmem:[%s212 + $0x14] sm:$0xf]
      %v366 = vld [vmem:[%s212 + $0x18] sm:$0xf]
      %v367 = vld [vmem:[%s212 + $0x1c] sm:$0xf]
      %v368 = vld [vmem:[%s212 + $0x20] sm:$0xf]
      %v369 = vld [vmem:[%s212 + $0x24] sm:$0xf]
      %v370 = vld [vmem:[%s212 + $0x28] sm:$0xf]
      %v371 = vld [vmem:[%s212 + $0x2c] sm:$0xf]
      %v372 = vld [vmem:[%s212 + $0x30] sm:$0xf]
      %v373 = vld [vmem:[%s212 + $0x34] sm:$0xf]
      %v374 = vld [vmem:[%s212 + $0x38] sm:$0xf]
      %v375 = vld [vmem:[%s212 + $0x3c] sm:$0xf]
      %v376 = vld [vmem:[%s212 + $0x40] sm:$0xf]
      %v377 = vld [vmem:[%s212 + $0x44] sm:$0xf]
      %v378 = vld [vmem:[%s212 + $0x48] sm:$0xf]
      %v379 = vld [vmem:[%s212 + $0x4c] sm:$0xf]
      %v380 = vld [vmem:[%s212 + $0x50] sm:$0xf]
      %v381 = vld [vmem:[%s212 + $0x54] sm:$0xf]
      %v382 = vld [vmem:[%s212 + $0x58] sm:$0xf]
      %v383 = vld [vmem:[%s212 + $0x5c] sm:$0xf]
      %v384 = vld [vmem:[%s212 + $0x60] sm:$0xf]
      %v385 = vld [vmem:[%s212 + $0x64] sm:$0xf]
      %v386 = vld [vmem:[%s212 + $0x68] sm:$0xf]
      %v387 = vld [vmem:[%s212 + $0x6c] sm:$0xf]
      %v388 = vld [vmem:[%s212 + $0x70] sm:$0xf]
      %v389 = vld [vmem:[%s212 + $0x74] sm:$0xf]
      %v390 = vld [vmem:[%s212 + $0x78] sm:$0xf]
      %v391 = vld [vmem:[%s212 + $0x7c] sm:$0xf]
      %v392 = vunpack.c.l.bf16 %v360
      %v393 = vunpack.c.l.bf16 %v361
      %v394 = vunpack.c.l.bf16 %v362
      %v395 = vunpack.c.l.bf16 %v363
      %v396 = vunpack.c.l.bf16 %v364
      %v397 = vunpack.c.l.bf16 %v365
      %v398 = vunpack.c.l.bf16 %v366
      %v399 = vunpack.c.l.bf16 %v367
      %v400 = vunpack.c.l.bf16 %v368
      %v401 = vunpack.c.l.bf16 %v369
      %v402 = vunpack.c.l.bf16 %v370
      %v403 = vunpack.c.l.bf16 %v371
      %v404 = vunpack.c.l.bf16 %v372
      %v405 = vunpack.c.l.bf16 %v373
      %v406 = vunpack.c.l.bf16 %v374
      %v407 = vunpack.c.l.bf16 %v375
      %v408 = vunpack.c.l.bf16 %v376
      %v409 = vunpack.c.l.bf16 %v377
      %v410 = vunpack.c.l.bf16 %v378
      %v411 = vunpack.c.l.bf16 %v379
      %v412 = vunpack.c.l.bf16 %v380
      %v413 = vunpack.c.l.bf16 %v381
      %v414 = vunpack.c.l.bf16 %v382
      %v415 = vunpack.c.l.bf16 %v383
      %v416 = vunpack.c.l.bf16 %v384
      %v417 = vunpack.c.l.bf16 %v385
      %v418 = vunpack.c.l.bf16 %v386
      %v419 = vunpack.c.l.bf16 %v387
      %v420 = vunpack.c.l.bf16 %v388
      %v421 = vunpack.c.l.bf16 %v389
      %v422 = vunpack.c.l.bf16 %v390
      %v423 = vunpack.c.l.bf16 %v391
      %v424 = vadd.f32 %v328, %v392
      %v425 = vadd.f32 %v329, %v393
      %v426 = vadd.f32 %v330, %v394
      %v427 = vadd.f32 %v331, %v395
      %v428 = vadd.f32 %v332, %v396
      %v429 = vadd.f32 %v333, %v397
      %v430 = vadd.f32 %v334, %v398
      %v431 = vadd.f32 %v335, %v399
      %v432 = vadd.f32 %v336, %v400
      %v433 = vadd.f32 %v337, %v401
      %v434 = vadd.f32 %v338, %v402
      %v435 = vadd.f32 %v339, %v403
      %v436 = vadd.f32 %v340, %v404
      %v437 = vadd.f32 %v341, %v405
      %v438 = vadd.f32 %v342, %v406
      %v439 = vadd.f32 %v343, %v407
      %v440 = vadd.f32 %v344, %v408
      %v441 = vadd.f32 %v345, %v409
      %v442 = vadd.f32 %v346, %v410
      %v443 = vadd.f32 %v347, %v411
      %v444 = vadd.f32 %v348, %v412
      %v445 = vadd.f32 %v349, %v413
      %v446 = vadd.f32 %v350, %v414
      %v447 = vadd.f32 %v351, %v415
      %v448 = vadd.f32 %v352, %v416
      %v449 = vadd.f32 %v353, %v417
      %v450 = vadd.f32 %v354, %v418
      %v451 = vadd.f32 %v355, %v419
      %v452 = vadd.f32 %v356, %v420
      %v453 = vadd.f32 %v357, %v421
      %v454 = vadd.f32 %v358, %v422
      %v455 = vadd.f32 %v359, %v423
      %v456 = vmax.f32 %v424, 0.0
      %v457 = vmax.f32 %v425, 0.0
      %v458 = vmax.f32 %v426, 0.0
      %v459 = vmax.f32 %v427, 0.0
      %v460 = vmax.f32 %v428, 0.0
      %v461 = vmax.f32 %v429, 0.0
      %v462 = vmax.f32 %v430, 0.0
      %v463 = vmax.f32 %v431, 0.0
      %v464 = vmax.f32 %v432, 0.0
      %v465 = vmax.f32 %v433, 0.0
      %v466 = vmax.f32 %v434, 0.0
      %v467 = vmax.f32 %v435, 0.0
      %v468 = vmax.f32 %v436, 0.0
      %v469 = vmax.f32 %v437, 0.0
      %v470 = vmax.f32 %v438, 0.0
      %v471 = vmax.f32 %v439, 0.0
      %v472 = vmax.f32 %v440, 0.0
      %v473 = vmax.f32 %v441, 0.0
      %v474 = vmax.f32 %v442, 0.0
      %v475 = vmax.f32 %v443, 0.0
      %v476 = vmax.f32 %v444, 0.0
      %v477 = vmax.f32 %v445, 0.0
      %v478 = vmax.f32 %v446, 0.0
      %v479 = vmax.f32 %v447, 0.0
      %v480 = vmax.f32 %v448, 0.0
      %v481 = vmax.f32 %v449, 0.0
      %v482 = vmax.f32 %v450, 0.0
      %v483 = vmax.f32 %v451, 0.0
      %v484 = vmax.f32 %v452, 0.0
      %v485 = vmax.f32 %v453, 0.0
      %v486 = vmax.f32 %v454, 0.0
      %v487 = vmax.f32 %v455, 0.0
      %488 = vst [vmem:[%s217] sm:$0xff] %v456
      %489 = vst [vmem:[%s217 + $0x8] sm:$0xff] %v457
      %490 = vst [vmem:[%s217 + $0x10] sm:$0xff] %v458
      %491 = vst [vmem:[%s217 + $0x18] sm:$0xff] %v459
      %492 = vst [vmem:[%s217 + $0x20] sm:$0xff] %v460
      %493 = vst [vmem:[%s217 + $0x28] sm:$0xff] %v461
      %494 = vst [vmem:[%s217 + $0x30] sm:$0xff] %v462
      %495 = vst [vmem:[%s217 + $0x38] sm:$0xff] %v463
      %496 = vst [vmem:[%s217 + $0x40] sm:$0xff] %v464
      %497 = vst [vmem:[%s217 + $0x48] sm:$0xff] %v465
      %498 = vst [vmem:[%s217 + $0x50] sm:$0xff] %v466
      %499 = vst [vmem:[%s217 + $0x58] sm:$0xff] %v467
      %500 = vst [vmem:[%s217 + $0x60] sm:$0xff] %v468
      %501 = vst [vmem:[%s217 + $0x68] sm:$0xff] %v469
      %502 = vst [vmem:[%s217 + $0x70] sm:$0xff] %v470
      %503 = vst [vmem:[%s217 + $0x78] sm:$0xff] %v471
      %504 = vst [vmem:[%s217 + $0x80] sm:$0xff] %v472
      %505 = vst [vmem:[%s217 + $0x88] sm:$0xff] %v473
      %506 = vst [vmem:[%s217 + $0x90] sm:$0xff] %v474
      %507 = vst [vmem:[%s217 + $0x98] sm:$0xff] %v475
      %508 = vst [vmem:[%s217 + $0xa0] sm:$0xff] %v476
      %509 = vst [vmem:[%s217 + $0xa8] sm:$0xff] %v477
      %510 = vst [vmem:[%s217 + $0xb0] sm:$0xff] %v478
      %511 = vst [vmem:[%s217 + $0xb8] sm:$0xff] %v479
      %512 = vst [vmem:[%s217 + $0xc0] sm:$0xff] %v480
      %513 = vst [vmem:[%s217 + $0xc8] sm:$0xff] %v481
      %514 = vst [vmem:[%s217 + $0xd0] sm:$0xff] %v482
      %515 = vst [vmem:[%s217 + $0xd8] sm:$0xff] %v483
      %516 = vst [vmem:[%s217 + $0xe0] sm:$0xff] %v484
      %517 = vst [vmem:[%s217 + $0xe8] sm:$0xff] %v485
      %518 = vst [vmem:[%s217 + $0xf0] sm:$0xff] %v486
      %519 = vst [vmem:[%s217 + $0xf8] sm:$0xff] %v487
      %p520 = scmp.lt.s32.totalorder %s15, 1
      %s521 = scalar_select %p520, %s15, 1
      %s522 = smul.addr %s521, 32
      %s523 = smul.addr %s522, 8
      %s524 = scalar_lea.vmem %s4, %s523
      // Predicated region
      $region37: #{basic_cell_forward.5} parent=35 // pred_check
        %p525 = pneg %p127
      $region38: #{basic_cell_forward.5} parent=35 // pred_check_branch
        %527 = sbr.rel (%p525) target = $region40
      $region39: #{basic_cell_forward.5} parent=35 // pred_region
        _
      $region40: #{basic_cell_forward.5} parent=35 // pred_fallthru
        _
    $region36: #{basic_cell_forward.5} parent=5 // pred_fallthru
      _
    %p528 = scmp.le.s32.totalorder 2, %s10
    // Predicated region
    $region41: #{basic_cell_forward.5} parent=5 // pred_check
      %p529 = pneg %p528
    $region42: #{basic_cell_forward.5} parent=5 // pred_check_branch
      %531 = sbr.rel (%p529) target = $region44
    $region43: #{basic_cell_forward.5} parent=5 // pred_region
      %s532 = ssub.s32 %s10, 2
      // Predicated region
      $region45: #{basic_cell_forward.5} parent=43 // pred_check
        %p533 = pneg %p133
      $region46: #{basic_cell_forward.5} parent=43 // pred_check_branch
        %535 = sbr.rel (%p533) target = $region48
      $region47: #{basic_cell_forward.5} parent=43 // pred_region
        %p536 = scmp.lt.s32.totalorder %s16, 1
        %s537 = scalar_select %p536, %s16, 1
        %s538 = smul.addr %s537, 32
        %s539 = smul.addr %s538, 8
        %s540 = scalar_lea.vmem %s4, %s539
      $region48: #{basic_cell_forward.5} parent=43 // pred_fallthru
        _
    $region44: #{basic_cell_forward.5} parent=5 // pred_fallthru
      _
  $region6: #{basic_cell_forward.5} parent=0 // loop_footer
    %s14 = sadd.s32 1, %s10
  $region7: #{basic_cell_forward.5} parent=0 // loop_footer_branch
    %9 = sbr.rel target = $region3
  $region8: #{basic_cell_forward.5} parent=0 // loop_exit
    _

// kernel: basic_cell_forward.3
$region0: #{basic_cell_forward.3}
  #allocation0 [shape = 'u32[]', space=smem, size = 0x4, offset = 0x4, fixed_abs, tag = 'smem constant byte address 0x4 - core index']
  #allocation1 [shape = 'u32[144,128]{1,0:T(1,128)}', space=vmem, size = 0x12000, scoped, tag = 'internal scratch']
  #allocation2 [shape = 'bf16[18,18,128]{2,1,0:T(8,128)(2,1)}', space=vmem, size = 0x1b000, scoped, tag = 'scratch operand']
  #allocation3 [shape = 'f32[256,128]{1,0:T(8,128)}', space=vmem, size = 0x20000, scoped, tag = 'scratch operand']
  %s0 = inlined_call_operand.vmem [shape: bf16[2,16,16,128], index: 0, kind: input, shape index: {}]
  %s1 = inlined_call_operand.vmem [shape: bf16[3,384,128], index: 1, kind: input, shape index: {}]
  %s2 = inlined_call_operand.vmem [shape: bf16[2,16,16,128], index: 2, kind: output, shape index: {0}]
  %s3 = inlined_call_operand.vmem [shape: f32[2,8,128], index: 3, kind: output, shape index: {1}]
  %4 = xla_tuple %s2, %s3
  %s5 = sld [smem:[#allocation0]]
  $region49: #{basic_cell_forward.3} parent=0
    _
  %s7 = ssub.s32 1, %s5
  %s8 = scalar_select 0, %s7, %s5
  loop: start=0, step=1, limit=4
  $region2: #{basic_cell_forward.3} parent=0 // loop_pre_header
    _
  $region3: #{basic_cell_forward.3} parent=0 // loop_header
    %s10 = sphi 0, %s14
    %p11 = scmp.ge.s32.totalorder %s10, 4
    %s20 = sphi 0, %s22
    %s23 = sphi 0, %s20
    %s24 = sphi 0, %s23
    %s40 = sphi 0, %s24
    %s44 = sphi 0, %s44
    %s46 = sphi 0, %s44
    %s47 = sphi 0, %s46
    %s61 = sphi 0, %s47
    %s67 = sphi 0, %s69
    %s70 = sphi 0, %s67
    %s71 = sphi 0, %s70
    %s87 = sphi 0, %s71
    %s93 = sphi 0, %s95
    %s96 = sphi 0, %s93
    %s97 = sphi 0, %s96
    %s113 = sphi 0, %s97
  $region4: #{basic_cell_forward.3} parent=0 // loop_header_branch
    %13 = sbr.rel (%p11) target = $region8
  $region5: #{basic_cell_forward.3} parent=0 // loop_body
    %s15 = ssub.s32 %s10, 1
    %s16 = ssub.s32 %s10, 2
    %s17 = sadd.s32 %s10, 1
    %s18 = ssub.s32 %s10, %s17
    %p19 = scmp.eq.s32.totalorder %s18, 0
    %s21 = sadd.s32 %s20, 1
    %s22 = scalar_select %p19, %s20, %s21
    %p25 = pneg %p19
    %p26 = scmp.eq.s32.totalorder %s10, 1
    %p27 = por %p25, %p26
    %p28 = scmp.ne.s32.totalorder %s20, %s23
    %p29 = scmp.eq.s32.totalorder %s10, 0
    %p30 = por %p28, %p29
    %p31 = scmp.ne.s32.totalorder %s20, %s23
    %p32 = scmp.eq.s32.totalorder %s15, 1
    %p33 = por %p31, %p32
    %p34 = scmp.ne.s32.totalorder %s23, %s24
    %p35 = scmp.eq.s32.totalorder %s15, 0
    %p36 = por %p34, %p35
    %p37 = scmp.ne.s32.totalorder %s23, %s24
    %p38 = scmp.eq.s32.totalorder %s16, 1
    %p39 = por %p37, %p38
    %p41 = scmp.ne.s32.totalorder %s24, %s40
    %p42 = scmp.eq.s32.totalorder %s16, 0
    %p43 = por %p41, %p42
    %s45 = sadd.s32 %s44, 1
    %p48 = scmp.eq.s32.totalorder %s10, 1
    %p49 = scmp.ne.s32.totalorder %s44, %s46
    %p50 = scmp.eq.s32.totalorder %s10, 0
    %p51 = por %p49, %p50
    %p52 = scmp.ne.s32.totalorder %s44, %s46
    %p53 = scmp.eq.s32.totalorder %s15, 1
    %p54 = por %p52, %p53
    %p55 = scmp.ne.s32.totalorder %s46, %s47
    %p56 = scmp.eq.s32.totalorder %s15, 0
    %p57 = por %p55, %p56
    %p58 = scmp.ne.s32.totalorder %s46, %s47
    %p59 = scmp.eq.s32.totalorder %s16, 1
    %p60 = por %p58, %p59
    %p62 = scmp.ne.s32.totalorder %s47, %s61
    %p63 = scmp.eq.s32.totalorder %s16, 0
    %p64 = por %p62, %p63
    %s65 = ssub.s32 %s10, %s17
    %p66 = scmp.eq.s32.totalorder %s65, 0
    %s68 = sadd.s32 %s67, 1
    %s69 = scalar_select %p66, %s67, %s68
    %p72 = pneg %p66
    %p73 = scmp.eq.s32.totalorder %s10, 1
    %p74 = por %p72, %p73
    %p75 = scmp.ne.s32.totalorder %s67, %s70
    %p76 = scmp.eq.s32.totalorder %s10, 0
    %p77 = por %p75, %p76
    %p78 = scmp.ne.s32.totalorder %s67, %s70
    %p79 = scmp.eq.s32.totalorder %s15, 1
    %p80 = por %p78, %p79
    %p81 = scmp.ne.s32.totalorder %s70, %s71
    %p82 = scmp.eq.s32.totalorder %s15, 0
    %p83 = por %p81, %p82
    %p84 = scmp.ne.s32.totalorder %s70, %s71
    %p85 = scmp.eq.s32.totalorder %s16, 1
    %p86 = por %p84, %p85
    %p88 = scmp.ne.s32.totalorder %s71, %s87
    %p89 = scmp.eq.s32.totalorder %s16, 0
    %p90 = por %p88, %p89
    %s91 = ssub.s32 %s10, %s17
    %p92 = scmp.eq.s32.totalorder %s91, 0
    %s94 = sadd.s32 %s93, 1
    %s95 = scalar_select %p92, %s93, %s94
    %p98 = pneg %p92
    %p99 = scmp.eq.s32.totalorder %s10, 1
    %p100 = por %p98, %p99
    %p101 = scmp.ne.s32.totalorder %s93, %s96
    %p102 = scmp.eq.s32.totalorder %s10, 0
    %p103 = por %p101, %p102
    %p104 = scmp.ne.s32.totalorder %s93, %s96
    %p105 = scmp.eq.s32.totalorder %s15, 1
    %p106 = por %p104, %p105
    %p107 = scmp.ne.s32.totalorder %s96, %s97
    %p108 = scmp.eq.s32.totalorder %s15, 0
    %p109 = por %p107, %p108
    %p110 = scmp.ne.s32.totalorder %s96, %s97
    %p111 = scmp.eq.s32.totalorder %s16, 1
    %p112 = por %p110, %p111
    %p114 = scmp.ne.s32.totalorder %s97, %s113
    %p115 = scmp.eq.s32.totalorder %s16, 0
    %p116 = por %p114, %p115
    %p117 = scmp.le.s32.totalorder 1, %s10
    %p118 = scmp.lt.s32.totalorder %s10, 3
    %p119 = pnand %p117, %p118
    %p120 = pneg %p119
    // Predicated region
    $region9: #{basic_cell_forward.3} parent=5 // pred_check
      _
    $region10: #{basic_cell_forward.3} parent=5 // pred_check_branch
      %122 = sbr.rel (%p119) target = $region12
    $region11: #{basic_cell_forward.3} parent=5 // pred_region
      %s123 = ssub.s32 %s10, 1
      // Predicated region
      $region13: #{basic_cell_forward.3} parent=11 // pred_check
        %p124 = pneg %p57
      $region14: #{basic_cell_forward.3} parent=11 // pred_check_branch
        %126 = sbr.rel (%p124) target = $region16
      $region15: #{basic_cell_forward.3} parent=11 // pred_region
        _
      $region16: #{basic_cell_forward.3} parent=11 // pred_fallthru
        _
    $region12: #{basic_cell_forward.3} parent=5 // pred_fallthru
      _
    %p127 = scmp.lt.s32.totalorder %s10, 2
    // Predicated region
    $region17: #{basic_cell_forward.3} parent=5 // pred_check
      %p128 = pneg %p127
    $region18: #{basic_cell_forward.3} parent=5 // pred_check_branch
      %130 = sbr.rel (%p128) target = $region20
    $region19: #{basic_cell_forward.3} parent=5 // pred_region
      // Predicated region
      $region21: #{basic_cell_forward.3} parent=19 // pred_check
        %p131 = pneg %p30
      $region22: #{basic_cell_forward.3} parent=19 // pred_check_branch
        %133 = sbr.rel (%p131) target = $region24
      $region23: #{basic_cell_forward.3} parent=19 // pred_region
        %p134 = scmp.lt.s32.totalorder %s10, 1
        %s135 = scalar_select %p134, %s10, 1
        %s136 = smul.addr %s135, 32
        %s137 = smul.addr %s136, 4
        %s138 = scalar_lea.vmem %s0, %s137
      $region24: #{basic_cell_forward.3} parent=19 // pred_fallthru
        _
    $region20: #{basic_cell_forward.3} parent=5 // pred_fallthru
      _
    %p139 = scmp.le.s32.totalorder 1, %s10
    %p140 = scmp.lt.s32.totalorder %s10, 3
    %p141 = pnand %p139, %p140
    %p142 = pneg %p141
    // Predicated region
    $region25: #{basic_cell_forward.3} parent=5 // pred_check
      _
    $region26: #{basic_cell_forward.3} parent=5 // pred_check_branch
      %144 = sbr.rel (%p141) target = $region28
    $region27: #{basic_cell_forward.3} parent=5 // pred_region
      %s145 = ssub.s32 %s10, 1
      %p146 = scmp.lt.s32.totalorder %s15, 1
      %s147 = scalar_select %p146, %s15, 1
      %s148 = smul.addr %s147, 32
      %s149 = smul.addr %s148, 4
      %s150 = scalar_lea.vmem %s0, %s149
      %p151 = pneg %p36
      %p152 = pneg %p33
      %p153 = pneg %p57
      %p154 = pneg %p54
      %p155 = pneg %p83
      %p156 = pneg %p80
      %p157 = scmp.lt.s32.totalorder %s15, 1
      %s158 = scalar_select %p157, %s15, 1
      %s159 = smul.addr %s158, 32
      %s160 = smul.addr %s159, 4
      %s161 = scalar_lea.vmem %s2, %s160
      %p162 = pneg %p109
      %p163 = pneg %p106
      %p164 = scmp.lt.s32.totalorder %s15, 1
      %s165 = scalar_select %p164, %s15, 1
      %s166 = smul.addr %s165, 8
      %s167 = scalar_lea.vmem %s3, %s166
      %p168 = scmp.lt.s32.totalorder %s15, 1
      %s169 = scalar_select %p168, %s15, 1
      %s170 = smul.addr %s169, 32
      %s171 = smul.addr %s170, 4
      %s172 = scalar_lea.vmem %s0, %s171
      %p173 = scmp.lt.s32.totalorder %s15, 1
      %s174 = scalar_select %p173, %s15, 1
      %s175 = smul.addr %s174, 32
      %s176 = smul.addr %s175, 4
      %s177 = scalar_lea.vmem %s2, %s176
      %p178 = scmp.lt.s32.totalorder %s15, 1
      %s179 = scalar_select %p178, %s15, 1
      %s180 = smul.addr %s179, 8
      %s181 = scalar_lea.vmem %s3, %s180
      %183 = vst [vmem:[#allocation2] sm:$0xf] 0
      %184 = vst [vmem:[#allocation2 + $0x4] sm:$0xf] 0
      %185 = vst [vmem:[#allocation2 + $0x8] sm:$0x1] 0
      %s186 = scalar_lea.vmem [#allocation2], 204
      %187 = vst [vmem:[%s186] sm:$0xf] 0
      %188 = vst [vmem:[%s186 + $0x4] sm:$0xf] 0
      %189 = vst [vmem:[%s186 + $0x8] sm:$0x1] 0
      %s190 = scalar_lea.vmem [#allocation2], 12
      %vm191 = vcmask 1040384
      %vm192 = vsmask.f32 256
      %vm193 = vmand %vm191, %vm192
      %v194 = vld [vmem:[%s190] sm:$0x1]
      %v195 = vsel %vm193, 0, %v194
      %196 = vst [vmem:[%s190] sm:$0x1] %v195
      %v197 = vld [vmem:[%s190 + $0xc] sm:$0x1]
      %v198 = vsel %vm193, 0, %v197
      %199 = vst [vmem:[%s190 + $0xc] sm:$0x1] %v198
      %v200 = vld [vmem:[%s190 + $0x18] sm:$0x1]
      %v201 = vsel %vm193, 0, %v200
      %202 = vst [vmem:[%s190 + $0x18] sm:$0x1] %v201
      %v203 = vld [vmem:[%s190 + $0x24] sm:$0x1]
      %v204 = vsel %vm193, 0, %v203
      %205 = vst [vmem:[%s190 + $0x24] sm:$0x1] %v204
      %v206 = vld [vmem:[%s190 + $0x30] sm:$0x1]
      %v207 = vsel %vm193, 0, %v206
      %208 = vst [vmem:[%s190 + $0x30] sm:$0x1] %v207
      %v209 = vld [vmem:[%s190 + $0x3c] sm:$0x1]
      %v210 = vsel %vm193, 0, %v209
      %211 = vst [vmem:[%s190 + $0x3c] sm:$0x1] %v210
      %v212 = vld [vmem:[%s190 + $0x48] sm:$0x1]
      %v213 = vsel %vm193, 0, %v212
      %214 = vst [vmem:[%s190 + $0x48] sm:$0x1] %v213
      %v215 = vld [vmem:[%s190 + $0x54] sm:$0x1]
      %v216 = vsel %vm193, 0, %v215
      %217 = vst [vmem:[%s190 + $0x54] sm:$0x1] %v216
      %v218 = vld [vmem:[%s190 + $0x60] sm:$0x1]
      %v219 = vsel %vm193, 0, %v218
      %220 = vst [vmem:[%s190 + $0x60] sm:$0x1] %v219
      %v221 = vld [vmem:[%s190 + $0x6c] sm:$0x1]
      %v222 = vsel %vm193, 0, %v221
      %223 = vst [vmem:[%s190 + $0x6c] sm:$0x1] %v222
      %v224 = vld [vmem:[%s190 + $0x78] sm:$0x1]
      %v225 = vsel %vm193, 0, %v224
      %226 = vst [vmem:[%s190 + $0x78] sm:$0x1] %v225
      %v227 = vld [vmem:[%s190 + $0x84] sm:$0x1]
      %v228 = vsel %vm193, 0, %v227
      %229 = vst [vmem:[%s190 + $0x84] sm:$0x1] %v228
      %v230 = vld [vmem:[%s190 + $0x90] sm:$0x1]
      %v231 = vsel %vm193, 0, %v230
      %232 = vst [vmem:[%s190 + $0x90] sm:$0x1] %v231
      %v233 = vld [vmem:[%s190 + $0x9c] sm:$0x1]
      %v234 = vsel %vm193, 0, %v233
      %235 = vst [vmem:[%s190 + $0x9c] sm:$0x1] %v234
      %v236 = vld [vmem:[%s190 + $0xa8] sm:$0x1]
      %v237 = vsel %vm193, 0, %v236
      %238 = vst [vmem:[%s190 + $0xa8] sm:$0x1] %v237
      %v239 = vld [vmem:[%s190 + $0xb4] sm:$0x1]
      %v240 = vsel %vm193, 0, %v239
      %241 = vst [vmem:[%s190 + $0xb4] sm:$0x1] %v240
      %vm242 = vsmask.f32 7938
      %vm243 = vmand %vm191, %vm242
      %v244 = vld [vmem:[%s190 + $0x8] sm:$0x1]
      %v245 = vsel %vm243, 0, %v244
      %246 = vst [vmem:[%s190 + $0x8] sm:$0x1] %v245
      %v247 = vld [vmem:[%s190 + $0x14] sm:$0x1]
      %v248 = vsel %vm243, 0, %v247
      %249 = vst [vmem:[%s190 + $0x14] sm:$0x1] %v248
      %v250 = vld [vmem:[%s190 + $0x20] sm:$0x1]
      %v251 = vsel %vm243, 0, %v250
      %252 = vst [vmem:[%s190 + $0x20] sm:$0x1] %v251
      %v253 = vld [vmem:[%s190 + $0x2c] sm:$0x1]
      %v254 = vsel %vm243, 0, %v253
      %255 = vst [vmem:[%s190 + $0x2c] sm:$0x1] %v254
      %v256 = vld [vmem:[%s190 + $0x38] sm:$0x1]
      %v257 = vsel %vm243, 0, %v256
      %258 = vst [vmem:[%s190 + $0x38] sm:$0x1] %v257
      %v259 = vld [vmem:[%s190 + $0x44] sm:$0x1]
      %v260 = vsel %vm243, 0, %v259
      %261 = vst [vmem:[%s190 + $0x44] sm:$0x1] %v260
      %v262 = vld [vmem:[%s190 + $0x50] sm:$0x1]
      %v263 = vsel %vm243, 0, %v262
      %264 = vst [vmem:[%s190 + $0x50] sm:$0x1] %v263
      %v265 = vld [vmem:[%s190 + $0x5c] sm:$0x1]
      %v266 = vsel %vm243, 0, %v265
      %267 = vst [vmem:[%s190 + $0x5c] sm:$0x1] %v266
      %v268 = vld [vmem:[%s190 + $0x68] sm:$0x1]
      %v269 = vsel %vm243, 0, %v268
      %270 = vst [vmem:[%s190 + $0x68] sm:$0x1] %v269
      %v271 = vld [vmem:[%s190 + $0x74] sm:$0x1]
      %v272 = vsel %vm243, 0, %v271
      %273 = vst [vmem:[%s190 + $0x74] sm:$0x1] %v272
      %v274 = vld [vmem:[%s190 + $0x80] sm:$0x1]
      %v275 = vsel %vm243, 0, %v274
      %276 = vst [vmem:[%s190 + $0x80] sm:$0x1] %v275
      %v277 = vld [vmem:[%s190 + $0x8c] sm:$0x1]
      %v278 = vsel %vm243, 0, %v277
      %279 = vst [vmem:[%s190 + $0x8c] sm:$0x1] %v278
      %v280 = vld [vmem:[%s190 + $0x98] sm:$0x1]
      %v281 = vsel %vm243, 0, %v280
      %282 = vst [vmem:[%s190 + $0x98] sm:$0x1] %v281
      %v283 = vld [vmem:[%s190 + $0xa4] sm:$0x1]
      %v284 = vsel %vm243, 0, %v283
      %285 = vst [vmem:[%s190 + $0xa4] sm:$0x1] %v284
      %v286 = vld [vmem:[%s190 + $0xb0] sm:$0x1]
      %v287 = vsel %vm243, 0, %v286
      %288 = vst [vmem:[%s190 + $0xb0] sm:$0x1] %v287
      %v289 = vld [vmem:[%s190 + $0xbc] sm:$0x1]
      %v290 = vsel %vm243, 0, %v289
      %291 = vst [vmem:[%s190 + $0xbc] sm:$0x1] %v290
      %v292 = vld [vmem:[%s172] sm:$0xf]
      %v293 = vld [vmem:[%s172 + $0x4] sm:$0xf]
      %v294 = vld [vmem:[%s172 + $0x8] sm:$0xf]
      %v295 = vld [vmem:[%s172 + $0xc] sm:$0xf]
      %v296 = vld [vmem:[%s172 + $0x10] sm:$0xf]
      %v297 = vld [vmem:[%s172 + $0x14] sm:$0xf]
      %v298 = vld [vmem:[%s172 + $0x18] sm:$0xf]
      %v299 = vld [vmem:[%s172 + $0x1c] sm:$0xf]
      %v300 = vld [vmem:[%s172 + $0x20] sm:$0xf]
      %v301 = vld [vmem:[%s172 + $0x24] sm:$0xf]
      %v302 = vld [vmem:[%s172 + $0x28] sm:$0xf]
      %v303 = vld [vmem:[%s172 + $0x2c] sm:$0xf]
      %v304 = vld [vmem:[%s172 + $0x30] sm:$0xf]
      %v305 = vld [vmem:[%s172 + $0x34] sm:$0xf]
      %v306 = vld [vmem:[%s172 + $0x38] sm:$0xf]
      %v307 = vld [vmem:[%s172 + $0x3c] sm:$0xf]
      %v308 = vld [vmem:[%s172 + $0x40] sm:$0xf]
      %v309 = vld [vmem:[%s172 + $0x44] sm:$0xf]
      %v310 = vld [vmem:[%s172 + $0x48] sm:$0xf]
      %v311 = vld [vmem:[%s172 + $0x4c] sm:$0xf]
      %v312 = vld [vmem:[%s172 + $0x50] sm:$0xf]
      %v313 = vld [vmem:[%s172 + $0x54] sm:$0xf]
      %v314 = vld [vmem:[%s172 + $0x58] sm:$0xf]
      %v315 = vld [vmem:[%s172 + $0x5c] sm:$0xf]
      %v316 = vld [vmem:[%s172 + $0x60] sm:$0xf]
      %v317 = vld [vmem:[%s172 + $0x64] sm:$0xf]
      %v318 = vld [vmem:[%s172 + $0x68] sm:$0xf]
      %v319 = vld [vmem:[%s172 + $0x6c] sm:$0xf]
      %v320 = vld [vmem:[%s172 + $0x70] sm:$0xf]
      %v321 = vld [vmem:[%s172 + $0x74] sm:$0xf]
      %v322 = vld [vmem:[%s172 + $0x78] sm:$0xf]
      %v323 = vld [vmem:[%s172 + $0x7c] sm:$0xf]
      %vm324 = vsmask.f32 4368
      %vm325 = vmor %vm192, %vm324
      %v327 = vshrl.u32 %v292, 16
      %v329 = vrot.slane %v327, 7
      %v330 = vshll.u32 %v292, 16
      %v332 = vor.u32 %v329, %v330
      %v333 = vrot.slane %v329, 4
      %v335 = vshrl.u32 %v293, 16
      %v337 = vrot.slane %v335, 7
      %v338 = vshll.u32 %v293, 16
      %v340 = vor.u32 %v337, %v338
      %v341 = vsel %vm325, %v333, %v340
      %v342 = vrot.slane %v337, 4
      %v344 = vshrl.u32 %v294, 16
      %v346 = vrot.slane %v344, 7
      %v347 = vshll.u32 %v294, 16
      %v349 = vor.u32 %v346, %v347
      %v350 = vrot.slane %v346, 4
      %v352 = vshrl.u32 %v295, 16
      %v354 = vrot.slane %v352, 7
      %v355 = vshll.u32 %v295, 16
      %v357 = vor.u32 %v354, %v355
      %v358 = vsel %vm325, %v350, %v357
      %v359 = vrot.slane %v354, 4
      %v361 = vshrl.u32 %v296, 16
      %v363 = vrot.slane %v361, 7
      %v364 = vshll.u32 %v296, 16
      %v366 = vor.u32 %v363, %v364
      %v367 = vrot.slane %v363, 4
      %v369 = vshrl.u32 %v297, 16
      %v371 = vrot.slane %v369, 7
      %v372 = vshll.u32 %v297, 16
      %v374 = vor.u32 %v371, %v372
      %v375 = vsel %vm325, %v367, %v374
      %v376 = vrot.slane %v371, 4
      %v378 = vshrl.u32 %v298, 16
      %v380 = vrot.slane %v378, 7
      %v381 = vshll.u32 %v298, 16
      %v383 = vor.u32 %v380, %v381
      %v384 = vrot.slane %v380, 4
      %v386 = vshrl.u32 %v299, 16
      %v388 = vrot.slane %v386, 7
      %v389 = vshll.u32 %v299, 16
      %v391 = vor.u32 %v388, %v389
      %v392 = vsel %vm325, %v384, %v391
      %v393 = vrot.slane %v388, 4
      %v395 = vshrl.u32 %v300, 16
      %v397 = vrot.slane %v395, 7
      %v398 = vshll.u32 %v300, 16
      %v400 = vor.u32 %v397, %v398
      %v401 = vrot.slane %v397, 4
      %v403 = vshrl.u32 %v301, 16
      %v405 = vrot.slane %v403, 7
      %v406 = vshll.u32 %v301, 16
      %v408 = vor.u32 %v405, %v406
      %v409 = vsel %vm325, %v401, %v408
      %v410 = vrot.slane %v405, 4
      %v412 = vshrl.u32 %v302, 16
      %v414 = vrot.slane %v412, 7
      %v415 = vshll.u32 %v302, 16
      %v417 = vor.u32 %v414, %v415
      %v418 = vrot.slane %v414, 4
      %v420 = vshrl.u32 %v303, 16
      %v422 = vrot.slane %v420, 7
      %v423 = vshll.u32 %v303, 16
      %v425 = vor.u32 %v422, %v423
      %v426 = vsel %vm325, %v418, %v425
      %v427 = vrot.slane %v422, 4
      %v429 = vshrl.u32 %v304, 16
      %v431 = vrot.slane %v429, 7
      %v432 = vshll.u32 %v304, 16
      %v434 = vor.u32 %v431, %v432
      %v435 = vrot.slane %v431, 4
      %v437 = vshrl.u32 %v305, 16
      %v439 = vrot.slane %v437, 7
      %v440 = vshll.u32 %v305, 16
      %v442 = vor.u32 %v439, %v440
      %v443 = vsel %vm325, %v435, %v442
      %v444 = vrot.slane %v439, 4
      %v446 = vshrl.u32 %v306, 16
      %v448 = vrot.slane %v446, 7
      %v449 = vshll.u32 %v306, 16
      %v451 = vor.u32 %v448, %v449
      %v452 = vrot.slane %v448, 4
      %v454 = vshrl.u32 %v307, 16
      %v456 = vrot.slane %v454, 7
      %v457 = vshll.u32 %v307, 16
      %v459 = vor.u32 %v456, %v457
      %v460 = vsel %vm325, %v452, %v459
      %v461 = vrot.slane %v456, 4
      %v463 = vshrl.u32 %v308, 16
      %v465 = vrot.slane %v463, 7
      %v466 = vshll.u32 %v308, 16
      %v468 = vor.u32 %v465, %v466
      %v469 = vrot.slane %v465, 4
      %v471 = vshrl.u32 %v309, 16
      %v473 = vrot.slane %v471, 7
      %v474 = vshll.u32 %v309, 16
      %v476 = vor.u32 %v473, %v474
      %v477 = vsel %vm325, %v469, %v476
      %v478 = vrot.slane %v473, 4
      %v480 = vshrl.u32 %v310, 16
      %v482 = vrot.slane %v480, 7
      %v483 = vshll.u32 %v310, 16
      %v485 = vor.u32 %v482, %v483
      %v486 = vrot.slane %v482, 4
      %v488 = vshrl.u32 %v311, 16
      %v490 = vrot.slane %v488, 7
      %v491 = vshll.u32 %v311, 16
      %v493 = vor.u32 %v490, %v491
      %v494 = vsel %vm325, %v486, %v493
      %v495 = vrot.slane %v490, 4
      %v497 = vshrl.u32 %v312, 16
      %v499 = vrot.slane %v497, 7
      %v500 = vshll.u32 %v312, 16
      %v502 = vor.u32 %v499, %v500
      %v503 = vrot.slane %v499, 4
      %v505 = vshrl.u32 %v313, 16
      %v507 = vrot.slane %v505, 7
      %v508 = vshll.u32 %v313, 16
      %v510 = vor.u32 %v507, %v508
      %v511 = vsel %vm325, %v503, %v510
      %v512 = vrot.slane %v507, 4
      %v514 = vshrl.u32 %v314, 16
      %v516 = vrot.slane %v514, 7
      %v517 = vshll.u32 %v314, 16
      %v519 = vor.u32 %v516, %v517
      %v520 = vrot.slane %v516, 4
      %v522 = vshrl.u32 %v315, 16
      %v524 = vrot.slane %v522, 7
      %v525 = vshll.u32 %v315, 16
      %v527 = vor.u32 %v524, %v525
      %v528 = vsel %vm325, %v520, %v527
      %v529 = vrot.slane %v524, 4
      %v531 = vshrl.u32 %v316, 16
      %v533 = vrot.slane %v531, 7
      %v534 = vshll.u32 %v316, 16
      %v536 = vor.u32 %v533, %v534
      %v537 = vrot.slane %v533, 4
      %v539 = vshrl.u32 %v317, 16
      %v541 = vrot.slane %v539, 7
      %v542 = vshll.u32 %v317, 16
      %v544 = vor.u32 %v541, %v542
      %v545 = vsel %vm325, %v537, %v544
      %v546 = vrot.slane %v541, 4
      %v548 = vshrl.u32 %v318, 16
      %v550 = vrot.slane %v548, 7
      %v551 = vshll.u32 %v318, 16
      %v553 = vor.u32 %v550, %v551
      %v554 = vrot.slane %v550, 4
      %v556 = vshrl.u32 %v319, 16
      %v558 = vrot.slane %v556, 7
      %v559 = vshll.u32 %v319, 16
      %v561 = vor.u32 %v558, %v559
      %v562 = vsel %vm325, %v554, %v561
      %v563 = vrot.slane %v558, 4
      %v565 = vshrl.u32 %v320, 16
      %v567 = vrot.slane %v565, 7
      %v568 = vshll.u32 %v320, 16
      %v570 = vor.u32 %v567, %v568
      %v571 = vrot.slane %v567, 4
      %v573 = vshrl.u32 %v321, 16
      %v575 = vrot.slane %v573, 7
      %v576 = vshll.u32 %v321, 16
      %v578 = vor.u32 %v575, %v576
      %v579 = vsel %vm325, %v571, %v578
      %v580 = vrot.slane %v575, 4
      %v582 = vshrl.u32 %v322, 16
      %v584 = vrot.slane %v582, 7
      %v585 = vshll.u32 %v322, 16
      %v587 = vor.u32 %v584, %v585
      %v588 = vrot.slane %v584, 4
      %v590 = vshrl.u32 %v323, 16
      %v592 = vrot.slane %v590, 7
      %v593 = vshll.u32 %v323, 16
      %v595 = vor.u32 %v592, %v593
      %v596 = vsel %vm325, %v588, %v595
      %v597 = vrot.slane %v592, 4
      %vm646 = vcmask 1043456
      %vm647 = vmand %vm646, %vm242
      %v648 = vld [vmem:[%s190] sm:$0xf]
      %v649 = vsel %vm647, %v332, %v648
      %650 = vst [vmem:[%s190] sm:$0xf] %v649
      %651 = vst [vmem:[%s190 + $0x4] sm:$0xf] %v341
      %v652 = vld [vmem:[%s190 + $0x8] sm:$0x1]
      %v653 = vsel %vm193, %v342, %v652
      %654 = vst [vmem:[%s190 + $0x8] sm:$0x1] %v653
      %v655 = vld [vmem:[%s190 + $0xc] sm:$0xf]
      %v656 = vsel %vm647, %v349, %v655
      %657 = vst [vmem:[%s190 + $0xc] sm:$0xf] %v656
      %658 = vst [vmem:[%s190 + $0x10] sm:$0xf] %v358
      %v659 = vld [vmem:[%s190 + $0x14] sm:$0x1]
      %v660 = vsel %vm193, %v359, %v659
      %661 = vst [vmem:[%s190 + $0x14] sm:$0x1] %v660
      %v662 = vld [vmem:[%s190 + $0x18] sm:$0xf]
      %v663 = vsel %vm647, %v366, %v662
      %664 = vst [vmem:[%s190 + $0x18] sm:$0xf] %v663
      %665 = vst [vmem:[%s190 + $0x1c] sm:$0xf] %v375
      %v666 = vld [vmem:[%s190 + $0x20] sm:$0x1]
      %v667 = vsel %vm193, %v376, %v666
      %668 = vst [vmem:[%s190 + $0x20] sm:$0x1] %v667
      %v669 = vld [vmem:[%s190 + $0x24] sm:$0xf]
      %v670 = vsel %vm647, %v383, %v669
      %671 = vst [vmem:[%s190 + $0x24] sm:$0xf] %v670
      %672 = vst [vmem:[%s190 + $0x28] sm:$0xf] %v392
      %v673 = vld [vmem:[%s190 + $0x2c] sm:$0x1]
      %v674 = vsel %vm193, %v393, %v673
      %675 = vst [vmem:[%s190 + $0x2c] sm:$0x1] %v674
      %v676 = vld [vmem:[%s190 + $0x30] sm:$0xf]
      %v677 = vsel %vm647, %v400, %v676
      %678 = vst [vmem:[%s190 + $0x30] sm:$0xf] %v677
      %679 = vst [vmem:[%s190 + $0x34] sm:$0xf] %v409
      %v680 = vld [vmem:[%s190 + $0x38] sm:$0x1]
      %v681 = vsel %vm193, %v410, %v680
      %682 = vst [vmem:[%s190 + $0x38] sm:$0x1] %v681
      %v683 = vld [vmem:[%s190 + $0x3c] sm:$0xf]
      %v684 = vsel %vm647, %v417, %v683
      %685 = vst [vmem:[%s190 + $0x3c] sm:$0xf] %v684
      %686 = vst [vmem:[%s190 + $0x40] sm:$0xf] %v426
      %v687 = vld [vmem:[%s190 + $0x44] sm:$0x1]
      %v688 = vsel %vm193, %v427, %v687
      %689 = vst [vmem:[%s190 + $0x44] sm:$0x1] %v688
      %v690 = vld [vmem:[%s190 + $0x48] sm:$0xf]
      %v691 = vsel %vm647, %v434, %v690
      %692 = vst [vmem:[%s190 + $0x48] sm:$0xf] %v691
      %693 = vst [vmem:[%s190 + $0x4c] sm:$0xf] %v443
      %v694 = vld [vmem:[%s190 + $0x50] sm:$0x1]
      %v695 = vsel %vm193, %v444, %v694
      %696 = vst [vmem:[%s190 + $0x50] sm:$0x1] %v695
      %v697 = vld [vmem:[%s190 + $0x54] sm:$0xf]
      %v698 = vsel %vm647, %v451, %v697
      %699 = vst [vmem:[%s190 + $0x54] sm:$0xf] %v698
      %700 = vst [vmem:[%s190 + $0x58] sm:$0xf] %v460
      %v701 = vld [vmem:[%s190 + $0x5c] sm:$0x1]
      %v702 = vsel %vm193, %v461, %v701
      %703 = vst [vmem:[%s190 + $0x5c] sm:$0x1] %v702
      %v704 = vld [vmem:[%s190 + $0x60] sm:$0xf]
      %v705 = vsel %vm647, %v468, %v704
      %706 = vst [vmem:[%s190 + $0x60] sm:$0xf] %v705
      %707 = vst [vmem:[%s190 + $0x64] sm:$0xf] %v477
      %v708 = vld [vmem:[%s190 + $0x68] sm:$0x1]
      %v709 = vsel %vm193, %v478, %v708
      %710 = vst [vmem:[%s190 + $0x68] sm:$0x1] %v709
      %v711 = vld [vmem:[%s190 + $0x6c] sm:$0xf]
      %v712 = vsel %vm647, %v485, %v711
      %713 = vst [vmem:[%s190 + $0x6c] sm:$0xf] %v712
      %714 = vst [vmem:[%s190 + $0x70] sm:$0xf] %v494
      %v715 = vld [vmem:[%s190 + $0x74] sm:$0x1]
      %v716 = vsel %vm193, %v495, %v715
      %717 = vst [vmem:[%s190 + $0x74] sm:$0x1] %v716
      %v718 = vld [vmem:[%s190 + $0x78] sm:$0xf]
      %v719 = vsel %vm647, %v502, %v718
      %720 = vst [vmem:[%s190 + $0x78] sm:$0xf] %v719
      %721 = vst [vmem:[%s190 + $0x7c] sm:$0xf] %v511
      %v722 = vld [vmem:[%s190 + $0x80] sm:$0x1]
      %v723 = vsel %vm193, %v512, %v722
      %724 = vst [vmem:[%s190 + $0x80] sm:$0x1] %v723
      %v725 = vld [vmem:[%s190 + $0x84] sm:$0xf]
      %v726 = vsel %vm647, %v519, %v725
      %727 = vst [vmem:[%s190 + $0x84] sm:$0xf] %v726
      %728 = vst [vmem:[%s190 + $0x88] sm:$0xf] %v528
      %v729 = vld [vmem:[%s190 + $0x8c] sm:$0x1]
      %v730 = vsel %vm193, %v529, %v729
      %731 = vst [vmem:[%s190 + $0x8c] sm:$0x1] %v730
      %v732 = vld [vmem:[%s190 + $0x90] sm:$0xf]
      %v733 = vsel %vm647, %v536, %v732
      %734 = vst [vmem:[%s190 + $0x90] sm:$0xf] %v733
      %735 = vst [vmem:[%s190 + $0x94] sm:$0xf] %v545
      %v736 = vld [vmem:[%s190 + $0x98] sm:$0x1]
      %v737 = vsel %vm193, %v546, %v736
      %738 = vst [vmem:[%s190 + $0x98] sm:$0x1] %v737
      %v739 = vld [vmem:[%s190 + $0x9c] sm:$0xf]
      %v740 = vsel %vm647, %v553, %v739
      %741 = vst [vmem:[%s190 + $0x9c] sm:$0xf] %v740
      %742 = vst [vmem:[%s190 + $0xa0] sm:$0xf] %v562
      %v743 = vld [vmem:[%s190 + $0xa4] sm:$0x1]
      %v744 = vsel %vm193, %v563, %v743
      %745 = vst [vmem:[%s190 + $0xa4] sm:$0x1] %v744
      %v746 = vld [vmem:[%s190 + $0xa8] sm:$0xf]
      %v747 = vsel %vm647, %v570, %v746
      %748 = vst [vmem:[%s190 + $0xa8] sm:$0xf] %v747
      %749 = vst [vmem:[%s190 + $0xac] sm:$0xf] %v579
      %v750 = vld [vmem:[%s190 + $0xb0] sm:$0x1]
      %v751 = vsel %vm193, %v580, %v750
      %752 = vst [vmem:[%s190 + $0xb0] sm:$0x1] %v751
      %v753 = vld [vmem:[%s190 + $0xb4] sm:$0xf]
      %v754 = vsel %vm647, %v587, %v753
      %755 = vst [vmem:[%s190 + $0xb4] sm:$0xf] %v754
      %756 = vst [vmem:[%s190 + $0xb8] sm:$0xf] %v596
      %v757 = vld [vmem:[%s190 + $0xbc] sm:$0x1]
      %v758 = vsel %vm193, %v597, %v757
      %759 = vst [vmem:[%s190 + $0xbc] sm:$0x1] %v758
      %v760 = vld [vmem:[#allocation2] sm:$0xf]
      %v761 = vld [vmem:[#allocation2 + $0x4] sm:$0xf]
      %v762 = vld [vmem:[#allocation2 + $0x8] sm:$0x1]
      %v763 = vld [vmem:[#allocation2 + $0xc] sm:$0xf]
      %v764 = vld [vmem:[#allocation2 + $0x10] sm:$0xf]
      %v765 = vld [vmem:[#allocation2 + $0x14] sm:$0x1]
      %v766 = vld [vmem:[#allocation2 + $0x18] sm:$0xf]
      %v767 = vld [vmem:[#allocation2 + $0x1c] sm:$0xf]
      %v768 = vld [vmem:[#allocation2 + $0x20] sm:$0x1]
      %v769 = vld [vmem:[#allocation2 + $0x24] sm:$0xf]
      %v770 = vld [vmem:[#allocation2 + $0x28] sm:$0xf]
      %v771 = vld [vmem:[#allocation2 + $0x2c] sm:$0x1]
      %v772 = vld [vmem:[#allocation2 + $0x30] sm:$0xf]
      %v773 = vld [vmem:[#allocation2 + $0x34] sm:$0xf]
      %v774 = vld [vmem:[#allocation2 + $0x38] sm:$0x1]
      %v775 = vld [vmem:[#allocation2 + $0x3c] sm:$0xf]
      %v776 = vld [vmem:[#allocation2 + $0x40] sm:$0xf]
      %v777 = vld [vmem:[#allocation2 + $0x44] sm:$0x1]
      %v778 = vld [vmem:[#allocation2 + $0x48] sm:$0xf]
      %v779 = vld [vmem:[#allocation2 + $0x4c] sm:$0xf]
      %v780 = vld [vmem:[#allocation2 + $0x50] sm:$0x1]
      %v781 = vld [vmem:[#allocation2 + $0x54] sm:$0xf]
      %v782 = vld [vmem:[#allocation2 + $0x58] sm:$0xf]
      %v783 = vld [vmem:[#allocation2 + $0x5c] sm:$0x1]
      %v784 = vld [vmem:[#allocation2 + $0x60] sm:$0xf]
      %v785 = vld [vmem:[#allocation2 + $0x64] sm:$0xf]
      %v786 = vld [vmem:[#allocation2 + $0x68] sm:$0x1]
      %v787 = vld [vmem:[#allocation2 + $0x6c] sm:$0xf]
      %v788 = vld [vmem:[#allocation2 + $0x70] sm:$0xf]
      %v789 = vld [vmem:[#allocation2 + $0x74] sm:$0x1]
      %v790 = vld [vmem:[#allocation2 + $0x78] sm:$0xf]
      %v791 = vld [vmem:[#allocation2 + $0x7c] sm:$0xf]
      %v792 = vld [vmem:[#allocation2 + $0x80] sm:$0x1]
      %v793 = vld [vmem:[#allocation2 + $0x84] sm:$0xf]
      %v794 = vld [vmem:[#allocation2 + $0x88] sm:$0xf]
      %v795 = vld [vmem:[#allocation2 + $0x8c] sm:$0x1]
      %v796 = vld [vmem:[#allocation2 + $0x90] sm:$0xf]
      %v797 = vld [vmem:[#allocation2 + $0x94] sm:$0xf]
      %v798 = vld [vmem:[#allocation2 + $0x98] sm:$0x1]
      %v799 = vld [vmem:[#allocation2 + $0x9c] sm:$0xf]
      %v800 = vld [vmem:[#allocation2 + $0xa0] sm:$0xf]
      %v801 = vld [vmem:[#allocation2 + $0xa4] sm:$0x1]
      %v802 = vld [vmem:[#allocation2 + $0xa8] sm:$0xf]
      %v803 = vld [vmem:[#allocation2 + $0xac] sm:$0xf]
      %v804 = vld [vmem:[#allocation2 + $0xb0] sm:$0x1]
      %v805 = vld [vmem:[#allocation2 + $0xb4] sm:$0xf]
      %v806 = vld [vmem:[#allocation2 + $0xb8] sm:$0xf]
      %v807 = vld [vmem:[#allocation2 + $0xbc] sm:$0x1]
      %v840 = vunpack.c.l.b16 %v760
      %v841 = vunpack.c.l.b16 %v761
      %v842 = vunpack.c.l.b16 %v763
      %v843 = vunpack.c.l.b16 %v764
      %v844 = vunpack.c.l.b16 %v766
      %v845 = vunpack.c.l.b16 %v767
      %v846 = vunpack.c.l.b16 %v769
      %v847 = vunpack.c.l.b16 %v770
      %v848 = vunpack.c.l.b16 %v772
      %v849 = vunpack.c.l.b16 %v773
      %v850 = vunpack.c.l.b16 %v775
      %v851 = vunpack.c.l.b16 %v776
      %v852 = vunpack.c.l.b16 %v778
      %v853 = vunpack.c.l.b16 %v779
      %v854 = vunpack.c.l.b16 %v781
      %v855 = vunpack.c.l.b16 %v782
      %v856 = vunpack.c.l.b16 %v784
      %v857 = vunpack.c.l.b16 %v785
      %v858 = vunpack.c.l.b16 %v787
      %v859 = vunpack.c.l.b16 %v788
      %v860 = vunpack.c.l.b16 %v790
      %v861 = vunpack.c.l.b16 %v791
      %v862 = vunpack.c.l.b16 %v793
      %v863 = vunpack.c.l.b16 %v794
      %v864 = vunpack.c.l.b16 %v796
      %v865 = vunpack.c.l.b16 %v797
      %v866 = vunpack.c.l.b16 %v799
      %v867 = vunpack.c.l.b16 %v800
      %v868 = vunpack.c.l.b16 %v802
      %v869 = vunpack.c.l.b16 %v803
      %v870 = vunpack.c.l.b16 %v805
      %v871 = vunpack.c.l.b16 %v806
      %v872 = vpack.c.b16 %v841, %v840
      %v873 = vpack.c.b16 %v843, %v842
      %v874 = vpack.c.b16 %v845, %v844
      %v875 = vpack.c.b16 %v847, %v846
      %v876 = vpack.c.b16 %v849, %v848
      %v877 = vpack.c.b16 %v851, %v850
      %v878 = vpack.c.b16 %v853, %v852
      %v879 = vpack.c.b16 %v855, %v854
      %v880 = vpack.c.b16 %v857, %v856
      %v881 = vpack.c.b16 %v859, %v858
      %v882 = vpack.c.b16 %v861, %v860
      %v883 = vpack.c.b16 %v863, %v862
      %v884 = vpack.c.b16 %v865, %v864
      %v885 = vpack.c.b16 %v867, %v866
      %v886 = vpack.c.b16 %v869, %v868
      %v887 = vpack.c.b16 %v871, %v870
      %v920 = vunpack.c.l.b16 %v762
      %v921 = vunpack.c.l.b16 %v765
      %v922 = vunpack.c.l.b16 %v768
      %v923 = vunpack.c.l.b16 %v771
      %v924 = vunpack.c.l.b16 %v774
      %v925 = vunpack.c.l.b16 %v777
      %v926 = vunpack.c.l.b16 %v780
      %v927 = vunpack.c.l.b16 %v783
      %v928 = vunpack.c.l.b16 %v786
      %v929 = vunpack.c.l.b16 %v789
      %v930 = vunpack.c.l.b16 %v792
      %v931 = vunpack.c.l.b16 %v795
      %v932 = vunpack.c.l.b16 %v798
      %v933 = vunpack.c.l.b16 %v801
      %v934 = vunpack.c.l.b16 %v804
      %v935 = vunpack.c.l.b16 %v807
      %v936 = vpack.c.b16 %v920, %v920
      %v937 = vpack.c.b16 %v921, %v921
      %v938 = vpack.c.b16 %v922, %v922
      %v939 = vpack.c.b16 %v923, %v923
      %v940 = vpack.c.b16 %v924, %v924
      %v941 = vpack.c.b16 %v925, %v925
      %v942 = vpack.c.b16 %v926, %v926
      %v943 = vpack.c.b16 %v927, %v927
      %v944 = vpack.c.b16 %v928, %v928
      %v945 = vpack.c.b16 %v929, %v929
      %v946 = vpack.c.b16 %v930, %v930
      %v947 = vpack.c.b16 %v931, %v931
      %v948 = vpack.c.b16 %v932, %v932
      %v949 = vpack.c.b16 %v933, %v933
      %v950 = vpack.c.b16 %v934, %v934
      %v951 = vpack.c.b16 %v935, %v935
      %vm952 = vsmask.f32 7424
      %v954 = vshrl.u32 %v872, 16
      %v956 = vshll.u32 %v872, 16
      %v958 = vrot.slane %v956, 1
      %v959 = vor.u32 %v954, %v958
      %v961 = vshll.u32 %v936, 16
      %v963 = vrot.slane %v961, 1
      %v964 = vsel %vm952, %v959, %v963
      %v966 = vshrl.u32 %v873, 16
      %v968 = vshll.u32 %v873, 16
      %v970 = vrot.slane %v968, 1
      %v971 = vor.u32 %v966, %v970
      %v973 = vshll.u32 %v937, 16
      %v975 = vrot.slane %v973, 1
      %v976 = vsel %vm952, %v971, %v975
      %v978 = vshrl.u32 %v874, 16
      %v980 = vshll.u32 %v874, 16
      %v982 = vrot.slane %v980, 1
      %v983 = vor.u32 %v978, %v982
      %v985 = vshll.u32 %v938, 16
      %v987 = vrot.slane %v985, 1
      %v988 = vsel %vm952, %v983, %v987
      %v990 = vshrl.u32 %v875, 16
      %v992 = vshll.u32 %v875, 16
      %v994 = vrot.slane %v992, 1
      %v995 = vor.u32 %v990, %v994
      %v997 = vshll.u32 %v939, 16
      %v999 = vrot.slane %v997, 1
      %v1000 = vsel %vm952, %v995, %v999
      %v1002 = vshrl.u32 %v876, 16
      %v1004 = vshll.u32 %v876, 16
      %v1006 = vrot.slane %v1004, 1
      %v1007 = vor.u32 %v1002, %v1006
      %v1009 = vshll.u32 %v940, 16
      %v1011 = vrot.slane %v1009, 1
      %v1012 = vsel %vm952, %v1007, %v1011
      %v1014 = vshrl.u32 %v877, 16
      %v1016 = vshll.u32 %v877, 16
      %v1018 = vrot.slane %v1016, 1
      %v1019 = vor.u32 %v1014, %v1018
      %v1021 = vshll.u32 %v941, 16
      %v1023 = vrot.slane %v1021, 1
      %v1024 = vsel %vm952, %v1019, %v1023
      %v1026 = vshrl.u32 %v878, 16
      %v1028 = vshll.u32 %v878, 16
      %v1030 = vrot.slane %v1028, 1
      %v1031 = vor.u32 %v1026, %v1030
      %v1033 = vshll.u32 %v942, 16
      %v1035 = vrot.slane %v1033, 1
      %v1036 = vsel %vm952, %v1031, %v1035
      %v1038 = vshrl.u32 %v879, 16
      %v1040 = vshll.u32 %v879, 16
      %v1042 = vrot.slane %v1040, 1
      %v1043 = vor.u32 %v1038, %v1042
      %v1045 = vshll.u32 %v943, 16
      %v1047 = vrot.slane %v1045, 1
      %v1048 = vsel %vm952, %v1043, %v1047
      %v1050 = vshrl.u32 %v880, 16
      %v1052 = vshll.u32 %v880, 16
      %v1054 = vrot.slane %v1052, 1
      %v1055 = vor.u32 %v1050, %v1054
      %v1057 = vshll.u32 %v944, 16
      %v1059 = vrot.slane %v1057, 1
      %v1060 = vsel %vm952, %v1055, %v1059
      %v1062 = vshrl.u32 %v881, 16
      %v1064 = vshll.u32 %v881, 16
      %v1066 = vrot.slane %v1064, 1
      %v1067 = vor.u32 %v1062, %v1066
      %v1069 = vshll.u32 %v945, 16
      %v1071 = vrot.slane %v1069, 1
      %v1072 = vsel %vm952, %v1067, %v1071
      %v1074 = vshrl.u32 %v882, 16
      %v1076 = vshll.u32 %v882, 16
      %v1078 = vrot.slane %v1076, 1
      %v1079 = vor.u32 %v1074, %v1078
      %v1081 = vshll.u32 %v946, 16
      %v1083 = vrot.slane %v1081, 1
      %v1084 = vsel %vm952, %v1079, %v1083
      %v1086 = vshrl.u32 %v883, 16
      %v1088 = vshll.u32 %v883, 16
      %v1090 = vrot.slane %v1088, 1
      %v1091 = vor.u32 %v1086, %v1090
      %v1093 = vshll.u32 %v947, 16
      %v1095 = vrot.slane %v1093, 1
      %v1096 = vsel %vm952, %v1091, %v1095
      %v1098 = vshrl.u32 %v884, 16
      %v1100 = vshll.u32 %v884, 16
      %v1102 = vrot.slane %v1100, 1
      %v1103 = vor.u32 %v1098, %v1102
      %v1105 = vshll.u32 %v948, 16
      %v1107 = vrot.slane %v1105, 1
      %v1108 = vsel %vm952, %v1103, %v1107
      %v1110 = vshrl.u32 %v885, 16
      %v1112 = vshll.u32 %v885, 16
      %v1114 = vrot.slane %v1112, 1
      %v1115 = vor.u32 %v1110, %v1114
      %v1117 = vshll.u32 %v949, 16
      %v1119 = vrot.slane %v1117, 1
      %v1120 = vsel %vm952, %v1115, %v1119
      %v1122 = vshrl.u32 %v886, 16
      %v1124 = vshll.u32 %v886, 16
      %v1126 = vrot.slane %v1124, 1
      %v1127 = vor.u32 %v1122, %v1126
      %v1129 = vshll.u32 %v950, 16
      %v1131 = vrot.slane %v1129, 1
      %v1132 = vsel %vm952, %v1127, %v1131
      %v1134 = vshrl.u32 %v887, 16
      %v1136 = vshll.u32 %v887, 16
      %v1138 = vrot.slane %v1136, 1
      %v1139 = vor.u32 %v1134, %v1138
      %v1141 = vshll.u32 %v951, 16
      %v1143 = vrot.slane %v1141, 1
      %v1144 = vsel %vm952, %v1139, %v1143
      %vm1161 = vcmask 1046528
      %v1162 = vrot.slane %v872, 1
      %v1163 = vrot.slane %v936, 1
      %v1164 = vsel %vm1161, %v1162, %v1163
      %v1165 = vrot.slane %v873, 1
      %v1166 = vrot.slane %v937, 1
      %v1167 = vsel %vm1161, %v1165, %v1166
      %v1168 = vrot.slane %v874, 1
      %v1169 = vrot.slane %v938, 1
      %v1170 = vsel %vm1161, %v1168, %v1169
      %v1171 = vrot.slane %v875, 1
      %v1172 = vrot.slane %v939, 1
      %v1173 = vsel %vm1161, %v1171, %v1172
      %v1174 = vrot.slane %v876, 1
      %v1175 = vrot.slane %v940, 1
      %v1176 = vsel %vm1161, %v1174, %v1175
      %v1177 = vrot.slane %v877, 1
      %v1178 = vrot.slane %v941, 1
      %v1179 = vsel %vm1161, %v1177, %v1178
      %v1180 = vrot.slane %v878, 1
      %v1181 = vrot.slane %v942, 1
      %v1182 = vsel %vm1161, %v1180, %v1181
      %v1183 = vrot.slane %v879, 1
      %v1184 = vrot.slane %v943, 1
      %v1185 = vsel %vm1161, %v1183, %v1184
      %v1186 = vrot.slane %v880, 1
      %v1187 = vrot.slane %v944, 1
      %v1188 = vsel %vm1161, %v1186, %v1187
      %v1189 = vrot.slane %v881, 1
      %v1190 = vrot.slane %v945, 1
      %v1191 = vsel %vm1161, %v1189, %v1190
      %v1192 = vrot.slane %v882, 1
      %v1193 = vrot.slane %v946, 1
      %v1194 = vsel %vm1161, %v1192, %v1193
      %v1195 = vrot.slane %v883, 1
      %v1196 = vrot.slane %v947, 1
      %v1197 = vsel %vm1161, %v1195, %v1196
      %v1198 = vrot.slane %v884, 1
      %v1199 = vrot.slane %v948, 1
      %v1200 = vsel %vm1161, %v1198, %v1199
      %v1201 = vrot.slane %v885, 1
      %v1202 = vrot.slane %v949, 1
      %v1203 = vsel %vm1161, %v1201, %v1202
      %v1204 = vrot.slane %v886, 1
      %v1205 = vrot.slane %v950, 1
      %v1206 = vsel %vm1161, %v1204, %v1205
      %v1207 = vrot.slane %v887, 1
      %v1208 = vrot.slane %v951, 1
      %v1209 = vsel %vm1161, %v1207, %v1208
      %v1226 = vld [vmem:[%s1] sm:$0xf]
      %v1227 = vld [vmem:[%s1 + $0x4] sm:$0xf]
      %v1228 = vld [vmem:[%s1 + $0x8] sm:$0xf]
      %v1229 = vld [vmem:[%s1 + $0xc] sm:$0xf]
      %v1230 = vld [vmem:[%s1 + $0x10] sm:$0xf]
      %v1231 = vld [vmem:[%s1 + $0x14] sm:$0xf]
      %v1232 = vld [vmem:[%s1 + $0x18] sm:$0xf]
      %v1233 = vld [vmem:[%s1 + $0x1c] sm:$0xf]
      %v1234 = vld [vmem:[%s1 + $0x20] sm:$0xf]
      %v1235 = vld [vmem:[%s1 + $0x24] sm:$0xf]
      %v1236 = vld [vmem:[%s1 + $0x28] sm:$0xf]
      %v1237 = vld [vmem:[%s1 + $0x2c] sm:$0xf]
      %v1238 = vld [vmem:[%s1 + $0x30] sm:$0xf]
      %v1239 = vld [vmem:[%s1 + $0x34] sm:$0xf]
      %v1240 = vld [vmem:[%s1 + $0x38] sm:$0xf]
      %v1241 = vld [vmem:[%s1 + $0x3c] sm:$0xf]
      %v1242 = vld [vmem:[%s1 + $0x40] sm:$0xf]
      %v1243 = vld [vmem:[%s1 + $0x44] sm:$0xf]
      %v1244 = vld [vmem:[%s1 + $0x48] sm:$0xf]
      %v1245 = vld [vmem:[%s1 + $0x4c] sm:$0xf]
      %v1246 = vld [vmem:[%s1 + $0x50] sm:$0xf]
      %v1247 = vld [vmem:[%s1 + $0x54] sm:$0xf]
      %v1248 = vld [vmem:[%s1 + $0x58] sm:$0xf]
      %v1249 = vld [vmem:[%s1 + $0x5c] sm:$0xf]
      %v1250 = vld [vmem:[%s1 + $0x60] sm:$0xf]
      %v1251 = vld [vmem:[%s1 + $0x64] sm:$0xf]
      %v1252 = vld [vmem:[%s1 + $0x68] sm:$0xf]
      %v1253 = vld [vmem:[%s1 + $0x6c] sm:$0xf]
      %v1254 = vld [vmem:[%s1 + $0x70] sm:$0xf]
      %v1255 = vld [vmem:[%s1 + $0x74] sm:$0xf]
      %v1256 = vld [vmem:[%s1 + $0x78] sm:$0xf]
      %v1257 = vld [vmem:[%s1 + $0x7c] sm:$0xf]
      %v1258 = vld [vmem:[%s1 + $0x80] sm:$0xf]
      %v1259 = vld [vmem:[%s1 + $0x84] sm:$0xf]
      %v1260 = vld [vmem:[%s1 + $0x88] sm:$0xf]
      %v1261 = vld [vmem:[%s1 + $0x8c] sm:$0xf]
      %v1262 = vld [vmem:[%s1 + $0x90] sm:$0xf]
      %v1263 = vld [vmem:[%s1 + $0x94] sm:$0xf]
      %v1264 = vld [vmem:[%s1 + $0x98] sm:$0xf]
      %v1265 = vld [vmem:[%s1 + $0x9c] sm:$0xf]
      %v1266 = vld [vmem:[%s1 + $0xa0] sm:$0xf]
      %v1267 = vld [vmem:[%s1 + $0xa4] sm:$0xf]
      %v1268 = vld [vmem:[%s1 + $0xa8] sm:$0xf]
      %v1269 = vld [vmem:[%s1 + $0xac] sm:$0xf]
      %v1270 = vld [vmem:[%s1 + $0xb0] sm:$0xf]
      %v1271 = vld [vmem:[%s1 + $0xb4] sm:$0xf]
      %v1272 = vld [vmem:[%s1 + $0xb8] sm:$0xf]
      %v1273 = vld [vmem:[%s1 + $0xbc] sm:$0xf]
      %v1322 = vunpack.c.l.b16 %v1226
      %v1323 = vunpack.c.l.b16 %v1227
      %v1324 = vunpack.c.l.b16 %v1228
      %v1325 = vunpack.c.l.b16 %v1229
      %v1326 = vunpack.c.l.b16 %v1230
      %v1327 = vunpack.c.l.b16 %v1231
      %v1328 = vunpack.c.l.b16 %v1232
      %v1329 = vunpack.c.l.b16 %v1233
      %v1330 = vunpack.c.l.b16 %v1234
      %v1331 = vunpack.c.l.b16 %v1235
      %v1332 = vunpack.c.l.b16 %v1236
      %v1333 = vunpack.c.l.b16 %v1237
      %v1334 = vunpack.c.l.b16 %v1238
      %v1335 = vunpack.c.l.b16 %v1239
      %v1336 = vunpack.c.l.b16 %v1240
      %v1337 = vunpack.c.l.b16 %v1241
      %v1338 = vunpack.c.l.b16 %v1242
      %v1339 = vunpack.c.l.b16 %v1243
      %v1340 = vunpack.c.l.b16 %v1244
      %v1341 = vunpack.c.l.b16 %v1245
      %v1342 = vunpack.c.l.b16 %v1246
      %v1343 = vunpack.c.l.b16 %v1247
      %v1344 = vunpack.c.l.b16 %v1248
      %v1345 = vunpack.c.l.b16 %v1249
      %v1346 = vunpack.c.l.b16 %v1250
      %v1347 = vunpack.c.l.b16 %v1251
      %v1348 = vunpack.c.l.b16 %v1252
      %v1349 = vunpack.c.l.b16 %v1253
      %v1350 = vunpack.c.l.b16 %v1254
      %v1351 = vunpack.c.l.b16 %v1255
      %v1352 = vunpack.c.l.b16 %v1256
      %v1353 = vunpack.c.l.b16 %v1257
      %v1354 = vunpack.c.l.b16 %v1258
      %v1355 = vunpack.c.l.b16 %v1259
      %v1356 = vunpack.c.l.b16 %v1260
      %v1357 = vunpack.c.l.b16 %v1261
      %v1358 = vunpack.c.l.b16 %v1262
      %v1359 = vunpack.c.l.b16 %v1263
      %v1360 = vunpack.c.l.b16 %v1264
      %v1361 = vunpack.c.l.b16 %v1265
      %v1362 = vunpack.c.l.b16 %v1266
      %v1363 = vunpack.c.l.b16 %v1267
      %v1364 = vunpack.c.l.b16 %v1268
      %v1365 = vunpack.c.l.b16 %v1269
      %v1366 = vunpack.c.l.b16 %v1270
      %v1367 = vunpack.c.l.b16 %v1271
      %v1368 = vunpack.c.l.b16 %v1272
      %v1369 = vunpack.c.l.b16 %v1273
      %v1370 = vpack.c.b16 %v1323, %v1322
      %v1371 = vpack.c.b16 %v1325, %v1324
      %v1372 = vpack.c.b16 %v1327, %v1326
      %v1373 = vpack.c.b16 %v1329, %v1328
      %v1374 = vpack.c.b16 %v1331, %v1330
      %v1375 = vpack.c.b16 %v1333, %v1332
      %v1376 = vpack.c.b16 %v1335, %v1334
      %v1377 = vpack.c.b16 %v1337, %v1336
      %v1378 = vpack.c.b16 %v1339, %v1338
      %v1379 = vpack.c.b16 %v1341, %v1340
      %v1380 = vpack.c.b16 %v1343, %v1342
      %v1381 = vpack.c.b16 %v1345, %v1344
      %v1382 = vpack.c.b16 %v1347, %v1346
      %v1383 = vpack.c.b16 %v1349, %v1348
      %v1384 = vpack.c.b16 %v1351, %v1350
      %v1385 = vpack.c.b16 %v1353, %v1352
      %v1386 = vpack.c.b16 %v1355, %v1354
      %v1387 = vpack.c.b16 %v1357, %v1356
      %v1388 = vpack.c.b16 %v1359, %v1358
      %v1389 = vpack.c.b16 %v1361, %v1360
      %v1390 = vpack.c.b16 %v1363, %v1362
      %v1391 = vpack.c.b16 %v1365, %v1364
      %v1392 = vpack.c.b16 %v1367, %v1366
      %v1393 = vpack.c.b16 %v1369, %v1368
      %1418 = vmatprep.subr.bf16.mxu0 0
      %1419 = vmatpush1.bf16.msra.mxu0 %v1370
      %1420 = vmatprep.subr.bf16.mxu0 0
      %1421 = vmatpush1.bf16.msra.mxu0 %v1371
      %1422 = vmatprep.subr.bf16.mxu0 0
      %1423 = vmatpush1.bf16.msra.mxu0 %v1372
      %1424 = vmatprep.subr.bf16.mxu0 0
      %1425 = vmatpush1.bf16.msra.mxu0 %v1373
      %1426 = vmatprep.subr.bf16.mxu0 0
      %1427 = vmatpush1.bf16.msra.mxu0 %v1374
      %1428 = vmatprep.subr.bf16.mxu0 0
      %1429 = vmatpush1.bf16.msra.mxu0 %v1375
      %1430 = vmatprep.subr.bf16.mxu0 0
      %1431 = vmatpush1.bf16.msra.mxu0 %v1376
      %1432 = vmatprep.subr.bf16.mxu0 0
      %1433 = vmatpush1.bf16.msra.mxu0 %v1377
      %1434 = vmatprep.subr.bf16.mxu0 0
      %1435 = vmatpush1.bf16.msra.mxu0 %v1378
      %1436 = vmatprep.subr.bf16.mxu0 0
      %1437 = vmatpush1.bf16.msra.mxu0 %v1379
      %1438 = vmatprep.subr.bf16.mxu0 0
      %1439 = vmatpush1.bf16.msra.mxu0 %v1380
      %1440 = vmatprep.subr.bf16.mxu0 0
      %1441 = vmatpush1.bf16.msra.mxu0 %v1381
      %1442 = vmatprep.subr.bf16.mxu0 0
      %1443 = vmatpush1.bf16.msra.mxu0 %v1382
      %1444 = vmatprep.subr.bf16.mxu0 0
      %1445 = vmatpush1.bf16.msra.mxu0 %v1383
      %1446 = vmatprep.subr.bf16.mxu0 0
      %1447 = vmatpush1.bf16.msra.mxu0 %v1384
      %1448 = vmatprep.subr.bf16.mxu0 0
      %1449 = vmatpush1.bf16.msra.mxu0 %v1385
      %1450 = vmatprep.mubr.bf16.mxu0 %v964
      %1451 = vmatmul.mubr.bf16.gmra.mrb[0].mxu0 %v872
      %v1452 = vpop.f32.mrb[0].mxu0
      %v1453 = vadd.f32 0.0, %v1452
      %v1454 = vpop.f32.mrb[0].mxu0
      %v1455 = vpop.f32.mrb[0].mxu0
      %v1456 = vadd.f32 0.0, %v1455
      %v1457 = vpop.f32.mrb[0].mxu0
      %1458 = vmatprep.mubr.bf16.mxu0 %v976
      %1459 = vmatmul.mubr.bf16.gmra.mrb[0].mxu0 %v873
      %v1460 = vpop.f32.mrb[0].mxu0
      %v1461 = vadd.f32 0.0, %v1460
      %v1462 = vpop.f32.mrb[0].mxu0
      %v1463 = vpop.f32.mrb[0].mxu0
      %v1464 = vadd.f32 0.0, %v1463
      %v1465 = vpop.f32.mrb[0].mxu0
      %1466 = vmatprep.mubr.bf16.mxu0 %v988
      %1467 = vmatmul.mubr.bf16.gmra.mrb[0].mxu0 %v874
      %v1468 = vpop.f32.mrb[0].mxu0
      %v1469 = vadd.f32 0.0, %v1468
      %v1470 = vpop.f32.mrb[0].mxu0
      %v1471 = vpop.f32.mrb[0].mxu0
      %v1472 = vadd.f32 0.0, %v1471
      %v1473 = vpop.f32.mrb[0].mxu0
      %1474 = vmatprep.mubr.bf16.mxu0 %v1000
      %1475 = vmatmul.mubr.bf16.gmra.mrb[0].mxu0 %v875
      %v1476 = vpop.f32.mrb[0].mxu0
      %v1477 = vadd.f32 0.0, %v1476
      %v1478 = vpop.f32.mrb[0].mxu0
      %v1479 = vpop.f32.mrb[0].mxu0
      %v1480 = vadd.f32 0.0, %v1479
      %v1481 = vpop.f32.mrb[0].mxu0
      %1482 = vmatprep.mubr.bf16.mxu0 %v1012
      %1483 = vmatmul.mubr.bf16.gmra.mrb[0].mxu0 %v876
      %v1484 = vpop.f32.mrb[0].mxu0
      %v1485 = vadd.f32 0.0, %v1484
      %v1486 = vpop.f32.mrb[0].mxu0
      %v1487 = vpop.f32.mrb[0].mxu0
      %v1488 = vadd.f32 0.0, %v1487
      %v1489 = vpop.f32.mrb[0].mxu0
      %1490 = vmatprep.mubr.bf16.mxu0 %v1024
      %1491 = vmatmul.mubr.bf16.gmra.mrb[0].mxu0 %v877
      %v1492 = vpop.f32.mrb[0].mxu0
      %v1493 = vadd.f32 0.0, %v1492
      %v1494 = vpop.f32.mrb[0].mxu0
      %v1495 = vpop.f32.mrb[0].mxu0
      %v1496 = vadd.f32 0.0, %v1495
      %v1497 = vpop.f32.mrb[0].mxu0
      %1498 = vmatprep.mubr.bf16.mxu0 %v1036
      %1499 = vmatmul.mubr.bf16.gmra.mrb[0].mxu0 %v878
      %v1500 = vpop.f32.mrb[0].mxu0
      %v1501 = vadd.f32 0.0, %v1500
      %v1502 = vpop.f32.mrb[0].mxu0
      %v1503 = vpop.f32.mrb[0].mxu0
      %v1504 = vadd.f32 0.0, %v1503
      %v1505 = vpop.f32.mrb[0].mxu0
      %1506 = vmatprep.mubr.bf16.mxu0 %v1048
      %1507 = vmatmul.mubr.bf16.gmra.mrb[0].mxu0 %v879
      %v1508 = vpop.f32.mrb[0].mxu0
      %v1509 = vadd.f32 0.0, %v1508
      %v1510 = vpop.f32.mrb[0].mxu0
      %v1511 = vpop.f32.mrb[0].mxu0
      %v1512 = vadd.f32 0.0, %v1511
      %v1513 = vpop.f32.mrb[0].mxu0
      %1514 = vmatprep.mubr.bf16.mxu0 %v1060
      %1515 = vmatmul.mubr.bf16.gmra.mrb[0].mxu0 %v880
      %v1516 = vpop.f32.mrb[0].mxu0
      %v1517 = vadd.f32 0.0, %v1516
      %v1518 = vpop.f32.mrb[0].mxu0
      %v1519 = vpop.f32.mrb[0].mxu0
      %v1520 = vadd.f32 0.0, %v1519
      %v1521 = vpop.f32.mrb[0].mxu0
      %1522 = vmatprep.mubr.bf16.mxu0 %v1072
      %1523 = vmatmul.mubr.bf16.gmra.mrb[0].mxu0 %v881
      %v1524 = vpop.f32.mrb[0].mxu0
      %v1525 = vadd.f32 0.0, %v1524
      %v1526 = vpop.f32.mrb[0].mxu0
      %v1527 = vpop.f32.mrb[0].mxu0
      %v1528 = vadd.f32 0.0, %v1527
      %v1529 = vpop.f32.mrb[0].mxu0
      %1530 = vmatprep.mubr.bf16.mxu0 %v1084
      %1531 = vmatmul.mubr.bf16.gmra.mrb[0].mxu0 %v882
      %v1532 = vpop.f32.mrb[0].mxu0
      %v1533 = vadd.f32 0.0, %v1532
      %v1534 = vpop.f32.mrb[0].mxu0
      %v1535 = vpop.f32.mrb[0].mxu0
      %v1536 = vadd.f32 0.0, %v1535
      %v1537 = vpop.f32.mrb[0].mxu0
      %1538 = vmatprep.mubr.bf16.mxu0 %v1096
      %1539 = vmatmul.mubr.bf16.gmra.mrb[0].mxu0 %v883
      %v1540 = vpop.f32.mrb[0].mxu0
      %v1541 = vadd.f32 0.0, %v1540
      %v1542 = vpop.f32.mrb[0].mxu0
      %v1543 = vpop.f32.mrb[0].mxu0
      %v1544 = vadd.f32 0.0, %v1543
      %v1545 = vpop.f32.mrb[0].mxu0
      %1546 = vmatprep.mubr.bf16.mxu0 %v1108
      %1547 = vmatmul.mubr.bf16.gmra.mrb[0].mxu0 %v884
      %v1548 = vpop.f32.mrb[0].mxu0
      %v1549 = vadd.f32 0.0, %v1548
      %v1550 = vpop.f32.mrb[0].mxu0
      %v1551 = vpop.f32.mrb[0].mxu0
      %v1552 = vadd.f32 0.0, %v1551
      %v1553 = vpop.f32.mrb[0].mxu0
      %1554 = vmatprep.mubr.bf16.mxu0 %v1120
      %1555 = vmatmul.mubr.bf16.gmra.mrb[0].mxu0 %v885
      %v1556 = vpop.f32.mrb[0].mxu0
      %v1557 = vadd.f32 0.0, %v1556
      %v1558 = vpop.f32.mrb[0].mxu0
      %v1559 = vpop.f32.mrb[0].mxu0
      %v1560 = vadd.f32 0.0, %v1559
      %v1561 = vpop.f32.mrb[0].mxu0
      %1562 = vmatprep.mubr.bf16.mxu0 %v1132
      %1563 = vmatmul.mubr.bf16.gmra.mrb[0].mxu0 %v886
      %v1564 = vpop.f32.mrb[0].mxu0
      %v1565 = vadd.f32 0.0, %v1564
      %v1566 = vpop.f32.mrb[0].mxu0
      %v1567 = vpop.f32.mrb[0].mxu0
      %v1568 = vadd.f32 0.0, %v1567
      %v1569 = vpop.f32.mrb[0].mxu0
      %1570 = vmatprep.mubr.bf16.mxu0 %v1144
      %1571 = vmatmul.mubr.bf16.gmra.mrb[0].mxu0 %v887
      %v1572 = vpop.f32.mrb[0].mxu0
      %v1573 = vadd.f32 0.0, %v1572
      %v1574 = vpop.f32.mrb[0].mxu0
      %v1575 = vpop.f32.mrb[0].mxu0
      %v1576 = vadd.f32 0.0, %v1575
      %v1577 = vpop.f32.mrb[0].mxu0
      %1578 = vdwg.mxu0
      %1579 = vmatprep.subr.bf16.mxu0 0
      %1580 = vmatpush1.bf16.msra.mxu0 %v1386
      %1581 = vmatprep.subr.bf16.mxu0 0
      %1582 = vmatpush1.bf16.msra.mxu0 %v1387
      %1583 = vmatprep.subr.bf16.mxu0 0
      %1584 = vmatpush1.bf16.msra.mxu0 %v1388
      %1585 = vmatprep.subr.bf16.mxu0 0
      %1586 = vmatpush1.bf16.msra.mxu0 %v1389
      %1587 = vmatprep.subr.bf16.mxu0 0
      %1588 = vmatpush1.bf16.msra.mxu0 %v1390
      %1589 = vmatprep.subr.bf16.mxu0 0
      %1590 = vmatpush1.bf16.msra.mxu0 %v1391
      %1591 = vmatprep.subr.bf16.mxu0 0
      %1592 = vmatpush1.bf16.msra.mxu0 %v1392
      %1593 = vmatprep.subr.bf16.mxu0 0
      %1594 = vmatpush1.bf16.msra.mxu0 %v1393
      %1595 = vmatprep.subr.bf16.mxu0 0
      %1596 = vmatpush1.bf16.msra.mxu0 0
      %1597 = vmatprep.subr.bf16.mxu0 0
      %1598 = vmatpush1.bf16.msra.mxu0 0
      %1599 = vmatprep.subr.bf16.mxu0 0
      %1600 = vmatpush1.bf16.msra.mxu0 0
      %1601 = vmatprep.subr.bf16.mxu0 0
      %1602 = vmatpush1.bf16.msra.mxu0 0
      %1603 = vmatprep.subr.bf16.mxu0 0
      %1604 = vmatpush1.bf16.msra.mxu0 0
      %1605 = vmatprep.subr.bf16.mxu0 0
      %1606 = vmatpush1.bf16.msra.mxu0 0
      %1607 = vmatprep.subr.bf16.mxu0 0
      %1608 = vmatpush1.bf16.msra.mxu0 0
      %1609 = vmatprep.subr.bf16.mxu0 0
      %1610 = vmatpush1.bf16.msra.mxu0 0
      %1611 = vmatprep.mubr.bf16.mxu0 0
      %1612 = vmatmul.mubr.bf16.gmra.mrb[0].mxu0 %v1164
      %v1613 = vpop.f32.mrb[0].mxu0
      %v1614 = vadd.f32 %v1453, %v1613
      %v1615 = vpop.f32.mrb[0].mxu0
      %v1616 = vpop.f32.mrb[0].mxu0
      %v1617 = vadd.f32 %v1456, %v1616
      %v1618 = vpop.f32.mrb[0].mxu0
      %1619 = vmatprep.mubr.bf16.mxu0 0
      %1620 = vmatmul.mubr.bf16.gmra.mrb[0].mxu0 %v1167
      %v1621 = vpop.f32.mrb[0].mxu0
      %v1622 = vadd.f32 %v1461, %v1621
      %v1623 = vpop.f32.mrb[0].mxu0
      %v1624 = vpop.f32.mrb[0].mxu0
      %v1625 = vadd.f32 %v1464, %v1624
      %v1626 = vpop.f32.mrb[0].mxu0
      %1627 = vmatprep.mubr.bf16.mxu0 0
      %1628 = vmatmul.mubr.bf16.gmra.mrb[0].mxu0 %v1170
      %v1629 = vpop.f32.mrb[0].mxu0
      %v1630 = vadd.f32 %v1469, %v1629
      %v1631 = vpop.f32.mrb[0].mxu0
      %v1632 = vpop.f32.mrb[0].mxu0
      %v1633 = vadd.f32 %v1472, %v1632
      %v1634 = vpop.f32.mrb[0].mxu0
      %1635 = vmatprep.mubr.bf16.mxu0 0
      %1636 = vmatmul.mubr.bf16.gmra.mrb[0].mxu0 %v1173
      %v1637 = vpop.f32.mrb[0].mxu0
      %v1638 = vadd.f32 %v1477, %v1637
      %v1639 = vpop.f32.mrb[0].mxu0
      %v1640 = vpop.f32.mrb[0].mxu0
      %v1641 = vadd.f32 %v1480, %v1640
      %v1642 = vpop.f32.mrb[0].mxu0
      %1643 = vmatprep.mubr.bf16.mxu0 0
      %1644 = vmatmul.mubr.bf16.gmra.mrb[0].mxu0 %v1176
      %v1645 = vpop.f32.mrb[0].mxu0
      %v1646 = vadd.f32 %v1485, %v1645
      %v1647 = vpop.f32.mrb[0].mxu0
      %v1648 = vpop.f32.mrb[0].mxu0
      %v1649 = vadd.f32 %v1488, %v1648
      %v1650 = vpop.f32.mrb[0].mxu0
      %1651 = vmatprep.mubr.bf16.mxu0 0
      %1652 = vmatmul.mubr.bf16.gmra.mrb[0].mxu0 %v1179
      %v1653 = vpop.f32.mrb[0].mxu0
      %v1654 = vadd.f32 %v1493, %v1653
      %v1655 = vpop.f32.mrb[0].mxu0
      %v1656 = vpop.f32.mrb[0].mxu0
      %v1657 = vadd.f32 %v1496, %v1656
      %v1658 = vpop.f32.mrb[0].mxu0
      %1659 = vmatprep.mubr.bf16.mxu0 0
      %1660 = vmatmul.mubr.bf16.gmra.mrb[0].mxu0 %v1182
      %v1661 = vpop.f32.mrb[0].mxu0
      %v1662 = vadd.f32 %v1501, %v1661
      %v1663 = vpop.f32.mrb[0].mxu0
      %v1664 = vpop.f32.mrb[0].mxu0
      %v1665 = vadd.f32 %v1504, %v1664
      %v1666 = vpop.f32.mrb[0].mxu0
      %1667 = vmatprep.mubr.bf16.mxu0 0
      %1668 = vmatmul.mubr.bf16.gmra.mrb[0].mxu0 %v1185
      %v1669 = vpop.f32.mrb[0].mxu0
      %v1670 = vadd.f32 %v1509, %v1669
      %v1671 = vpop.f32.mrb[0].mxu0
      %v1672 = vpop.f32.mrb[0].mxu0
      %v1673 = vadd.f32 %v1512, %v1672
      %v1674 = vpop.f32.mrb[0].mxu0
      %1675 = vmatprep.mubr.bf16.mxu0 0
      %1676 = vmatmul.mubr.bf16.gmra.mrb[0].mxu0 %v1188
      %v1677 = vpop.f32.mrb[0].mxu0
      %v1678 = vadd.f32 %v1517, %v1677
      %v1679 = vpop.f32.mrb[0].mxu0
      %v1680 = vpop.f32.mrb[0].mxu0
      %v1681 = vadd.f32 %v1520, %v1680
      %v1682 = vpop.f32.mrb[0].mxu0
      %1683 = vmatprep.mubr.bf16.mxu0 0
      %1684 = vmatmul.mubr.bf16.gmra.mrb[0].mxu0 %v1191
      %v1685 = vpop.f32.mrb[0].mxu0
      %v1686 = vadd.f32 %v1525, %v1685
      %v1687 = vpop.f32.mrb[0].mxu0
      %v1688 = vpop.f32.mrb[0].mxu0
      %v1689 = vadd.f32 %v1528, %v1688
      %v1690 = vpop.f32.mrb[0].mxu0
      %1691 = vmatprep.mubr.bf16.mxu0 0
      %1692 = vmatmul.mubr.bf16.gmra.mrb[0].mxu0 %v1194
      %v1693 = vpop.f32.mrb[0].mxu0
      %v1694 = vadd.f32 %v1533, %v1693
      %v1695 = vpop.f32.mrb[0].mxu0
      %v1696 = vpop.f32.mrb[0].mxu0
      %v1697 = vadd.f32 %v1536, %v1696
      %v1698 = vpop.f32.mrb[0].mxu0
      %1699 = vmatprep.mubr.bf16.mxu0 0
      %1700 = vmatmul.mubr.bf16.gmra.mrb[0].mxu0 %v1197
      %v1701 = vpop.f32.mrb[0].mxu0
      %v1702 = vadd.f32 %v1541, %v1701
      %v1703 = vpop.f32.mrb[0].mxu0
      %v1704 = vpop.f32.mrb[0].mxu0
      %v1705 = vadd.f32 %v1544, %v1704
      %v1706 = vpop.f32.mrb[0].mxu0
      %1707 = vmatprep.mubr.bf16.mxu0 0
      %1708 = vmatmul.mubr.bf16.gmra.mrb[0].mxu0 %v1200
      %v1709 = vpop.f32.mrb[0].mxu0
      %v1710 = vadd.f32 %v1549, %v1709
      %v1711 = vpop.f32.mrb[0].mxu0
      %v1712 = vpop.f32.mrb[0].mxu0
      %v1713 = vadd.f32 %v1552, %v1712
      %v1714 = vpop.f32.mrb[0].mxu0
      %1715 = vmatprep.mubr.bf16.mxu0 0
      %1716 = vmatmul.mubr.bf16.gmra.mrb[0].mxu0 %v1203
      %v1717 = vpop.f32.mrb[0].mxu0
      %v1718 = vadd.f32 %v1557, %v1717
      %v1719 = vpop.f32.mrb[0].mxu0
      %v1720 = vpop.f32.mrb[0].mxu0
      %v1721 = vadd.f32 %v1560, %v1720
      %v1722 = vpop.f32.mrb[0].mxu0
      %1723 = vmatprep.mubr.bf16.mxu0 0
      %1724 = vmatmul.mubr.bf16.gmra.mrb[0].mxu0 %v1206
      %v1725 = vpop.f32.mrb[0].mxu0
      %v1726 = vadd.f32 %v1565, %v1725
      %v1727 = vpop.f32.mrb[0].mxu0
      %v1728 = vpop.f32.mrb[0].mxu0
      %v1729 = vadd.f32 %v1568, %v1728
      %v1730 = vpop.f32.mrb[0].mxu0
      %1731 = vmatprep.mubr.bf16.mxu0 0
      %1732 = vmatmul.mubr.bf16.gmra.mrb[0].mxu0 %v1209
      %v1733 = vpop.f32.mrb[0].mxu0
      %v1734 = vadd.f32 %v1573, %v1733
      %v1735 = vpop.f32.mrb[0].mxu0
      %v1736 = vpop.f32.mrb[0].mxu0
      %v1737 = vadd.f32 %v1576, %v1736
      %v1738 = vpop.f32.mrb[0].mxu0
      %1739 = vdwg.mxu0
      %1740 = vst [vmem:[#allocation3] sm:$0xff] %v1614
      %1741 = vst [vmem:[#allocation3 + $0x8] sm:$0xff] %v1617
      %1742 = vst [vmem:[#allocation3 + $0x10] sm:$0xff] %v1622
      %1743 = vst [vmem:[#allocation3 + $0x18] sm:$0xff] %v1625
      %1744 = vst [vmem:[#allocation3 + $0x20] sm:$0xff] %v1630
      %1745 = vst [vmem:[#allocation3 + $0x28] sm:$0xff] %v1633
      %1746 = vst [vmem:[#allocation3 + $0x30] sm:$0xff] %v1638
      %1747 = vst [vmem:[#allocation3 + $0x38] sm:$0xff] %v1641
      %1748 = vst [vmem:[#allocation3 + $0x40] sm:$0xff] %v1646
      %1749 = vst [vmem:[#allocation3 + $0x48] sm:$0xff] %v1649
      %1750 = vst [vmem:[#allocation3 + $0x50] sm:$0xff] %v1654
      %1751 = vst [vmem:[#allocation3 + $0x58] sm:$0xff] %v1657
      %1752 = vst [vmem:[#allocation3 + $0x60] sm:$0xff] %v1662
      %1753 = vst [vmem:[#allocation3 + $0x68] sm:$0xff] %v1665
      %1754 = vst [vmem:[#allocation3 + $0x70] sm:$0xff] %v1670
      %1755 = vst [vmem:[#allocation3 + $0x78] sm:$0xff] %v1673
      %1756 = vst [vmem:[#allocation3 + $0x80] sm:$0xff] %v1678
      %1757 = vst [vmem:[#allocation3 + $0x88] sm:$0xff] %v1681
      %1758 = vst [vmem:[#allocation3 + $0x90] sm:$0xff] %v1686
      %1759 = vst [vmem:[#allocation3 + $0x98] sm:$0xff] %v1689
      %1760 = vst [vmem:[#allocation3 + $0xa0] sm:$0xff] %v1694
      %1761 = vst [vmem:[#allocation3 + $0xa8] sm:$0xff] %v1697
      %1762 = vst [vmem:[#allocation3 + $0xb0] sm:$0xff] %v1702
      %1763 = vst [vmem:[#allocation3 + $0xb8] sm:$0xff] %v1705
      %1764 = vst [vmem:[#allocation3 + $0xc0] sm:$0xff] %v1710
      %1765 = vst [vmem:[#allocation3 + $0xc8] sm:$0xff] %v1713
      %1766 = vst [vmem:[#allocation3 + $0xd0] sm:$0xff] %v1718
      %1767 = vst [vmem:[#allocation3 + $0xd8] sm:$0xff] %v1721
      %1768 = vst [vmem:[#allocation3 + $0xe0] sm:$0xff] %v1726
      %1769 = vst [vmem:[#allocation3 + $0xe8] sm:$0xff] %v1729
      %1770 = vst [vmem:[#allocation3 + $0xf0] sm:$0xff] %v1734
      %1771 = vst [vmem:[#allocation3 + $0xf8] sm:$0xff] %v1737
      %v1772 = vld [vmem:[%s190] sm:$0xf]
      %v1773 = vld [vmem:[%s190 + $0x4] sm:$0xf]
      %v1774 = vld [vmem:[%s190 + $0x8] sm:$0x1]
      %v1775 = vld [vmem:[%s190 + $0xc] sm:$0xf]
      %v1776 = vld [vmem:[%s190 + $0x10] sm:$0xf]
      %v1777 = vld [vmem:[%s190 + $0x14] sm:$0x1]
      %v1778 = vld [vmem:[%s190 + $0x18] sm:$0xf]
      %v1779 = vld [vmem:[%s190 + $0x1c] sm:$0xf]
      %v1780 = vld [vmem:[%s190 + $0x20] sm:$0x1]
      %v1781 = vld [vmem:[%s190 + $0x24] sm:$0xf]
      %v1782 = vld [vmem:[%s190 + $0x28] sm:$0xf]
      %v1783 = vld [vmem:[%s190 + $0x2c] sm:$0x1]
      %v1784 = vld [vmem:[%s190 + $0x30] sm:$0xf]
      %v1785 = vld [vmem:[%s190 + $0x34] sm:$0xf]
      %v1786 = vld [vmem:[%s190 + $0x38] sm:$0x1]
      %v1787 = vld [vmem:[%s190 + $0x3c] sm:$0xf]
      %v1788 = vld [vmem:[%s190 + $0x40] sm:$0xf]
      %v1789 = vld [vmem:[%s190 + $0x44] sm:$0x1]
      %v1790 = vld [vmem:[%s190 + $0x48] sm:$0xf]
      %v1791 = vld [vmem:[%s190 + $0x4c] sm:$0xf]
      %v1792 = vld [vmem:[%s190 + $0x50] sm:$0x1]
      %v1793 = vld [vmem:[%s190 + $0x54] sm:$0xf]
      %v1794 = vld [vmem:[%s190 + $0x58] sm:$0xf]
      %v1795 = vld [vmem:[%s190 + $0x5c] sm:$0x1]
      %v1796 = vld [vmem:[%s190 + $0x60] sm:$0xf]
      %v1797 = vld [vmem:[%s190 + $0x64] sm:$0xf]
      %v1798 = vld [vmem:[%s190 + $0x68] sm:$0x1]
      %v1799 = vld [vmem:[%s190 + $0x6c] sm:$0xf]
      %v1800 = vld [vmem:[%s190 + $0x70] sm:$0xf]
      %v1801 = vld [vmem:[%s190 + $0x74] sm:$0x1]
      %v1802 = vld [vmem:[%s190 + $0x78] sm:$0xf]
      %v1803 = vld [vmem:[%s190 + $0x7c] sm:$0xf]
      %v1804 = vld [vmem:[%s190 + $0x80] sm:$0x1]
      %v1805 = vld [vmem:[%s190 + $0x84] sm:$0xf]
      %v1806 = vld [vmem:[%s190 + $0x88] sm:$0xf]
      %v1807 = vld [vmem:[%s190 + $0x8c] sm:$0x1]
      %v1808 = vld [vmem:[%s190 + $0x90] sm:$0xf]
      %v1809 = vld [vmem:[%s190 + $0x94] sm:$0xf]
      %v1810 = vld [vmem:[%s190 + $0x98] sm:$0x1]
      %v1811 = vld [vmem:[%s190 + $0x9c] sm:$0xf]
      %v1812 = vld [vmem:[%s190 + $0xa0] sm:$0xf]
      %v1813 = vld [vmem:[%s190 + $0xa4] sm:$0x1]
      %v1814 = vld [vmem:[%s190 + $0xa8] sm:$0xf]
      %v1815 = vld [vmem:[%s190 + $0xac] sm:$0xf]
      %v1816 = vld [vmem:[%s190 + $0xb0] sm:$0x1]
      %v1817 = vld [vmem:[%s190 + $0xb4] sm:$0xf]
      %v1818 = vld [vmem:[%s190 + $0xb8] sm:$0xf]
      %v1819 = vld [vmem:[%s190 + $0xbc] sm:$0x1]
      %v1852 = vunpack.c.l.b16 %v1772
      %v1853 = vunpack.c.l.b16 %v1773
      %v1854 = vunpack.c.l.b16 %v1775
      %v1855 = vunpack.c.l.b16 %v1776
      %v1856 = vunpack.c.l.b16 %v1778
      %v1857 = vunpack.c.l.b16 %v1779
      %v1858 = vunpack.c.l.b16 %v1781
      %v1859 = vunpack.c.l.b16 %v1782
      %v1860 = vunpack.c.l.b16 %v1784
      %v1861 = vunpack.c.l.b16 %v1785
      %v1862 = vunpack.c.l.b16 %v1787
      %v1863 = vunpack.c.l.b16 %v1788
      %v1864 = vunpack.c.l.b16 %v1790
      %v1865 = vunpack.c.l.b16 %v1791
      %v1866 = vunpack.c.l.b16 %v1793
      %v1867 = vunpack.c.l.b16 %v1794
      %v1868 = vunpack.c.l.b16 %v1796
      %v1869 = vunpack.c.l.b16 %v1797
      %v1870 = vunpack.c.l.b16 %v1799
      %v1871 = vunpack.c.l.b16 %v1800
      %v1872 = vunpack.c.l.b16 %v1802
      %v1873 = vunpack.c.l.b16 %v1803
      %v1874 = vunpack.c.l.b16 %v1805
      %v1875 = vunpack.c.l.b16 %v1806
      %v1876 = vunpack.c.l.b16 %v1808
      %v1877 = vunpack.c.l.b16 %v1809
      %v1878 = vunpack.c.l.b16 %v1811
      %v1879 = vunpack.c.l.b16 %v1812
      %v1880 = vunpack.c.l.b16 %v1814
      %v1881 = vunpack.c.l.b16 %v1815
      %v1882 = vunpack.c.l.b16 %v1817
      %v1883 = vunpack.c.l.b16 %v1818
      %v1884 = vpack.c.b16 %v1853, %v1852
      %v1885 = vpack.c.b16 %v1855, %v1854
      %v1886 = vpack.c.b16 %v1857, %v1856
      %v1887 = vpack.c.b16 %v1859, %v1858
      %v1888 = vpack.c.b16 %v1861, %v1860
      %v1889 = vpack.c.b16 %v1863, %v1862
      %v1890 = vpack.c.b16 %v1865, %v1864
      %v1891 = vpack.c.b16 %v1867, %v1866
      %v1892 = vpack.c.b16 %v1869, %v1868
      %v1893 = vpack.c.b16 %v1871, %v1870
      %v1894 = vpack.c.b16 %v1873, %v1872
      %v1895 = vpack.c.b16 %v1875, %v1874
      %v1896 = vpack.c.b16 %v1877, %v1876
      %v1897 = vpack.c.b16 %v1879, %v1878
      %v1898 = vpack.c.b16 %v1881, %v1880
      %v1899 = vpack.c.b16 %v1883, %v1882
      %v1932 = vunpack.c.l.b16 %v1774
      %v1933 = vunpack.c.l.b16 %v1777
      %v1934 = vunpack.c.l.b16 %v1780
      %v1935 = vunpack.c.l.b16 %v1783
      %v1936 = vunpack.c.l.b16 %v1786
      %v1937 = vunpack.c.l.b16 %v1789
      %v1938 = vunpack.c.l.b16 %v1792
      %v1939 = vunpack.c.l.b16 %v1795
      %v1940 = vunpack.c.l.b16 %v1798
      %v1941 = vunpack.c.l.b16 %v1801
      %v1942 = vunpack.c.l.b16 %v1804
      %v1943 = vunpack.c.l.b16 %v1807
      %v1944 = vunpack.c.l.b16 %v1810
      %v1945 = vunpack.c.l.b16 %v1813
      %v1946 = vunpack.c.l.b16 %v1816
      %v1947 = vunpack.c.l.b16 %v1819
      %v1948 = vpack.c.b16 %v1932, %v1932
      %v1949 = vpack.c.b16 %v1933, %v1933
      %v1950 = vpack.c.b16 %v1934, %v1934
      %v1951 = vpack.c.b16 %v1935, %v1935
      %v1952 = vpack.c.b16 %v1936, %v1936
      %v1953 = vpack.c.b16 %v1937, %v1937
      %v1954 = vpack.c.b16 %v1938, %v1938
      %v1955 = vpack.c.b16 %v1939, %v1939
      %v1956 = vpack.c.b16 %v1940, %v1940
      %v1957 = vpack.c.b16 %v1941, %v1941
      %v1958 = vpack.c.b16 %v1942, %v1942
      %v1959 = vpack.c.b16 %v1943, %v1943
      %v1960 = vpack.c.b16 %v1944, %v1944
      %v1961 = vpack.c.b16 %v1945, %v1945
      %v1962 = vpack.c.b16 %v1946, %v1946
      %v1963 = vpack.c.b16 %v1947, %v1947
      %v1965 = vshrl.u32 %v1884, 16
      %v1967 = vshll.u32 %v1884, 16
      %v1969 = vrot.slane %v1967, 1
      %v1970 = vor.u32 %v1965, %v1969
      %v1972 = vshll.u32 %v1948, 16
      %v1974 = vrot.slane %v1972, 1
      %v1975 = vsel %vm952, %v1970, %v1974
      %v1977 = vshrl.u32 %v1885, 16
      %v1979 = vshll.u32 %v1885, 16
      %v1981 = vrot.slane %v1979, 1
      %v1982 = vor.u32 %v1977, %v1981
      %v1984 = vshll.u32 %v1949, 16
      %v1986 = vrot.slane %v1984, 1
      %v1987 = vsel %vm952, %v1982, %v1986
      %v1989 = vshrl.u32 %v1886, 16
      %v1991 = vshll.u32 %v1886, 16
      %v1993 = vrot.slane %v1991, 1
      %v1994 = vor.u32 %v1989, %v1993
      %v1996 = vshll.u32 %v1950, 16
      %v1998 = vrot.slane %v1996, 1
      %v1999 = vsel %vm952, %v1994, %v1998
      %v2001 = vshrl.u32 %v1887, 16
      %v2003 = vshll.u32 %v1887, 16
      %v2005 = vrot.slane %v2003, 1
      %v2006 = vor.u32 %v2001, %v2005
      %v2008 = vshll.u32 %v1951, 16
      %v2010 = vrot.slane %v2008, 1
      %v2011 = vsel %vm952, %v2006, %v2010
      %v2013 = vshrl.u32 %v1888, 16
      %v2015 = vshll.u32 %v1888, 16
      %v2017 = vrot.slane %v2015, 1
      %v2018 = vor.u32 %v2013, %v2017
      %v2020 = vshll.u32 %v1952, 16
      %v2022 = vrot.slane %v2020, 1
      %v2023 = vsel %vm952, %v2018, %v2022
      %v2025 = vshrl.u32 %v1889, 16
      %v2027 = vshll.u32 %v1889, 16
      %v2029 = vrot.slane %v2027, 1
      %v2030 = vor.u32 %v2025, %v2029
      %v2032 = vshll.u32 %v1953, 16
      %v2034 = vrot.slane %v2032, 1
      %v2035 = vsel %vm952, %v2030, %v2034
      %v2037 = vshrl.u32 %v1890, 16
      %v2039 = vshll.u32 %v1890, 16
      %v2041 = vrot.slane %v2039, 1
      %v2042 = vor.u32 %v2037, %v2041
      %v2044 = vshll.u32 %v1954, 16
      %v2046 = vrot.slane %v2044, 1
      %v2047 = vsel %vm952, %v2042, %v2046
      %v2049 = vshrl.u32 %v1891, 16
      %v2051 = vshll.u32 %v1891, 16
      %v2053 = vrot.slane %v2051, 1
      %v2054 = vor.u32 %v2049, %v2053
      %v2056 = vshll.u32 %v1955, 16
      %v2058 = vrot.slane %v2056, 1
      %v2059 = vsel %vm952, %v2054, %v2058
      %v2061 = vshrl.u32 %v1892, 16
      %v2063 = vshll.u32 %v1892, 16
      %v2065 = vrot.slane %v2063, 1
      %v2066 = vor.u32 %v2061, %v2065
      %v2068 = vshll.u32 %v1956, 16
      %v2070 = vrot.slane %v2068, 1
      %v2071 = vsel %vm952, %v2066, %v2070
      %v2073 = vshrl.u32 %v1893, 16
      %v2075 = vshll.u32 %v1893, 16
      %v2077 = vrot.slane %v2075, 1
      %v2078 = vor.u32 %v2073, %v2077
      %v2080 = vshll.u32 %v1957, 16
      %v2082 = vrot.slane %v2080, 1
      %v2083 = vsel %vm952, %v2078, %v2082
      %v2085 = vshrl.u32 %v1894, 16
      %v2087 = vshll.u32 %v1894, 16
      %v2089 = vrot.slane %v2087, 1
      %v2090 = vor.u32 %v2085, %v2089
      %v2092 = vshll.u32 %v1958, 16
      %v2094 = vrot.slane %v2092, 1
      %v2095 = vsel %vm952, %v2090, %v2094
      %v2097 = vshrl.u32 %v1895, 16
      %v2099 = vshll.u32 %v1895, 16
      %v2101 = vrot.slane %v2099, 1
      %v2102 = vor.u32 %v2097, %v2101
      %v2104 = vshll.u32 %v1959, 16
      %v2106 = vrot.slane %v2104, 1
      %v2107 = vsel %vm952, %v2102, %v2106
      %v2109 = vshrl.u32 %v1896, 16
      %v2111 = vshll.u32 %v1896, 16
      %v2113 = vrot.slane %v2111, 1
      %v2114 = vor.u32 %v2109, %v2113
      %v2116 = vshll.u32 %v1960, 16
      %v2118 = vrot.slane %v2116, 1
      %v2119 = vsel %vm952, %v2114, %v2118
      %v2121 = vshrl.u32 %v1897, 16
      %v2123 = vshll.u32 %v1897, 16
      %v2125 = vrot.slane %v2123, 1
      %v2126 = vor.u32 %v2121, %v2125
      %v2128 = vshll.u32 %v1961, 16
      %v2130 = vrot.slane %v2128, 1
      %v2131 = vsel %vm952, %v2126, %v2130
      %v2133 = vshrl.u32 %v1898, 16
      %v2135 = vshll.u32 %v1898, 16
      %v2137 = vrot.slane %v2135, 1
      %v2138 = vor.u32 %v2133, %v2137
      %v2140 = vshll.u32 %v1962, 16
      %v2142 = vrot.slane %v2140, 1
      %v2143 = vsel %vm952, %v2138, %v2142
      %v2145 = vshrl.u32 %v1899, 16
      %v2147 = vshll.u32 %v1899, 16
      %v2149 = vrot.slane %v2147, 1
      %v2150 = vor.u32 %v2145, %v2149
      %v2152 = vshll.u32 %v1963, 16
      %v2154 = vrot.slane %v2152, 1
      %v2155 = vsel %vm952, %v2150, %v2154
      %v2172 = vrot.slane %v1884, 1
      %v2173 = vrot.slane %v1948, 1
      %v2174 = vsel %vm1161, %v2172, %v2173
      %v2175 = vrot.slane %v1885, 1
      %v2176 = vrot.slane %v1949, 1
      %v2177 = vsel %vm1161, %v2175, %v2176
      %v2178 = vrot.slane %v1886, 1
      %v2179 = vrot.slane %v1950, 1
      %v2180 = vsel %vm1161, %v2178, %v2179
      %v2181 = vrot.slane %v1887, 1
      %v2182 = vrot.slane %v1951, 1
      %v2183 = vsel %vm1161, %v2181, %v2182
      %v2184 = vrot.slane %v1888, 1
      %v2185 = vrot.slane %v1952, 1
      %v2186 = vsel %vm1161, %v2184, %v2185
      %v2187 = vrot.slane %v1889, 1
      %v2188 = vrot.slane %v1953, 1
      %v2189 = vsel %vm1161, %v2187, %v2188
      %v2190 = vrot.slane %v1890, 1
      %v2191 = vrot.slane %v1954, 1
      %v2192 = vsel %vm1161, %v2190, %v2191
      %v2193 = vrot.slane %v1891, 1
      %v2194 = vrot.slane %v1955, 1
      %v2195 = vsel %vm1161, %v2193, %v2194
      %v2196 = vrot.slane %v1892, 1
      %v2197 = vrot.slane %v1956, 1
      %v2198 = vsel %vm1161, %v2196, %v2197
      %v2199 = vrot.slane %v1893, 1
      %v2200 = vrot.slane %v1957, 1
      %v2201 = vsel %vm1161, %v2199, %v2200
      %v2202 = vrot.slane %v1894, 1
      %v2203 = vrot.slane %v1958, 1
      %v2204 = vsel %vm1161, %v2202, %v2203
      %v2205 = vrot.slane %v1895, 1
      %v2206 = vrot.slane %v1959, 1
      %v2207 = vsel %vm1161, %v2205, %v2206
      %v2208 = vrot.slane %v1896, 1
      %v2209 = vrot.slane %v1960, 1
      %v2210 = vsel %vm1161, %v2208, %v2209
      %v2211 = vrot.slane %v1897, 1
      %v2212 = vrot.slane %v1961, 1
      %v2213 = vsel %vm1161, %v2211, %v2212
      %v2214 = vrot.slane %v1898, 1
      %v2215 = vrot.slane %v1962, 1
      %v2216 = vsel %vm1161, %v2214, %v2215
      %v2217 = vrot.slane %v1899, 1
      %v2218 = vrot.slane %v1963, 1
      %v2219 = vsel %vm1161, %v2217, %v2218
      %s2236 = scalar_lea.vmem %s1, 192
      %v2237 = vld [vmem:[%s2236] sm:$0xf]
      %v2238 = vld [vmem:[%s2236 + $0x4] sm:$0xf]
      %v2239 = vld [vmem:[%s2236 + $0x8] sm:$0xf]
      %v2240 = vld [vmem:[%s2236 + $0xc] sm:$0xf]
      %v2241 = vld [vmem:[%s2236 + $0x10] sm:$0xf]
      %v2242 = vld [vmem:[%s2236 + $0x14] sm:$0xf]
      %v2243 = vld [vmem:[%s2236 + $0x18] sm:$0xf]
      %v2244 = vld [vmem:[%s2236 + $0x1c] sm:$0xf]
      %v2245 = vld [vmem:[%s2236 + $0x20] sm:$0xf]
      %v2246 = vld [vmem:[%s2236 + $0x24] sm:$0xf]
      %v2247 = vld [vmem:[%s2236 + $0x28] sm:$0xf]
      %v2248 = vld [vmem:[%s2236 + $0x2c] sm:$0xf]
      %v2249 = vld [vmem:[%s2236 + $0x30] sm:$0xf]
      %v2250 = vld [vmem:[%s2236 + $0x34] sm:$0xf]
      %v2251 = vld [vmem:[%s2236 + $0x38] sm:$0xf]
      %v2252 = vld [vmem:[%s2236 + $0x3c] sm:$0xf]
      %v2253 = vld [vmem:[%s2236 + $0x40] sm:$0xf]
      %v2254 = vld [vmem:[%s2236 + $0x44] sm:$0xf]
      %v2255 = vld [vmem:[%s2236 + $0x48] sm:$0xf]
      %v2256 = vld [vmem:[%s2236 + $0x4c] sm:$0xf]
      %v2257 = vld [vmem:[%s2236 + $0x50] sm:$0xf]
      %v2258 = vld [vmem:[%s2236 + $0x54] sm:$0xf]
      %v2259 = vld [vmem:[%s2236 + $0x58] sm:$0xf]
      %v2260 = vld [vmem:[%s2236 + $0x5c] sm:$0xf]
      %v2261 = vld [vmem:[%s2236 + $0x60] sm:$0xf]
      %v2262 = vld [vmem:[%s2236 + $0x64] sm:$0xf]
      %v2263 = vld [vmem:[%s2236 + $0x68] sm:$0xf]
      %v2264 = vld [vmem:[%s2236 + $0x6c] sm:$0xf]
      %v2265 = vld [vmem:[%s2236 + $0x70] sm:$0xf]
      %v2266 = vld [vmem:[%s2236 + $0x74] sm:$0xf]
      %v2267 = vld [vmem:[%s2236 + $0x78] sm:$0xf]
      %v2268 = vld [vmem:[%s2236 + $0x7c] sm:$0xf]
      %v2269 = vld [vmem:[%s2236 + $0x80] sm:$0xf]
      %v2270 = vld [vmem:[%s2236 + $0x84] sm:$0xf]
      %v2271 = vld [vmem:[%s2236 + $0x88] sm:$0xf]
      %v2272 = vld [vmem:[%s2236 + $0x8c] sm:$0xf]
      %v2273 = vld [vmem:[%s2236 + $0x90] sm:$0xf]
      %v2274 = vld [vmem:[%s2236 + $0x94] sm:$0xf]
      %v2275 = vld [vmem:[%s2236 + $0x98] sm:$0xf]
      %v2276 = vld [vmem:[%s2236 + $0x9c] sm:$0xf]
      %v2277 = vld [vmem:[%s2236 + $0xa0] sm:$0xf]
      %v2278 = vld [vmem:[%s2236 + $0xa4] sm:$0xf]
      %v2279 = vld [vmem:[%s2236 + $0xa8] sm:$0xf]
      %v2280 = vld [vmem:[%s2236 + $0xac] sm:$0xf]
      %v2281 = vld [vmem:[%s2236 + $0xb0] sm:$0xf]
      %v2282 = vld [vmem:[%s2236 + $0xb4] sm:$0xf]
      %v2283 = vld [vmem:[%s2236 + $0xb8] sm:$0xf]
      %v2284 = vld [vmem:[%s2236 + $0xbc] sm:$0xf]
      %v2333 = vunpack.c.l.b16 %v2237
      %v2334 = vunpack.c.l.b16 %v2238
      %v2335 = vunpack.c.l.b16 %v2239
      %v2336 = vunpack.c.l.b16 %v2240
      %v2337 = vunpack.c.l.b16 %v2241
      %v2338 = vunpack.c.l.b16 %v2242
      %v2339 = vunpack.c.l.b16 %v2243
      %v2340 = vunpack.c.l.b16 %v2244
      %v2341 = vunpack.c.l.b16 %v2245
      %v2342 = vunpack.c.l.b16 %v2246
      %v2343 = vunpack.c.l.b16 %v2247
      %v2344 = vunpack.c.l.b16 %v2248
      %v2345 = vunpack.c.l.b16 %v2249
      %v2346 = vunpack.c.l.b16 %v2250
      %v2347 = vunpack.c.l.b16 %v2251
      %v2348 = vunpack.c.l.b16 %v2252
      %v2349 = vunpack.c.l.b16 %v2253
      %v2350 = vunpack.c.l.b16 %v2254
      %v2351 = vunpack.c.l.b16 %v2255
      %v2352 = vunpack.c.l.b16 %v2256
      %v2353 = vunpack.c.l.b16 %v2257
      %v2354 = vunpack.c.l.b16 %v2258
      %v2355 = vunpack.c.l.b16 %v2259
      %v2356 = vunpack.c.l.b16 %v2260
      %v2357 = vunpack.c.l.b16 %v2261
      %v2358 = vunpack.c.l.b16 %v2262
      %v2359 = vunpack.c.l.b16 %v2263
      %v2360 = vunpack.c.l.b16 %v2264
      %v2361 = vunpack.c.l.b16 %v2265
      %v2362 = vunpack.c.l.b16 %v2266
      %v2363 = vunpack.c.l.b16 %v2267
      %v2364 = vunpack.c.l.b16 %v2268
      %v2365 = vunpack.c.l.b16 %v2269
      %v2366 = vunpack.c.l.b16 %v2270
      %v2367 = vunpack.c.l.b16 %v2271
      %v2368 = vunpack.c.l.b16 %v2272
      %v2369 = vunpack.c.l.b16 %v2273
      %v2370 = vunpack.c.l.b16 %v2274
      %v2371 = vunpack.c.l.b16 %v2275
      %v2372 = vunpack.c.l.b16 %v2276
      %v2373 = vunpack.c.l.b16 %v2277
      %v2374 = vunpack.c.l.b16 %v2278
      %v2375 = vunpack.c.l.b16 %v2279
      %v2376 = vunpack.c.l.b16 %v2280
      %v2377 = vunpack.c.l.b16 %v2281
      %v2378 = vunpack.c.l.b16 %v2282
      %v2379 = vunpack.c.l.b16 %v2283
      %v2380 = vunpack.c.l.b16 %v2284
      %v2381 = vpack.c.b16 %v2334, %v2333
      %v2382 = vpack.c.b16 %v2336, %v2335
      %v2383 = vpack.c.b16 %v2338, %v2337
      %v2384 = vpack.c.b16 %v2340, %v2339
      %v2385 = vpack.c.b16 %v2342, %v2341
      %v2386 = vpack.c.b16 %v2344, %v2343
      %v2387 = vpack.c.b16 %v2346, %v2345
      %v2388 = vpack.c.b16 %v2348, %v2347
      %v2389 = vpack.c.b16 %v2350, %v2349
      %v2390 = vpack.c.b16 %v2352, %v2351
      %v2391 = vpack.c.b16 %v2354, %v2353
      %v2392 = vpack.c.b16 %v2356, %v2355
      %v2393 = vpack.c.b16 %v2358, %v2357
      %v2394 = vpack.c.b16 %v2360, %v2359
      %v2395 = vpack.c.b16 %v2362, %v2361
      %v2396 = vpack.c.b16 %v2364, %v2363
      %v2397 = vpack.c.b16 %v2366, %v2365
      %v2398 = vpack.c.b16 %v2368, %v2367
      %v2399 = vpack.c.b16 %v2370, %v2369
      %v2400 = vpack.c.b16 %v2372, %v2371
      %v2401 = vpack.c.b16 %v2374, %v2373
      %v2402 = vpack.c.b16 %v2376, %v2375
      %v2403 = vpack.c.b16 %v2378, %v2377
      %v2404 = vpack.c.b16 %v2380, %v2379
      %2429 = vmatprep.subr.bf16.mxu0 0
      %2430 = vmatpush1.bf16.msra.mxu0 %v2381
      %2431 = vmatprep.subr.bf16.mxu0 0
      %2432 = vmatpush1.bf16.msra.mxu0 %v2382
      %2433 = vmatprep.subr.bf16.mxu0 0
      %2434 = vmatpush1.bf16.msra.mxu0 %v2383
      %2435 = vmatprep.subr.bf16.mxu0 0
      %2436 = vmatpush1.bf16.msra.mxu0 %v2384
      %2437 = vmatprep.subr.bf16.mxu0 0
      %2438 = vmatpush1.bf16.msra.mxu0 %v2385
      %2439 = vmatprep.subr.bf16.mxu0 0
      %2440 = vmatpush1.bf16.msra.mxu0 %v2386
      %2441 = vmatprep.subr.bf16.mxu0 0
      %2442 = vmatpush1.bf16.msra.mxu0 %v2387
      %2443 = vmatprep.subr.bf16.mxu0 0
      %2444 = vmatpush1.bf16.msra.mxu0 %v2388
      %2445 = vmatprep.subr.bf16.mxu0 0
      %2446 = vmatpush1.bf16.msra.mxu0 %v2389
      %2447 = vmatprep.subr.bf16.mxu0 0
      %2448 = vmatpush1.bf16.msra.mxu0 %v2390
      %2449 = vmatprep.subr.bf16.mxu0 0
      %2450 = vmatpush1.bf16.msra.mxu0 %v2391
      %2451 = vmatprep.subr.bf16.mxu0 0
      %2452 = vmatpush1.bf16.msra.mxu0 %v2392
      %2453 = vmatprep.subr.bf16.mxu0 0
      %2454 = vmatpush1.bf16.msra.mxu0 %v2393
      %2455 = vmatprep.subr.bf16.mxu0 0
      %2456 = vmatpush1.bf16.msra.mxu0 %v2394
      %2457 = vmatprep.subr.bf16.mxu0 0
      %2458 = vmatpush1.bf16.msra.mxu0 %v2395
      %2459 = vmatprep.subr.bf16.mxu0 0
      %2460 = vmatpush1.bf16.msra.mxu0 %v2396
      %2461 = vmatprep.mubr.bf16.mxu0 %v1975
      %2462 = vmatmul.mubr.bf16.gmra.mrb[0].mxu0 %v1884
      %v2463 = vpop.f32.mrb[0].mxu0
      %v2464 = vadd.f32 0.0, %v2463
      %v2465 = vpop.f32.mrb[0].mxu0
      %v2466 = vpop.f32.mrb[0].mxu0
      %v2467 = vadd.f32 0.0, %v2466
      %v2468 = vpop.f32.mrb[0].mxu0
      %2469 = vmatprep.mubr.bf16.mxu0 %v1987
      %2470 = vmatmul.mubr.bf16.gmra.mrb[0].mxu0 %v1885
      %v2471 = vpop.f32.mrb[0].mxu0
      %v2472 = vadd.f32 0.0, %v2471
      %v2473 = vpop.f32.mrb[0].mxu0
      %v2474 = vpop.f32.mrb[0].mxu0
      %v2475 = vadd.f32 0.0, %v2474
      %v2476 = vpop.f32.mrb[0].mxu0
      %2477 = vmatprep.mubr.bf16.mxu0 %v1999
      %2478 = vmatmul.mubr.bf16.gmra.mrb[0].mxu0 %v1886
      %v2479 = vpop.f32.mrb[0].mxu0
      %v2480 = vadd.f32 0.0, %v2479
      %v2481 = vpop.f32.mrb[0].mxu0
      %v2482 = vpop.f32.mrb[0].mxu0
      %v2483 = vadd.f32 0.0, %v2482
      %v2484 = vpop.f32.mrb[0].mxu0
      %2485 = vmatprep.mubr.bf16.mxu0 %v2011
      %2486 = vmatmul.mubr.bf16.gmra.mrb[0].mxu0 %v1887
      %v2487 = vpop.f32.mrb[0].mxu0
      %v2488 = vadd.f32 0.0, %v2487
      %v2489 = vpop.f32.mrb[0].mxu0
      %v2490 = vpop.f32.mrb[0].mxu0
      %v2491 = vadd.f32 0.0, %v2490
      %v2492 = vpop.f32.mrb[0].mxu0
      %2493 = vmatprep.mubr.bf16.mxu0 %v2023
      %2494 = vmatmul.mubr.bf16.gmra.mrb[0].mxu0 %v1888
      %v2495 = vpop.f32.mrb[0].mxu0
      %v2496 = vadd.f32 0.0, %v2495
      %v2497 = vpop.f32.mrb[0].mxu0
      %v2498 = vpop.f32.mrb[0].mxu0
      %v2499 = vadd.f32 0.0, %v2498
      %v2500 = vpop.f32.mrb[0].mxu0
      %2501 = vmatprep.mubr.bf16.mxu0 %v2035
      %2502 = vmatmul.mubr.bf16.gmra.mrb[0].mxu0 %v1889
      %v2503 = vpop.f32.mrb[0].mxu0
      %v2504 = vadd.f32 0.0, %v2503
      %v2505 = vpop.f32.mrb[0].mxu0
      %v2506 = vpop.f32.mrb[0].mxu0
      %v2507 = vadd.f32 0.0, %v2506
      %v2508 = vpop.f32.mrb[0].mxu0
      %2509 = vmatprep.mubr.bf16.mxu0 %v2047
      %2510 = vmatmul.mubr.bf16.gmra.mrb[0].mxu0 %v1890
      %v2511 = vpop.f32.mrb[0].mxu0
      %v2512 = vadd.f32 0.0, %v2511
      %v2513 = vpop.f32.mrb[0].mxu0
      %v2514 = vpop.f32.mrb[0].mxu0
      %v2515 = vadd.f32 0.0, %v2514
      %v2516 = vpop.f32.mrb[0].mxu0
      %2517 = vmatprep.mubr.bf16.mxu0 %v2059
      %2518 = vmatmul.mubr.bf16.gmra.mrb[0].mxu0 %v1891
      %v2519 = vpop.f32.mrb[0].mxu0
      %v2520 = vadd.f32 0.0, %v2519
      %v2521 = vpop.f32.mrb[0].mxu0
      %v2522 = vpop.f32.mrb[0].mxu0
      %v2523 = vadd.f32 0.0, %v2522
      %v2524 = vpop.f32.mrb[0].mxu0
      %2525 = vmatprep.mubr.bf16.mxu0 %v2071
      %2526 = vmatmul.mubr.bf16.gmra.mrb[0].mxu0 %v1892
      %v2527 = vpop.f32.mrb[0].mxu0
      %v2528 = vadd.f32 0.0, %v2527
      %v2529 = vpop.f32.mrb[0].mxu0
      %v2530 = vpop.f32.mrb[0].mxu0
      %v2531 = vadd.f32 0.0, %v2530
      %v2532 = vpop.f32.mrb[0].mxu0
      %2533 = vmatprep.mubr.bf16.mxu0 %v2083
      %2534 = vmatmul.mubr.bf16.gmra.mrb[0].mxu0 %v1893
      %v2535 = vpop.f32.mrb[0].mxu0
      %v2536 = vadd.f32 0.0, %v2535
      %v2537 = vpop.f32.mrb[0].mxu0
      %v2538 = vpop.f32.mrb[0].mxu0
      %v2539 = vadd.f32 0.0, %v2538
      %v2540 = vpop.f32.mrb[0].mxu0
      %2541 = vmatprep.mubr.bf16.mxu0 %v2095
      %2542 = vmatmul.mubr.bf16.gmra.mrb[0].mxu0 %v1894
      %v2543 = vpop.f32.mrb[0].mxu0
      %v2544 = vadd.f32 0.0, %v2543
      %v2545 = vpop.f32.mrb[0].mxu0
      %v2546 = vpop.f32.mrb[0].mxu0
      %v2547 = vadd.f32 0.0, %v2546
      %v2548 = vpop.f32.mrb[0].mxu0
      %2549 = vmatprep.mubr.bf16.mxu0 %v2107
      %2550 = vmatmul.mubr.bf16.gmra.mrb[0].mxu0 %v1895
      %v2551 = vpop.f32.mrb[0].mxu0
      %v2552 = vadd.f32 0.0, %v2551
      %v2553 = vpop.f32.mrb[0].mxu0
      %v2554 = vpop.f32.mrb[0].mxu0
      %v2555 = vadd.f32 0.0, %v2554
      %v2556 = vpop.f32.mrb[0].mxu0
      %2557 = vmatprep.mubr.bf16.mxu0 %v2119
      %2558 = vmatmul.mubr.bf16.gmra.mrb[0].mxu0 %v1896
      %v2559 = vpop.f32.mrb[0].mxu0
      %v2560 = vadd.f32 0.0, %v2559
      %v2561 = vpop.f32.mrb[0].mxu0
      %v2562 = vpop.f32.mrb[0].mxu0
      %v2563 = vadd.f32 0.0, %v2562
      %v2564 = vpop.f32.mrb[0].mxu0
      %2565 = vmatprep.mubr.bf16.mxu0 %v2131
      %2566 = vmatmul.mubr.bf16.gmra.mrb[0].mxu0 %v1897
      %v2567 = vpop.f32.mrb[0].mxu0
      %v2568 = vadd.f32 0.0, %v2567
      %v2569 = vpop.f32.mrb[0].mxu0
      %v2570 = vpop.f32.mrb[0].mxu0
      %v2571 = vadd.f32 0.0, %v2570
      %v2572 = vpop.f32.mrb[0].mxu0
      %2573 = vmatprep.mubr.bf16.mxu0 %v2143
      %2574 = vmatmul.mubr.bf16.gmra.mrb[0].mxu0 %v1898
      %v2575 = vpop.f32.mrb[0].mxu0
      %v2576 = vadd.f32 0.0, %v2575
      %v2577 = vpop.f32.mrb[0].mxu0
      %v2578 = vpop.f32.mrb[0].mxu0
      %v2579 = vadd.f32 0.0, %v2578
      %v2580 = vpop.f32.mrb[0].mxu0
      %2581 = vmatprep.mubr.bf16.mxu0 %v2155
      %2582 = vmatmul.mubr.bf16.gmra.mrb[0].mxu0 %v1899
      %v2583 = vpop.f32.mrb[0].mxu0
      %v2584 = vadd.f32 0.0, %v2583
      %v2585 = vpop.f32.mrb[0].mxu0
      %v2586 = vpop.f32.mrb[0].mxu0
      %v2587 = vadd.f32 0.0, %v2586
      %v2588 = vpop.f32.mrb[0].mxu0
      %2589 = vdwg.mxu0
      %2590 = vmatprep.subr.bf16.mxu0 0
      %2591 = vmatpush1.bf16.msra.mxu0 %v2397
      %2592 = vmatprep.subr.bf16.mxu0 0
      %2593 = vmatpush1.bf16.msra.mxu0 %v2398
      %2594 = vmatprep.subr.bf16.mxu0 0
      %2595 = vmatpush1.bf16.msra.mxu0 %v2399
      %2596 = vmatprep.subr.bf16.mxu0 0
      %2597 = vmatpush1.bf16.msra.mxu0 %v2400
      %2598 = vmatprep.subr.bf16.mxu0 0
      %2599 = vmatpush1.bf16.msra.mxu0 %v2401
      %2600 = vmatprep.subr.bf16.mxu0 0
      %2601 = vmatpush1.bf16.msra.mxu0 %v2402
      %2602 = vmatprep.subr.bf16.mxu0 0
      %2603 = vmatpush1.bf16.msra.mxu0 %v2403
      %2604 = vmatprep.subr.bf16.mxu0 0
      %2605 = vmatpush1.bf16.msra.mxu0 %v2404
      %2606 = vmatprep.subr.bf16.mxu0 0
      %2607 = vmatpush1.bf16.msra.mxu0 0
      %2608 = vmatprep.subr.bf16.mxu0 0
      %2609 = vmatpush1.bf16.msra.mxu0 0
      %2610 = vmatprep.subr.bf16.mxu0 0
      %2611 = vmatpush1.bf16.msra.mxu0 0
      %2612 = vmatprep.subr.bf16.mxu0 0
      %2613 = vmatpush1.bf16.msra.mxu0 0
      %2614 = vmatprep.subr.bf16.mxu0 0
      %2615 = vmatpush1.bf16.msra.mxu0 0
      %2616 = vmatprep.subr.bf16.mxu0 0
      %2617 = vmatpush1.bf16.msra.mxu0 0
      %2618 = vmatprep.subr.bf16.mxu0 0
      %2619 = vmatpush1.bf16.msra.mxu0 0
      %2620 = vmatprep.subr.bf16.mxu0 0
      %2621 = vmatpush1.bf16.msra.mxu0 0
      %2622 = vmatprep.mubr.bf16.mxu0 0
      %2623 = vmatmul.mubr.bf16.gmra.mrb[0].mxu0 %v2174
      %v2624 = vpop.f32.mrb[0].mxu0
      %v2625 = vadd.f32 %v2464, %v2624
      %v2626 = vpop.f32.mrb[0].mxu0
      %v2627 = vpop.f32.mrb[0].mxu0
      %v2628 = vadd.f32 %v2467, %v2627
      %v2629 = vpop.f32.mrb[0].mxu0
      %2630 = vmatprep.mubr.bf16.mxu0 0
      %2631 = vmatmul.mubr.bf16.gmra.mrb[0].mxu0 %v2177
      %v2632 = vpop.f32.mrb[0].mxu0
      %v2633 = vadd.f32 %v2472, %v2632
      %v2634 = vpop.f32.mrb[0].mxu0
      %v2635 = vpop.f32.mrb[0].mxu0
      %v2636 = vadd.f32 %v2475, %v2635
      %v2637 = vpop.f32.mrb[0].mxu0
      %2638 = vmatprep.mubr.bf16.mxu0 0
      %2639 = vmatmul.mubr.bf16.gmra.mrb[0].mxu0 %v2180
      %v2640 = vpop.f32.mrb[0].mxu0
      %v2641 = vadd.f32 %v2480, %v2640
      %v2642 = vpop.f32.mrb[0].mxu0
      %v2643 = vpop.f32.mrb[0].mxu0
      %v2644 = vadd.f32 %v2483, %v2643
      %v2645 = vpop.f32.mrb[0].mxu0
      %2646 = vmatprep.mubr.bf16.mxu0 0
      %2647 = vmatmul.mubr.bf16.gmra.mrb[0].mxu0 %v2183
      %v2648 = vpop.f32.mrb[0].mxu0
      %v2649 = vadd.f32 %v2488, %v2648
      %v2650 = vpop.f32.mrb[0].mxu0
      %v2651 = vpop.f32.mrb[0].mxu0
      %v2652 = vadd.f32 %v2491, %v2651
      %v2653 = vpop.f32.mrb[0].mxu0
      %2654 = vmatprep.mubr.bf16.mxu0 0
      %2655 = vmatmul.mubr.bf16.gmra.mrb[0].mxu0 %v2186
      %v2656 = vpop.f32.mrb[0].mxu0
      %v2657 = vadd.f32 %v2496, %v2656
      %v2658 = vpop.f32.mrb[0].mxu0
      %v2659 = vpop.f32.mrb[0].mxu0
      %v2660 = vadd.f32 %v2499, %v2659
      %v2661 = vpop.f32.mrb[0].mxu0
      %2662 = vmatprep.mubr.bf16.mxu0 0
      %2663 = vmatmul.mubr.bf16.gmra.mrb[0].mxu0 %v2189
      %v2664 = vpop.f32.mrb[0].mxu0
      %v2665 = vadd.f32 %v2504, %v2664
      %v2666 = vpop.f32.mrb[0].mxu0
      %v2667 = vpop.f32.mrb[0].mxu0
      %v2668 = vadd.f32 %v2507, %v2667
      %v2669 = vpop.f32.mrb[0].mxu0
      %2670 = vmatprep.mubr.bf16.mxu0 0
      %2671 = vmatmul.mubr.bf16.gmra.mrb[0].mxu0 %v2192
      %v2672 = vpop.f32.mrb[0].mxu0
      %v2673 = vadd.f32 %v2512, %v2672
      %v2674 = vpop.f32.mrb[0].mxu0
      %v2675 = vpop.f32.mrb[0].mxu0
      %v2676 = vadd.f32 %v2515, %v2675
      %v2677 = vpop.f32.mrb[0].mxu0
      %2678 = vmatprep.mubr.bf16.mxu0 0
      %2679 = vmatmul.mubr.bf16.gmra.mrb[0].mxu0 %v2195
      %v2680 = vpop.f32.mrb[0].mxu0
      %v2681 = vadd.f32 %v2520, %v2680
      %v2682 = vpop.f32.mrb[0].mxu0
      %v2683 = vpop.f32.mrb[0].mxu0
      %v2684 = vadd.f32 %v2523, %v2683
      %v2685 = vpop.f32.mrb[0].mxu0
      %2686 = vmatprep.mubr.bf16.mxu0 0
      %2687 = vmatmul.mubr.bf16.gmra.mrb[0].mxu0 %v2198
      %v2688 = vpop.f32.mrb[0].mxu0
      %v2689 = vadd.f32 %v2528, %v2688
      %v2690 = vpop.f32.mrb[0].mxu0
      %v2691 = vpop.f32.mrb[0].mxu0
      %v2692 = vadd.f32 %v2531, %v2691
      %v2693 = vpop.f32.mrb[0].mxu0
      %2694 = vmatprep.mubr.bf16.mxu0 0
      %2695 = vmatmul.mubr.bf16.gmra.mrb[0].mxu0 %v2201
      %v2696 = vpop.f32.mrb[0].mxu0
      %v2697 = vadd.f32 %v2536, %v2696
      %v2698 = vpop.f32.mrb[0].mxu0
      %v2699 = vpop.f32.mrb[0].mxu0
      %v2700 = vadd.f32 %v2539, %v2699
      %v2701 = vpop.f32.mrb[0].mxu0
      %2702 = vmatprep.mubr.bf16.mxu0 0
      %2703 = vmatmul.mubr.bf16.gmra.mrb[0].mxu0 %v2204
      %v2704 = vpop.f32.mrb[0].mxu0
      %v2705 = vadd.f32 %v2544, %v2704
      %v2706 = vpop.f32.mrb[0].mxu0
      %v2707 = vpop.f32.mrb[0].mxu0
      %v2708 = vadd.f32 %v2547, %v2707
      %v2709 = vpop.f32.mrb[0].mxu0
      %2710 = vmatprep.mubr.bf16.mxu0 0
      %2711 = vmatmul.mubr.bf16.gmra.mrb[0].mxu0 %v2207
      %v2712 = vpop.f32.mrb[0].mxu0
      %v2713 = vadd.f32 %v2552, %v2712
      %v2714 = vpop.f32.mrb[0].mxu0
      %v2715 = vpop.f32.mrb[0].mxu0
      %v2716 = vadd.f32 %v2555, %v2715
      %v2717 = vpop.f32.mrb[0].mxu0
      %2718 = vmatprep.mubr.bf16.mxu0 0
      %2719 = vmatmul.mubr.bf16.gmra.mrb[0].mxu0 %v2210
      %v2720 = vpop.f32.mrb[0].mxu0
      %v2721 = vadd.f32 %v2560, %v2720
      %v2722 = vpop.f32.mrb[0].mxu0
      %v2723 = vpop.f32.mrb[0].mxu0
      %v2724 = vadd.f32 %v2563, %v2723
      %v2725 = vpop.f32.mrb[0].mxu0
      %2726 = vmatprep.mubr.bf16.mxu0 0
      %2727 = vmatmul.mubr.bf16.gmra.mrb[0].mxu0 %v2213
      %v2728 = vpop.f32.mrb[0].mxu0
      %v2729 = vadd.f32 %v2568, %v2728
      %v2730 = vpop.f32.mrb[0].mxu0
      %v2731 = vpop.f32.mrb[0].mxu0
      %v2732 = vadd.f32 %v2571, %v2731
      %v2733 = vpop.f32.mrb[0].mxu0
      %2734 = vmatprep.mubr.bf16.mxu0 0
      %2735 = vmatmul.mubr.bf16.gmra.mrb[0].mxu0 %v2216
      %v2736 = vpop.f32.mrb[0].mxu0
      %v2737 = vadd.f32 %v2576, %v2736
      %v2738 = vpop.f32.mrb[0].mxu0
      %v2739 = vpop.f32.mrb[0].mxu0
      %v2740 = vadd.f32 %v2579, %v2739
      %v2741 = vpop.f32.mrb[0].mxu0
      %2742 = vmatprep.mubr.bf16.mxu0 0
      %2743 = vmatmul.mubr.bf16.gmra.mrb[0].mxu0 %v2219
      %v2744 = vpop.f32.mrb[0].mxu0
      %v2745 = vadd.f32 %v2584, %v2744
      %v2746 = vpop.f32.mrb[0].mxu0
      %v2747 = vpop.f32.mrb[0].mxu0
      %v2748 = vadd.f32 %v2587, %v2747
      %v2749 = vpop.f32.mrb[0].mxu0
      %2750 = vdwg.mxu0
      %v2751 = vld [vmem:[#allocation3] sm:$0xff]
      %v2752 = vld [vmem:[#allocation3 + $0x8] sm:$0xff]
      %v2753 = vld [vmem:[#allocation3 + $0x10] sm:$0xff]
      %v2754 = vld [vmem:[#allocation3 + $0x18] sm:$0xff]
      %v2755 = vld [vmem:[#allocation3 + $0x20] sm:$0xff]
      %v2756 = vld [vmem:[#allocation3 + $0x28] sm:$0xff]
      %v2757 = vld [vmem:[#allocation3 + $0x30] sm:$0xff]
      %v2758 = vld [vmem:[#allocation3 + $0x38] sm:$0xff]
      %v2759 = vld [vmem:[#allocation3 + $0x40] sm:$0xff]
      %v2760 = vld [vmem:[#allocation3 + $0x48] sm:$0xff]
      %v2761 = vld [vmem:[#allocation3 + $0x50] sm:$0xff]
      %v2762 = vld [vmem:[#allocation3 + $0x58] sm:$0xff]
      %v2763 = vld [vmem:[#allocation3 + $0x60] sm:$0xff]
      %v2764 = vld [vmem:[#allocation3 + $0x68] sm:$0xff]
      %v2765 = vld [vmem:[#allocation3 + $0x70] sm:$0xff]
      %v2766 = vld [vmem:[#allocation3 + $0x78] sm:$0xff]
      %v2767 = vld [vmem:[#allocation3 + $0x80] sm:$0xff]
      %v2768 = vld [vmem:[#allocation3 + $0x88] sm:$0xff]
      %v2769 = vld [vmem:[#allocation3 + $0x90] sm:$0xff]
      %v2770 = vld [vmem:[#allocation3 + $0x98] sm:$0xff]
      %v2771 = vld [vmem:[#allocation3 + $0xa0] sm:$0xff]
      %v2772 = vld [vmem:[#allocation3 + $0xa8] sm:$0xff]
      %v2773 = vld [vmem:[#allocation3 + $0xb0] sm:$0xff]
      %v2774 = vld [vmem:[#allocation3 + $0xb8] sm:$0xff]
      %v2775 = vld [vmem:[#allocation3 + $0xc0] sm:$0xff]
      %v2776 = vld [vmem:[#allocation3 + $0xc8] sm:$0xff]
      %v2777 = vld [vmem:[#allocation3 + $0xd0] sm:$0xff]
      %v2778 = vld [vmem:[#allocation3 + $0xd8] sm:$0xff]
      %v2779 = vld [vmem:[#allocation3 + $0xe0] sm:$0xff]
      %v2780 = vld [vmem:[#allocation3 + $0xe8] sm:$0xff]
      %v2781 = vld [vmem:[#allocation3 + $0xf0] sm:$0xff]
      %v2782 = vld [vmem:[#allocation3 + $0xf8] sm:$0xff]
      %v2783 = vadd.f32 %v2751, %v2625
      %v2784 = vadd.f32 %v2752, %v2628
      %v2785 = vadd.f32 %v2753, %v2633
      %v2786 = vadd.f32 %v2754, %v2636
      %v2787 = vadd.f32 %v2755, %v2641
      %v2788 = vadd.f32 %v2756, %v2644
      %v2789 = vadd.f32 %v2757, %v2649
      %v2790 = vadd.f32 %v2758, %v2652
      %v2791 = vadd.f32 %v2759, %v2657
      %v2792 = vadd.f32 %v2760, %v2660
      %v2793 = vadd.f32 %v2761, %v2665
      %v2794 = vadd.f32 %v2762, %v2668
      %v2795 = vadd.f32 %v2763, %v2673
      %v2796 = vadd.f32 %v2764, %v2676
      %v2797 = vadd.f32 %v2765, %v2681
      %v2798 = vadd.f32 %v2766, %v2684
      %v2799 = vadd.f32 %v2767, %v2689
      %v2800 = vadd.f32 %v2768, %v2692
      %v2801 = vadd.f32 %v2769, %v2697
      %v2802 = vadd.f32 %v2770, %v2700
      %v2803 = vadd.f32 %v2771, %v2705
      %v2804 = vadd.f32 %v2772, %v2708
      %v2805 = vadd.f32 %v2773, %v2713
      %v2806 = vadd.f32 %v2774, %v2716
      %v2807 = vadd.f32 %v2775, %v2721
      %v2808 = vadd.f32 %v2776, %v2724
      %v2809 = vadd.f32 %v2777, %v2729
      %v2810 = vadd.f32 %v2778, %v2732
      %v2811 = vadd.f32 %v2779, %v2737
      %v2812 = vadd.f32 %v2780, %v2740
      %v2813 = vadd.f32 %v2781, %v2745
      %v2814 = vadd.f32 %v2782, %v2748
      %2815 = vst [vmem:[#allocation3] sm:$0xff] %v2783
      %2816 = vst [vmem:[#allocation3 + $0x8] sm:$0xff] %v2784
      %2817 = vst [vmem:[#allocation3 + $0x10] sm:$0xff] %v2785
      %2818 = vst [vmem:[#allocation3 + $0x18] sm:$0xff] %v2786
      %2819 = vst [vmem:[#allocation3 + $0x20] sm:$0xff] %v2787
      %2820 = vst [vmem:[#allocation3 + $0x28] sm:$0xff] %v2788
      %2821 = vst [vmem:[#allocation3 + $0x30] sm:$0xff] %v2789
      %2822 = vst [vmem:[#allocation3 + $0x38] sm:$0xff] %v2790
      %2823 = vst [vmem:[#allocation3 + $0x40] sm:$0xff] %v2791
      %2824 = vst [vmem:[#allocation3 + $0x48] sm:$0xff] %v2792
      %2825 = vst [vmem:[#allocation3 + $0x50] sm:$0xff] %v2793
      %2826 = vst [vmem:[#allocation3 + $0x58] sm:$0xff] %v2794
      %2827 = vst [vmem:[#allocation3 + $0x60] sm:$0xff] %v2795
      %2828 = vst [vmem:[#allocation3 + $0x68] sm:$0xff] %v2796
      %2829 = vst [vmem:[#allocation3 + $0x70] sm:$0xff] %v2797
      %2830 = vst [vmem:[#allocation3 + $0x78] sm:$0xff] %v2798
      %2831 = vst [vmem:[#allocation3 + $0x80] sm:$0xff] %v2799
      %2832 = vst [vmem:[#allocation3 + $0x88] sm:$0xff] %v2800
      %2833 = vst [vmem:[#allocation3 + $0x90] sm:$0xff] %v2801
      %2834 = vst [vmem:[#allocation3 + $0x98] sm:$0xff] %v2802
      %2835 = vst [vmem:[#allocation3 + $0xa0] sm:$0xff] %v2803
      %2836 = vst [vmem:[#allocation3 + $0xa8] sm:$0xff] %v2804
      %2837 = vst [vmem:[#allocation3 + $0xb0] sm:$0xff] %v2805
      %2838 = vst [vmem:[#allocation3 + $0xb8] sm:$0xff] %v2806
      %2839 = vst [vmem:[#allocation3 + $0xc0] sm:$0xff] %v2807
      %2840 = vst [vmem:[#allocation3 + $0xc8] sm:$0xff] %v2808
      %2841 = vst [vmem:[#allocation3 + $0xd0] sm:$0xff] %v2809
      %2842 = vst [vmem:[#allocation3 + $0xd8] sm:$0xff] %v2810
      %2843 = vst [vmem:[#allocation3 + $0xe0] sm:$0xff] %v2811
      %2844 = vst [vmem:[#allocation3 + $0xe8] sm:$0xff] %v2812
      %2845 = vst [vmem:[#allocation3 + $0xf0] sm:$0xff] %v2813
      %2846 = vst [vmem:[#allocation3 + $0xf8] sm:$0xff] %v2814
      %s2847 = scalar_lea.vmem [#allocation2], 24
      %v2848 = vld [vmem:[%s2847] sm:$0xf]
      %v2849 = vld [vmem:[%s2847 + $0x4] sm:$0xf]
      %v2850 = vld [vmem:[%s2847 + $0x8] sm:$0x1]
      %v2851 = vld [vmem:[%s2847 + $0xc] sm:$0xf]
      %v2852 = vld [vmem:[%s2847 + $0x10] sm:$0xf]
      %v2853 = vld [vmem:[%s2847 + $0x14] sm:$0x1]
      %v2854 = vld [vmem:[%s2847 + $0x18] sm:$0xf]
      %v2855 = vld [vmem:[%s2847 + $0x1c] sm:$0xf]
      %v2856 = vld [vmem:[%s2847 + $0x20] sm:$0x1]
      %v2857 = vld [vmem:[%s2847 + $0x24] sm:$0xf]
      %v2858 = vld [vmem:[%s2847 + $0x28] sm:$0xf]
      %v2859 = vld [vmem:[%s2847 + $0x2c] sm:$0x1]
      %v2860 = vld [vmem:[%s2847 + $0x30] sm:$0xf]
      %v2861 = vld [vmem:[%s2847 + $0x34] sm:$0xf]
      %v2862 = vld [vmem:[%s2847 + $0x38] sm:$0x1]
      %v2863 = vld [vmem:[%s2847 + $0x3c] sm:$0xf]
      %v2864 = vld [vmem:[%s2847 + $0x40] sm:$0xf]
      %v2865 = vld [vmem:[%s2847 + $0x44] sm:$0x1]
      %v2866 = vld [vmem:[%s2847 + $0x48] sm:$0xf]
      %v2867 = vld [vmem:[%s2847 + $0x4c] sm:$0xf]
      %v2868 = vld [vmem:[%s2847 + $0x50] sm:$0x1]
      %v2869 = vld [vmem:[%s2847 + $0x54] sm:$0xf]
      %v2870 = vld [vmem:[%s2847 + $0x58] sm:$0xf]
      %v2871 = vld [vmem:[%s2847 + $0x5c] sm:$0x1]
      %v2872 = vld [vmem:[%s2847 + $0x60] sm:$0xf]
      %v2873 = vld [vmem:[%s2847 + $0x64] sm:$0xf]
      %v2874 = vld [vmem:[%s2847 + $0x68] sm:$0x1]
      %v2875 = vld [vmem:[%s2847 + $0x6c] sm:$0xf]
      %v2876 = vld [vmem:[%s2847 + $0x70] sm:$0xf]
      %v2877 = vld [vmem:[%s2847 + $0x74] sm:$0x1]
      %v2878 = vld [vmem:[%s2847 + $0x78] sm:$0xf]
      %v2879 = vld [vmem:[%s2847 + $0x7c] sm:$0xf]
      %v2880 = vld [vmem:[%s2847 + $0x80] sm:$0x1]
      %v2881 = vld [vmem:[%s2847 + $0x84] sm:$0xf]
      %v2882 = vld [vmem:[%s2847 + $0x88] sm:$0xf]
      %v2883 = vld [vmem:[%s2847 + $0x8c] sm:$0x1]
      %v2884 = vld [vmem:[%s2847 + $0x90] sm:$0xf]
      %v2885 = vld [vmem:[%s2847 + $0x94] sm:$0xf]
      %v2886 = vld [vmem:[%s2847 + $0x98] sm:$0x1]
      %v2887 = vld [vmem:[%s2847 + $0x9c] sm:$0xf]
      %v2888 = vld [vmem:[%s2847 + $0xa0] sm:$0xf]
      %v2889 = vld [vmem:[%s2847 + $0xa4] sm:$0x1]
      %v2890 = vld [vmem:[%s2847 + $0xa8] sm:$0xf]
      %v2891 = vld [vmem:[%s2847 + $0xac] sm:$0xf]
      %v2892 = vld [vmem:[%s2847 + $0xb0] sm:$0x1]
      %v2893 = vld [vmem:[%s2847 + $0xb4] sm:$0xf]
      %v2894 = vld [vmem:[%s2847 + $0xb8] sm:$0xf]
      %v2895 = vld [vmem:[%s2847 + $0xbc] sm:$0x1]
      %v2928 = vunpack.c.l.b16 %v2848
      %v2929 = vunpack.c.l.b16 %v2849
      %v2930 = vunpack.c.l.b16 %v2851
      %v2931 = vunpack.c.l.b16 %v2852
      %v2932 = vunpack.c.l.b16 %v2854
      %v2933 = vunpack.c.l.b16 %v2855
      %v2934 = vunpack.c.l.b16 %v2857
      %v2935 = vunpack.c.l.b16 %v2858
      %v2936 = vunpack.c.l.b16 %v2860
      %v2937 = vunpack.c.l.b16 %v2861
      %v2938 = vunpack.c.l.b16 %v2863
      %v2939 = vunpack.c.l.b16 %v2864
      %v2940 = vunpack.c.l.b16 %v2866
      %v2941 = vunpack.c.l.b16 %v2867
      %v2942 = vunpack.c.l.b16 %v2869
      %v2943 = vunpack.c.l.b16 %v2870
      %v2944 = vunpack.c.l.b16 %v2872
      %v2945 = vunpack.c.l.b16 %v2873
      %v2946 = vunpack.c.l.b16 %v2875
      %v2947 = vunpack.c.l.b16 %v2876
      %v2948 = vunpack.c.l.b16 %v2878
      %v2949 = vunpack.c.l.b16 %v2879
      %v2950 = vunpack.c.l.b16 %v2881
      %v2951 = vunpack.c.l.b16 %v2882
      %v2952 = vunpack.c.l.b16 %v2884
      %v2953 = vunpack.c.l.b16 %v2885
      %v2954 = vunpack.c.l.b16 %v2887
      %v2955 = vunpack.c.l.b16 %v2888
      %v2956 = vunpack.c.l.b16 %v2890
      %v2957 = vunpack.c.l.b16 %v2891
      %v2958 = vunpack.c.l.b16 %v2893
      %v2959 = vunpack.c.l.b16 %v2894
      %v2960 = vpack.c.b16 %v2929, %v2928
      %v2961 = vpack.c.b16 %v2931, %v2930
      %v2962 = vpack.c.b16 %v2933, %v2932
      %v2963 = vpack.c.b16 %v2935, %v2934
      %v2964 = vpack.c.b16 %v2937, %v2936
      %v2965 = vpack.c.b16 %v2939, %v2938
      %v2966 = vpack.c.b16 %v2941, %v2940
      %v2967 = vpack.c.b16 %v2943, %v2942
      %v2968 = vpack.c.b16 %v2945, %v2944
      %v2969 = vpack.c.b16 %v2947, %v2946
      %v2970 = vpack.c.b16 %v2949, %v2948
      %v2971 = vpack.c.b16 %v2951, %v2950
      %v2972 = vpack.c.b16 %v2953, %v2952
      %v2973 = vpack.c.b16 %v2955, %v2954
      %v2974 = vpack.c.b16 %v2957, %v2956
      %v2975 = vpack.c.b16 %v2959, %v2958
      %v3008 = vunpack.c.l.b16 %v2850
      %v3009 = vunpack.c.l.b16 %v2853
      %v3010 = vunpack.c.l.b16 %v2856
      %v3011 = vunpack.c.l.b16 %v2859
      %v3012 = vunpack.c.l.b16 %v2862
      %v3013 = vunpack.c.l.b16 %v2865
      %v3014 = vunpack.c.l.b16 %v2868
      %v3015 = vunpack.c.l.b16 %v2871
      %v3016 = vunpack.c.l.b16 %v2874
      %v3017 = vunpack.c.l.b16 %v2877
      %v3018 = vunpack.c.l.b16 %v2880
      %v3019 = vunpack.c.l.b16 %v2883
      %v3020 = vunpack.c.l.b16 %v2886
      %v3021 = vunpack.c.l.b16 %v2889
      %v3022 = vunpack.c.l.b16 %v2892
      %v3023 = vunpack.c.l.b16 %v2895
      %v3024 = vpack.c.b16 %v3008, %v3008
      %v3025 = vpack.c.b16 %v3009, %v3009
      %v3026 = vpack.c.b16 %v3010, %v3010
      %v3027 = vpack.c.b16 %v3011, %v3011
      %v3028 = vpack.c.b16 %v3012, %v3012
      %v3029 = vpack.c.b16 %v3013, %v3013
      %v3030 = vpack.c.b16 %v3014, %v3014
      %v3031 = vpack.c.b16 %v3015, %v3015
      %v3032 = vpack.c.b16 %v3016, %v3016
      %v3033 = vpack.c.b16 %v3017, %v3017
      %v3034 = vpack.c.b16 %v3018, %v3018
      %v3035 = vpack.c.b16 %v3019, %v3019
      %v3036 = vpack.c.b16 %v3020, %v3020
      %v3037 = vpack.c.b16 %v3021, %v3021
      %v3038 = vpack.c.b16 %v3022, %v3022
      %v3039 = vpack.c.b16 %v3023, %v3023
      %v3041 = vshrl.u32 %v2960, 16
      %v3043 = vshll.u32 %v2960, 16
      %v3045 = vrot.slane %v3043, 1
      %v3046 = vor.u32 %v3041, %v3045
      %v3048 = vshll.u32 %v3024, 16
      %v3050 = vrot.slane %v3048, 1
      %v3051 = vsel %vm952, %v3046, %v3050
      %v3053 = vshrl.u32 %v2961, 16
      %v3055 = vshll.u32 %v2961, 16
      %v3057 = vrot.slane %v3055, 1
      %v3058 = vor.u32 %v3053, %v3057
      %v3060 = vshll.u32 %v3025, 16
      %v3062 = vrot.slane %v3060, 1
      %v3063 = vsel %vm952, %v3058, %v3062
      %v3065 = vshrl.u32 %v2962, 16
      %v3067 = vshll.u32 %v2962, 16
      %v3069 = vrot.slane %v3067, 1
      %v3070 = vor.u32 %v3065, %v3069
      %v3072 = vshll.u32 %v3026, 16
      %v3074 = vrot.slane %v3072, 1
      %v3075 = vsel %vm952, %v3070, %v3074
      %v3077 = vshrl.u32 %v2963, 16
      %v3079 = vshll.u32 %v2963, 16
      %v3081 = vrot.slane %v3079, 1
      %v3082 = vor.u32 %v3077, %v3081
      %v3084 = vshll.u32 %v3027, 16
      %v3086 = vrot.slane %v3084, 1
      %v3087 = vsel %vm952, %v3082, %v3086
      %v3089 = vshrl.u32 %v2964, 16
      %v3091 = vshll.u32 %v2964, 16
      %v3093 = vrot.slane %v3091, 1
      %v3094 = vor.u32 %v3089, %v3093
      %v3096 = vshll.u32 %v3028, 16
      %v3098 = vrot.slane %v3096, 1
      %v3099 = vsel %vm952, %v3094, %v3098
      %v3101 = vshrl.u32 %v2965, 16
      %v3103 = vshll.u32 %v2965, 16
      %v3105 = vrot.slane %v3103, 1
      %v3106 = vor.u32 %v3101, %v3105
      %v3108 = vshll.u32 %v3029, 16
      %v3110 = vrot.slane %v3108, 1
      %v3111 = vsel %vm952, %v3106, %v3110
      %v3113 = vshrl.u32 %v2966, 16
      %v3115 = vshll.u32 %v2966, 16
      %v3117 = vrot.slane %v3115, 1
      %v3118 = vor.u32 %v3113, %v3117
      %v3120 = vshll.u32 %v3030, 16
      %v3122 = vrot.slane %v3120, 1
      %v3123 = vsel %vm952, %v3118, %v3122
      %v3125 = vshrl.u32 %v2967, 16
      %v3127 = vshll.u32 %v2967, 16
      %v3129 = vrot.slane %v3127, 1
      %v3130 = vor.u32 %v3125, %v3129
      %v3132 = vshll.u32 %v3031, 16
      %v3134 = vrot.slane %v3132, 1
      %v3135 = vsel %vm952, %v3130, %v3134
      %v3137 = vshrl.u32 %v2968, 16
      %v3139 = vshll.u32 %v2968, 16
      %v3141 = vrot.slane %v3139, 1
      %v3142 = vor.u32 %v3137, %v3141
      %v3144 = vshll.u32 %v3032, 16
      %v3146 = vrot.slane %v3144, 1
      %v3147 = vsel %vm952, %v3142, %v3146
      %v3149 = vshrl.u32 %v2969, 16
      %v3151 = vshll.u32 %v2969, 16
      %v3153 = vrot.slane %v3151, 1
      %v3154 = vor.u32 %v3149, %v3153
      %v3156 = vshll.u32 %v3033, 16
      %v3158 = vrot.slane %v3156, 1
      %v3159 = vsel %vm952, %v3154, %v3158
      %v3161 = vshrl.u32 %v2970, 16
      %v3163 = vshll.u32 %v2970, 16
      %v3165 = vrot.slane %v3163, 1
      %v3166 = vor.u32 %v3161, %v3165
      %v3168 = vshll.u32 %v3034, 16
      %v3170 = vrot.slane %v3168, 1
      %v3171 = vsel %vm952, %v3166, %v3170
      %v3173 = vshrl.u32 %v2971, 16
      %v3175 = vshll.u32 %v2971, 16
      %v3177 = vrot.slane %v3175, 1
      %v3178 = vor.u32 %v3173, %v3177
      %v3180 = vshll.u32 %v3035, 16
      %v3182 = vrot.slane %v3180, 1
      %v3183 = vsel %vm952, %v3178, %v3182
      %v3185 = vshrl.u32 %v2972, 16
      %v3187 = vshll.u32 %v2972, 16
      %v3189 = vrot.slane %v3187, 1
      %v3190 = vor.u32 %v3185, %v3189
      %v3192 = vshll.u32 %v3036, 16
      %v3194 = vrot.slane %v3192, 1
      %v3195 = vsel %vm952, %v3190, %v3194
      %v3197 = vshrl.u32 %v2973, 16
      %v3199 = vshll.u32 %v2973, 16
      %v3201 = vrot.slane %v3199, 1
      %v3202 = vor.u32 %v3197, %v3201
      %v3204 = vshll.u32 %v3037, 16
      %v3206 = vrot.slane %v3204, 1
      %v3207 = vsel %vm952, %v3202, %v3206
      %v3209 = vshrl.u32 %v2974, 16
      %v3211 = vshll.u32 %v2974, 16
      %v3213 = vrot.slane %v3211, 1
      %v3214 = vor.u32 %v3209, %v3213
      %v3216 = vshll.u32 %v3038, 16
      %v3218 = vrot.slane %v3216, 1
      %v3219 = vsel %vm952, %v3214, %v3218
      %v3221 = vshrl.u32 %v2975, 16
      %v3223 = vshll.u32 %v2975, 16
      %v3225 = vrot.slane %v3223, 1
      %v3226 = vor.u32 %v3221, %v3225
      %v3228 = vshll.u32 %v3039, 16
      %v3230 = vrot.slane %v3228, 1
      %v3231 = vsel %vm952, %v3226, %v3230
      %v3248 = vrot.slane %v2960, 1
      %v3249 = vrot.slane %v3024, 1
      %v3250 = vsel %vm1161, %v3248, %v3249
      %v3251 = vrot.slane %v2961, 1
      %v3252 = vrot.slane %v3025, 1
      %v3253 = vsel %vm1161, %v3251, %v3252
      %v3254 = vrot.slane %v2962, 1
      %v3255 = vrot.slane %v3026, 1
      %v3256 = vsel %vm1161, %v3254, %v3255
      %v3257 = vrot.slane %v2963, 1
      %v3258 = vrot.slane %v3027, 1
      %v3259 = vsel %vm1161, %v3257, %v3258
      %v3260 = vrot.slane %v2964, 1
      %v3261 = vrot.slane %v3028, 1
      %v3262 = vsel %vm1161, %v3260, %v3261
      %v3263 = vrot.slane %v2965, 1
      %v3264 = vrot.slane %v3029, 1
      %v3265 = vsel %vm1161, %v3263, %v3264
      %v3266 = vrot.slane %v2966, 1
      %v3267 = vrot.slane %v3030, 1
      %v3268 = vsel %vm1161, %v3266, %v3267
      %v3269 = vrot.slane %v2967, 1
      %v3270 = vrot.slane %v3031, 1
      %v3271 = vsel %vm1161, %v3269, %v3270
      %v3272 = vrot.slane %v2968, 1
      %v3273 = vrot.slane %v3032, 1
      %v3274 = vsel %vm1161, %v3272, %v3273
      %v3275 = vrot.slane %v2969, 1
      %v3276 = vrot.slane %v3033, 1
      %v3277 = vsel %vm1161, %v3275, %v3276
      %v3278 = vrot.slane %v2970, 1
      %v3279 = vrot.slane %v3034, 1
      %v3280 = vsel %vm1161, %v3278, %v3279
      %v3281 = vrot.slane %v2971, 1
      %v3282 = vrot.slane %v3035, 1
      %v3283 = vsel %vm1161, %v3281, %v3282
      %v3284 = vrot.slane %v2972, 1
      %v3285 = vrot.slane %v3036, 1
      %v3286 = vsel %vm1161, %v3284, %v3285
      %v3287 = vrot.slane %v2973, 1
      %v3288 = vrot.slane %v3037, 1
      %v3289 = vsel %vm1161, %v3287, %v3288
      %v3290 = vrot.slane %v2974, 1
      %v3291 = vrot.slane %v3038, 1
      %v3292 = vsel %vm1161, %v3290, %v3291
      %v3293 = vrot.slane %v2975, 1
      %v3294 = vrot.slane %v3039, 1
      %v3295 = vsel %vm1161, %v3293, %v3294
      %s3312 = scalar_lea.vmem %s1, 384
      %v3313 = vld [vmem:[%s3312] sm:$0xf]
      %v3314 = vld [vmem:[%s3312 + $0x4] sm:$0xf]
      %v3315 = vld [vmem:[%s3312 + $0x8] sm:$0xf]
      %v3316 = vld [vmem:[%s3312 + $0xc] sm:$0xf]
      %v3317 = vld [vmem:[%s3312 + $0x10] sm:$0xf]
      %v3318 = vld [vmem:[%s3312 + $0x14] sm:$0xf]
      %v3319 = vld [vmem:[%s3312 + $0x18] sm:$0xf]
      %v3320 = vld [vmem:[%s3312 + $0x1c] sm:$0xf]
      %v3321 = vld [vmem:[%s3312 + $0x20] sm:$0xf]
      %v3322 = vld [vmem:[%s3312 + $0x24] sm:$0xf]
      %v3323 = vld [vmem:[%s3312 + $0x28] sm:$0xf]
      %v3324 = vld [vmem:[%s3312 + $0x2c] sm:$0xf]
      %v3325 = vld [vmem:[%s3312 + $0x30] sm:$0xf]
      %v3326 = vld [vmem:[%s3312 + $0x34] sm:$0xf]
      %v3327 = vld [vmem:[%s3312 + $0x38] sm:$0xf]
      %v3328 = vld [vmem:[%s3312 + $0x3c] sm:$0xf]
      %v3329 = vld [vmem:[%s3312 + $0x40] sm:$0xf]
      %v3330 = vld [vmem:[%s3312 + $0x44] sm:$0xf]
      %v3331 = vld [vmem:[%s3312 + $0x48] sm:$0xf]
      %v3332 = vld [vmem:[%s3312 + $0x4c] sm:$0xf]
      %v3333 = vld [vmem:[%s3312 + $0x50] sm:$0xf]
      %v3334 = vld [vmem:[%s3312 + $0x54] sm:$0xf]
      %v3335 = vld [vmem:[%s3312 + $0x58] sm:$0xf]
      %v3336 = vld [vmem:[%s3312 + $0x5c] sm:$0xf]
      %v3337 = vld [vmem:[%s3312 + $0x60] sm:$0xf]
      %v3338 = vld [vmem:[%s3312 + $0x64] sm:$0xf]
      %v3339 = vld [vmem:[%s3312 + $0x68] sm:$0xf]
      %v3340 = vld [vmem:[%s3312 + $0x6c] sm:$0xf]
      %v3341 = vld [vmem:[%s3312 + $0x70] sm:$0xf]
      %v3342 = vld [vmem:[%s3312 + $0x74] sm:$0xf]
      %v3343 = vld [vmem:[%s3312 + $0x78] sm:$0xf]
      %v3344 = vld [vmem:[%s3312 + $0x7c] sm:$0xf]
      %v3345 = vld [vmem:[%s3312 + $0x80] sm:$0xf]
      %v3346 = vld [vmem:[%s3312 + $0x84] sm:$0xf]
      %v3347 = vld [vmem:[%s3312 + $0x88] sm:$0xf]
      %v3348 = vld [vmem:[%s3312 + $0x8c] sm:$0xf]
      %v3349 = vld [vmem:[%s3312 + $0x90] sm:$0xf]
      %v3350 = vld [vmem:[%s3312 + $0x94] sm:$0xf]
      %v3351 = vld [vmem:[%s3312 + $0x98] sm:$0xf]
      %v3352 = vld [vmem:[%s3312 + $0x9c] sm:$0xf]
      %v3353 = vld [vmem:[%s3312 + $0xa0] sm:$0xf]
      %v3354 = vld [vmem:[%s3312 + $0xa4] sm:$0xf]
      %v3355 = vld [vmem:[%s3312 + $0xa8] sm:$0xf]
      %v3356 = vld [vmem:[%s3312 + $0xac] sm:$0xf]
      %v3357 = vld [vmem:[%s3312 + $0xb0] sm:$0xf]
      %v3358 = vld [vmem:[%s3312 + $0xb4] sm:$0xf]
      %v3359 = vld [vmem:[%s3312 + $0xb8] sm:$0xf]
      %v3360 = vld [vmem:[%s3312 + $0xbc] sm:$0xf]
      %v3409 = vunpack.c.l.b16 %v3313
      %v3410 = vunpack.c.l.b16 %v3314
      %v3411 = vunpack.c.l.b16 %v3315
      %v3412 = vunpack.c.l.b16 %v3316
      %v3413 = vunpack.c.l.b16 %v3317
      %v3414 = vunpack.c.l.b16 %v3318
      %v3415 = vunpack.c.l.b16 %v3319
      %v3416 = vunpack.c.l.b16 %v3320
      %v3417 = vunpack.c.l.b16 %v3321
      %v3418 = vunpack.c.l.b16 %v3322
      %v3419 = vunpack.c.l.b16 %v3323
      %v3420 = vunpack.c.l.b16 %v3324
      %v3421 = vunpack.c.l.b16 %v3325
      %v3422 = vunpack.c.l.b16 %v3326
      %v3423 = vunpack.c.l.b16 %v3327
      %v3424 = vunpack.c.l.b16 %v3328
      %v3425 = vunpack.c.l.b16 %v3329
      %v3426 = vunpack.c.l.b16 %v3330
      %v3427 = vunpack.c.l.b16 %v3331
      %v3428 = vunpack.c.l.b16 %v3332
      %v3429 = vunpack.c.l.b16 %v3333
      %v3430 = vunpack.c.l.b16 %v3334
      %v3431 = vunpack.c.l.b16 %v3335
      %v3432 = vunpack.c.l.b16 %v3336
      %v3433 = vunpack.c.l.b16 %v3337
      %v3434 = vunpack.c.l.b16 %v3338
      %v3435 = vunpack.c.l.b16 %v3339
      %v3436 = vunpack.c.l.b16 %v3340
      %v3437 = vunpack.c.l.b16 %v3341
      %v3438 = vunpack.c.l.b16 %v3342
      %v3439 = vunpack.c.l.b16 %v3343
      %v3440 = vunpack.c.l.b16 %v3344
      %v3441 = vunpack.c.l.b16 %v3345
      %v3442 = vunpack.c.l.b16 %v3346
      %v3443 = vunpack.c.l.b16 %v3347
      %v3444 = vunpack.c.l.b16 %v3348
      %v3445 = vunpack.c.l.b16 %v3349
      %v3446 = vunpack.c.l.b16 %v3350
      %v3447 = vunpack.c.l.b16 %v3351
      %v3448 = vunpack.c.l.b16 %v3352
      %v3449 = vunpack.c.l.b16 %v3353
      %v3450 = vunpack.c.l.b16 %v3354
      %v3451 = vunpack.c.l.b16 %v3355
      %v3452 = vunpack.c.l.b16 %v3356
      %v3453 = vunpack.c.l.b16 %v3357
      %v3454 = vunpack.c.l.b16 %v3358
      %v3455 = vunpack.c.l.b16 %v3359
      %v3456 = vunpack.c.l.b16 %v3360
      %v3457 = vpack.c.b16 %v3410, %v3409
      %v3458 = vpack.c.b16 %v3412, %v3411
      %v3459 = vpack.c.b16 %v3414, %v3413
      %v3460 = vpack.c.b16 %v3416, %v3415
      %v3461 = vpack.c.b16 %v3418, %v3417
      %v3462 = vpack.c.b16 %v3420, %v3419
      %v3463 = vpack.c.b16 %v3422, %v3421
      %v3464 = vpack.c.b16 %v3424, %v3423
      %v3465 = vpack.c.b16 %v3426, %v3425
      %v3466 = vpack.c.b16 %v3428, %v3427
      %v3467 = vpack.c.b16 %v3430, %v3429
      %v3468 = vpack.c.b16 %v3432, %v3431
      %v3469 = vpack.c.b16 %v3434, %v3433
      %v3470 = vpack.c.b16 %v3436, %v3435
      %v3471 = vpack.c.b16 %v3438, %v3437
      %v3472 = vpack.c.b16 %v3440, %v3439
      %v3473 = vpack.c.b16 %v3442, %v3441
      %v3474 = vpack.c.b16 %v3444, %v3443
      %v3475 = vpack.c.b16 %v3446, %v3445
      %v3476 = vpack.c.b16 %v3448, %v3447
      %v3477 = vpack.c.b16 %v3450, %v3449
      %v3478 = vpack.c.b16 %v3452, %v3451
      %v3479 = vpack.c.b16 %v3454, %v3453
      %v3480 = vpack.c.b16 %v3456, %v3455
      %3505 = vmatprep.subr.bf16.mxu0 0
      %3506 = vmatpush1.bf16.msra.mxu0 %v3457
      %3507 = vmatprep.subr.bf16.mxu0 0
      %3508 = vmatpush1.bf16.msra.mxu0 %v3458
      %3509 = vmatprep.subr.bf16.mxu0 0
      %3510 = vmatpush1.bf16.msra.mxu0 %v3459
      %3511 = vmatprep.subr.bf16.mxu0 0
      %3512 = vmatpush1.bf16.msra.mxu0 %v3460
      %3513 = vmatprep.subr.bf16.mxu0 0
      %3514 = vmatpush1.bf16.msra.mxu0 %v3461
      %3515 = vmatprep.subr.bf16.mxu0 0
      %3516 = vmatpush1.bf16.msra.mxu0 %v3462
      %3517 = vmatprep.subr.bf16.mxu0 0
      %3518 = vmatpush1.bf16.msra.mxu0 %v3463
      %3519 = vmatprep.subr.bf16.mxu0 0
      %3520 = vmatpush1.bf16.msra.mxu0 %v3464
      %3521 = vmatprep.subr.bf16.mxu0 0
      %3522 = vmatpush1.bf16.msra.mxu0 %v3465
      %3523 = vmatprep.subr.bf16.mxu0 0
      %3524 = vmatpush1.bf16.msra.mxu0 %v3466
      %3525 = vmatprep.subr.bf16.mxu0 0
      %3526 = vmatpush1.bf16.msra.mxu0 %v3467
      %3527 = vmatprep.subr.bf16.mxu0 0
      %3528 = vmatpush1.bf16.msra.mxu0 %v3468
      %3529 = vmatprep.subr.bf16.mxu0 0
      %3530 = vmatpush1.bf16.msra.mxu0 %v3469
      %3531 = vmatprep.subr.bf16.mxu0 0
      %3532 = vmatpush1.bf16.msra.mxu0 %v3470
      %3533 = vmatprep.subr.bf16.mxu0 0
      %3534 = vmatpush1.bf16.msra.mxu0 %v3471
      %3535 = vmatprep.subr.bf16.mxu0 0
      %3536 = vmatpush1.bf16.msra.mxu0 %v3472
      %3537 = vmatprep.mubr.bf16.mxu0 %v3051
      %3538 = vmatmul.mubr.bf16.gmra.mrb[0].mxu0 %v2960
      %v3539 = vpop.f32.mrb[0].mxu0
      %v3540 = vadd.f32 0.0, %v3539
      %v3541 = vpop.f32.mrb[0].mxu0
      %v3542 = vpop.f32.mrb[0].mxu0
      %v3543 = vadd.f32 0.0, %v3542
      %v3544 = vpop.f32.mrb[0].mxu0
      %3545 = vmatprep.mubr.bf16.mxu0 %v3063
      %3546 = vmatmul.mubr.bf16.gmra.mrb[0].mxu0 %v2961
      %v3547 = vpop.f32.mrb[0].mxu0
      %v3548 = vadd.f32 0.0, %v3547
      %v3549 = vpop.f32.mrb[0].mxu0
      %v3550 = vpop.f32.mrb[0].mxu0
      %v3551 = vadd.f32 0.0, %v3550
      %v3552 = vpop.f32.mrb[0].mxu0
      %3553 = vmatprep.mubr.bf16.mxu0 %v3075
      %3554 = vmatmul.mubr.bf16.gmra.mrb[0].mxu0 %v2962
      %v3555 = vpop.f32.mrb[0].mxu0
      %v3556 = vadd.f32 0.0, %v3555
      %v3557 = vpop.f32.mrb[0].mxu0
      %v3558 = vpop.f32.mrb[0].mxu0
      %v3559 = vadd.f32 0.0, %v3558
      %v3560 = vpop.f32.mrb[0].mxu0
      %3561 = vmatprep.mubr.bf16.mxu0 %v3087
      %3562 = vmatmul.mubr.bf16.gmra.mrb[0].mxu0 %v2963
      %v3563 = vpop.f32.mrb[0].mxu0
      %v3564 = vadd.f32 0.0, %v3563
      %v3565 = vpop.f32.mrb[0].mxu0
      %v3566 = vpop.f32.mrb[0].mxu0
      %v3567 = vadd.f32 0.0, %v3566
      %v3568 = vpop.f32.mrb[0].mxu0
      %3569 = vmatprep.mubr.bf16.mxu0 %v3099
      %3570 = vmatmul.mubr.bf16.gmra.mrb[0].mxu0 %v2964
      %v3571 = vpop.f32.mrb[0].mxu0
      %v3572 = vadd.f32 0.0, %v3571
      %v3573 = vpop.f32.mrb[0].mxu0
      %v3574 = vpop.f32.mrb[0].mxu0
      %v3575 = vadd.f32 0.0, %v3574
      %v3576 = vpop.f32.mrb[0].mxu0
      %3577 = vmatprep.mubr.bf16.mxu0 %v3111
      %3578 = vmatmul.mubr.bf16.gmra.mrb[0].mxu0 %v2965
      %v3579 = vpop.f32.mrb[0].mxu0
      %v3580 = vadd.f32 0.0, %v3579
      %v3581 = vpop.f32.mrb[0].mxu0
      %v3582 = vpop.f32.mrb[0].mxu0
      %v3583 = vadd.f32 0.0, %v3582
      %v3584 = vpop.f32.mrb[0].mxu0
      %3585 = vmatprep.mubr.bf16.mxu0 %v3123
      %3586 = vmatmul.mubr.bf16.gmra.mrb[0].mxu0 %v2966
      %v3587 = vpop.f32.mrb[0].mxu0
      %v3588 = vadd.f32 0.0, %v3587
      %v3589 = vpop.f32.mrb[0].mxu0
      %v3590 = vpop.f32.mrb[0].mxu0
      %v3591 = vadd.f32 0.0, %v3590
      %v3592 = vpop.f32.mrb[0].mxu0
      %3593 = vmatprep.mubr.bf16.mxu0 %v3135
      %3594 = vmatmul.mubr.bf16.gmra.mrb[0].mxu0 %v2967
      %v3595 = vpop.f32.mrb[0].mxu0
      %v3596 = vadd.f32 0.0, %v3595
      %v3597 = vpop.f32.mrb[0].mxu0
      %v3598 = vpop.f32.mrb[0].mxu0
      %v3599 = vadd.f32 0.0, %v3598
      %v3600 = vpop.f32.mrb[0].mxu0
      %3601 = vmatprep.mubr.bf16.mxu0 %v3147
      %3602 = vmatmul.mubr.bf16.gmra.mrb[0].mxu0 %v2968
      %v3603 = vpop.f32.mrb[0].mxu0
      %v3604 = vadd.f32 0.0, %v3603
      %v3605 = vpop.f32.mrb[0].mxu0
      %v3606 = vpop.f32.mrb[0].mxu0
      %v3607 = vadd.f32 0.0, %v3606
      %v3608 = vpop.f32.mrb[0].mxu0
      %3609 = vmatprep.mubr.bf16.mxu0 %v3159
      %3610 = vmatmul.mubr.bf16.gmra.mrb[0].mxu0 %v2969
      %v3611 = vpop.f32.mrb[0].mxu0
      %v3612 = vadd.f32 0.0, %v3611
      %v3613 = vpop.f32.mrb[0].mxu0
      %v3614 = vpop.f32.mrb[0].mxu0
      %v3615 = vadd.f32 0.0, %v3614
      %v3616 = vpop.f32.mrb[0].mxu0
      %3617 = vmatprep.mubr.bf16.mxu0 %v3171
      %3618 = vmatmul.mubr.bf16.gmra.mrb[0].mxu0 %v2970
      %v3619 = vpop.f32.mrb[0].mxu0
      %v3620 = vadd.f32 0.0, %v3619
      %v3621 = vpop.f32.mrb[0].mxu0
      %v3622 = vpop.f32.mrb[0].mxu0
      %v3623 = vadd.f32 0.0, %v3622
      %v3624 = vpop.f32.mrb[0].mxu0
      %3625 = vmatprep.mubr.bf16.mxu0 %v3183
      %3626 = vmatmul.mubr.bf16.gmra.mrb[0].mxu0 %v2971
      %v3627 = vpop.f32.mrb[0].mxu0
      %v3628 = vadd.f32 0.0, %v3627
      %v3629 = vpop.f32.mrb[0].mxu0
      %v3630 = vpop.f32.mrb[0].mxu0
      %v3631 = vadd.f32 0.0, %v3630
      %v3632 = vpop.f32.mrb[0].mxu0
      %3633 = vmatprep.mubr.bf16.mxu0 %v3195
      %3634 = vmatmul.mubr.bf16.gmra.mrb[0].mxu0 %v2972
      %v3635 = vpop.f32.mrb[0].mxu0
      %v3636 = vadd.f32 0.0, %v3635
      %v3637 = vpop.f32.mrb[0].mxu0
      %v3638 = vpop.f32.mrb[0].mxu0
      %v3639 = vadd.f32 0.0, %v3638
      %v3640 = vpop.f32.mrb[0].mxu0
      %3641 = vmatprep.mubr.bf16.mxu0 %v3207
      %3642 = vmatmul.mubr.bf16.gmra.mrb[0].mxu0 %v2973
      %v3643 = vpop.f32.mrb[0].mxu0
      %v3644 = vadd.f32 0.0, %v3643
      %v3645 = vpop.f32.mrb[0].mxu0
      %v3646 = vpop.f32.mrb[0].mxu0
      %v3647 = vadd.f32 0.0, %v3646
      %v3648 = vpop.f32.mrb[0].mxu0
      %3649 = vmatprep.mubr.bf16.mxu0 %v3219
      %3650 = vmatmul.mubr.bf16.gmra.mrb[0].mxu0 %v2974
      %v3651 = vpop.f32.mrb[0].mxu0
      %v3652 = vadd.f32 0.0, %v3651
      %v3653 = vpop.f32.mrb[0].mxu0
      %v3654 = vpop.f32.mrb[0].mxu0
      %v3655 = vadd.f32 0.0, %v3654
      %v3656 = vpop.f32.mrb[0].mxu0
      %3657 = vmatprep.mubr.bf16.mxu0 %v3231
      %3658 = vmatmul.mubr.bf16.gmra.mrb[0].mxu0 %v2975
      %v3659 = vpop.f32.mrb[0].mxu0
      %v3660 = vadd.f32 0.0, %v3659
      %v3661 = vpop.f32.mrb[0].mxu0
      %v3662 = vpop.f32.mrb[0].mxu0
      %v3663 = vadd.f32 0.0, %v3662
      %v3664 = vpop.f32.mrb[0].mxu0
      %3665 = vdwg.mxu0
      %3666 = vmatprep.subr.bf16.mxu0 0
      %3667 = vmatpush1.bf16.msra.mxu0 %v3473
      %3668 = vmatprep.subr.bf16.mxu0 0
      %3669 = vmatpush1.bf16.msra.mxu0 %v3474
      %3670 = vmatprep.subr.bf16.mxu0 0
      %3671 = vmatpush1.bf16.msra.mxu0 %v3475
      %3672 = vmatprep.subr.bf16.mxu0 0
      %3673 = vmatpush1.bf16.msra.mxu0 %v3476
      %3674 = vmatprep.subr.bf16.mxu0 0
      %3675 = vmatpush1.bf16.msra.mxu0 %v3477
      %3676 = vmatprep.subr.bf16.mxu0 0
      %3677 = vmatpush1.bf16.msra.mxu0 %v3478
      %3678 = vmatprep.subr.bf16.mxu0 0
      %3679 = vmatpush1.bf16.msra.mxu0 %v3479
      %3680 = vmatprep.subr.bf16.mxu0 0
      %3681 = vmatpush1.bf16.msra.mxu0 %v3480
      %3682 = vmatprep.subr.bf16.mxu0 0
      %3683 = vmatpush1.bf16.msra.mxu0 0
      %3684 = vmatprep.subr.bf16.mxu0 0
      %3685 = vmatpush1.bf16.msra.mxu0 0
      %3686 = vmatprep.subr.bf16.mxu0 0
      %3687 = vmatpush1.bf16.msra.mxu0 0
      %3688 = vmatprep.subr.bf16.mxu0 0
      %3689 = vmatpush1.bf16.msra.mxu0 0
      %3690 = vmatprep.subr.bf16.mxu0 0
      %3691 = vmatpush1.bf16.msra.mxu0 0
      %3692 = vmatprep.subr.bf16.mxu0 0
      %3693 = vmatpush1.bf16.msra.mxu0 0
      %3694 = vmatprep.subr.bf16.mxu0 0
      %3695 = vmatpush1.bf16.msra.mxu0 0
      %3696 = vmatprep.subr.bf16.mxu0 0
      %3697 = vmatpush1.bf16.msra.mxu0 0
      %3698 = vmatprep.mubr.bf16.mxu0 0
      %3699 = vmatmul.mubr.bf16.gmra.mrb[0].mxu0 %v3250
      %v3700 = vpop.f32.mrb[0].mxu0
      %v3701 = vadd.f32 %v3540, %v3700
      %v3702 = vpop.f32.mrb[0].mxu0
      %v3703 = vpop.f32.mrb[0].mxu0
      %v3704 = vadd.f32 %v3543, %v3703
      %v3705 = vpop.f32.mrb[0].mxu0
      %3706 = vmatprep.mubr.bf16.mxu0 0
      %3707 = vmatmul.mubr.bf16.gmra.mrb[0].mxu0 %v3253
      %v3708 = vpop.f32.mrb[0].mxu0
      %v3709 = vadd.f32 %v3548, %v3708
      %v3710 = vpop.f32.mrb[0].mxu0
      %v3711 = vpop.f32.mrb[0].mxu0
      %v3712 = vadd.f32 %v3551, %v3711
      %v3713 = vpop.f32.mrb[0].mxu0
      %3714 = vmatprep.mubr.bf16.mxu0 0
      %3715 = vmatmul.mubr.bf16.gmra.mrb[0].mxu0 %v3256
      %v3716 = vpop.f32.mrb[0].mxu0
      %v3717 = vadd.f32 %v3556, %v3716
      %v3718 = vpop.f32.mrb[0].mxu0
      %v3719 = vpop.f32.mrb[0].mxu0
      %v3720 = vadd.f32 %v3559, %v3719
      %v3721 = vpop.f32.mrb[0].mxu0
      %3722 = vmatprep.mubr.bf16.mxu0 0
      %3723 = vmatmul.mubr.bf16.gmra.mrb[0].mxu0 %v3259
      %v3724 = vpop.f32.mrb[0].mxu0
      %v3725 = vadd.f32 %v3564, %v3724
      %v3726 = vpop.f32.mrb[0].mxu0
      %v3727 = vpop.f32.mrb[0].mxu0
      %v3728 = vadd.f32 %v3567, %v3727
      %v3729 = vpop.f32.mrb[0].mxu0
      %3730 = vmatprep.mubr.bf16.mxu0 0
      %3731 = vmatmul.mubr.bf16.gmra.mrb[0].mxu0 %v3262
      %v3732 = vpop.f32.mrb[0].mxu0
      %v3733 = vadd.f32 %v3572, %v3732
      %v3734 = vpop.f32.mrb[0].mxu0
      %v3735 = vpop.f32.mrb[0].mxu0
      %v3736 = vadd.f32 %v3575, %v3735
      %v3737 = vpop.f32.mrb[0].mxu0
      %3738 = vmatprep.mubr.bf16.mxu0 0
      %3739 = vmatmul.mubr.bf16.gmra.mrb[0].mxu0 %v3265
      %v3740 = vpop.f32.mrb[0].mxu0
      %v3741 = vadd.f32 %v3580, %v3740
      %v3742 = vpop.f32.mrb[0].mxu0
      %v3743 = vpop.f32.mrb[0].mxu0
      %v3744 = vadd.f32 %v3583, %v3743
      %v3745 = vpop.f32.mrb[0].mxu0
      %3746 = vmatprep.mubr.bf16.mxu0 0
      %3747 = vmatmul.mubr.bf16.gmra.mrb[0].mxu0 %v3268
      %v3748 = vpop.f32.mrb[0].mxu0
      %v3749 = vadd.f32 %v3588, %v3748
      %v3750 = vpop.f32.mrb[0].mxu0
      %v3751 = vpop.f32.mrb[0].mxu0
      %v3752 = vadd.f32 %v3591, %v3751
      %v3753 = vpop.f32.mrb[0].mxu0
      %3754 = vmatprep.mubr.bf16.mxu0 0
      %3755 = vmatmul.mubr.bf16.gmra.mrb[0].mxu0 %v3271
      %v3756 = vpop.f32.mrb[0].mxu0
      %v3757 = vadd.f32 %v3596, %v3756
      %v3758 = vpop.f32.mrb[0].mxu0
      %v3759 = vpop.f32.mrb[0].mxu0
      %v3760 = vadd.f32 %v3599, %v3759
      %v3761 = vpop.f32.mrb[0].mxu0
      %3762 = vmatprep.mubr.bf16.mxu0 0
      %3763 = vmatmul.mubr.bf16.gmra.mrb[0].mxu0 %v3274
      %v3764 = vpop.f32.mrb[0].mxu0
      %v3765 = vadd.f32 %v3604, %v3764
      %v3766 = vpop.f32.mrb[0].mxu0
      %v3767 = vpop.f32.mrb[0].mxu0
      %v3768 = vadd.f32 %v3607, %v3767
      %v3769 = vpop.f32.mrb[0].mxu0
      %3770 = vmatprep.mubr.bf16.mxu0 0
      %3771 = vmatmul.mubr.bf16.gmra.mrb[0].mxu0 %v3277
      %v3772 = vpop.f32.mrb[0].mxu0
      %v3773 = vadd.f32 %v3612, %v3772
      %v3774 = vpop.f32.mrb[0].mxu0
      %v3775 = vpop.f32.mrb[0].mxu0
      %v3776 = vadd.f32 %v3615, %v3775
      %v3777 = vpop.f32.mrb[0].mxu0
      %3778 = vmatprep.mubr.bf16.mxu0 0
      %3779 = vmatmul.mubr.bf16.gmra.mrb[0].mxu0 %v3280
      %v3780 = vpop.f32.mrb[0].mxu0
      %v3781 = vadd.f32 %v3620, %v3780
      %v3782 = vpop.f32.mrb[0].mxu0
      %v3783 = vpop.f32.mrb[0].mxu0
      %v3784 = vadd.f32 %v3623, %v3783
      %v3785 = vpop.f32.mrb[0].mxu0
      %3786 = vmatprep.mubr.bf16.mxu0 0
      %3787 = vmatmul.mubr.bf16.gmra.mrb[0].mxu0 %v3283
      %v3788 = vpop.f32.mrb[0].mxu0
      %v3789 = vadd.f32 %v3628, %v3788
      %v3790 = vpop.f32.mrb[0].mxu0
      %v3791 = vpop.f32.mrb[0].mxu0
      %v3792 = vadd.f32 %v3631, %v3791
      %v3793 = vpop.f32.mrb[0].mxu0
      %3794 = vmatprep.mubr.bf16.mxu0 0
      %3795 = vmatmul.mubr.bf16.gmra.mrb[0].mxu0 %v3286
      %v3796 = vpop.f32.mrb[0].mxu0
      %v3797 = vadd.f32 %v3636, %v3796
      %v3798 = vpop.f32.mrb[0].mxu0
      %v3799 = vpop.f32.mrb[0].mxu0
      %v3800 = vadd.f32 %v3639, %v3799
      %v3801 = vpop.f32.mrb[0].mxu0
      %3802 = vmatprep.mubr.bf16.mxu0 0
      %3803 = vmatmul.mubr.bf16.gmra.mrb[0].mxu0 %v3289
      %v3804 = vpop.f32.mrb[0].mxu0
      %v3805 = vadd.f32 %v3644, %v3804
      %v3806 = vpop.f32.mrb[0].mxu0
      %v3807 = vpop.f32.mrb[0].mxu0
      %v3808 = vadd.f32 %v3647, %v3807
      %v3809 = vpop.f32.mrb[0].mxu0
      %3810 = vmatprep.mubr.bf16.mxu0 0
      %3811 = vmatmul.mubr.bf16.gmra.mrb[0].mxu0 %v3292
      %v3812 = vpop.f32.mrb[0].mxu0
      %v3813 = vadd.f32 %v3652, %v3812
      %v3814 = vpop.f32.mrb[0].mxu0
      %v3815 = vpop.f32.mrb[0].mxu0
      %v3816 = vadd.f32 %v3655, %v3815
      %v3817 = vpop.f32.mrb[0].mxu0
      %3818 = vmatprep.mubr.bf16.mxu0 0
      %3819 = vmatmul.mubr.bf16.gmra.mrb[0].mxu0 %v3295
      %v3820 = vpop.f32.mrb[0].mxu0
      %v3821 = vadd.f32 %v3660, %v3820
      %v3822 = vpop.f32.mrb[0].mxu0
      %v3823 = vpop.f32.mrb[0].mxu0
      %v3824 = vadd.f32 %v3663, %v3823
      %v3825 = vpop.f32.mrb[0].mxu0
      %3826 = vdwg.mxu0
      %v3827 = vld [vmem:[#allocation3] sm:$0xff]
      %v3828 = vld [vmem:[#allocation3 + $0x8] sm:$0xff]
      %v3829 = vld [vmem:[#allocation3 + $0x10] sm:$0xff]
      %v3830 = vld [vmem:[#allocation3 + $0x18] sm:$0xff]
      %v3831 = vld [vmem:[#allocation3 + $0x20] sm:$0xff]
      %v3832 = vld [vmem:[#allocation3 + $0x28] sm:$0xff]
      %v3833 = vld [vmem:[#allocation3 + $0x30] sm:$0xff]
      %v3834 = vld [vmem:[#allocation3 + $0x38] sm:$0xff]
      %v3835 = vld [vmem:[#allocation3 + $0x40] sm:$0xff]
      %v3836 = vld [vmem:[#allocation3 + $0x48] sm:$0xff]
      %v3837 = vld [vmem:[#allocation3 + $0x50] sm:$0xff]
      %v3838 = vld [vmem:[#allocation3 + $0x58] sm:$0xff]
      %v3839 = vld [vmem:[#allocation3 + $0x60] sm:$0xff]
      %v3840 = vld [vmem:[#allocation3 + $0x68] sm:$0xff]
      %v3841 = vld [vmem:[#allocation3 + $0x70] sm:$0xff]
      %v3842 = vld [vmem:[#allocation3 + $0x78] sm:$0xff]
      %v3843 = vld [vmem:[#allocation3 + $0x80] sm:$0xff]
      %v3844 = vld [vmem:[#allocation3 + $0x88] sm:$0xff]
      %v3845 = vld [vmem:[#allocation3 + $0x90] sm:$0xff]
      %v3846 = vld [vmem:[#allocation3 + $0x98] sm:$0xff]
      %v3847 = vld [vmem:[#allocation3 + $0xa0] sm:$0xff]
      %v3848 = vld [vmem:[#allocation3 + $0xa8] sm:$0xff]
      %v3849 = vld [vmem:[#allocation3 + $0xb0] sm:$0xff]
      %v3850 = vld [vmem:[#allocation3 + $0xb8] sm:$0xff]
      %v3851 = vld [vmem:[#allocation3 + $0xc0] sm:$0xff]
      %v3852 = vld [vmem:[#allocation3 + $0xc8] sm:$0xff]
      %v3853 = vld [vmem:[#allocation3 + $0xd0] sm:$0xff]
      %v3854 = vld [vmem:[#allocation3 + $0xd8] sm:$0xff]
      %v3855 = vld [vmem:[#allocation3 + $0xe0] sm:$0xff]
      %v3856 = vld [vmem:[#allocation3 + $0xe8] sm:$0xff]
      %v3857 = vld [vmem:[#allocation3 + $0xf0] sm:$0xff]
      %v3858 = vld [vmem:[#allocation3 + $0xf8] sm:$0xff]
      %v3859 = vadd.f32 %v3827, %v3701
      %v3860 = vadd.f32 %v3828, %v3704
      %v3861 = vadd.f32 %v3829, %v3709
      %v3862 = vadd.f32 %v3830, %v3712
      %v3863 = vadd.f32 %v3831, %v3717
      %v3864 = vadd.f32 %v3832, %v3720
      %v3865 = vadd.f32 %v3833, %v3725
      %v3866 = vadd.f32 %v3834, %v3728
      %v3867 = vadd.f32 %v3835, %v3733
      %v3868 = vadd.f32 %v3836, %v3736
      %v3869 = vadd.f32 %v3837, %v3741
      %v3870 = vadd.f32 %v3838, %v3744
      %v3871 = vadd.f32 %v3839, %v3749
      %v3872 = vadd.f32 %v3840, %v3752
      %v3873 = vadd.f32 %v3841, %v3757
      %v3874 = vadd.f32 %v3842, %v3760
      %v3875 = vadd.f32 %v3843, %v3765
      %v3876 = vadd.f32 %v3844, %v3768
      %v3877 = vadd.f32 %v3845, %v3773
      %v3878 = vadd.f32 %v3846, %v3776
      %v3879 = vadd.f32 %v3847, %v3781
      %v3880 = vadd.f32 %v3848, %v3784
      %v3881 = vadd.f32 %v3849, %v3789
      %v3882 = vadd.f32 %v3850, %v3792
      %v3883 = vadd.f32 %v3851, %v3797
      %v3884 = vadd.f32 %v3852, %v3800
      %v3885 = vadd.f32 %v3853, %v3805
      %v3886 = vadd.f32 %v3854, %v3808
      %v3887 = vadd.f32 %v3855, %v3813
      %v3888 = vadd.f32 %v3856, %v3816
      %v3889 = vadd.f32 %v3857, %v3821
      %v3890 = vadd.f32 %v3858, %v3824
      %3891 = vst [vmem:[#allocation3] sm:$0xff] %v3859
      %3892 = vst [vmem:[#allocation3 + $0x8] sm:$0xff] %v3860
      %3893 = vst [vmem:[#allocation3 + $0x10] sm:$0xff] %v3861
      %3894 = vst [vmem:[#allocation3 + $0x18] sm:$0xff] %v3862
      %3895 = vst [vmem:[#allocation3 + $0x20] sm:$0xff] %v3863
      %3896 = vst [vmem:[#allocation3 + $0x28] sm:$0xff] %v3864
      %3897 = vst [vmem:[#allocation3 + $0x30] sm:$0xff] %v3865
      %3898 = vst [vmem:[#allocation3 + $0x38] sm:$0xff] %v3866
      %3899 = vst [vmem:[#allocation3 + $0x40] sm:$0xff] %v3867
      %3900 = vst [vmem:[#allocation3 + $0x48] sm:$0xff] %v3868
      %3901 = vst [vmem:[#allocation3 + $0x50] sm:$0xff] %v3869
      %3902 = vst [vmem:[#allocation3 + $0x58] sm:$0xff] %v3870
      %3903 = vst [vmem:[#allocation3 + $0x60] sm:$0xff] %v3871
      %3904 = vst [vmem:[#allocation3 + $0x68] sm:$0xff] %v3872
      %3905 = vst [vmem:[#allocation3 + $0x70] sm:$0xff] %v3873
      %3906 = vst [vmem:[#allocation3 + $0x78] sm:$0xff] %v3874
      %3907 = vst [vmem:[#allocation3 + $0x80] sm:$0xff] %v3875
      %3908 = vst [vmem:[#allocation3 + $0x88] sm:$0xff] %v3876
      %3909 = vst [vmem:[#allocation3 + $0x90] sm:$0xff] %v3877
      %3910 = vst [vmem:[#allocation3 + $0x98] sm:$0xff] %v3878
      %3911 = vst [vmem:[#allocation3 + $0xa0] sm:$0xff] %v3879
      %3912 = vst [vmem:[#allocation3 + $0xa8] sm:$0xff] %v3880
      %3913 = vst [vmem:[#allocation3 + $0xb0] sm:$0xff] %v3881
      %3914 = vst [vmem:[#allocation3 + $0xb8] sm:$0xff] %v3882
      %3915 = vst [vmem:[#allocation3 + $0xc0] sm:$0xff] %v3883
      %3916 = vst [vmem:[#allocation3 + $0xc8] sm:$0xff] %v3884
      %3917 = vst [vmem:[#allocation3 + $0xd0] sm:$0xff] %v3885
      %3918 = vst [vmem:[#allocation3 + $0xd8] sm:$0xff] %v3886
      %3919 = vst [vmem:[#allocation3 + $0xe0] sm:$0xff] %v3887
      %3920 = vst [vmem:[#allocation3 + $0xe8] sm:$0xff] %v3888
      %3921 = vst [vmem:[#allocation3 + $0xf0] sm:$0xff] %v3889
      %3922 = vst [vmem:[#allocation3 + $0xf8] sm:$0xff] %v3890
      %v3923 = vld [vmem:[#allocation3] sm:$0xff]
      %v3924 = vld [vmem:[#allocation3 + $0x8] sm:$0xff]
      %v3925 = vld [vmem:[#allocation3 + $0x10] sm:$0xff]
      %v3926 = vld [vmem:[#allocation3 + $0x18] sm:$0xff]
      %v3927 = vld [vmem:[#allocation3 + $0x20] sm:$0xff]
      %v3928 = vld [vmem:[#allocation3 + $0x28] sm:$0xff]
      %v3929 = vld [vmem:[#allocation3 + $0x30] sm:$0xff]
      %v3930 = vld [vmem:[#allocation3 + $0x38] sm:$0xff]
      %v3931 = vld [vmem:[#allocation3 + $0x40] sm:$0xff]
      %v3932 = vld [vmem:[#allocation3 + $0x48] sm:$0xff]
      %v3933 = vld [vmem:[#allocation3 + $0x50] sm:$0xff]
      %v3934 = vld [vmem:[#allocation3 + $0x58] sm:$0xff]
      %v3935 = vld [vmem:[#allocation3 + $0x60] sm:$0xff]
      %v3936 = vld [vmem:[#allocation3 + $0x68] sm:$0xff]
      %v3937 = vld [vmem:[#allocation3 + $0x70] sm:$0xff]
      %v3938 = vld [vmem:[#allocation3 + $0x78] sm:$0xff]
      %v3939 = vld [vmem:[#allocation3 + $0x80] sm:$0xff]
      %v3940 = vld [vmem:[#allocation3 + $0x88] sm:$0xff]
      %v3941 = vld [vmem:[#allocation3 + $0x90] sm:$0xff]
      %v3942 = vld [vmem:[#allocation3 + $0x98] sm:$0xff]
      %v3943 = vld [vmem:[#allocation3 + $0xa0] sm:$0xff]
      %v3944 = vld [vmem:[#allocation3 + $0xa8] sm:$0xff]
      %v3945 = vld [vmem:[#allocation3 + $0xb0] sm:$0xff]
      %v3946 = vld [vmem:[#allocation3 + $0xb8] sm:$0xff]
      %v3947 = vld [vmem:[#allocation3 + $0xc0] sm:$0xff]
      %v3948 = vld [vmem:[#allocation3 + $0xc8] sm:$0xff]
      %v3949 = vld [vmem:[#allocation3 + $0xd0] sm:$0xff]
      %v3950 = vld [vmem:[#allocation3 + $0xd8] sm:$0xff]
      %v3951 = vld [vmem:[#allocation3 + $0xe0] sm:$0xff]
      %v3952 = vld [vmem:[#allocation3 + $0xe8] sm:$0xff]
      %v3953 = vld [vmem:[#allocation3 + $0xf0] sm:$0xff]
      %v3954 = vld [vmem:[#allocation3 + $0xf8] sm:$0xff]
      %v3955 = vpack.c.bf16 %v3924, %v3923
      %v3956 = vpack.c.bf16 %v3926, %v3925
      %v3957 = vpack.c.bf16 %v3928, %v3927
      %v3958 = vpack.c.bf16 %v3930, %v3929
      %v3959 = vpack.c.bf16 %v3932, %v3931
      %v3960 = vpack.c.bf16 %v3934, %v3933
      %v3961 = vpack.c.bf16 %v3936, %v3935
      %v3962 = vpack.c.bf16 %v3938, %v3937
      %v3963 = vpack.c.bf16 %v3940, %v3939
      %v3964 = vpack.c.bf16 %v3942, %v3941
      %v3965 = vpack.c.bf16 %v3944, %v3943
      %v3966 = vpack.c.bf16 %v3946, %v3945
      %v3967 = vpack.c.bf16 %v3948, %v3947
      %v3968 = vpack.c.bf16 %v3950, %v3949
      %v3969 = vpack.c.bf16 %v3952, %v3951
      %v3970 = vpack.c.bf16 %v3954, %v3953
      %v3987 = vunpack.c.l.b16 %v3955
      %v3988 = vunpack.c.h.b16 %v3955
      %v3989 = vunpack.c.l.b16 %v3956
      %v3990 = vunpack.c.h.b16 %v3956
      %v3991 = vunpack.c.l.b16 %v3957
      %v3992 = vunpack.c.h.b16 %v3957
      %v3993 = vunpack.c.l.b16 %v3958
      %v3994 = vunpack.c.h.b16 %v3958
      %v3995 = vunpack.c.l.b16 %v3959
      %v3996 = vunpack.c.h.b16 %v3959
      %v3997 = vunpack.c.l.b16 %v3960
      %v3998 = vunpack.c.h.b16 %v3960
      %v3999 = vunpack.c.l.b16 %v3961
      %v4000 = vunpack.c.h.b16 %v3961
      %v4001 = vunpack.c.l.b16 %v3962
      %v4002 = vunpack.c.h.b16 %v3962
      %v4003 = vunpack.c.l.b16 %v3963
      %v4004 = vunpack.c.h.b16 %v3963
      %v4005 = vunpack.c.l.b16 %v3964
      %v4006 = vunpack.c.h.b16 %v3964
      %v4007 = vunpack.c.l.b16 %v3965
      %v4008 = vunpack.c.h.b16 %v3965
      %v4009 = vunpack.c.l.b16 %v3966
      %v4010 = vunpack.c.h.b16 %v3966
      %v4011 = vunpack.c.l.b16 %v3967
      %v4012 = vunpack.c.h.b16 %v3967
      %v4013 = vunpack.c.l.b16 %v3968
      %v4014 = vunpack.c.h.b16 %v3968
      %v4015 = vunpack.c.l.b16 %v3969
      %v4016 = vunpack.c.h.b16 %v3969
      %v4017 = vunpack.c.l.b16 %v3970
      %v4018 = vunpack.c.h.b16 %v3970
      %v4019 = vpack.c.b16 %v3987, %v3987
      %v4020 = vpack.c.b16 %v3988, %v3988
      %v4021 = vpack.c.b16 %v3989, %v3989
      %v4022 = vpack.c.b16 %v3990, %v3990
      %v4023 = vpack.c.b16 %v3991, %v3991
      %v4024 = vpack.c.b16 %v3992, %v3992
      %v4025 = vpack.c.b16 %v3993, %v3993
      %v4026 = vpack.c.b16 %v3994, %v3994
      %v4027 = vpack.c.b16 %v3995, %v3995
      %v4028 = vpack.c.b16 %v3996, %v3996
      %v4029 = vpack.c.b16 %v3997, %v3997
      %v4030 = vpack.c.b16 %v3998, %v3998
      %v4031 = vpack.c.b16 %v3999, %v3999
      %v4032 = vpack.c.b16 %v4000, %v4000
      %v4033 = vpack.c.b16 %v4001, %v4001
      %v4034 = vpack.c.b16 %v4002, %v4002
      %v4035 = vpack.c.b16 %v4003, %v4003
      %v4036 = vpack.c.b16 %v4004, %v4004
      %v4037 = vpack.c.b16 %v4005, %v4005
      %v4038 = vpack.c.b16 %v4006, %v4006
      %v4039 = vpack.c.b16 %v4007, %v4007
      %v4040 = vpack.c.b16 %v4008, %v4008
      %v4041 = vpack.c.b16 %v4009, %v4009
      %v4042 = vpack.c.b16 %v4010, %v4010
      %v4043 = vpack.c.b16 %v4011, %v4011
      %v4044 = vpack.c.b16 %v4012, %v4012
      %v4045 = vpack.c.b16 %v4013, %v4013
      %v4046 = vpack.c.b16 %v4014, %v4014
      %v4047 = vpack.c.b16 %v4015, %v4015
      %v4048 = vpack.c.b16 %v4016, %v4016
      %v4049 = vpack.c.b16 %v4017, %v4017
      %v4050 = vpack.c.b16 %v4018, %v4018
      %4083 = vst [vmem:[%s177] sm:$0xf] %v4019
      %4084 = vst [vmem:[%s177 + $0x4] sm:$0xf] %v4020
      %4085 = vst [vmem:[%s177 + $0x8] sm:$0xf] %v4021
      %4086 = vst [vmem:[%s177 + $0xc] sm:$0xf] %v4022
      %4087 = vst [vmem:[%s177 + $0x10] sm:$0xf] %v4023
      %4088 = vst [vmem:[%s177 + $0x14] sm:$0xf] %v4024
      %4089 = vst [vmem:[%s177 + $0x18] sm:$0xf] %v4025
      %4090 = vst [vmem:[%s177 + $0x1c] sm:$0xf] %v4026
      %4091 = vst [vmem:[%s177 + $0x20] sm:$0xf] %v4027
      %4092 = vst [vmem:[%s177 + $0x24] sm:$0xf] %v4028
      %4093 = vst [vmem:[%s177 + $0x28] sm:$0xf] %v4029
      %4094 = vst [vmem:[%s177 + $0x2c] sm:$0xf] %v4030
      %4095 = vst [vmem:[%s177 + $0x30] sm:$0xf] %v4031
      %4096 = vst [vmem:[%s177 + $0x34] sm:$0xf] %v4032
      %4097 = vst [vmem:[%s177 + $0x38] sm:$0xf] %v4033
      %4098 = vst [vmem:[%s177 + $0x3c] sm:$0xf] %v4034
      %4099 = vst [vmem:[%s177 + $0x40] sm:$0xf] %v4035
      %4100 = vst [vmem:[%s177 + $0x44] sm:$0xf] %v4036
      %4101 = vst [vmem:[%s177 + $0x48] sm:$0xf] %v4037
      %4102 = vst [vmem:[%s177 + $0x4c] sm:$0xf] %v4038
      %4103 = vst [vmem:[%s177 + $0x50] sm:$0xf] %v4039
      %4104 = vst [vmem:[%s177 + $0x54] sm:$0xf] %v4040
      %4105 = vst [vmem:[%s177 + $0x58] sm:$0xf] %v4041
      %4106 = vst [vmem:[%s177 + $0x5c] sm:$0xf] %v4042
      %4107 = vst [vmem:[%s177 + $0x60] sm:$0xf] %v4043
      %4108 = vst [vmem:[%s177 + $0x64] sm:$0xf] %v4044
      %4109 = vst [vmem:[%s177 + $0x68] sm:$0xf] %v4045
      %4110 = vst [vmem:[%s177 + $0x6c] sm:$0xf] %v4046
      %4111 = vst [vmem:[%s177 + $0x70] sm:$0xf] %v4047
      %4112 = vst [vmem:[%s177 + $0x74] sm:$0xf] %v4048
      %4113 = vst [vmem:[%s177 + $0x78] sm:$0xf] %v4049
      %4114 = vst [vmem:[%s177 + $0x7c] sm:$0xf] %v4050
      %v4115 = vadd.f32 %v3923, %v3924
      %v4116 = vadd.f32 %v4115, %v3925
      %v4117 = vadd.f32 %v4116, %v3926
      %v4118 = vadd.f32 %v4117, %v3927
      %v4119 = vadd.f32 %v4118, %v3928
      %v4120 = vadd.f32 %v4119, %v3929
      %v4121 = vadd.f32 %v4120, %v3930
      %v4122 = vadd.f32 %v4121, %v3931
      %v4123 = vadd.f32 %v4122, %v3932
      %v4124 = vadd.f32 %v4123, %v3933
      %v4125 = vadd.f32 %v4124, %v3934
      %v4126 = vadd.f32 %v4125, %v3935
      %v4127 = vadd.f32 %v4126, %v3936
      %v4128 = vadd.f32 %v4127, %v3937
      %v4129 = vadd.f32 %v4128, %v3938
      %v4130 = vadd.f32 %v4129, %v3939
      %v4131 = vadd.f32 %v4130, %v3940
      %v4132 = vadd.f32 %v4131, %v3941
      %v4133 = vadd.f32 %v4132, %v3942
      %v4134 = vadd.f32 %v4133, %v3943
      %v4135 = vadd.f32 %v4134, %v3944
      %v4136 = vadd.f32 %v4135, %v3945
      %v4137 = vadd.f32 %v4136, %v3946
      %v4138 = vadd.f32 %v4137, %v3947
      %v4139 = vadd.f32 %v4138, %v3948
      %v4140 = vadd.f32 %v4139, %v3949
      %v4141 = vadd.f32 %v4140, %v3950
      %v4142 = vadd.f32 %v4141, %v3951
      %v4143 = vadd.f32 %v4142, %v3952
      %v4144 = vadd.f32 %v4143, %v3953
      %v4145 = vadd.f32 %v4144, %v3954
      %v4146 = vrot.slane %v4145, 4
      %v4147 = vadd.f32 %v4145, %v4146
      %v4148 = vrot.slane %v4147, 2
      %v4149 = vadd.f32 %v4147, %v4148
      %v4150 = vrot.slane %v4149, 1
      %v4151 = vadd.f32 %v4149, %v4150
      %v4152 = vmul.f32 %v3923, %v3923
      %v4153 = vmul.f32 %v3924, %v3924
      %v4154 = vmul.f32 %v3925, %v3925
      %v4155 = vmul.f32 %v3926, %v3926
      %v4156 = vmul.f32 %v3927, %v3927
      %v4157 = vmul.f32 %v3928, %v3928
      %v4158 = vmul.f32 %v3929, %v3929
      %v4159 = vmul.f32 %v3930, %v3930
      %v4160 = vmul.f32 %v3931, %v3931
      %v4161 = vmul.f32 %v3932, %v3932
      %v4162 = vmul.f32 %v3933, %v3933
      %v4163 = vmul.f32 %v3934, %v3934
      %v4164 = vmul.f32 %v3935, %v3935
      %v4165 = vmul.f32 %v3936, %v3936
      %v4166 = vmul.f32 %v3937, %v3937
      %v4167 = vmul.f32 %v3938, %v3938
      %v4168 = vmul.f32 %v3939, %v3939
      %v4169 = vmul.f32 %v3940, %v3940
      %v4170 = vmul.f32 %v3941, %v3941
      %v4171 = vmul.f32 %v3942, %v3942
      %v4172 = vmul.f32 %v3943, %v3943
      %v4173 = vmul.f32 %v3944, %v3944
      %v4174 = vmul.f32 %v3945, %v3945
      %v4175 = vmul.f32 %v3946, %v3946
      %v4176 = vmul.f32 %v3947, %v3947
      %v4177 = vmul.f32 %v3948, %v3948
      %v4178 = vmul.f32 %v3949, %v3949
      %v4179 = vmul.f32 %v3950, %v3950
      %v4180 = vmul.f32 %v3951, %v3951
      %v4181 = vmul.f32 %v3952, %v3952
      %v4182 = vmul.f32 %v3953, %v3953
      %v4183 = vmul.f32 %v3954, %v3954
      %v4184 = vadd.f32 %v4152, %v4153
      %v4185 = vadd.f32 %v4184, %v4154
      %v4186 = vadd.f32 %v4185, %v4155
      %v4187 = vadd.f32 %v4186, %v4156
      %v4188 = vadd.f32 %v4187, %v4157
      %v4189 = vadd.f32 %v4188, %v4158
      %v4190 = vadd.f32 %v4189, %v4159
      %v4191 = vadd.f32 %v4190, %v4160
      %v4192 = vadd.f32 %v4191, %v4161
      %v4193 = vadd.f32 %v4192, %v4162
      %v4194 = vadd.f32 %v4193, %v4163
      %v4195 = vadd.f32 %v4194, %v4164
      %v4196 = vadd.f32 %v4195, %v4165
      %v4197 = vadd.f32 %v4196, %v4166
      %v4198 = vadd.f32 %v4197, %v4167
      %v4199 = vadd.f32 %v4198, %v4168
      %v4200 = vadd.f32 %v4199, %v4169
      %v4201 = vadd.f32 %v4200, %v4170
      %v4202 = vadd.f32 %v4201, %v4171
      %v4203 = vadd.f32 %v4202, %v4172
      %v4204 = vadd.f32 %v4203, %v4173
      %v4205 = vadd.f32 %v4204, %v4174
      %v4206 = vadd.f32 %v4205, %v4175
      %v4207 = vadd.f32 %v4206, %v4176
      %v4208 = vadd.f32 %v4207, %v4177
      %v4209 = vadd.f32 %v4208, %v4178
      %v4210 = vadd.f32 %v4209, %v4179
      %v4211 = vadd.f32 %v4210, %v4180
      %v4212 = vadd.f32 %v4211, %v4181
      %v4213 = vadd.f32 %v4212, %v4182
      %v4214 = vadd.f32 %v4213, %v4183
      %v4215 = vrot.slane %v4214, 4
      %v4216 = vadd.f32 %v4214, %v4215
      %v4217 = vrot.slane %v4216, 2
      %v4218 = vadd.f32 %v4216, %v4217
      %v4219 = vrot.slane %v4218, 1
      %v4220 = vadd.f32 %v4218, %v4219
      %vm4221 = vcmask 1040384
      %v4222 = vsel %vm4221, %v4151, %v4220
      %vm4223 = vcmask 1041408
      %v4224 = vsel %vm4223, %v4222, 0.0
      %4225 = vst [vmem:[%s181] sm:$0xff] %v4224
      %p4226 = scmp.lt.s32.totalorder %s15, 1
      %s4227 = scalar_select %p4226, %s15, 1
      %s4228 = smul.addr %s4227, 32
      %s4229 = smul.addr %s4228, 4
      %s4230 = scalar_lea.vmem %s2, %s4229
      %p4231 = scmp.lt.s32.totalorder %s15, 1
      %s4232 = scalar_select %p4231, %s15, 1
      %s4233 = smul.addr %s4232, 8
      %s4234 = scalar_lea.vmem %s3, %s4233
      // Predicated region
      $region29: #{basic_cell_forward.3} parent=27 // pred_check
        %p4235 = pneg %p80
      $region30: #{basic_cell_forward.3} parent=27 // pred_check_branch
        %4237 = sbr.rel (%p4235) target = $region32
      $region31: #{basic_cell_forward.3} parent=27 // pred_region
        _
      $region32: #{basic_cell_forward.3} parent=27 // pred_fallthru
        _
      // Predicated region
      $region33: #{basic_cell_forward.3} parent=27 // pred_check
        %p4238 = pneg %p106
      $region34: #{basic_cell_forward.3} parent=27 // pred_check_branch
        %4240 = sbr.rel (%p4238) target = $region36
      $region35: #{basic_cell_forward.3} parent=27 // pred_region
        _
      $region36: #{basic_cell_forward.3} parent=27 // pred_fallthru
        _
    $region28: #{basic_cell_forward.3} parent=5 // pred_fallthru
      _
    %p4241 = scmp.le.s32.totalorder 2, %s10
    // Predicated region
    $region37: #{basic_cell_forward.3} parent=5 // pred_check
      %p4242 = pneg %p4241
    $region38: #{basic_cell_forward.3} parent=5 // pred_check_branch
      %4244 = sbr.rel (%p4242) target = $region40
    $region39: #{basic_cell_forward.3} parent=5 // pred_region
      %s4245 = ssub.s32 %s10, 2
      // Predicated region
      $region41: #{basic_cell_forward.3} parent=39 // pred_check
        %p4246 = pneg %p86
      $region42: #{basic_cell_forward.3} parent=39 // pred_check_branch
        %4248 = sbr.rel (%p4246) target = $region44
      $region43: #{basic_cell_forward.3} parent=39 // pred_region
        %p4249 = scmp.lt.s32.totalorder %s16, 1
        %s4250 = scalar_select %p4249, %s16, 1
        %s4251 = smul.addr %s4250, 32
        %s4252 = smul.addr %s4251, 4
        %s4253 = scalar_lea.vmem %s2, %s4252
      $region44: #{basic_cell_forward.3} parent=39 // pred_fallthru
        _
      // Predicated region
      $region45: #{basic_cell_forward.3} parent=39 // pred_check
        %p4254 = pneg %p112
      $region46: #{basic_cell_forward.3} parent=39 // pred_check_branch
        %4256 = sbr.rel (%p4254) target = $region48
      $region47: #{basic_cell_forward.3} parent=39 // pred_region
        %p4257 = scmp.lt.s32.totalorder %s16, 1
        %s4258 = scalar_select %p4257, %s16, 1
        %s4259 = smul.addr %s4258, 8
        %s4260 = scalar_lea.vmem %s3, %s4259
      $region48: #{basic_cell_forward.3} parent=39 // pred_fallthru
        _
    $region40: #{basic_cell_forward.3} parent=5 // pred_fallthru
      _
  $region6: #{basic_cell_forward.3} parent=0 // loop_footer
    %s14 = sadd.s32 1, %s10
  $region7: #{basic_cell_forward.3} parent=0 // loop_footer_branch
    %9 = sbr.rel target = $region3
  $region8: #{basic_cell_forward.3} parent=0 // loop_exit
    _

// kernel: basic_cell_forward.4
$region0: #{basic_cell_forward.4}
  #allocation0 [shape = 'u32[]', space=smem, size = 0x4, offset = 0x4, fixed_abs, tag = 'smem constant byte address 0x4 - core index']
  #allocation1 [shape = 'u32[144,128]{1,0:T(1,128)}', space=vmem, size = 0x12000, scoped, tag = 'internal scratch']
  #allocation2 [shape = 'bf16[18,18,128]{2,1,0:T(8,128)(2,1)}', space=vmem, size = 0x1b000, scoped, tag = 'scratch operand']
  #allocation3 [shape = 'f32[256,128]{1,0:T(8,128)}', space=vmem, size = 0x20000, scoped, tag = 'scratch operand']
  %s0 = inlined_call_operand.vmem [shape: bf16[2,16,16,128], index: 0, kind: input, shape index: {}]
  %s1 = inlined_call_operand.vmem [shape: f32[1,128], index: 1, kind: input, shape index: {}]
  %s2 = inlined_call_operand.vmem [shape: f32[1,128], index: 2, kind: input, shape index: {}]
  %s3 = inlined_call_operand.vmem [shape: bf16[3,384,128], index: 3, kind: input, shape index: {}]
  %s4 = inlined_call_operand.vmem [shape: bf16[2,16,16,128], index: 4, kind: output, shape index: {0}]
  %s5 = inlined_call_operand.vmem [shape: f32[2,8,128], index: 5, kind: output, shape index: {1}]
  %6 = xla_tuple %s4, %s5
  %s7 = sld [smem:[#allocation0]]
  $region57: #{basic_cell_forward.4} parent=0
    _
  %s9 = ssub.s32 1, %s7
  %s10 = scalar_select 0, %s9, %s7
  loop: start=0, step=1, limit=4
  $region2: #{basic_cell_forward.4} parent=0 // loop_pre_header
    _
  $region3: #{basic_cell_forward.4} parent=0 // loop_header
    %s12 = sphi 0, %s16
    %p13 = scmp.ge.s32.totalorder %s12, 4
    %s22 = sphi 0, %s24
    %s25 = sphi 0, %s22
    %s26 = sphi 0, %s25
    %s42 = sphi 0, %s26
    %s46 = sphi 0, %s46
    %s48 = sphi 0, %s46
    %s49 = sphi 0, %s48
    %s63 = sphi 0, %s49
    %s67 = sphi 0, %s67
    %s69 = sphi 0, %s67
    %s70 = sphi 0, %s69
    %s84 = sphi 0, %s70
    %s88 = sphi 0, %s88
    %s90 = sphi 0, %s88
    %s91 = sphi 0, %s90
    %s105 = sphi 0, %s91
    %s111 = sphi 0, %s113
    %s114 = sphi 0, %s111
    %s115 = sphi 0, %s114
    %s131 = sphi 0, %s115
    %s137 = sphi 0, %s139
    %s140 = sphi 0, %s137
    %s141 = sphi 0, %s140
    %s157 = sphi 0, %s141
  $region4: #{basic_cell_forward.4} parent=0 // loop_header_branch
    %15 = sbr.rel (%p13) target = $region8
  $region5: #{basic_cell_forward.4} parent=0 // loop_body
    %s17 = ssub.s32 %s12, 1
    %s18 = ssub.s32 %s12, 2
    %s19 = sadd.s32 %s12, 1
    %s20 = ssub.s32 %s12, %s19
    %p21 = scmp.eq.s32.totalorder %s20, 0
    %s23 = sadd.s32 %s22, 1
    %s24 = scalar_select %p21, %s22, %s23
    %p27 = pneg %p21
    %p28 = scmp.eq.s32.totalorder %s12, 1
    %p29 = por %p27, %p28
    %p30 = scmp.ne.s32.totalorder %s22, %s25
    %p31 = scmp.eq.s32.totalorder %s12, 0
    %p32 = por %p30, %p31
    %p33 = scmp.ne.s32.totalorder %s22, %s25
    %p34 = scmp.eq.s32.totalorder %s17, 1
    %p35 = por %p33, %p34
    %p36 = scmp.ne.s32.totalorder %s25, %s26
    %p37 = scmp.eq.s32.totalorder %s17, 0
    %p38 = por %p36, %p37
    %p39 = scmp.ne.s32.totalorder %s25, %s26
    %p40 = scmp.eq.s32.totalorder %s18, 1
    %p41 = por %p39, %p40
    %p43 = scmp.ne.s32.totalorder %s26, %s42
    %p44 = scmp.eq.s32.totalorder %s18, 0
    %p45 = por %p43, %p44
    %s47 = sadd.s32 %s46, 1
    %p50 = scmp.eq.s32.totalorder %s12, 1
    %p51 = scmp.ne.s32.totalorder %s46, %s48
    %p52 = scmp.eq.s32.totalorder %s12, 0
    %p53 = por %p51, %p52
    %p54 = scmp.ne.s32.totalorder %s46, %s48
    %p55 = scmp.eq.s32.totalorder %s17, 1
    %p56 = por %p54, %p55
    %p57 = scmp.ne.s32.totalorder %s48, %s49
    %p58 = scmp.eq.s32.totalorder %s17, 0
    %p59 = por %p57, %p58
    %p60 = scmp.ne.s32.totalorder %s48, %s49
    %p61 = scmp.eq.s32.totalorder %s18, 1
    %p62 = por %p60, %p61
    %p64 = scmp.ne.s32.totalorder %s49, %s63
    %p65 = scmp.eq.s32.totalorder %s18, 0
    %p66 = por %p64, %p65
    %s68 = sadd.s32 %s67, 1
    %p71 = scmp.eq.s32.totalorder %s12, 1
    %p72 = scmp.ne.s32.totalorder %s67, %s69
    %p73 = scmp.eq.s32.totalorder %s12, 0
    %p74 = por %p72, %p73
    %p75 = scmp.ne.s32.totalorder %s67, %s69
    %p76 = scmp.eq.s32.totalorder %s17, 1
    %p77 = por %p75, %p76
    %p78 = scmp.ne.s32.totalorder %s69, %s70
    %p79 = scmp.eq.s32.totalorder %s17, 0
    %p80 = por %p78, %p79
    %p81 = scmp.ne.s32.totalorder %s69, %s70
    %p82 = scmp.eq.s32.totalorder %s18, 1
    %p83 = por %p81, %p82
    %p85 = scmp.ne.s32.totalorder %s70, %s84
    %p86 = scmp.eq.s32.totalorder %s18, 0
    %p87 = por %p85, %p86
    %s89 = sadd.s32 %s88, 1
    %p92 = scmp.eq.s32.totalorder %s12, 1
    %p93 = scmp.ne.s32.totalorder %s88, %s90
    %p94 = scmp.eq.s32.totalorder %s12, 0
    %p95 = por %p93, %p94
    %p96 = scmp.ne.s32.totalorder %s88, %s90
    %p97 = scmp.eq.s32.totalorder %s17, 1
    %p98 = por %p96, %p97
    %p99 = scmp.ne.s32.totalorder %s90, %s91
    %p100 = scmp.eq.s32.totalorder %s17, 0
    %p101 = por %p99, %p100
    %p102 = scmp.ne.s32.totalorder %s90, %s91
    %p103 = scmp.eq.s32.totalorder %s18, 1
    %p104 = por %p102, %p103
    %p106 = scmp.ne.s32.totalorder %s91, %s105
    %p107 = scmp.eq.s32.totalorder %s18, 0
    %p108 = por %p106, %p107
    %s109 = ssub.s32 %s12, %s19
    %p110 = scmp.eq.s32.totalorder %s109, 0
    %s112 = sadd.s32 %s111, 1
    %s113 = scalar_select %p110, %s111, %s112
    %p116 = pneg %p110
    %p117 = scmp.eq.s32.totalorder %s12, 1
    %p118 = por %p116, %p117
    %p119 = scmp.ne.s32.totalorder %s111, %s114
    %p120 = scmp.eq.s32.totalorder %s12, 0
    %p121 = por %p119, %p120
    %p122 = scmp.ne.s32.totalorder %s111, %s114
    %p123 = scmp.eq.s32.totalorder %s17, 1
    %p124 = por %p122, %p123
    %p125 = scmp.ne.s32.totalorder %s114, %s115
    %p126 = scmp.eq.s32.totalorder %s17, 0
    %p127 = por %p125, %p126
    %p128 = scmp.ne.s32.totalorder %s114, %s115
    %p129 = scmp.eq.s32.totalorder %s18, 1
    %p130 = por %p128, %p129
    %p132 = scmp.ne.s32.totalorder %s115, %s131
    %p133 = scmp.eq.s32.totalorder %s18, 0
    %p134 = por %p132, %p133
    %s135 = ssub.s32 %s12, %s19
    %p136 = scmp.eq.s32.totalorder %s135, 0
    %s138 = sadd.s32 %s137, 1
    %s139 = scalar_select %p136, %s137, %s138
    %p142 = pneg %p136
    %p143 = scmp.eq.s32.totalorder %s12, 1
    %p144 = por %p142, %p143
    %p145 = scmp.ne.s32.totalorder %s137, %s140
    %p146 = scmp.eq.s32.totalorder %s12, 0
    %p147 = por %p145, %p146
    %p148 = scmp.ne.s32.totalorder %s137, %s140
    %p149 = scmp.eq.s32.totalorder %s17, 1
    %p150 = por %p148, %p149
    %p151 = scmp.ne.s32.totalorder %s140, %s141
    %p152 = scmp.eq.s32.totalorder %s17, 0
    %p153 = por %p151, %p152
    %p154 = scmp.ne.s32.totalorder %s140, %s141
    %p155 = scmp.eq.s32.totalorder %s18, 1
    %p156 = por %p154, %p155
    %p158 = scmp.ne.s32.totalorder %s141, %s157
    %p159 = scmp.eq.s32.totalorder %s18, 0
    %p160 = por %p158, %p159
    %p161 = scmp.le.s32.totalorder 1, %s12
    %p162 = scmp.lt.s32.totalorder %s12, 3
    %p163 = pnand %p161, %p162
    %p164 = pneg %p163
    // Predicated region
    $region9: #{basic_cell_forward.4} parent=5 // pred_check
      _
    $region10: #{basic_cell_forward.4} parent=5 // pred_check_branch
      %166 = sbr.rel (%p163) target = $region12
    $region11: #{basic_cell_forward.4} parent=5 // pred_region
      %s167 = ssub.s32 %s12, 1
      // Predicated region
      $region13: #{basic_cell_forward.4} parent=11 // pred_check
        %p168 = pneg %p59
      $region14: #{basic_cell_forward.4} parent=11 // pred_check_branch
        %170 = sbr.rel (%p168) target = $region16
      $region15: #{basic_cell_forward.4} parent=11 // pred_region
        _
      $region16: #{basic_cell_forward.4} parent=11 // pred_fallthru
        _
      // Predicated region
      $region17: #{basic_cell_forward.4} parent=11 // pred_check
        %p171 = pneg %p80
      $region18: #{basic_cell_forward.4} parent=11 // pred_check_branch
        %173 = sbr.rel (%p171) target = $region20
      $region19: #{basic_cell_forward.4} parent=11 // pred_region
        _
      $region20: #{basic_cell_forward.4} parent=11 // pred_fallthru
        _
      // Predicated region
      $region21: #{basic_cell_forward.4} parent=11 // pred_check
        %p174 = pneg %p101
      $region22: #{basic_cell_forward.4} parent=11 // pred_check_branch
        %176 = sbr.rel (%p174) target = $region24
      $region23: #{basic_cell_forward.4} parent=11 // pred_region
        _
      $region24: #{basic_cell_forward.4} parent=11 // pred_fallthru
        _
    $region12: #{basic_cell_forward.4} parent=5 // pred_fallthru
      _
    %p177 = scmp.lt.s32.totalorder %s12, 2
    // Predicated region
    $region25: #{basic_cell_forward.4} parent=5 // pred_check
      %p178 = pneg %p177
    $region26: #{basic_cell_forward.4} parent=5 // pred_check_branch
      %180 = sbr.rel (%p178) target = $region28
    $region27: #{basic_cell_forward.4} parent=5 // pred_region
      // Predicated region
      $region29: #{basic_cell_forward.4} parent=27 // pred_check
        %p181 = pneg %p32
      $region30: #{basic_cell_forward.4} parent=27 // pred_check_branch
        %183 = sbr.rel (%p181) target = $region32
      $region31: #{basic_cell_forward.4} parent=27 // pred_region
        %p184 = scmp.lt.s32.totalorder %s12, 1
        %s185 = scalar_select %p184, %s12, 1
        %s186 = smul.addr %s185, 32
        %s187 = smul.addr %s186, 4
        %s188 = scalar_lea.vmem %s0, %s187
      $region32: #{basic_cell_forward.4} parent=27 // pred_fallthru
        _
    $region28: #{basic_cell_forward.4} parent=5 // pred_fallthru
      _
    %p189 = scmp.le.s32.totalorder 1, %s12
    %p190 = scmp.lt.s32.totalorder %s12, 3
    %p191 = pnand %p189, %p190
    %p192 = pneg %p191
    // Predicated region
    $region33: #{basic_cell_forward.4} parent=5 // pred_check
      _
    $region34: #{basic_cell_forward.4} parent=5 // pred_check_branch
      %194 = sbr.rel (%p191) target = $region36
    $region35: #{basic_cell_forward.4} parent=5 // pred_region
      %s195 = ssub.s32 %s12, 1
      %p196 = scmp.lt.s32.totalorder %s17, 1
      %s197 = scalar_select %p196, %s17, 1
      %s198 = smul.addr %s197, 32
      %s199 = smul.addr %s198, 4
      %s200 = scalar_lea.vmem %s0, %s199
      %p201 = pneg %p38
      %p202 = pneg %p35
      %p203 = pneg %p59
      %p204 = pneg %p56
      %p205 = pneg %p80
      %p206 = pneg %p77
      %p207 = pneg %p101
      %p208 = pneg %p98
      %p209 = pneg %p127
      %p210 = pneg %p124
      %p211 = scmp.lt.s32.totalorder %s17, 1
      %s212 = scalar_select %p211, %s17, 1
      %s213 = smul.addr %s212, 32
      %s214 = smul.addr %s213, 4
      %s215 = scalar_lea.vmem %s4, %s214
      %p216 = pneg %p153
      %p217 = pneg %p150
      %p218 = scmp.lt.s32.totalorder %s17, 1
      %s219 = scalar_select %p218, %s17, 1
      %s220 = smul.addr %s219, 8
      %s221 = scalar_lea.vmem %s5, %s220
      %p222 = scmp.lt.s32.totalorder %s17, 1
      %s223 = scalar_select %p222, %s17, 1
      %s224 = smul.addr %s223, 32
      %s225 = smul.addr %s224, 4
      %s226 = scalar_lea.vmem %s0, %s225
      %p227 = scmp.lt.s32.totalorder %s17, 1
      %s228 = scalar_select %p227, %s17, 1
      %s229 = smul.addr %s228, 32
      %s230 = smul.addr %s229, 4
      %s231 = scalar_lea.vmem %s4, %s230
      %p232 = scmp.lt.s32.totalorder %s17, 1
      %s233 = scalar_select %p232, %s17, 1
      %s234 = smul.addr %s233, 8
      %s235 = scalar_lea.vmem %s5, %s234
      %237 = vst [vmem:[#allocation2] sm:$0xf] 0
      %238 = vst [vmem:[#allocation2 + $0x4] sm:$0xf] 0
      %239 = vst [vmem:[#allocation2 + $0x8] sm:$0x1] 0
      %s240 = scalar_lea.vmem [#allocation2], 204
      %241 = vst [vmem:[%s240] sm:$0xf] 0
      %242 = vst [vmem:[%s240 + $0x4] sm:$0xf] 0
      %243 = vst [vmem:[%s240 + $0x8] sm:$0x1] 0
      %s244 = scalar_lea.vmem [#allocation2], 12
      %vm245 = vcmask 1040384
      %vm246 = vsmask.f32 256
      %vm247 = vmand %vm245, %vm246
      %v248 = vld [vmem:[%s244] sm:$0x1]
      %v249 = vsel %vm247, 0, %v248
      %250 = vst [vmem:[%s244] sm:$0x1] %v249
      %v251 = vld [vmem:[%s244 + $0xc] sm:$0x1]
      %v252 = vsel %vm247, 0, %v251
      %253 = vst [vmem:[%s244 + $0xc] sm:$0x1] %v252
      %v254 = vld [vmem:[%s244 + $0x18] sm:$0x1]
      %v255 = vsel %vm247, 0, %v254
      %256 = vst [vmem:[%s244 + $0x18] sm:$0x1] %v255
      %v257 = vld [vmem:[%s244 + $0x24] sm:$0x1]
      %v258 = vsel %vm247, 0, %v257
      %259 = vst [vmem:[%s244 + $0x24] sm:$0x1] %v258
      %v260 = vld [vmem:[%s244 + $0x30] sm:$0x1]
      %v261 = vsel %vm247, 0, %v260
      %262 = vst [vmem:[%s244 + $0x30] sm:$0x1] %v261
      %v263 = vld [vmem:[%s244 + $0x3c] sm:$0x1]
      %v264 = vsel %vm247, 0, %v263
      %265 = vst [vmem:[%s244 + $0x3c] sm:$0x1] %v264
      %v266 = vld [vmem:[%s244 + $0x48] sm:$0x1]
      %v267 = vsel %vm247, 0, %v266
      %268 = vst [vmem:[%s244 + $0x48] sm:$0x1] %v267
      %v269 = vld [vmem:[%s244 + $0x54] sm:$0x1]
      %v270 = vsel %vm247, 0, %v269
      %271 = vst [vmem:[%s244 + $0x54] sm:$0x1] %v270
      %v272 = vld [vmem:[%s244 + $0x60] sm:$0x1]
      %v273 = vsel %vm247, 0, %v272
      %274 = vst [vmem:[%s244 + $0x60] sm:$0x1] %v273
      %v275 = vld [vmem:[%s244 + $0x6c] sm:$0x1]
      %v276 = vsel %vm247, 0, %v275
      %277 = vst [vmem:[%s244 + $0x6c] sm:$0x1] %v276
      %v278 = vld [vmem:[%s244 + $0x78] sm:$0x1]
      %v279 = vsel %vm247, 0, %v278
      %280 = vst [vmem:[%s244 + $0x78] sm:$0x1] %v279
      %v281 = vld [vmem:[%s244 + $0x84] sm:$0x1]
      %v282 = vsel %vm247, 0, %v281
      %283 = vst [vmem:[%s244 + $0x84] sm:$0x1] %v282
      %v284 = vld [vmem:[%s244 + $0x90] sm:$0x1]
      %v285 = vsel %vm247, 0, %v284
      %286 = vst [vmem:[%s244 + $0x90] sm:$0x1] %v285
      %v287 = vld [vmem:[%s244 + $0x9c] sm:$0x1]
      %v288 = vsel %vm247, 0, %v287
      %289 = vst [vmem:[%s244 + $0x9c] sm:$0x1] %v288
      %v290 = vld [vmem:[%s244 + $0xa8] sm:$0x1]
      %v291 = vsel %vm247, 0, %v290
      %292 = vst [vmem:[%s244 + $0xa8] sm:$0x1] %v291
      %v293 = vld [vmem:[%s244 + $0xb4] sm:$0x1]
      %v294 = vsel %vm247, 0, %v293
      %295 = vst [vmem:[%s244 + $0xb4] sm:$0x1] %v294
      %vm296 = vsmask.f32 7938
      %vm297 = vmand %vm245, %vm296
      %v298 = vld [vmem:[%s244 + $0x8] sm:$0x1]
      %v299 = vsel %vm297, 0, %v298
      %300 = vst [vmem:[%s244 + $0x8] sm:$0x1] %v299
      %v301 = vld [vmem:[%s244 + $0x14] sm:$0x1]
      %v302 = vsel %vm297, 0, %v301
      %303 = vst [vmem:[%s244 + $0x14] sm:$0x1] %v302
      %v304 = vld [vmem:[%s244 + $0x20] sm:$0x1]
      %v305 = vsel %vm297, 0, %v304
      %306 = vst [vmem:[%s244 + $0x20] sm:$0x1] %v305
      %v307 = vld [vmem:[%s244 + $0x2c] sm:$0x1]
      %v308 = vsel %vm297, 0, %v307
      %309 = vst [vmem:[%s244 + $0x2c] sm:$0x1] %v308
      %v310 = vld [vmem:[%s244 + $0x38] sm:$0x1]
      %v311 = vsel %vm297, 0, %v310
      %312 = vst [vmem:[%s244 + $0x38] sm:$0x1] %v311
      %v313 = vld [vmem:[%s244 + $0x44] sm:$0x1]
      %v314 = vsel %vm297, 0, %v313
      %315 = vst [vmem:[%s244 + $0x44] sm:$0x1] %v314
      %v316 = vld [vmem:[%s244 + $0x50] sm:$0x1]
      %v317 = vsel %vm297, 0, %v316
      %318 = vst [vmem:[%s244 + $0x50] sm:$0x1] %v317
      %v319 = vld [vmem:[%s244 + $0x5c] sm:$0x1]
      %v320 = vsel %vm297, 0, %v319
      %321 = vst [vmem:[%s244 + $0x5c] sm:$0x1] %v320
      %v322 = vld [vmem:[%s244 + $0x68] sm:$0x1]
      %v323 = vsel %vm297, 0, %v322
      %324 = vst [vmem:[%s244 + $0x68] sm:$0x1] %v323
      %v325 = vld [vmem:[%s244 + $0x74] sm:$0x1]
      %v326 = vsel %vm297, 0, %v325
      %327 = vst [vmem:[%s244 + $0x74] sm:$0x1] %v326
      %v328 = vld [vmem:[%s244 + $0x80] sm:$0x1]
      %v329 = vsel %vm297, 0, %v328
      %330 = vst [vmem:[%s244 + $0x80] sm:$0x1] %v329
      %v331 = vld [vmem:[%s244 + $0x8c] sm:$0x1]
      %v332 = vsel %vm297, 0, %v331
      %333 = vst [vmem:[%s244 + $0x8c] sm:$0x1] %v332
      %v334 = vld [vmem:[%s244 + $0x98] sm:$0x1]
      %v335 = vsel %vm297, 0, %v334
      %336 = vst [vmem:[%s244 + $0x98] sm:$0x1] %v335
      %v337 = vld [vmem:[%s244 + $0xa4] sm:$0x1]
      %v338 = vsel %vm297, 0, %v337
      %339 = vst [vmem:[%s244 + $0xa4] sm:$0x1] %v338
      %v340 = vld [vmem:[%s244 + $0xb0] sm:$0x1]
      %v341 = vsel %vm297, 0, %v340
      %342 = vst [vmem:[%s244 + $0xb0] sm:$0x1] %v341
      %v343 = vld [vmem:[%s244 + $0xbc] sm:$0x1]
      %v344 = vsel %vm297, 0, %v343
      %345 = vst [vmem:[%s244 + $0xbc] sm:$0x1] %v344
      %v346 = vld [vmem:[%s226] sm:$0xf]
      %v347 = vld [vmem:[%s226 + $0x4] sm:$0xf]
      %v348 = vld [vmem:[%s226 + $0x8] sm:$0xf]
      %v349 = vld [vmem:[%s226 + $0xc] sm:$0xf]
      %v350 = vld [vmem:[%s226 + $0x10] sm:$0xf]
      %v351 = vld [vmem:[%s226 + $0x14] sm:$0xf]
      %v352 = vld [vmem:[%s226 + $0x18] sm:$0xf]
      %v353 = vld [vmem:[%s226 + $0x1c] sm:$0xf]
      %v354 = vld [vmem:[%s226 + $0x20] sm:$0xf]
      %v355 = vld [vmem:[%s226 + $0x24] sm:$0xf]
      %v356 = vld [vmem:[%s226 + $0x28] sm:$0xf]
      %v357 = vld [vmem:[%s226 + $0x2c] sm:$0xf]
      %v358 = vld [vmem:[%s226 + $0x30] sm:$0xf]
      %v359 = vld [vmem:[%s226 + $0x34] sm:$0xf]
      %v360 = vld [vmem:[%s226 + $0x38] sm:$0xf]
      %v361 = vld [vmem:[%s226 + $0x3c] sm:$0xf]
      %v362 = vld [vmem:[%s226 + $0x40] sm:$0xf]
      %v363 = vld [vmem:[%s226 + $0x44] sm:$0xf]
      %v364 = vld [vmem:[%s226 + $0x48] sm:$0xf]
      %v365 = vld [vmem:[%s226 + $0x4c] sm:$0xf]
      %v366 = vld [vmem:[%s226 + $0x50] sm:$0xf]
      %v367 = vld [vmem:[%s226 + $0x54] sm:$0xf]
      %v368 = vld [vmem:[%s226 + $0x58] sm:$0xf]
      %v369 = vld [vmem:[%s226 + $0x5c] sm:$0xf]
      %v370 = vld [vmem:[%s226 + $0x60] sm:$0xf]
      %v371 = vld [vmem:[%s226 + $0x64] sm:$0xf]
      %v372 = vld [vmem:[%s226 + $0x68] sm:$0xf]
      %v373 = vld [vmem:[%s226 + $0x6c] sm:$0xf]
      %v374 = vld [vmem:[%s226 + $0x70] sm:$0xf]
      %v375 = vld [vmem:[%s226 + $0x74] sm:$0xf]
      %v376 = vld [vmem:[%s226 + $0x78] sm:$0xf]
      %v377 = vld [vmem:[%s226 + $0x7c] sm:$0xf]
      %v378 = vunpack.c.l.bf16 %v346
      %v379 = vunpack.c.l.bf16 %v347
      %v380 = vunpack.c.l.bf16 %v348
      %v381 = vunpack.c.l.bf16 %v349
      %v382 = vunpack.c.l.bf16 %v350
      %v383 = vunpack.c.l.bf16 %v351
      %v384 = vunpack.c.l.bf16 %v352
      %v385 = vunpack.c.l.bf16 %v353
      %v386 = vunpack.c.l.bf16 %v354
      %v387 = vunpack.c.l.bf16 %v355
      %v388 = vunpack.c.l.bf16 %v356
      %v389 = vunpack.c.l.bf16 %v357
      %v390 = vunpack.c.l.bf16 %v358
      %v391 = vunpack.c.l.bf16 %v359
      %v392 = vunpack.c.l.bf16 %v360
      %v393 = vunpack.c.l.bf16 %v361
      %v394 = vunpack.c.l.bf16 %v362
      %v395 = vunpack.c.l.bf16 %v363
      %v396 = vunpack.c.l.bf16 %v364
      %v397 = vunpack.c.l.bf16 %v365
      %v398 = vunpack.c.l.bf16 %v366
      %v399 = vunpack.c.l.bf16 %v367
      %v400 = vunpack.c.l.bf16 %v368
      %v401 = vunpack.c.l.bf16 %v369
      %v402 = vunpack.c.l.bf16 %v370
      %v403 = vunpack.c.l.bf16 %v371
      %v404 = vunpack.c.l.bf16 %v372
      %v405 = vunpack.c.l.bf16 %v373
      %v406 = vunpack.c.l.bf16 %v374
      %v407 = vunpack.c.l.bf16 %v375
      %v408 = vunpack.c.l.bf16 %v376
      %v409 = vunpack.c.l.bf16 %v377
      %v410 = vld [vmem:[%s1] sm:$0x1]
      %v412 = vlaneseq
      %v413 = vshrl.u32 %v412, 7
      %v414 = vsub.s32 0, %v413
      %v415 = vrot.slane %v410, %v414
      %v417 = vmul.f32 %v378, %v415
      %v418 = vmul.f32 %v379, %v415
      %v419 = vmul.f32 %v380, %v415
      %v420 = vmul.f32 %v381, %v415
      %v421 = vmul.f32 %v382, %v415
      %v422 = vmul.f32 %v383, %v415
      %v423 = vmul.f32 %v384, %v415
      %v424 = vmul.f32 %v385, %v415
      %v425 = vmul.f32 %v386, %v415
      %v426 = vmul.f32 %v387, %v415
      %v427 = vmul.f32 %v388, %v415
      %v428 = vmul.f32 %v389, %v415
      %v429 = vmul.f32 %v390, %v415
      %v430 = vmul.f32 %v391, %v415
      %v431 = vmul.f32 %v392, %v415
      %v432 = vmul.f32 %v393, %v415
      %v433 = vmul.f32 %v394, %v415
      %v434 = vmul.f32 %v395, %v415
      %v435 = vmul.f32 %v396, %v415
      %v436 = vmul.f32 %v397, %v415
      %v437 = vmul.f32 %v398, %v415
      %v438 = vmul.f32 %v399, %v415
      %v439 = vmul.f32 %v400, %v415
      %v440 = vmul.f32 %v401, %v415
      %v441 = vmul.f32 %v402, %v415
      %v442 = vmul.f32 %v403, %v415
      %v443 = vmul.f32 %v404, %v415
      %v444 = vmul.f32 %v405, %v415
      %v445 = vmul.f32 %v406, %v415
      %v446 = vmul.f32 %v407, %v415
      %v447 = vmul.f32 %v408, %v415
      %v448 = vmul.f32 %v409, %v415
      %v449 = vld [vmem:[%s2] sm:$0x1]
      %v451 = vlaneseq
      %v452 = vshrl.u32 %v451, 7
      %v453 = vsub.s32 0, %v452
      %v454 = vrot.slane %v449, %v453
      %v456 = vadd.f32 %v417, %v454
      %v457 = vadd.f32 %v418, %v454
      %v458 = vadd.f32 %v419, %v454
      %v459 = vadd.f32 %v420, %v454
      %v460 = vadd.f32 %v421, %v454
      %v461 = vadd.f32 %v422, %v454
      %v462 = vadd.f32 %v423, %v454
      %v463 = vadd.f32 %v424, %v454
      %v464 = vadd.f32 %v425, %v454
      %v465 = vadd.f32 %v426, %v454
      %v466 = vadd.f32 %v427, %v454
      %v467 = vadd.f32 %v428, %v454
      %v468 = vadd.f32 %v429, %v454
      %v469 = vadd.f32 %v430, %v454
      %v470 = vadd.f32 %v431, %v454
      %v471 = vadd.f32 %v432, %v454
      %v472 = vadd.f32 %v433, %v454
      %v473 = vadd.f32 %v434, %v454
      %v474 = vadd.f32 %v435, %v454
      %v475 = vadd.f32 %v436, %v454
      %v476 = vadd.f32 %v437, %v454
      %v477 = vadd.f32 %v438, %v454
      %v478 = vadd.f32 %v439, %v454
      %v479 = vadd.f32 %v440, %v454
      %v480 = vadd.f32 %v441, %v454
      %v481 = vadd.f32 %v442, %v454
      %v482 = vadd.f32 %v443, %v454
      %v483 = vadd.f32 %v444, %v454
      %v484 = vadd.f32 %v445, %v454
      %v485 = vadd.f32 %v446, %v454
      %v486 = vadd.f32 %v447, %v454
      %v487 = vadd.f32 %v448, %v454
      %v488 = vmax.f32 %v456, 0.0
      %v489 = vmax.f32 %v457, 0.0
      %v490 = vmax.f32 %v458, 0.0
      %v491 = vmax.f32 %v459, 0.0
      %v492 = vmax.f32 %v460, 0.0
      %v493 = vmax.f32 %v461, 0.0
      %v494 = vmax.f32 %v462, 0.0
      %v495 = vmax.f32 %v463, 0.0
      %v496 = vmax.f32 %v464, 0.0
      %v497 = vmax.f32 %v465, 0.0
      %v498 = vmax.f32 %v466, 0.0
      %v499 = vmax.f32 %v467, 0.0
      %v500 = vmax.f32 %v468, 0.0
      %v501 = vmax.f32 %v469, 0.0
      %v502 = vmax.f32 %v470, 0.0
      %v503 = vmax.f32 %v471, 0.0
      %v504 = vmax.f32 %v472, 0.0
      %v505 = vmax.f32 %v473, 0.0
      %v506 = vmax.f32 %v474, 0.0
      %v507 = vmax.f32 %v475, 0.0
      %v508 = vmax.f32 %v476, 0.0
      %v509 = vmax.f32 %v477, 0.0
      %v510 = vmax.f32 %v478, 0.0
      %v511 = vmax.f32 %v479, 0.0
      %v512 = vmax.f32 %v480, 0.0
      %v513 = vmax.f32 %v481, 0.0
      %v514 = vmax.f32 %v482, 0.0
      %v515 = vmax.f32 %v483, 0.0
      %v516 = vmax.f32 %v484, 0.0
      %v517 = vmax.f32 %v485, 0.0
      %v518 = vmax.f32 %v486, 0.0
      %v519 = vmax.f32 %v487, 0.0
      %v520 = vpack.c.bf16 %v489, %v488
      %v521 = vpack.c.bf16 %v491, %v490
      %v522 = vpack.c.bf16 %v493, %v492
      %v523 = vpack.c.bf16 %v495, %v494
      %v524 = vpack.c.bf16 %v497, %v496
      %v525 = vpack.c.bf16 %v499, %v498
      %v526 = vpack.c.bf16 %v501, %v500
      %v527 = vpack.c.bf16 %v503, %v502
      %v528 = vpack.c.bf16 %v505, %v504
      %v529 = vpack.c.bf16 %v507, %v506
      %v530 = vpack.c.bf16 %v509, %v508
      %v531 = vpack.c.bf16 %v511, %v510
      %v532 = vpack.c.bf16 %v513, %v512
      %v533 = vpack.c.bf16 %v515, %v514
      %v534 = vpack.c.bf16 %v517, %v516
      %v535 = vpack.c.bf16 %v519, %v518
      %v552 = vunpack.c.l.b16 %v520
      %v553 = vunpack.c.h.b16 %v520
      %v554 = vunpack.c.l.b16 %v521
      %v555 = vunpack.c.h.b16 %v521
      %v556 = vunpack.c.l.b16 %v522
      %v557 = vunpack.c.h.b16 %v522
      %v558 = vunpack.c.l.b16 %v523
      %v559 = vunpack.c.h.b16 %v523
      %v560 = vunpack.c.l.b16 %v524
      %v561 = vunpack.c.h.b16 %v524
      %v562 = vunpack.c.l.b16 %v525
      %v563 = vunpack.c.h.b16 %v525
      %v564 = vunpack.c.l.b16 %v526
      %v565 = vunpack.c.h.b16 %v526
      %v566 = vunpack.c.l.b16 %v527
      %v567 = vunpack.c.h.b16 %v527
      %v568 = vunpack.c.l.b16 %v528
      %v569 = vunpack.c.h.b16 %v528
      %v570 = vunpack.c.l.b16 %v529
      %v571 = vunpack.c.h.b16 %v529
      %v572 = vunpack.c.l.b16 %v530
      %v573 = vunpack.c.h.b16 %v530
      %v574 = vunpack.c.l.b16 %v531
      %v575 = vunpack.c.h.b16 %v531
      %v576 = vunpack.c.l.b16 %v532
      %v577 = vunpack.c.h.b16 %v532
      %v578 = vunpack.c.l.b16 %v533
      %v579 = vunpack.c.h.b16 %v533
      %v580 = vunpack.c.l.b16 %v534
      %v581 = vunpack.c.h.b16 %v534
      %v582 = vunpack.c.l.b16 %v535
      %v583 = vunpack.c.h.b16 %v535
      %v584 = vpack.c.b16 %v552, %v552
      %v585 = vpack.c.b16 %v553, %v553
      %v586 = vpack.c.b16 %v554, %v554
      %v587 = vpack.c.b16 %v555, %v555
      %v588 = vpack.c.b16 %v556, %v556
      %v589 = vpack.c.b16 %v557, %v557
      %v590 = vpack.c.b16 %v558, %v558
      %v591 = vpack.c.b16 %v559, %v559
      %v592 = vpack.c.b16 %v560, %v560
      %v593 = vpack.c.b16 %v561, %v561
      %v594 = vpack.c.b16 %v562, %v562
      %v595 = vpack.c.b16 %v563, %v563
      %v596 = vpack.c.b16 %v564, %v564
      %v597 = vpack.c.b16 %v565, %v565
      %v598 = vpack.c.b16 %v566, %v566
      %v599 = vpack.c.b16 %v567, %v567
      %v600 = vpack.c.b16 %v568, %v568
      %v601 = vpack.c.b16 %v569, %v569
      %v602 = vpack.c.b16 %v570, %v570
      %v603 = vpack.c.b16 %v571, %v571
      %v604 = vpack.c.b16 %v572, %v572
      %v605 = vpack.c.b16 %v573, %v573
      %v606 = vpack.c.b16 %v574, %v574
      %v607 = vpack.c.b16 %v575, %v575
      %v608 = vpack.c.b16 %v576, %v576
      %v609 = vpack.c.b16 %v577, %v577
      %v610 = vpack.c.b16 %v578, %v578
      %v611 = vpack.c.b16 %v579, %v579
      %v612 = vpack.c.b16 %v580, %v580
      %v613 = vpack.c.b16 %v581, %v581
      %v614 = vpack.c.b16 %v582, %v582
      %v615 = vpack.c.b16 %v583, %v583
      %vm616 = vsmask.f32 4368
      %vm617 = vmor %vm246, %vm616
      %v619 = vshrl.u32 %v584, 16
      %v621 = vrot.slane %v619, 7
      %v622 = vshll.u32 %v584, 16
      %v624 = vor.u32 %v621, %v622
      %v625 = vrot.slane %v621, 4
      %v627 = vshrl.u32 %v585, 16
      %v629 = vrot.slane %v627, 7
      %v630 = vshll.u32 %v585, 16
      %v632 = vor.u32 %v629, %v630
      %v633 = vsel %vm617, %v625, %v632
      %v634 = vrot.slane %v629, 4
      %v636 = vshrl.u32 %v586, 16
      %v638 = vrot.slane %v636, 7
      %v639 = vshll.u32 %v586, 16
      %v641 = vor.u32 %v638, %v639
      %v642 = vrot.slane %v638, 4
      %v644 = vshrl.u32 %v587, 16
      %v646 = vrot.slane %v644, 7
      %v647 = vshll.u32 %v587, 16
      %v649 = vor.u32 %v646, %v647
      %v650 = vsel %vm617, %v642, %v649
      %v651 = vrot.slane %v646, 4
      %v653 = vshrl.u32 %v588, 16
      %v655 = vrot.slane %v653, 7
      %v656 = vshll.u32 %v588, 16
      %v658 = vor.u32 %v655, %v656
      %v659 = vrot.slane %v655, 4
      %v661 = vshrl.u32 %v589, 16
      %v663 = vrot.slane %v661, 7
      %v664 = vshll.u32 %v589, 16
      %v666 = vor.u32 %v663, %v664
      %v667 = vsel %vm617, %v659, %v666
      %v668 = vrot.slane %v663, 4
      %v670 = vshrl.u32 %v590, 16
      %v672 = vrot.slane %v670, 7
      %v673 = vshll.u32 %v590, 16
      %v675 = vor.u32 %v672, %v673
      %v676 = vrot.slane %v672, 4
      %v678 = vshrl.u32 %v591, 16
      %v680 = vrot.slane %v678, 7
      %v681 = vshll.u32 %v591, 16
      %v683 = vor.u32 %v680, %v681
      %v684 = vsel %vm617, %v676, %v683
      %v685 = vrot.slane %v680, 4
      %v687 = vshrl.u32 %v592, 16
      %v689 = vrot.slane %v687, 7
      %v690 = vshll.u32 %v592, 16
      %v692 = vor.u32 %v689, %v690
      %v693 = vrot.slane %v689, 4
      %v695 = vshrl.u32 %v593, 16
      %v697 = vrot.slane %v695, 7
      %v698 = vshll.u32 %v593, 16
      %v700 = vor.u32 %v697, %v698
      %v701 = vsel %vm617, %v693, %v700
      %v702 = vrot.slane %v697, 4
      %v704 = vshrl.u32 %v594, 16
      %v706 = vrot.slane %v704, 7
      %v707 = vshll.u32 %v594, 16
      %v709 = vor.u32 %v706, %v707
      %v710 = vrot.slane %v706, 4
      %v712 = vshrl.u32 %v595, 16
      %v714 = vrot.slane %v712, 7
      %v715 = vshll.u32 %v595, 16
      %v717 = vor.u32 %v714, %v715
      %v718 = vsel %vm617, %v710, %v717
      %v719 = vrot.slane %v714, 4
      %v721 = vshrl.u32 %v596, 16
      %v723 = vrot.slane %v721, 7
      %v724 = vshll.u32 %v596, 16
      %v726 = vor.u32 %v723, %v724
      %v727 = vrot.slane %v723, 4
      %v729 = vshrl.u32 %v597, 16
      %v731 = vrot.slane %v729, 7
      %v732 = vshll.u32 %v597, 16
      %v734 = vor.u32 %v731, %v732
      %v735 = vsel %vm617, %v727, %v734
      %v736 = vrot.slane %v731, 4
      %v738 = vshrl.u32 %v598, 16
      %v740 = vrot.slane %v738, 7
      %v741 = vshll.u32 %v598, 16
      %v743 = vor.u32 %v740, %v741
      %v744 = vrot.slane %v740, 4
      %v746 = vshrl.u32 %v599, 16
      %v748 = vrot.slane %v746, 7
      %v749 = vshll.u32 %v599, 16
      %v751 = vor.u32 %v748, %v749
      %v752 = vsel %vm617, %v744, %v751
      %v753 = vrot.slane %v748, 4
      %v755 = vshrl.u32 %v600, 16
      %v757 = vrot.slane %v755, 7
      %v758 = vshll.u32 %v600, 16
      %v760 = vor.u32 %v757, %v758
      %v761 = vrot.slane %v757, 4
      %v763 = vshrl.u32 %v601, 16
      %v765 = vrot.slane %v763, 7
      %v766 = vshll.u32 %v601, 16
      %v768 = vor.u32 %v765, %v766
      %v769 = vsel %vm617, %v761, %v768
      %v770 = vrot.slane %v765, 4
      %v772 = vshrl.u32 %v602, 16
      %v774 = vrot.slane %v772, 7
      %v775 = vshll.u32 %v602, 16
      %v777 = vor.u32 %v774, %v775
      %v778 = vrot.slane %v774, 4
      %v780 = vshrl.u32 %v603, 16
      %v782 = vrot.slane %v780, 7
      %v783 = vshll.u32 %v603, 16
      %v785 = vor.u32 %v782, %v783
      %v786 = vsel %vm617, %v778, %v785
      %v787 = vrot.slane %v782, 4
      %v789 = vshrl.u32 %v604, 16
      %v791 = vrot.slane %v789, 7
      %v792 = vshll.u32 %v604, 16
      %v794 = vor.u32 %v791, %v792
      %v795 = vrot.slane %v791, 4
      %v797 = vshrl.u32 %v605, 16
      %v799 = vrot.slane %v797, 7
      %v800 = vshll.u32 %v605, 16
      %v802 = vor.u32 %v799, %v800
      %v803 = vsel %vm617, %v795, %v802
      %v804 = vrot.slane %v799, 4
      %v806 = vshrl.u32 %v606, 16
      %v808 = vrot.slane %v806, 7
      %v809 = vshll.u32 %v606, 16
      %v811 = vor.u32 %v808, %v809
      %v812 = vrot.slane %v808, 4
      %v814 = vshrl.u32 %v607, 16
      %v816 = vrot.slane %v814, 7
      %v817 = vshll.u32 %v607, 16
      %v819 = vor.u32 %v816, %v817
      %v820 = vsel %vm617, %v812, %v819
      %v821 = vrot.slane %v816, 4
      %v823 = vshrl.u32 %v608, 16
      %v825 = vrot.slane %v823, 7
      %v826 = vshll.u32 %v608, 16
      %v828 = vor.u32 %v825, %v826
      %v829 = vrot.slane %v825, 4
      %v831 = vshrl.u32 %v609, 16
      %v833 = vrot.slane %v831, 7
      %v834 = vshll.u32 %v609, 16
      %v836 = vor.u32 %v833, %v834
      %v837 = vsel %vm617, %v829, %v836
      %v838 = vrot.slane %v833, 4
      %v840 = vshrl.u32 %v610, 16
      %v842 = vrot.slane %v840, 7
      %v843 = vshll.u32 %v610, 16
      %v845 = vor.u32 %v842, %v843
      %v846 = vrot.slane %v842, 4
      %v848 = vshrl.u32 %v611, 16
      %v850 = vrot.slane %v848, 7
      %v851 = vshll.u32 %v611, 16
      %v853 = vor.u32 %v850, %v851
      %v854 = vsel %vm617, %v846, %v853
      %v855 = vrot.slane %v850, 4
      %v857 = vshrl.u32 %v612, 16
      %v859 = vrot.slane %v857, 7
      %v860 = vshll.u32 %v612, 16
      %v862 = vor.u32 %v859, %v860
      %v863 = vrot.slane %v859, 4
      %v865 = vshrl.u32 %v613, 16
      %v867 = vrot.slane %v865, 7
      %v868 = vshll.u32 %v613, 16
      %v870 = vor.u32 %v867, %v868
      %v871 = vsel %vm617, %v863, %v870
      %v872 = vrot.slane %v867, 4
      %v874 = vshrl.u32 %v614, 16
      %v876 = vrot.slane %v874, 7
      %v877 = vshll.u32 %v614, 16
      %v879 = vor.u32 %v876, %v877
      %v880 = vrot.slane %v876, 4
      %v882 = vshrl.u32 %v615, 16
      %v884 = vrot.slane %v882, 7
      %v885 = vshll.u32 %v615, 16
      %v887 = vor.u32 %v884, %v885
      %v888 = vsel %vm617, %v880, %v887
      %v889 = vrot.slane %v884, 4
      %vm938 = vcmask 1043456
      %vm939 = vmand %vm938, %vm296
      %v940 = vld [vmem:[%s244] sm:$0xf]
      %v941 = vsel %vm939, %v624, %v940
      %942 = vst [vmem:[%s244] sm:$0xf] %v941
      %943 = vst [vmem:[%s244 + $0x4] sm:$0xf] %v633
      %v944 = vld [vmem:[%s244 + $0x8] sm:$0x1]
      %v945 = vsel %vm247, %v634, %v944
      %946 = vst [vmem:[%s244 + $0x8] sm:$0x1] %v945
      %v947 = vld [vmem:[%s244 + $0xc] sm:$0xf]
      %v948 = vsel %vm939, %v641, %v947
      %949 = vst [vmem:[%s244 + $0xc] sm:$0xf] %v948
      %950 = vst [vmem:[%s244 + $0x10] sm:$0xf] %v650
      %v951 = vld [vmem:[%s244 + $0x14] sm:$0x1]
      %v952 = vsel %vm247, %v651, %v951
      %953 = vst [vmem:[%s244 + $0x14] sm:$0x1] %v952
      %v954 = vld [vmem:[%s244 + $0x18] sm:$0xf]
      %v955 = vsel %vm939, %v658, %v954
      %956 = vst [vmem:[%s244 + $0x18] sm:$0xf] %v955
      %957 = vst [vmem:[%s244 + $0x1c] sm:$0xf] %v667
      %v958 = vld [vmem:[%s244 + $0x20] sm:$0x1]
      %v959 = vsel %vm247, %v668, %v958
      %960 = vst [vmem:[%s244 + $0x20] sm:$0x1] %v959
      %v961 = vld [vmem:[%s244 + $0x24] sm:$0xf]
      %v962 = vsel %vm939, %v675, %v961
      %963 = vst [vmem:[%s244 + $0x24] sm:$0xf] %v962
      %964 = vst [vmem:[%s244 + $0x28] sm:$0xf] %v684
      %v965 = vld [vmem:[%s244 + $0x2c] sm:$0x1]
      %v966 = vsel %vm247, %v685, %v965
      %967 = vst [vmem:[%s244 + $0x2c] sm:$0x1] %v966
      %v968 = vld [vmem:[%s244 + $0x30] sm:$0xf]
      %v969 = vsel %vm939, %v692, %v968
      %970 = vst [vmem:[%s244 + $0x30] sm:$0xf] %v969
      %971 = vst [vmem:[%s244 + $0x34] sm:$0xf] %v701
      %v972 = vld [vmem:[%s244 + $0x38] sm:$0x1]
      %v973 = vsel %vm247, %v702, %v972
      %974 = vst [vmem:[%s244 + $0x38] sm:$0x1] %v973
      %v975 = vld [vmem:[%s244 + $0x3c] sm:$0xf]
      %v976 = vsel %vm939, %v709, %v975
      %977 = vst [vmem:[%s244 + $0x3c] sm:$0xf] %v976
      %978 = vst [vmem:[%s244 + $0x40] sm:$0xf] %v718
      %v979 = vld [vmem:[%s244 + $0x44] sm:$0x1]
      %v980 = vsel %vm247, %v719, %v979
      %981 = vst [vmem:[%s244 + $0x44] sm:$0x1] %v980
      %v982 = vld [vmem:[%s244 + $0x48] sm:$0xf]
      %v983 = vsel %vm939, %v726, %v982
      %984 = vst [vmem:[%s244 + $0x48] sm:$0xf] %v983
      %985 = vst [vmem:[%s244 + $0x4c] sm:$0xf] %v735
      %v986 = vld [vmem:[%s244 + $0x50] sm:$0x1]
      %v987 = vsel %vm247, %v736, %v986
      %988 = vst [vmem:[%s244 + $0x50] sm:$0x1] %v987
      %v989 = vld [vmem:[%s244 + $0x54] sm:$0xf]
      %v990 = vsel %vm939, %v743, %v989
      %991 = vst [vmem:[%s244 + $0x54] sm:$0xf] %v990
      %992 = vst [vmem:[%s244 + $0x58] sm:$0xf] %v752
      %v993 = vld [vmem:[%s244 + $0x5c] sm:$0x1]
      %v994 = vsel %vm247, %v753, %v993
      %995 = vst [vmem:[%s244 + $0x5c] sm:$0x1] %v994
      %v996 = vld [vmem:[%s244 + $0x60] sm:$0xf]
      %v997 = vsel %vm939, %v760, %v996
      %998 = vst [vmem:[%s244 + $0x60] sm:$0xf] %v997
      %999 = vst [vmem:[%s244 + $0x64] sm:$0xf] %v769
      %v1000 = vld [vmem:[%s244 + $0x68] sm:$0x1]
      %v1001 = vsel %vm247, %v770, %v1000
      %1002 = vst [vmem:[%s244 + $0x68] sm:$0x1] %v1001
      %v1003 = vld [vmem:[%s244 + $0x6c] sm:$0xf]
      %v1004 = vsel %vm939, %v777, %v1003
      %1005 = vst [vmem:[%s244 + $0x6c] sm:$0xf] %v1004
      %1006 = vst [vmem:[%s244 + $0x70] sm:$0xf] %v786
      %v1007 = vld [vmem:[%s244 + $0x74] sm:$0x1]
      %v1008 = vsel %vm247, %v787, %v1007
      %1009 = vst [vmem:[%s244 + $0x74] sm:$0x1] %v1008
      %v1010 = vld [vmem:[%s244 + $0x78] sm:$0xf]
      %v1011 = vsel %vm939, %v794, %v1010
      %1012 = vst [vmem:[%s244 + $0x78] sm:$0xf] %v1011
      %1013 = vst [vmem:[%s244 + $0x7c] sm:$0xf] %v803
      %v1014 = vld [vmem:[%s244 + $0x80] sm:$0x1]
      %v1015 = vsel %vm247, %v804, %v1014
      %1016 = vst [vmem:[%s244 + $0x80] sm:$0x1] %v1015
      %v1017 = vld [vmem:[%s244 + $0x84] sm:$0xf]
      %v1018 = vsel %vm939, %v811, %v1017
      %1019 = vst [vmem:[%s244 + $0x84] sm:$0xf] %v1018
      %1020 = vst [vmem:[%s244 + $0x88] sm:$0xf] %v820
      %v1021 = vld [vmem:[%s244 + $0x8c] sm:$0x1]
      %v1022 = vsel %vm247, %v821, %v1021
      %1023 = vst [vmem:[%s244 + $0x8c] sm:$0x1] %v1022
      %v1024 = vld [vmem:[%s244 + $0x90] sm:$0xf]
      %v1025 = vsel %vm939, %v828, %v1024
      %1026 = vst [vmem:[%s244 + $0x90] sm:$0xf] %v1025
      %1027 = vst [vmem:[%s244 + $0x94] sm:$0xf] %v837
      %v1028 = vld [vmem:[%s244 + $0x98] sm:$0x1]
      %v1029 = vsel %vm247, %v838, %v1028
      %1030 = vst [vmem:[%s244 + $0x98] sm:$0x1] %v1029
      %v1031 = vld [vmem:[%s244 + $0x9c] sm:$0xf]
      %v1032 = vsel %vm939, %v845, %v1031
      %1033 = vst [vmem:[%s244 + $0x9c] sm:$0xf] %v1032
      %1034 = vst [vmem:[%s244 + $0xa0] sm:$0xf] %v854
      %v1035 = vld [vmem:[%s244 + $0xa4] sm:$0x1]
      %v1036 = vsel %vm247, %v855, %v1035
      %1037 = vst [vmem:[%s244 + $0xa4] sm:$0x1] %v1036
      %v1038 = vld [vmem:[%s244 + $0xa8] sm:$0xf]
      %v1039 = vsel %vm939, %v862, %v1038
      %1040 = vst [vmem:[%s244 + $0xa8] sm:$0xf] %v1039
      %1041 = vst [vmem:[%s244 + $0xac] sm:$0xf] %v871
      %v1042 = vld [vmem:[%s244 + $0xb0] sm:$0x1]
      %v1043 = vsel %vm247, %v872, %v1042
      %1044 = vst [vmem:[%s244 + $0xb0] sm:$0x1] %v1043
      %v1045 = vld [vmem:[%s244 + $0xb4] sm:$0xf]
      %v1046 = vsel %vm939, %v879, %v1045
      %1047 = vst [vmem:[%s244 + $0xb4] sm:$0xf] %v1046
      %1048 = vst [vmem:[%s244 + $0xb8] sm:$0xf] %v888
      %v1049 = vld [vmem:[%s244 + $0xbc] sm:$0x1]
      %v1050 = vsel %vm247, %v889, %v1049
      %1051 = vst [vmem:[%s244 + $0xbc] sm:$0x1] %v1050
      %v1052 = vld [vmem:[#allocation2] sm:$0xf]
      %v1053 = vld [vmem:[#allocation2 + $0x4] sm:$0xf]
      %v1054 = vld [vmem:[#allocation2 + $0x8] sm:$0x1]
      %v1055 = vld [vmem:[#allocation2 + $0xc] sm:$0xf]
      %v1056 = vld [vmem:[#allocation2 + $0x10] sm:$0xf]
      %v1057 = vld [vmem:[#allocation2 + $0x14] sm:$0x1]
      %v1058 = vld [vmem:[#allocation2 + $0x18] sm:$0xf]
      %v1059 = vld [vmem:[#allocation2 + $0x1c] sm:$0xf]
      %v1060 = vld [vmem:[#allocation2 + $0x20] sm:$0x1]
      %v1061 = vld [vmem:[#allocation2 + $0x24] sm:$0xf]
      %v1062 = vld [vmem:[#allocation2 + $0x28] sm:$0xf]
      %v1063 = vld [vmem:[#allocation2 + $0x2c] sm:$0x1]
      %v1064 = vld [vmem:[#allocation2 + $0x30] sm:$0xf]
      %v1065 = vld [vmem:[#allocation2 + $0x34] sm:$0xf]
      %v1066 = vld [vmem:[#allocation2 + $0x38] sm:$0x1]
      %v1067 = vld [vmem:[#allocation2 + $0x3c] sm:$0xf]
      %v1068 = vld [vmem:[#allocation2 + $0x40] sm:$0xf]
      %v1069 = vld [vmem:[#allocation2 + $0x44] sm:$0x1]
      %v1070 = vld [vmem:[#allocation2 + $0x48] sm:$0xf]
      %v1071 = vld [vmem:[#allocation2 + $0x4c] sm:$0xf]
      %v1072 = vld [vmem:[#allocation2 + $0x50] sm:$0x1]
      %v1073 = vld [vmem:[#allocation2 + $0x54] sm:$0xf]
      %v1074 = vld [vmem:[#allocation2 + $0x58] sm:$0xf]
      %v1075 = vld [vmem:[#allocation2 + $0x5c] sm:$0x1]
      %v1076 = vld [vmem:[#allocation2 + $0x60] sm:$0xf]
      %v1077 = vld [vmem:[#allocation2 + $0x64] sm:$0xf]
      %v1078 = vld [vmem:[#allocation2 + $0x68] sm:$0x1]
      %v1079 = vld [vmem:[#allocation2 + $0x6c] sm:$0xf]
      %v1080 = vld [vmem:[#allocation2 + $0x70] sm:$0xf]
      %v1081 = vld [vmem:[#allocation2 + $0x74] sm:$0x1]
      %v1082 = vld [vmem:[#allocation2 + $0x78] sm:$0xf]
      %v1083 = vld [vmem:[#allocation2 + $0x7c] sm:$0xf]
      %v1084 = vld [vmem:[#allocation2 + $0x80] sm:$0x1]
      %v1085 = vld [vmem:[#allocation2 + $0x84] sm:$0xf]
      %v1086 = vld [vmem:[#allocation2 + $0x88] sm:$0xf]
      %v1087 = vld [vmem:[#allocation2 + $0x8c] sm:$0x1]
      %v1088 = vld [vmem:[#allocation2 + $0x90] sm:$0xf]
      %v1089 = vld [vmem:[#allocation2 + $0x94] sm:$0xf]
      %v1090 = vld [vmem:[#allocation2 + $0x98] sm:$0x1]
      %v1091 = vld [vmem:[#allocation2 + $0x9c] sm:$0xf]
      %v1092 = vld [vmem:[#allocation2 + $0xa0] sm:$0xf]
      %v1093 = vld [vmem:[#allocation2 + $0xa4] sm:$0x1]
      %v1094 = vld [vmem:[#allocation2 + $0xa8] sm:$0xf]
      %v1095 = vld [vmem:[#allocation2 + $0xac] sm:$0xf]
      %v1096 = vld [vmem:[#allocation2 + $0xb0] sm:$0x1]
      %v1097 = vld [vmem:[#allocation2 + $0xb4] sm:$0xf]
      %v1098 = vld [vmem:[#allocation2 + $0xb8] sm:$0xf]
      %v1099 = vld [vmem:[#allocation2 + $0xbc] sm:$0x1]
      %v1132 = vunpack.c.l.b16 %v1052
      %v1133 = vunpack.c.l.b16 %v1053
      %v1134 = vunpack.c.l.b16 %v1055
      %v1135 = vunpack.c.l.b16 %v1056
      %v1136 = vunpack.c.l.b16 %v1058
      %v1137 = vunpack.c.l.b16 %v1059
      %v1138 = vunpack.c.l.b16 %v1061
      %v1139 = vunpack.c.l.b16 %v1062
      %v1140 = vunpack.c.l.b16 %v1064
      %v1141 = vunpack.c.l.b16 %v1065
      %v1142 = vunpack.c.l.b16 %v1067
      %v1143 = vunpack.c.l.b16 %v1068
      %v1144 = vunpack.c.l.b16 %v1070
      %v1145 = vunpack.c.l.b16 %v1071
      %v1146 = vunpack.c.l.b16 %v1073
      %v1147 = vunpack.c.l.b16 %v1074
      %v1148 = vunpack.c.l.b16 %v1076
      %v1149 = vunpack.c.l.b16 %v1077
      %v1150 = vunpack.c.l.b16 %v1079
      %v1151 = vunpack.c.l.b16 %v1080
      %v1152 = vunpack.c.l.b16 %v1082
      %v1153 = vunpack.c.l.b16 %v1083
      %v1154 = vunpack.c.l.b16 %v1085
      %v1155 = vunpack.c.l.b16 %v1086
      %v1156 = vunpack.c.l.b16 %v1088
      %v1157 = vunpack.c.l.b16 %v1089
      %v1158 = vunpack.c.l.b16 %v1091
      %v1159 = vunpack.c.l.b16 %v1092
      %v1160 = vunpack.c.l.b16 %v1094
      %v1161 = vunpack.c.l.b16 %v1095
      %v1162 = vunpack.c.l.b16 %v1097
      %v1163 = vunpack.c.l.b16 %v1098
      %v1164 = vpack.c.b16 %v1133, %v1132
      %v1165 = vpack.c.b16 %v1135, %v1134
      %v1166 = vpack.c.b16 %v1137, %v1136
      %v1167 = vpack.c.b16 %v1139, %v1138
      %v1168 = vpack.c.b16 %v1141, %v1140
      %v1169 = vpack.c.b16 %v1143, %v1142
      %v1170 = vpack.c.b16 %v1145, %v1144
      %v1171 = vpack.c.b16 %v1147, %v1146
      %v1172 = vpack.c.b16 %v1149, %v1148
      %v1173 = vpack.c.b16 %v1151, %v1150
      %v1174 = vpack.c.b16 %v1153, %v1152
      %v1175 = vpack.c.b16 %v1155, %v1154
      %v1176 = vpack.c.b16 %v1157, %v1156
      %v1177 = vpack.c.b16 %v1159, %v1158
      %v1178 = vpack.c.b16 %v1161, %v1160
      %v1179 = vpack.c.b16 %v1163, %v1162
      %v1212 = vunpack.c.l.b16 %v1054
      %v1213 = vunpack.c.l.b16 %v1057
      %v1214 = vunpack.c.l.b16 %v1060
      %v1215 = vunpack.c.l.b16 %v1063
      %v1216 = vunpack.c.l.b16 %v1066
      %v1217 = vunpack.c.l.b16 %v1069
      %v1218 = vunpack.c.l.b16 %v1072
      %v1219 = vunpack.c.l.b16 %v1075
      %v1220 = vunpack.c.l.b16 %v1078
      %v1221 = vunpack.c.l.b16 %v1081
      %v1222 = vunpack.c.l.b16 %v1084
      %v1223 = vunpack.c.l.b16 %v1087
      %v1224 = vunpack.c.l.b16 %v1090
      %v1225 = vunpack.c.l.b16 %v1093
      %v1226 = vunpack.c.l.b16 %v1096
      %v1227 = vunpack.c.l.b16 %v1099
      %v1228 = vpack.c.b16 %v1212, %v1212
      %v1229 = vpack.c.b16 %v1213, %v1213
      %v1230 = vpack.c.b16 %v1214, %v1214
      %v1231 = vpack.c.b16 %v1215, %v1215
      %v1232 = vpack.c.b16 %v1216, %v1216
      %v1233 = vpack.c.b16 %v1217, %v1217
      %v1234 = vpack.c.b16 %v1218, %v1218
      %v1235 = vpack.c.b16 %v1219, %v1219
      %v1236 = vpack.c.b16 %v1220, %v1220
      %v1237 = vpack.c.b16 %v1221, %v1221
      %v1238 = vpack.c.b16 %v1222, %v1222
      %v1239 = vpack.c.b16 %v1223, %v1223
      %v1240 = vpack.c.b16 %v1224, %v1224
      %v1241 = vpack.c.b16 %v1225, %v1225
      %v1242 = vpack.c.b16 %v1226, %v1226
      %v1243 = vpack.c.b16 %v1227, %v1227
      %vm1244 = vsmask.f32 7424
      %v1246 = vshrl.u32 %v1164, 16
      %v1248 = vshll.u32 %v1164, 16
      %v1250 = vrot.slane %v1248, 1
      %v1251 = vor.u32 %v1246, %v1250
      %v1253 = vshll.u32 %v1228, 16
      %v1255 = vrot.slane %v1253, 1
      %v1256 = vsel %vm1244, %v1251, %v1255
      %v1258 = vshrl.u32 %v1165, 16
      %v1260 = vshll.u32 %v1165, 16
      %v1262 = vrot.slane %v1260, 1
      %v1263 = vor.u32 %v1258, %v1262
      %v1265 = vshll.u32 %v1229, 16
      %v1267 = vrot.slane %v1265, 1
      %v1268 = vsel %vm1244, %v1263, %v1267
      %v1270 = vshrl.u32 %v1166, 16
      %v1272 = vshll.u32 %v1166, 16
      %v1274 = vrot.slane %v1272, 1
      %v1275 = vor.u32 %v1270, %v1274
      %v1277 = vshll.u32 %v1230, 16
      %v1279 = vrot.slane %v1277, 1
      %v1280 = vsel %vm1244, %v1275, %v1279
      %v1282 = vshrl.u32 %v1167, 16
      %v1284 = vshll.u32 %v1167, 16
      %v1286 = vrot.slane %v1284, 1
      %v1287 = vor.u32 %v1282, %v1286
      %v1289 = vshll.u32 %v1231, 16
      %v1291 = vrot.slane %v1289, 1
      %v1292 = vsel %vm1244, %v1287, %v1291
      %v1294 = vshrl.u32 %v1168, 16
      %v1296 = vshll.u32 %v1168, 16
      %v1298 = vrot.slane %v1296, 1
      %v1299 = vor.u32 %v1294, %v1298
      %v1301 = vshll.u32 %v1232, 16
      %v1303 = vrot.slane %v1301, 1
      %v1304 = vsel %vm1244, %v1299, %v1303
      %v1306 = vshrl.u32 %v1169, 16
      %v1308 = vshll.u32 %v1169, 16
      %v1310 = vrot.slane %v1308, 1
      %v1311 = vor.u32 %v1306, %v1310
      %v1313 = vshll.u32 %v1233, 16
      %v1315 = vrot.slane %v1313, 1
      %v1316 = vsel %vm1244, %v1311, %v1315
      %v1318 = vshrl.u32 %v1170, 16
      %v1320 = vshll.u32 %v1170, 16
      %v1322 = vrot.slane %v1320, 1
      %v1323 = vor.u32 %v1318, %v1322
      %v1325 = vshll.u32 %v1234, 16
      %v1327 = vrot.slane %v1325, 1
      %v1328 = vsel %vm1244, %v1323, %v1327
      %v1330 = vshrl.u32 %v1171, 16
      %v1332 = vshll.u32 %v1171, 16
      %v1334 = vrot.slane %v1332, 1
      %v1335 = vor.u32 %v1330, %v1334
      %v1337 = vshll.u32 %v1235, 16
      %v1339 = vrot.slane %v1337, 1
      %v1340 = vsel %vm1244, %v1335, %v1339
      %v1342 = vshrl.u32 %v1172, 16
      %v1344 = vshll.u32 %v1172, 16
      %v1346 = vrot.slane %v1344, 1
      %v1347 = vor.u32 %v1342, %v1346
      %v1349 = vshll.u32 %v1236, 16
      %v1351 = vrot.slane %v1349, 1
      %v1352 = vsel %vm1244, %v1347, %v1351
      %v1354 = vshrl.u32 %v1173, 16
      %v1356 = vshll.u32 %v1173, 16
      %v1358 = vrot.slane %v1356, 1
      %v1359 = vor.u32 %v1354, %v1358
      %v1361 = vshll.u32 %v1237, 16
      %v1363 = vrot.slane %v1361, 1
      %v1364 = vsel %vm1244, %v1359, %v1363
      %v1366 = vshrl.u32 %v1174, 16
      %v1368 = vshll.u32 %v1174, 16
      %v1370 = vrot.slane %v1368, 1
      %v1371 = vor.u32 %v1366, %v1370
      %v1373 = vshll.u32 %v1238, 16
      %v1375 = vrot.slane %v1373, 1
      %v1376 = vsel %vm1244, %v1371, %v1375
      %v1378 = vshrl.u32 %v1175, 16
      %v1380 = vshll.u32 %v1175, 16
      %v1382 = vrot.slane %v1380, 1
      %v1383 = vor.u32 %v1378, %v1382
      %v1385 = vshll.u32 %v1239, 16
      %v1387 = vrot.slane %v1385, 1
      %v1388 = vsel %vm1244, %v1383, %v1387
      %v1390 = vshrl.u32 %v1176, 16
      %v1392 = vshll.u32 %v1176, 16
      %v1394 = vrot.slane %v1392, 1
      %v1395 = vor.u32 %v1390, %v1394
      %v1397 = vshll.u32 %v1240, 16
      %v1399 = vrot.slane %v1397, 1
      %v1400 = vsel %vm1244, %v1395, %v1399
      %v1402 = vshrl.u32 %v1177, 16
      %v1404 = vshll.u32 %v1177, 16
      %v1406 = vrot.slane %v1404, 1
      %v1407 = vor.u32 %v1402, %v1406
      %v1409 = vshll.u32 %v1241, 16
      %v1411 = vrot.slane %v1409, 1
      %v1412 = vsel %vm1244, %v1407, %v1411
      %v1414 = vshrl.u32 %v1178, 16
      %v1416 = vshll.u32 %v1178, 16
      %v1418 = vrot.slane %v1416, 1
      %v1419 = vor.u32 %v1414, %v1418
      %v1421 = vshll.u32 %v1242, 16
      %v1423 = vrot.slane %v1421, 1
      %v1424 = vsel %vm1244, %v1419, %v1423
      %v1426 = vshrl.u32 %v1179, 16
      %v1428 = vshll.u32 %v1179, 16
      %v1430 = vrot.slane %v1428, 1
      %v1431 = vor.u32 %v1426, %v1430
      %v1433 = vshll.u32 %v1243, 16
      %v1435 = vrot.slane %v1433, 1
      %v1436 = vsel %vm1244, %v1431, %v1435
      %vm1453 = vcmask 1046528
      %v1454 = vrot.slane %v1164, 1
      %v1455 = vrot.slane %v1228, 1
      %v1456 = vsel %vm1453, %v1454, %v1455
      %v1457 = vrot.slane %v1165, 1
      %v1458 = vrot.slane %v1229, 1
      %v1459 = vsel %vm1453, %v1457, %v1458
      %v1460 = vrot.slane %v1166, 1
      %v1461 = vrot.slane %v1230, 1
      %v1462 = vsel %vm1453, %v1460, %v1461
      %v1463 = vrot.slane %v1167, 1
      %v1464 = vrot.slane %v1231, 1
      %v1465 = vsel %vm1453, %v1463, %v1464
      %v1466 = vrot.slane %v1168, 1
      %v1467 = vrot.slane %v1232, 1
      %v1468 = vsel %vm1453, %v1466, %v1467
      %v1469 = vrot.slane %v1169, 1
      %v1470 = vrot.slane %v1233, 1
      %v1471 = vsel %vm1453, %v1469, %v1470
      %v1472 = vrot.slane %v1170, 1
      %v1473 = vrot.slane %v1234, 1
      %v1474 = vsel %vm1453, %v1472, %v1473
      %v1475 = vrot.slane %v1171, 1
      %v1476 = vrot.slane %v1235, 1
      %v1477 = vsel %vm1453, %v1475, %v1476
      %v1478 = vrot.slane %v1172, 1
      %v1479 = vrot.slane %v1236, 1
      %v1480 = vsel %vm1453, %v1478, %v1479
      %v1481 = vrot.slane %v1173, 1
      %v1482 = vrot.slane %v1237, 1
      %v1483 = vsel %vm1453, %v1481, %v1482
      %v1484 = vrot.slane %v1174, 1
      %v1485 = vrot.slane %v1238, 1
      %v1486 = vsel %vm1453, %v1484, %v1485
      %v1487 = vrot.slane %v1175, 1
      %v1488 = vrot.slane %v1239, 1
      %v1489 = vsel %vm1453, %v1487, %v1488
      %v1490 = vrot.slane %v1176, 1
      %v1491 = vrot.slane %v1240, 1
      %v1492 = vsel %vm1453, %v1490, %v1491
      %v1493 = vrot.slane %v1177, 1
      %v1494 = vrot.slane %v1241, 1
      %v1495 = vsel %vm1453, %v1493, %v1494
      %v1496 = vrot.slane %v1178, 1
      %v1497 = vrot.slane %v1242, 1
      %v1498 = vsel %vm1453, %v1496, %v1497
      %v1499 = vrot.slane %v1179, 1
      %v1500 = vrot.slane %v1243, 1
      %v1501 = vsel %vm1453, %v1499, %v1500
      %v1518 = vld [vmem:[%s3] sm:$0xf]
      %v1519 = vld [vmem:[%s3 + $0x4] sm:$0xf]
      %v1520 = vld [vmem:[%s3 + $0x8] sm:$0xf]
      %v1521 = vld [vmem:[%s3 + $0xc] sm:$0xf]
      %v1522 = vld [vmem:[%s3 + $0x10] sm:$0xf]
      %v1523 = vld [vmem:[%s3 + $0x14] sm:$0xf]
      %v1524 = vld [vmem:[%s3 + $0x18] sm:$0xf]
      %v1525 = vld [vmem:[%s3 + $0x1c] sm:$0xf]
      %v1526 = vld [vmem:[%s3 + $0x20] sm:$0xf]
      %v1527 = vld [vmem:[%s3 + $0x24] sm:$0xf]
      %v1528 = vld [vmem:[%s3 + $0x28] sm:$0xf]
      %v1529 = vld [vmem:[%s3 + $0x2c] sm:$0xf]
      %v1530 = vld [vmem:[%s3 + $0x30] sm:$0xf]
      %v1531 = vld [vmem:[%s3 + $0x34] sm:$0xf]
      %v1532 = vld [vmem:[%s3 + $0x38] sm:$0xf]
      %v1533 = vld [vmem:[%s3 + $0x3c] sm:$0xf]
      %v1534 = vld [vmem:[%s3 + $0x40] sm:$0xf]
      %v1535 = vld [vmem:[%s3 + $0x44] sm:$0xf]
      %v1536 = vld [vmem:[%s3 + $0x48] sm:$0xf]
      %v1537 = vld [vmem:[%s3 + $0x4c] sm:$0xf]
      %v1538 = vld [vmem:[%s3 + $0x50] sm:$0xf]
      %v1539 = vld [vmem:[%s3 + $0x54] sm:$0xf]
      %v1540 = vld [vmem:[%s3 + $0x58] sm:$0xf]
      %v1541 = vld [vmem:[%s3 + $0x5c] sm:$0xf]
      %v1542 = vld [vmem:[%s3 + $0x60] sm:$0xf]
      %v1543 = vld [vmem:[%s3 + $0x64] sm:$0xf]
      %v1544 = vld [vmem:[%s3 + $0x68] sm:$0xf]
      %v1545 = vld [vmem:[%s3 + $0x6c] sm:$0xf]
      %v1546 = vld [vmem:[%s3 + $0x70] sm:$0xf]
      %v1547 = vld [vmem:[%s3 + $0x74] sm:$0xf]
      %v1548 = vld [vmem:[%s3 + $0x78] sm:$0xf]
      %v1549 = vld [vmem:[%s3 + $0x7c] sm:$0xf]
      %v1550 = vld [vmem:[%s3 + $0x80] sm:$0xf]
      %v1551 = vld [vmem:[%s3 + $0x84] sm:$0xf]
      %v1552 = vld [vmem:[%s3 + $0x88] sm:$0xf]
      %v1553 = vld [vmem:[%s3 + $0x8c] sm:$0xf]
      %v1554 = vld [vmem:[%s3 + $0x90] sm:$0xf]
      %v1555 = vld [vmem:[%s3 + $0x94] sm:$0xf]
      %v1556 = vld [vmem:[%s3 + $0x98] sm:$0xf]
      %v1557 = vld [vmem:[%s3 + $0x9c] sm:$0xf]
      %v1558 = vld [vmem:[%s3 + $0xa0] sm:$0xf]
      %v1559 = vld [vmem:[%s3 + $0xa4] sm:$0xf]
      %v1560 = vld [vmem:[%s3 + $0xa8] sm:$0xf]
      %v1561 = vld [vmem:[%s3 + $0xac] sm:$0xf]
      %v1562 = vld [vmem:[%s3 + $0xb0] sm:$0xf]
      %v1563 = vld [vmem:[%s3 + $0xb4] sm:$0xf]
      %v1564 = vld [vmem:[%s3 + $0xb8] sm:$0xf]
      %v1565 = vld [vmem:[%s3 + $0xbc] sm:$0xf]
      %v1614 = vunpack.c.l.b16 %v1518
      %v1615 = vunpack.c.l.b16 %v1519
      %v1616 = vunpack.c.l.b16 %v1520
      %v1617 = vunpack.c.l.b16 %v1521
      %v1618 = vunpack.c.l.b16 %v1522
      %v1619 = vunpack.c.l.b16 %v1523
      %v1620 = vunpack.c.l.b16 %v1524
      %v1621 = vunpack.c.l.b16 %v1525
      %v1622 = vunpack.c.l.b16 %v1526
      %v1623 = vunpack.c.l.b16 %v1527
      %v1624 = vunpack.c.l.b16 %v1528
      %v1625 = vunpack.c.l.b16 %v1529
      %v1626 = vunpack.c.l.b16 %v1530
      %v1627 = vunpack.c.l.b16 %v1531
      %v1628 = vunpack.c.l.b16 %v1532
      %v1629 = vunpack.c.l.b16 %v1533
      %v1630 = vunpack.c.l.b16 %v1534
      %v1631 = vunpack.c.l.b16 %v1535
      %v1632 = vunpack.c.l.b16 %v1536
      %v1633 = vunpack.c.l.b16 %v1537
      %v1634 = vunpack.c.l.b16 %v1538
      %v1635 = vunpack.c.l.b16 %v1539
      %v1636 = vunpack.c.l.b16 %v1540
      %v1637 = vunpack.c.l.b16 %v1541
      %v1638 = vunpack.c.l.b16 %v1542
      %v1639 = vunpack.c.l.b16 %v1543
      %v1640 = vunpack.c.l.b16 %v1544
      %v1641 = vunpack.c.l.b16 %v1545
      %v1642 = vunpack.c.l.b16 %v1546
      %v1643 = vunpack.c.l.b16 %v1547
      %v1644 = vunpack.c.l.b16 %v1548
      %v1645 = vunpack.c.l.b16 %v1549
      %v1646 = vunpack.c.l.b16 %v1550
      %v1647 = vunpack.c.l.b16 %v1551
      %v1648 = vunpack.c.l.b16 %v1552
      %v1649 = vunpack.c.l.b16 %v1553
      %v1650 = vunpack.c.l.b16 %v1554
      %v1651 = vunpack.c.l.b16 %v1555
      %v1652 = vunpack.c.l.b16 %v1556
      %v1653 = vunpack.c.l.b16 %v1557
      %v1654 = vunpack.c.l.b16 %v1558
      %v1655 = vunpack.c.l.b16 %v1559
      %v1656 = vunpack.c.l.b16 %v1560
      %v1657 = vunpack.c.l.b16 %v1561
      %v1658 = vunpack.c.l.b16 %v1562
      %v1659 = vunpack.c.l.b16 %v1563
      %v1660 = vunpack.c.l.b16 %v1564
      %v1661 = vunpack.c.l.b16 %v1565
      %v1662 = vpack.c.b16 %v1615, %v1614
      %v1663 = vpack.c.b16 %v1617, %v1616
      %v1664 = vpack.c.b16 %v1619, %v1618
      %v1665 = vpack.c.b16 %v1621, %v1620
      %v1666 = vpack.c.b16 %v1623, %v1622
      %v1667 = vpack.c.b16 %v1625, %v1624
      %v1668 = vpack.c.b16 %v1627, %v1626
      %v1669 = vpack.c.b16 %v1629, %v1628
      %v1670 = vpack.c.b16 %v1631, %v1630
      %v1671 = vpack.c.b16 %v1633, %v1632
      %v1672 = vpack.c.b16 %v1635, %v1634
      %v1673 = vpack.c.b16 %v1637, %v1636
      %v1674 = vpack.c.b16 %v1639, %v1638
      %v1675 = vpack.c.b16 %v1641, %v1640
      %v1676 = vpack.c.b16 %v1643, %v1642
      %v1677 = vpack.c.b16 %v1645, %v1644
      %v1678 = vpack.c.b16 %v1647, %v1646
      %v1679 = vpack.c.b16 %v1649, %v1648
      %v1680 = vpack.c.b16 %v1651, %v1650
      %v1681 = vpack.c.b16 %v1653, %v1652
      %v1682 = vpack.c.b16 %v1655, %v1654
      %v1683 = vpack.c.b16 %v1657, %v1656
      %v1684 = vpack.c.b16 %v1659, %v1658
      %v1685 = vpack.c.b16 %v1661, %v1660
      %1710 = vmatprep.subr.bf16.mxu0 0
      %1711 = vmatpush1.bf16.msra.mxu0 %v1662
      %1712 = vmatprep.subr.bf16.mxu0 0
      %1713 = vmatpush1.bf16.msra.mxu0 %v1663
      %1714 = vmatprep.subr.bf16.mxu0 0
      %1715 = vmatpush1.bf16.msra.mxu0 %v1664
      %1716 = vmatprep.subr.bf16.mxu0 0
      %1717 = vmatpush1.bf16.msra.mxu0 %v1665
      %1718 = vmatprep.subr.bf16.mxu0 0
      %1719 = vmatpush1.bf16.msra.mxu0 %v1666
      %1720 = vmatprep.subr.bf16.mxu0 0
      %1721 = vmatpush1.bf16.msra.mxu0 %v1667
      %1722 = vmatprep.subr.bf16.mxu0 0
      %1723 = vmatpush1.bf16.msra.mxu0 %v1668
      %1724 = vmatprep.subr.bf16.mxu0 0
      %1725 = vmatpush1.bf16.msra.mxu0 %v1669
      %1726 = vmatprep.subr.bf16.mxu0 0
      %1727 = vmatpush1.bf16.msra.mxu0 %v1670
      %1728 = vmatprep.subr.bf16.mxu0 0
      %1729 = vmatpush1.bf16.msra.mxu0 %v1671
      %1730 = vmatprep.subr.bf16.mxu0 0
      %1731 = vmatpush1.bf16.msra.mxu0 %v1672
      %1732 = vmatprep.subr.bf16.mxu0 0
      %1733 = vmatpush1.bf16.msra.mxu0 %v1673
      %1734 = vmatprep.subr.bf16.mxu0 0
      %1735 = vmatpush1.bf16.msra.mxu0 %v1674
      %1736 = vmatprep.subr.bf16.mxu0 0
      %1737 = vmatpush1.bf16.msra.mxu0 %v1675
      %1738 = vmatprep.subr.bf16.mxu0 0
      %1739 = vmatpush1.bf16.msra.mxu0 %v1676
      %1740 = vmatprep.subr.bf16.mxu0 0
      %1741 = vmatpush1.bf16.msra.mxu0 %v1677
      %1742 = vmatprep.mubr.bf16.mxu0 %v1256
      %1743 = vmatmul.mubr.bf16.gmra.mrb[0].mxu0 %v1164
      %v1744 = vpop.f32.mrb[0].mxu0
      %v1745 = vadd.f32 0.0, %v1744
      %v1746 = vpop.f32.mrb[0].mxu0
      %v1747 = vpop.f32.mrb[0].mxu0
      %v1748 = vadd.f32 0.0, %v1747
      %v1749 = vpop.f32.mrb[0].mxu0
      %1750 = vmatprep.mubr.bf16.mxu0 %v1268
      %1751 = vmatmul.mubr.bf16.gmra.mrb[0].mxu0 %v1165
      %v1752 = vpop.f32.mrb[0].mxu0
      %v1753 = vadd.f32 0.0, %v1752
      %v1754 = vpop.f32.mrb[0].mxu0
      %v1755 = vpop.f32.mrb[0].mxu0
      %v1756 = vadd.f32 0.0, %v1755
      %v1757 = vpop.f32.mrb[0].mxu0
      %1758 = vmatprep.mubr.bf16.mxu0 %v1280
      %1759 = vmatmul.mubr.bf16.gmra.mrb[0].mxu0 %v1166
      %v1760 = vpop.f32.mrb[0].mxu0
      %v1761 = vadd.f32 0.0, %v1760
      %v1762 = vpop.f32.mrb[0].mxu0
      %v1763 = vpop.f32.mrb[0].mxu0
      %v1764 = vadd.f32 0.0, %v1763
      %v1765 = vpop.f32.mrb[0].mxu0
      %1766 = vmatprep.mubr.bf16.mxu0 %v1292
      %1767 = vmatmul.mubr.bf16.gmra.mrb[0].mxu0 %v1167
      %v1768 = vpop.f32.mrb[0].mxu0
      %v1769 = vadd.f32 0.0, %v1768
      %v1770 = vpop.f32.mrb[0].mxu0
      %v1771 = vpop.f32.mrb[0].mxu0
      %v1772 = vadd.f32 0.0, %v1771
      %v1773 = vpop.f32.mrb[0].mxu0
      %1774 = vmatprep.mubr.bf16.mxu0 %v1304
      %1775 = vmatmul.mubr.bf16.gmra.mrb[0].mxu0 %v1168
      %v1776 = vpop.f32.mrb[0].mxu0
      %v1777 = vadd.f32 0.0, %v1776
      %v1778 = vpop.f32.mrb[0].mxu0
      %v1779 = vpop.f32.mrb[0].mxu0
      %v1780 = vadd.f32 0.0, %v1779
      %v1781 = vpop.f32.mrb[0].mxu0
      %1782 = vmatprep.mubr.bf16.mxu0 %v1316
      %1783 = vmatmul.mubr.bf16.gmra.mrb[0].mxu0 %v1169
      %v1784 = vpop.f32.mrb[0].mxu0
      %v1785 = vadd.f32 0.0, %v1784
      %v1786 = vpop.f32.mrb[0].mxu0
      %v1787 = vpop.f32.mrb[0].mxu0
      %v1788 = vadd.f32 0.0, %v1787
      %v1789 = vpop.f32.mrb[0].mxu0
      %1790 = vmatprep.mubr.bf16.mxu0 %v1328
      %1791 = vmatmul.mubr.bf16.gmra.mrb[0].mxu0 %v1170
      %v1792 = vpop.f32.mrb[0].mxu0
      %v1793 = vadd.f32 0.0, %v1792
      %v1794 = vpop.f32.mrb[0].mxu0
      %v1795 = vpop.f32.mrb[0].mxu0
      %v1796 = vadd.f32 0.0, %v1795
      %v1797 = vpop.f32.mrb[0].mxu0
      %1798 = vmatprep.mubr.bf16.mxu0 %v1340
      %1799 = vmatmul.mubr.bf16.gmra.mrb[0].mxu0 %v1171
      %v1800 = vpop.f32.mrb[0].mxu0
      %v1801 = vadd.f32 0.0, %v1800
      %v1802 = vpop.f32.mrb[0].mxu0
      %v1803 = vpop.f32.mrb[0].mxu0
      %v1804 = vadd.f32 0.0, %v1803
      %v1805 = vpop.f32.mrb[0].mxu0
      %1806 = vmatprep.mubr.bf16.mxu0 %v1352
      %1807 = vmatmul.mubr.bf16.gmra.mrb[0].mxu0 %v1172
      %v1808 = vpop.f32.mrb[0].mxu0
      %v1809 = vadd.f32 0.0, %v1808
      %v1810 = vpop.f32.mrb[0].mxu0
      %v1811 = vpop.f32.mrb[0].mxu0
      %v1812 = vadd.f32 0.0, %v1811
      %v1813 = vpop.f32.mrb[0].mxu0
      %1814 = vmatprep.mubr.bf16.mxu0 %v1364
      %1815 = vmatmul.mubr.bf16.gmra.mrb[0].mxu0 %v1173
      %v1816 = vpop.f32.mrb[0].mxu0
      %v1817 = vadd.f32 0.0, %v1816
      %v1818 = vpop.f32.mrb[0].mxu0
      %v1819 = vpop.f32.mrb[0].mxu0
      %v1820 = vadd.f32 0.0, %v1819
      %v1821 = vpop.f32.mrb[0].mxu0
      %1822 = vmatprep.mubr.bf16.mxu0 %v1376
      %1823 = vmatmul.mubr.bf16.gmra.mrb[0].mxu0 %v1174
      %v1824 = vpop.f32.mrb[0].mxu0
      %v1825 = vadd.f32 0.0, %v1824
      %v1826 = vpop.f32.mrb[0].mxu0
      %v1827 = vpop.f32.mrb[0].mxu0
      %v1828 = vadd.f32 0.0, %v1827
      %v1829 = vpop.f32.mrb[0].mxu0
      %1830 = vmatprep.mubr.bf16.mxu0 %v1388
      %1831 = vmatmul.mubr.bf16.gmra.mrb[0].mxu0 %v1175
      %v1832 = vpop.f32.mrb[0].mxu0
      %v1833 = vadd.f32 0.0, %v1832
      %v1834 = vpop.f32.mrb[0].mxu0
      %v1835 = vpop.f32.mrb[0].mxu0
      %v1836 = vadd.f32 0.0, %v1835
      %v1837 = vpop.f32.mrb[0].mxu0
      %1838 = vmatprep.mubr.bf16.mxu0 %v1400
      %1839 = vmatmul.mubr.bf16.gmra.mrb[0].mxu0 %v1176
      %v1840 = vpop.f32.mrb[0].mxu0
      %v1841 = vadd.f32 0.0, %v1840
      %v1842 = vpop.f32.mrb[0].mxu0
      %v1843 = vpop.f32.mrb[0].mxu0
      %v1844 = vadd.f32 0.0, %v1843
      %v1845 = vpop.f32.mrb[0].mxu0
      %1846 = vmatprep.mubr.bf16.mxu0 %v1412
      %1847 = vmatmul.mubr.bf16.gmra.mrb[0].mxu0 %v1177
      %v1848 = vpop.f32.mrb[0].mxu0
      %v1849 = vadd.f32 0.0, %v1848
      %v1850 = vpop.f32.mrb[0].mxu0
      %v1851 = vpop.f32.mrb[0].mxu0
      %v1852 = vadd.f32 0.0, %v1851
      %v1853 = vpop.f32.mrb[0].mxu0
      %1854 = vmatprep.mubr.bf16.mxu0 %v1424
      %1855 = vmatmul.mubr.bf16.gmra.mrb[0].mxu0 %v1178
      %v1856 = vpop.f32.mrb[0].mxu0
      %v1857 = vadd.f32 0.0, %v1856
      %v1858 = vpop.f32.mrb[0].mxu0
      %v1859 = vpop.f32.mrb[0].mxu0
      %v1860 = vadd.f32 0.0, %v1859
      %v1861 = vpop.f32.mrb[0].mxu0
      %1862 = vmatprep.mubr.bf16.mxu0 %v1436
      %1863 = vmatmul.mubr.bf16.gmra.mrb[0].mxu0 %v1179
      %v1864 = vpop.f32.mrb[0].mxu0
      %v1865 = vadd.f32 0.0, %v1864
      %v1866 = vpop.f32.mrb[0].mxu0
      %v1867 = vpop.f32.mrb[0].mxu0
      %v1868 = vadd.f32 0.0, %v1867
      %v1869 = vpop.f32.mrb[0].mxu0
      %1870 = vdwg.mxu0
      %1871 = vmatprep.subr.bf16.mxu0 0
      %1872 = vmatpush1.bf16.msra.mxu0 %v1678
      %1873 = vmatprep.subr.bf16.mxu0 0
      %1874 = vmatpush1.bf16.msra.mxu0 %v1679
      %1875 = vmatprep.subr.bf16.mxu0 0
      %1876 = vmatpush1.bf16.msra.mxu0 %v1680
      %1877 = vmatprep.subr.bf16.mxu0 0
      %1878 = vmatpush1.bf16.msra.mxu0 %v1681
      %1879 = vmatprep.subr.bf16.mxu0 0
      %1880 = vmatpush1.bf16.msra.mxu0 %v1682
      %1881 = vmatprep.subr.bf16.mxu0 0
      %1882 = vmatpush1.bf16.msra.mxu0 %v1683
      %1883 = vmatprep.subr.bf16.mxu0 0
      %1884 = vmatpush1.bf16.msra.mxu0 %v1684
      %1885 = vmatprep.subr.bf16.mxu0 0
      %1886 = vmatpush1.bf16.msra.mxu0 %v1685
      %1887 = vmatprep.subr.bf16.mxu0 0
      %1888 = vmatpush1.bf16.msra.mxu0 0
      %1889 = vmatprep.subr.bf16.mxu0 0
      %1890 = vmatpush1.bf16.msra.mxu0 0
      %1891 = vmatprep.subr.bf16.mxu0 0
      %1892 = vmatpush1.bf16.msra.mxu0 0
      %1893 = vmatprep.subr.bf16.mxu0 0
      %1894 = vmatpush1.bf16.msra.mxu0 0
      %1895 = vmatprep.subr.bf16.mxu0 0
      %1896 = vmatpush1.bf16.msra.mxu0 0
      %1897 = vmatprep.subr.bf16.mxu0 0
      %1898 = vmatpush1.bf16.msra.mxu0 0
      %1899 = vmatprep.subr.bf16.mxu0 0
      %1900 = vmatpush1.bf16.msra.mxu0 0
      %1901 = vmatprep.subr.bf16.mxu0 0
      %1902 = vmatpush1.bf16.msra.mxu0 0
      %1903 = vmatprep.mubr.bf16.mxu0 0
      %1904 = vmatmul.mubr.bf16.gmra.mrb[0].mxu0 %v1456
      %v1905 = vpop.f32.mrb[0].mxu0
      %v1906 = vadd.f32 %v1745, %v1905
      %v1907 = vpop.f32.mrb[0].mxu0
      %v1908 = vpop.f32.mrb[0].mxu0
      %v1909 = vadd.f32 %v1748, %v1908
      %v1910 = vpop.f32.mrb[0].mxu0
      %1911 = vmatprep.mubr.bf16.mxu0 0
      %1912 = vmatmul.mubr.bf16.gmra.mrb[0].mxu0 %v1459
      %v1913 = vpop.f32.mrb[0].mxu0
      %v1914 = vadd.f32 %v1753, %v1913
      %v1915 = vpop.f32.mrb[0].mxu0
      %v1916 = vpop.f32.mrb[0].mxu0
      %v1917 = vadd.f32 %v1756, %v1916
      %v1918 = vpop.f32.mrb[0].mxu0
      %1919 = vmatprep.mubr.bf16.mxu0 0
      %1920 = vmatmul.mubr.bf16.gmra.mrb[0].mxu0 %v1462
      %v1921 = vpop.f32.mrb[0].mxu0
      %v1922 = vadd.f32 %v1761, %v1921
      %v1923 = vpop.f32.mrb[0].mxu0
      %v1924 = vpop.f32.mrb[0].mxu0
      %v1925 = vadd.f32 %v1764, %v1924
      %v1926 = vpop.f32.mrb[0].mxu0
      %1927 = vmatprep.mubr.bf16.mxu0 0
      %1928 = vmatmul.mubr.bf16.gmra.mrb[0].mxu0 %v1465
      %v1929 = vpop.f32.mrb[0].mxu0
      %v1930 = vadd.f32 %v1769, %v1929
      %v1931 = vpop.f32.mrb[0].mxu0
      %v1932 = vpop.f32.mrb[0].mxu0
      %v1933 = vadd.f32 %v1772, %v1932
      %v1934 = vpop.f32.mrb[0].mxu0
      %1935 = vmatprep.mubr.bf16.mxu0 0
      %1936 = vmatmul.mubr.bf16.gmra.mrb[0].mxu0 %v1468
      %v1937 = vpop.f32.mrb[0].mxu0
      %v1938 = vadd.f32 %v1777, %v1937
      %v1939 = vpop.f32.mrb[0].mxu0
      %v1940 = vpop.f32.mrb[0].mxu0
      %v1941 = vadd.f32 %v1780, %v1940
      %v1942 = vpop.f32.mrb[0].mxu0
      %1943 = vmatprep.mubr.bf16.mxu0 0
      %1944 = vmatmul.mubr.bf16.gmra.mrb[0].mxu0 %v1471
      %v1945 = vpop.f32.mrb[0].mxu0
      %v1946 = vadd.f32 %v1785, %v1945
      %v1947 = vpop.f32.mrb[0].mxu0
      %v1948 = vpop.f32.mrb[0].mxu0
      %v1949 = vadd.f32 %v1788, %v1948
      %v1950 = vpop.f32.mrb[0].mxu0
      %1951 = vmatprep.mubr.bf16.mxu0 0
      %1952 = vmatmul.mubr.bf16.gmra.mrb[0].mxu0 %v1474
      %v1953 = vpop.f32.mrb[0].mxu0
      %v1954 = vadd.f32 %v1793, %v1953
      %v1955 = vpop.f32.mrb[0].mxu0
      %v1956 = vpop.f32.mrb[0].mxu0
      %v1957 = vadd.f32 %v1796, %v1956
      %v1958 = vpop.f32.mrb[0].mxu0
      %1959 = vmatprep.mubr.bf16.mxu0 0
      %1960 = vmatmul.mubr.bf16.gmra.mrb[0].mxu0 %v1477
      %v1961 = vpop.f32.mrb[0].mxu0
      %v1962 = vadd.f32 %v1801, %v1961
      %v1963 = vpop.f32.mrb[0].mxu0
      %v1964 = vpop.f32.mrb[0].mxu0
      %v1965 = vadd.f32 %v1804, %v1964
      %v1966 = vpop.f32.mrb[0].mxu0
      %1967 = vmatprep.mubr.bf16.mxu0 0
      %1968 = vmatmul.mubr.bf16.gmra.mrb[0].mxu0 %v1480
      %v1969 = vpop.f32.mrb[0].mxu0
      %v1970 = vadd.f32 %v1809, %v1969
      %v1971 = vpop.f32.mrb[0].mxu0
      %v1972 = vpop.f32.mrb[0].mxu0
      %v1973 = vadd.f32 %v1812, %v1972
      %v1974 = vpop.f32.mrb[0].mxu0
      %1975 = vmatprep.mubr.bf16.mxu0 0
      %1976 = vmatmul.mubr.bf16.gmra.mrb[0].mxu0 %v1483
      %v1977 = vpop.f32.mrb[0].mxu0
      %v1978 = vadd.f32 %v1817, %v1977
      %v1979 = vpop.f32.mrb[0].mxu0
      %v1980 = vpop.f32.mrb[0].mxu0
      %v1981 = vadd.f32 %v1820, %v1980
      %v1982 = vpop.f32.mrb[0].mxu0
      %1983 = vmatprep.mubr.bf16.mxu0 0
      %1984 = vmatmul.mubr.bf16.gmra.mrb[0].mxu0 %v1486
      %v1985 = vpop.f32.mrb[0].mxu0
      %v1986 = vadd.f32 %v1825, %v1985
      %v1987 = vpop.f32.mrb[0].mxu0
      %v1988 = vpop.f32.mrb[0].mxu0
      %v1989 = vadd.f32 %v1828, %v1988
      %v1990 = vpop.f32.mrb[0].mxu0
      %1991 = vmatprep.mubr.bf16.mxu0 0
      %1992 = vmatmul.mubr.bf16.gmra.mrb[0].mxu0 %v1489
      %v1993 = vpop.f32.mrb[0].mxu0
      %v1994 = vadd.f32 %v1833, %v1993
      %v1995 = vpop.f32.mrb[0].mxu0
      %v1996 = vpop.f32.mrb[0].mxu0
      %v1997 = vadd.f32 %v1836, %v1996
      %v1998 = vpop.f32.mrb[0].mxu0
      %1999 = vmatprep.mubr.bf16.mxu0 0
      %2000 = vmatmul.mubr.bf16.gmra.mrb[0].mxu0 %v1492
      %v2001 = vpop.f32.mrb[0].mxu0
      %v2002 = vadd.f32 %v1841, %v2001
      %v2003 = vpop.f32.mrb[0].mxu0
      %v2004 = vpop.f32.mrb[0].mxu0
      %v2005 = vadd.f32 %v1844, %v2004
      %v2006 = vpop.f32.mrb[0].mxu0
      %2007 = vmatprep.mubr.bf16.mxu0 0
      %2008 = vmatmul.mubr.bf16.gmra.mrb[0].mxu0 %v1495
      %v2009 = vpop.f32.mrb[0].mxu0
      %v2010 = vadd.f32 %v1849, %v2009
      %v2011 = vpop.f32.mrb[0].mxu0
      %v2012 = vpop.f32.mrb[0].mxu0
      %v2013 = vadd.f32 %v1852, %v2012
      %v2014 = vpop.f32.mrb[0].mxu0
      %2015 = vmatprep.mubr.bf16.mxu0 0
      %2016 = vmatmul.mubr.bf16.gmra.mrb[0].mxu0 %v1498
      %v2017 = vpop.f32.mrb[0].mxu0
      %v2018 = vadd.f32 %v1857, %v2017
      %v2019 = vpop.f32.mrb[0].mxu0
      %v2020 = vpop.f32.mrb[0].mxu0
      %v2021 = vadd.f32 %v1860, %v2020
      %v2022 = vpop.f32.mrb[0].mxu0
      %2023 = vmatprep.mubr.bf16.mxu0 0
      %2024 = vmatmul.mubr.bf16.gmra.mrb[0].mxu0 %v1501
      %v2025 = vpop.f32.mrb[0].mxu0
      %v2026 = vadd.f32 %v1865, %v2025
      %v2027 = vpop.f32.mrb[0].mxu0
      %v2028 = vpop.f32.mrb[0].mxu0
      %v2029 = vadd.f32 %v1868, %v2028
      %v2030 = vpop.f32.mrb[0].mxu0
      %2031 = vdwg.mxu0
      %2032 = vst [vmem:[#allocation3] sm:$0xff] %v1906
      %2033 = vst [vmem:[#allocation3 + $0x8] sm:$0xff] %v1909
      %2034 = vst [vmem:[#allocation3 + $0x10] sm:$0xff] %v1914
      %2035 = vst [vmem:[#allocation3 + $0x18] sm:$0xff] %v1917
      %2036 = vst [vmem:[#allocation3 + $0x20] sm:$0xff] %v1922
      %2037 = vst [vmem:[#allocation3 + $0x28] sm:$0xff] %v1925
      %2038 = vst [vmem:[#allocation3 + $0x30] sm:$0xff] %v1930
      %2039 = vst [vmem:[#allocation3 + $0x38] sm:$0xff] %v1933
      %2040 = vst [vmem:[#allocation3 + $0x40] sm:$0xff] %v1938
      %2041 = vst [vmem:[#allocation3 + $0x48] sm:$0xff] %v1941
      %2042 = vst [vmem:[#allocation3 + $0x50] sm:$0xff] %v1946
      %2043 = vst [vmem:[#allocation3 + $0x58] sm:$0xff] %v1949
      %2044 = vst [vmem:[#allocation3 + $0x60] sm:$0xff] %v1954
      %2045 = vst [vmem:[#allocation3 + $0x68] sm:$0xff] %v1957
      %2046 = vst [vmem:[#allocation3 + $0x70] sm:$0xff] %v1962
      %2047 = vst [vmem:[#allocation3 + $0x78] sm:$0xff] %v1965
      %2048 = vst [vmem:[#allocation3 + $0x80] sm:$0xff] %v1970
      %2049 = vst [vmem:[#allocation3 + $0x88] sm:$0xff] %v1973
      %2050 = vst [vmem:[#allocation3 + $0x90] sm:$0xff] %v1978
      %2051 = vst [vmem:[#allocation3 + $0x98] sm:$0xff] %v1981
      %2052 = vst [vmem:[#allocation3 + $0xa0] sm:$0xff] %v1986
      %2053 = vst [vmem:[#allocation3 + $0xa8] sm:$0xff] %v1989
      %2054 = vst [vmem:[#allocation3 + $0xb0] sm:$0xff] %v1994
      %2055 = vst [vmem:[#allocation3 + $0xb8] sm:$0xff] %v1997
      %2056 = vst [vmem:[#allocation3 + $0xc0] sm:$0xff] %v2002
      %2057 = vst [vmem:[#allocation3 + $0xc8] sm:$0xff] %v2005
      %2058 = vst [vmem:[#allocation3 + $0xd0] sm:$0xff] %v2010
      %2059 = vst [vmem:[#allocation3 + $0xd8] sm:$0xff] %v2013
      %2060 = vst [vmem:[#allocation3 + $0xe0] sm:$0xff] %v2018
      %2061 = vst [vmem:[#allocation3 + $0xe8] sm:$0xff] %v2021
      %2062 = vst [vmem:[#allocation3 + $0xf0] sm:$0xff] %v2026
      %2063 = vst [vmem:[#allocation3 + $0xf8] sm:$0xff] %v2029
      %v2064 = vld [vmem:[%s244] sm:$0xf]
      %v2065 = vld [vmem:[%s244 + $0x4] sm:$0xf]
      %v2066 = vld [vmem:[%s244 + $0x8] sm:$0x1]
      %v2067 = vld [vmem:[%s244 + $0xc] sm:$0xf]
      %v2068 = vld [vmem:[%s244 + $0x10] sm:$0xf]
      %v2069 = vld [vmem:[%s244 + $0x14] sm:$0x1]
      %v2070 = vld [vmem:[%s244 + $0x18] sm:$0xf]
      %v2071 = vld [vmem:[%s244 + $0x1c] sm:$0xf]
      %v2072 = vld [vmem:[%s244 + $0x20] sm:$0x1]
      %v2073 = vld [vmem:[%s244 + $0x24] sm:$0xf]
      %v2074 = vld [vmem:[%s244 + $0x28] sm:$0xf]
      %v2075 = vld [vmem:[%s244 + $0x2c] sm:$0x1]
      %v2076 = vld [vmem:[%s244 + $0x30] sm:$0xf]
      %v2077 = vld [vmem:[%s244 + $0x34] sm:$0xf]
      %v2078 = vld [vmem:[%s244 + $0x38] sm:$0x1]
      %v2079 = vld [vmem:[%s244 + $0x3c] sm:$0xf]
      %v2080 = vld [vmem:[%s244 + $0x40] sm:$0xf]
      %v2081 = vld [vmem:[%s244 + $0x44] sm:$0x1]
      %v2082 = vld [vmem:[%s244 + $0x48] sm:$0xf]
      %v2083 = vld [vmem:[%s244 + $0x4c] sm:$0xf]
      %v2084 = vld [vmem:[%s244 + $0x50] sm:$0x1]
      %v2085 = vld [vmem:[%s244 + $0x54] sm:$0xf]
      %v2086 = vld [vmem:[%s244 + $0x58] sm:$0xf]
      %v2087 = vld [vmem:[%s244 + $0x5c] sm:$0x1]
      %v2088 = vld [vmem:[%s244 + $0x60] sm:$0xf]
      %v2089 = vld [vmem:[%s244 + $0x64] sm:$0xf]
      %v2090 = vld [vmem:[%s244 + $0x68] sm:$0x1]
      %v2091 = vld [vmem:[%s244 + $0x6c] sm:$0xf]
      %v2092 = vld [vmem:[%s244 + $0x70] sm:$0xf]
      %v2093 = vld [vmem:[%s244 + $0x74] sm:$0x1]
      %v2094 = vld [vmem:[%s244 + $0x78] sm:$0xf]
      %v2095 = vld [vmem:[%s244 + $0x7c] sm:$0xf]
      %v2096 = vld [vmem:[%s244 + $0x80] sm:$0x1]
      %v2097 = vld [vmem:[%s244 + $0x84] sm:$0xf]
      %v2098 = vld [vmem:[%s244 + $0x88] sm:$0xf]
      %v2099 = vld [vmem:[%s244 + $0x8c] sm:$0x1]
      %v2100 = vld [vmem:[%s244 + $0x90] sm:$0xf]
      %v2101 = vld [vmem:[%s244 + $0x94] sm:$0xf]
      %v2102 = vld [vmem:[%s244 + $0x98] sm:$0x1]
      %v2103 = vld [vmem:[%s244 + $0x9c] sm:$0xf]
      %v2104 = vld [vmem:[%s244 + $0xa0] sm:$0xf]
      %v2105 = vld [vmem:[%s244 + $0xa4] sm:$0x1]
      %v2106 = vld [vmem:[%s244 + $0xa8] sm:$0xf]
      %v2107 = vld [vmem:[%s244 + $0xac] sm:$0xf]
      %v2108 = vld [vmem:[%s244 + $0xb0] sm:$0x1]
      %v2109 = vld [vmem:[%s244 + $0xb4] sm:$0xf]
      %v2110 = vld [vmem:[%s244 + $0xb8] sm:$0xf]
      %v2111 = vld [vmem:[%s244 + $0xbc] sm:$0x1]
      %v2144 = vunpack.c.l.b16 %v2064
      %v2145 = vunpack.c.l.b16 %v2065
      %v2146 = vunpack.c.l.b16 %v2067
      %v2147 = vunpack.c.l.b16 %v2068
      %v2148 = vunpack.c.l.b16 %v2070
      %v2149 = vunpack.c.l.b16 %v2071
      %v2150 = vunpack.c.l.b16 %v2073
      %v2151 = vunpack.c.l.b16 %v2074
      %v2152 = vunpack.c.l.b16 %v2076
      %v2153 = vunpack.c.l.b16 %v2077
      %v2154 = vunpack.c.l.b16 %v2079
      %v2155 = vunpack.c.l.b16 %v2080
      %v2156 = vunpack.c.l.b16 %v2082
      %v2157 = vunpack.c.l.b16 %v2083
      %v2158 = vunpack.c.l.b16 %v2085
      %v2159 = vunpack.c.l.b16 %v2086
      %v2160 = vunpack.c.l.b16 %v2088
      %v2161 = vunpack.c.l.b16 %v2089
      %v2162 = vunpack.c.l.b16 %v2091
      %v2163 = vunpack.c.l.b16 %v2092
      %v2164 = vunpack.c.l.b16 %v2094
      %v2165 = vunpack.c.l.b16 %v2095
      %v2166 = vunpack.c.l.b16 %v2097
      %v2167 = vunpack.c.l.b16 %v2098
      %v2168 = vunpack.c.l.b16 %v2100
      %v2169 = vunpack.c.l.b16 %v2101
      %v2170 = vunpack.c.l.b16 %v2103
      %v2171 = vunpack.c.l.b16 %v2104
      %v2172 = vunpack.c.l.b16 %v2106
      %v2173 = vunpack.c.l.b16 %v2107
      %v2174 = vunpack.c.l.b16 %v2109
      %v2175 = vunpack.c.l.b16 %v2110
      %v2176 = vpack.c.b16 %v2145, %v2144
      %v2177 = vpack.c.b16 %v2147, %v2146
      %v2178 = vpack.c.b16 %v2149, %v2148
      %v2179 = vpack.c.b16 %v2151, %v2150
      %v2180 = vpack.c.b16 %v2153, %v2152
      %v2181 = vpack.c.b16 %v2155, %v2154
      %v2182 = vpack.c.b16 %v2157, %v2156
      %v2183 = vpack.c.b16 %v2159, %v2158
      %v2184 = vpack.c.b16 %v2161, %v2160
      %v2185 = vpack.c.b16 %v2163, %v2162
      %v2186 = vpack.c.b16 %v2165, %v2164
      %v2187 = vpack.c.b16 %v2167, %v2166
      %v2188 = vpack.c.b16 %v2169, %v2168
      %v2189 = vpack.c.b16 %v2171, %v2170
      %v2190 = vpack.c.b16 %v2173, %v2172
      %v2191 = vpack.c.b16 %v2175, %v2174
      %v2224 = vunpack.c.l.b16 %v2066
      %v2225 = vunpack.c.l.b16 %v2069
      %v2226 = vunpack.c.l.b16 %v2072
      %v2227 = vunpack.c.l.b16 %v2075
      %v2228 = vunpack.c.l.b16 %v2078
      %v2229 = vunpack.c.l.b16 %v2081
      %v2230 = vunpack.c.l.b16 %v2084
      %v2231 = vunpack.c.l.b16 %v2087
      %v2232 = vunpack.c.l.b16 %v2090
      %v2233 = vunpack.c.l.b16 %v2093
      %v2234 = vunpack.c.l.b16 %v2096
      %v2235 = vunpack.c.l.b16 %v2099
      %v2236 = vunpack.c.l.b16 %v2102
      %v2237 = vunpack.c.l.b16 %v2105
      %v2238 = vunpack.c.l.b16 %v2108
      %v2239 = vunpack.c.l.b16 %v2111
      %v2240 = vpack.c.b16 %v2224, %v2224
      %v2241 = vpack.c.b16 %v2225, %v2225
      %v2242 = vpack.c.b16 %v2226, %v2226
      %v2243 = vpack.c.b16 %v2227, %v2227
      %v2244 = vpack.c.b16 %v2228, %v2228
      %v2245 = vpack.c.b16 %v2229, %v2229
      %v2246 = vpack.c.b16 %v2230, %v2230
      %v2247 = vpack.c.b16 %v2231, %v2231
      %v2248 = vpack.c.b16 %v2232, %v2232
      %v2249 = vpack.c.b16 %v2233, %v2233
      %v2250 = vpack.c.b16 %v2234, %v2234
      %v2251 = vpack.c.b16 %v2235, %v2235
      %v2252 = vpack.c.b16 %v2236, %v2236
      %v2253 = vpack.c.b16 %v2237, %v2237
      %v2254 = vpack.c.b16 %v2238, %v2238
      %v2255 = vpack.c.b16 %v2239, %v2239
      %v2257 = vshrl.u32 %v2176, 16
      %v2259 = vshll.u32 %v2176, 16
      %v2261 = vrot.slane %v2259, 1
      %v2262 = vor.u32 %v2257, %v2261
      %v2264 = vshll.u32 %v2240, 16
      %v2266 = vrot.slane %v2264, 1
      %v2267 = vsel %vm1244, %v2262, %v2266
      %v2269 = vshrl.u32 %v2177, 16
      %v2271 = vshll.u32 %v2177, 16
      %v2273 = vrot.slane %v2271, 1
      %v2274 = vor.u32 %v2269, %v2273
      %v2276 = vshll.u32 %v2241, 16
      %v2278 = vrot.slane %v2276, 1
      %v2279 = vsel %vm1244, %v2274, %v2278
      %v2281 = vshrl.u32 %v2178, 16
      %v2283 = vshll.u32 %v2178, 16
      %v2285 = vrot.slane %v2283, 1
      %v2286 = vor.u32 %v2281, %v2285
      %v2288 = vshll.u32 %v2242, 16
      %v2290 = vrot.slane %v2288, 1
      %v2291 = vsel %vm1244, %v2286, %v2290
      %v2293 = vshrl.u32 %v2179, 16
      %v2295 = vshll.u32 %v2179, 16
      %v2297 = vrot.slane %v2295, 1
      %v2298 = vor.u32 %v2293, %v2297
      %v2300 = vshll.u32 %v2243, 16
      %v2302 = vrot.slane %v2300, 1
      %v2303 = vsel %vm1244, %v2298, %v2302
      %v2305 = vshrl.u32 %v2180, 16
      %v2307 = vshll.u32 %v2180, 16
      %v2309 = vrot.slane %v2307, 1
      %v2310 = vor.u32 %v2305, %v2309
      %v2312 = vshll.u32 %v2244, 16
      %v2314 = vrot.slane %v2312, 1
      %v2315 = vsel %vm1244, %v2310, %v2314
      %v2317 = vshrl.u32 %v2181, 16
      %v2319 = vshll.u32 %v2181, 16
      %v2321 = vrot.slane %v2319, 1
      %v2322 = vor.u32 %v2317, %v2321
      %v2324 = vshll.u32 %v2245, 16
      %v2326 = vrot.slane %v2324, 1
      %v2327 = vsel %vm1244, %v2322, %v2326
      %v2329 = vshrl.u32 %v2182, 16
      %v2331 = vshll.u32 %v2182, 16
      %v2333 = vrot.slane %v2331, 1
      %v2334 = vor.u32 %v2329, %v2333
      %v2336 = vshll.u32 %v2246, 16
      %v2338 = vrot.slane %v2336, 1
      %v2339 = vsel %vm1244, %v2334, %v2338
      %v2341 = vshrl.u32 %v2183, 16
      %v2343 = vshll.u32 %v2183, 16
      %v2345 = vrot.slane %v2343, 1
      %v2346 = vor.u32 %v2341, %v2345
      %v2348 = vshll.u32 %v2247, 16
      %v2350 = vrot.slane %v2348, 1
      %v2351 = vsel %vm1244, %v2346, %v2350
      %v2353 = vshrl.u32 %v2184, 16
      %v2355 = vshll.u32 %v2184, 16
      %v2357 = vrot.slane %v2355, 1
      %v2358 = vor.u32 %v2353, %v2357
      %v2360 = vshll.u32 %v2248, 16
      %v2362 = vrot.slane %v2360, 1
      %v2363 = vsel %vm1244, %v2358, %v2362
      %v2365 = vshrl.u32 %v2185, 16
      %v2367 = vshll.u32 %v2185, 16
      %v2369 = vrot.slane %v2367, 1
      %v2370 = vor.u32 %v2365, %v2369
      %v2372 = vshll.u32 %v2249, 16
      %v2374 = vrot.slane %v2372, 1
      %v2375 = vsel %vm1244, %v2370, %v2374
      %v2377 = vshrl.u32 %v2186, 16
      %v2379 = vshll.u32 %v2186, 16
      %v2381 = vrot.slane %v2379, 1
      %v2382 = vor.u32 %v2377, %v2381
      %v2384 = vshll.u32 %v2250, 16
      %v2386 = vrot.slane %v2384, 1
      %v2387 = vsel %vm1244, %v2382, %v2386
      %v2389 = vshrl.u32 %v2187, 16
      %v2391 = vshll.u32 %v2187, 16
      %v2393 = vrot.slane %v2391, 1
      %v2394 = vor.u32 %v2389, %v2393
      %v2396 = vshll.u32 %v2251, 16
      %v2398 = vrot.slane %v2396, 1
      %v2399 = vsel %vm1244, %v2394, %v2398
      %v2401 = vshrl.u32 %v2188, 16
      %v2403 = vshll.u32 %v2188, 16
      %v2405 = vrot.slane %v2403, 1
      %v2406 = vor.u32 %v2401, %v2405
      %v2408 = vshll.u32 %v2252, 16
      %v2410 = vrot.slane %v2408, 1
      %v2411 = vsel %vm1244, %v2406, %v2410
      %v2413 = vshrl.u32 %v2189, 16
      %v2415 = vshll.u32 %v2189, 16
      %v2417 = vrot.slane %v2415, 1
      %v2418 = vor.u32 %v2413, %v2417
      %v2420 = vshll.u32 %v2253, 16
      %v2422 = vrot.slane %v2420, 1
      %v2423 = vsel %vm1244, %v2418, %v2422
      %v2425 = vshrl.u32 %v2190, 16
      %v2427 = vshll.u32 %v2190, 16
      %v2429 = vrot.slane %v2427, 1
      %v2430 = vor.u32 %v2425, %v2429
      %v2432 = vshll.u32 %v2254, 16
      %v2434 = vrot.slane %v2432, 1
      %v2435 = vsel %vm1244, %v2430, %v2434
      %v2437 = vshrl.u32 %v2191, 16
      %v2439 = vshll.u32 %v2191, 16
      %v2441 = vrot.slane %v2439, 1
      %v2442 = vor.u32 %v2437, %v2441
      %v2444 = vshll.u32 %v2255, 16
      %v2446 = vrot.slane %v2444, 1
      %v2447 = vsel %vm1244, %v2442, %v2446
      %v2464 = vrot.slane %v2176, 1
      %v2465 = vrot.slane %v2240, 1
      %v2466 = vsel %vm1453, %v2464, %v2465
      %v2467 = vrot.slane %v2177, 1
      %v2468 = vrot.slane %v2241, 1
      %v2469 = vsel %vm1453, %v2467, %v2468
      %v2470 = vrot.slane %v2178, 1
      %v2471 = vrot.slane %v2242, 1
      %v2472 = vsel %vm1453, %v2470, %v2471
      %v2473 = vrot.slane %v2179, 1
      %v2474 = vrot.slane %v2243, 1
      %v2475 = vsel %vm1453, %v2473, %v2474
      %v2476 = vrot.slane %v2180, 1
      %v2477 = vrot.slane %v2244, 1
      %v2478 = vsel %vm1453, %v2476, %v2477
      %v2479 = vrot.slane %v2181, 1
      %v2480 = vrot.slane %v2245, 1
      %v2481 = vsel %vm1453, %v2479, %v2480
      %v2482 = vrot.slane %v2182, 1
      %v2483 = vrot.slane %v2246, 1
      %v2484 = vsel %vm1453, %v2482, %v2483
      %v2485 = vrot.slane %v2183, 1
      %v2486 = vrot.slane %v2247, 1
      %v2487 = vsel %vm1453, %v2485, %v2486
      %v2488 = vrot.slane %v2184, 1
      %v2489 = vrot.slane %v2248, 1
      %v2490 = vsel %vm1453, %v2488, %v2489
      %v2491 = vrot.slane %v2185, 1
      %v2492 = vrot.slane %v2249, 1
      %v2493 = vsel %vm1453, %v2491, %v2492
      %v2494 = vrot.slane %v2186, 1
      %v2495 = vrot.slane %v2250, 1
      %v2496 = vsel %vm1453, %v2494, %v2495
      %v2497 = vrot.slane %v2187, 1
      %v2498 = vrot.slane %v2251, 1
      %v2499 = vsel %vm1453, %v2497, %v2498
      %v2500 = vrot.slane %v2188, 1
      %v2501 = vrot.slane %v2252, 1
      %v2502 = vsel %vm1453, %v2500, %v2501
      %v2503 = vrot.slane %v2189, 1
      %v2504 = vrot.slane %v2253, 1
      %v2505 = vsel %vm1453, %v2503, %v2504
      %v2506 = vrot.slane %v2190, 1
      %v2507 = vrot.slane %v2254, 1
      %v2508 = vsel %vm1453, %v2506, %v2507
      %v2509 = vrot.slane %v2191, 1
      %v2510 = vrot.slane %v2255, 1
      %v2511 = vsel %vm1453, %v2509, %v2510
      %s2528 = scalar_lea.vmem %s3, 192
      %v2529 = vld [vmem:[%s2528] sm:$0xf]
      %v2530 = vld [vmem:[%s2528 + $0x4] sm:$0xf]
      %v2531 = vld [vmem:[%s2528 + $0x8] sm:$0xf]
      %v2532 = vld [vmem:[%s2528 + $0xc] sm:$0xf]
      %v2533 = vld [vmem:[%s2528 + $0x10] sm:$0xf]
      %v2534 = vld [vmem:[%s2528 + $0x14] sm:$0xf]
      %v2535 = vld [vmem:[%s2528 + $0x18] sm:$0xf]
      %v2536 = vld [vmem:[%s2528 + $0x1c] sm:$0xf]
      %v2537 = vld [vmem:[%s2528 + $0x20] sm:$0xf]
      %v2538 = vld [vmem:[%s2528 + $0x24] sm:$0xf]
      %v2539 = vld [vmem:[%s2528 + $0x28] sm:$0xf]
      %v2540 = vld [vmem:[%s2528 + $0x2c] sm:$0xf]
      %v2541 = vld [vmem:[%s2528 + $0x30] sm:$0xf]
      %v2542 = vld [vmem:[%s2528 + $0x34] sm:$0xf]
      %v2543 = vld [vmem:[%s2528 + $0x38] sm:$0xf]
      %v2544 = vld [vmem:[%s2528 + $0x3c] sm:$0xf]
      %v2545 = vld [vmem:[%s2528 + $0x40] sm:$0xf]
      %v2546 = vld [vmem:[%s2528 + $0x44] sm:$0xf]
      %v2547 = vld [vmem:[%s2528 + $0x48] sm:$0xf]
      %v2548 = vld [vmem:[%s2528 + $0x4c] sm:$0xf]
      %v2549 = vld [vmem:[%s2528 + $0x50] sm:$0xf]
      %v2550 = vld [vmem:[%s2528 + $0x54] sm:$0xf]
      %v2551 = vld [vmem:[%s2528 + $0x58] sm:$0xf]
      %v2552 = vld [vmem:[%s2528 + $0x5c] sm:$0xf]
      %v2553 = vld [vmem:[%s2528 + $0x60] sm:$0xf]
      %v2554 = vld [vmem:[%s2528 + $0x64] sm:$0xf]
      %v2555 = vld [vmem:[%s2528 + $0x68] sm:$0xf]
      %v2556 = vld [vmem:[%s2528 + $0x6c] sm:$0xf]
      %v2557 = vld [vmem:[%s2528 + $0x70] sm:$0xf]
      %v2558 = vld [vmem:[%s2528 + $0x74] sm:$0xf]
      %v2559 = vld [vmem:[%s2528 + $0x78] sm:$0xf]
      %v2560 = vld [vmem:[%s2528 + $0x7c] sm:$0xf]
      %v2561 = vld [vmem:[%s2528 + $0x80] sm:$0xf]
      %v2562 = vld [vmem:[%s2528 + $0x84] sm:$0xf]
      %v2563 = vld [vmem:[%s2528 + $0x88] sm:$0xf]
      %v2564 = vld [vmem:[%s2528 + $0x8c] sm:$0xf]
      %v2565 = vld [vmem:[%s2528 + $0x90] sm:$0xf]
      %v2566 = vld [vmem:[%s2528 + $0x94] sm:$0xf]
      %v2567 = vld [vmem:[%s2528 + $0x98] sm:$0xf]
      %v2568 = vld [vmem:[%s2528 + $0x9c] sm:$0xf]
      %v2569 = vld [vmem:[%s2528 + $0xa0] sm:$0xf]
      %v2570 = vld [vmem:[%s2528 + $0xa4] sm:$0xf]
      %v2571 = vld [vmem:[%s2528 + $0xa8] sm:$0xf]
      %v2572 = vld [vmem:[%s2528 + $0xac] sm:$0xf]
      %v2573 = vld [vmem:[%s2528 + $0xb0] sm:$0xf]
      %v2574 = vld [vmem:[%s2528 + $0xb4] sm:$0xf]
      %v2575 = vld [vmem:[%s2528 + $0xb8] sm:$0xf]
      %v2576 = vld [vmem:[%s2528 + $0xbc] sm:$0xf]
      %v2625 = vunpack.c.l.b16 %v2529
      %v2626 = vunpack.c.l.b16 %v2530
      %v2627 = vunpack.c.l.b16 %v2531
      %v2628 = vunpack.c.l.b16 %v2532
      %v2629 = vunpack.c.l.b16 %v2533
      %v2630 = vunpack.c.l.b16 %v2534
      %v2631 = vunpack.c.l.b16 %v2535
      %v2632 = vunpack.c.l.b16 %v2536
      %v2633 = vunpack.c.l.b16 %v2537
      %v2634 = vunpack.c.l.b16 %v2538
      %v2635 = vunpack.c.l.b16 %v2539
      %v2636 = vunpack.c.l.b16 %v2540
      %v2637 = vunpack.c.l.b16 %v2541
      %v2638 = vunpack.c.l.b16 %v2542
      %v2639 = vunpack.c.l.b16 %v2543
      %v2640 = vunpack.c.l.b16 %v2544
      %v2641 = vunpack.c.l.b16 %v2545
      %v2642 = vunpack.c.l.b16 %v2546
      %v2643 = vunpack.c.l.b16 %v2547
      %v2644 = vunpack.c.l.b16 %v2548
      %v2645 = vunpack.c.l.b16 %v2549
      %v2646 = vunpack.c.l.b16 %v2550
      %v2647 = vunpack.c.l.b16 %v2551
      %v2648 = vunpack.c.l.b16 %v2552
      %v2649 = vunpack.c.l.b16 %v2553
      %v2650 = vunpack.c.l.b16 %v2554
      %v2651 = vunpack.c.l.b16 %v2555
      %v2652 = vunpack.c.l.b16 %v2556
      %v2653 = vunpack.c.l.b16 %v2557
      %v2654 = vunpack.c.l.b16 %v2558
      %v2655 = vunpack.c.l.b16 %v2559
      %v2656 = vunpack.c.l.b16 %v2560
      %v2657 = vunpack.c.l.b16 %v2561
      %v2658 = vunpack.c.l.b16 %v2562
      %v2659 = vunpack.c.l.b16 %v2563
      %v2660 = vunpack.c.l.b16 %v2564
      %v2661 = vunpack.c.l.b16 %v2565
      %v2662 = vunpack.c.l.b16 %v2566
      %v2663 = vunpack.c.l.b16 %v2567
      %v2664 = vunpack.c.l.b16 %v2568
      %v2665 = vunpack.c.l.b16 %v2569
      %v2666 = vunpack.c.l.b16 %v2570
      %v2667 = vunpack.c.l.b16 %v2571
      %v2668 = vunpack.c.l.b16 %v2572
      %v2669 = vunpack.c.l.b16 %v2573
      %v2670 = vunpack.c.l.b16 %v2574
      %v2671 = vunpack.c.l.b16 %v2575
      %v2672 = vunpack.c.l.b16 %v2576
      %v2673 = vpack.c.b16 %v2626, %v2625
      %v2674 = vpack.c.b16 %v2628, %v2627
      %v2675 = vpack.c.b16 %v2630, %v2629
      %v2676 = vpack.c.b16 %v2632, %v2631
      %v2677 = vpack.c.b16 %v2634, %v2633
      %v2678 = vpack.c.b16 %v2636, %v2635
      %v2679 = vpack.c.b16 %v2638, %v2637
      %v2680 = vpack.c.b16 %v2640, %v2639
      %v2681 = vpack.c.b16 %v2642, %v2641
      %v2682 = vpack.c.b16 %v2644, %v2643
      %v2683 = vpack.c.b16 %v2646, %v2645
      %v2684 = vpack.c.b16 %v2648, %v2647
      %v2685 = vpack.c.b16 %v2650, %v2649
      %v2686 = vpack.c.b16 %v2652, %v2651
      %v2687 = vpack.c.b16 %v2654, %v2653
      %v2688 = vpack.c.b16 %v2656, %v2655
      %v2689 = vpack.c.b16 %v2658, %v2657
      %v2690 = vpack.c.b16 %v2660, %v2659
      %v2691 = vpack.c.b16 %v2662, %v2661
      %v2692 = vpack.c.b16 %v2664, %v2663
      %v2693 = vpack.c.b16 %v2666, %v2665
      %v2694 = vpack.c.b16 %v2668, %v2667
      %v2695 = vpack.c.b16 %v2670, %v2669
      %v2696 = vpack.c.b16 %v2672, %v2671
      %2721 = vmatprep.subr.bf16.mxu0 0
      %2722 = vmatpush1.bf16.msra.mxu0 %v2673
      %2723 = vmatprep.subr.bf16.mxu0 0
      %2724 = vmatpush1.bf16.msra.mxu0 %v2674
      %2725 = vmatprep.subr.bf16.mxu0 0
      %2726 = vmatpush1.bf16.msra.mxu0 %v2675
      %2727 = vmatprep.subr.bf16.mxu0 0
      %2728 = vmatpush1.bf16.msra.mxu0 %v2676
      %2729 = vmatprep.subr.bf16.mxu0 0
      %2730 = vmatpush1.bf16.msra.mxu0 %v2677
      %2731 = vmatprep.subr.bf16.mxu0 0
      %2732 = vmatpush1.bf16.msra.mxu0 %v2678
      %2733 = vmatprep.subr.bf16.mxu0 0
      %2734 = vmatpush1.bf16.msra.mxu0 %v2679
      %2735 = vmatprep.subr.bf16.mxu0 0
      %2736 = vmatpush1.bf16.msra.mxu0 %v2680
      %2737 = vmatprep.subr.bf16.mxu0 0
      %2738 = vmatpush1.bf16.msra.mxu0 %v2681
      %2739 = vmatprep.subr.bf16.mxu0 0
      %2740 = vmatpush1.bf16.msra.mxu0 %v2682
      %2741 = vmatprep.subr.bf16.mxu0 0
      %2742 = vmatpush1.bf16.msra.mxu0 %v2683
      %2743 = vmatprep.subr.bf16.mxu0 0
      %2744 = vmatpush1.bf16.msra.mxu0 %v2684
      %2745 = vmatprep.subr.bf16.mxu0 0
      %2746 = vmatpush1.bf16.msra.mxu0 %v2685
      %2747 = vmatprep.subr.bf16.mxu0 0
      %2748 = vmatpush1.bf16.msra.mxu0 %v2686
      %2749 = vmatprep.subr.bf16.mxu0 0
      %2750 = vmatpush1.bf16.msra.mxu0 %v2687
      %2751 = vmatprep.subr.bf16.mxu0 0
      %2752 = vmatpush1.bf16.msra.mxu0 %v2688
      %2753 = vmatprep.mubr.bf16.mxu0 %v2267
      %2754 = vmatmul.mubr.bf16.gmra.mrb[0].mxu0 %v2176
      %v2755 = vpop.f32.mrb[0].mxu0
      %v2756 = vadd.f32 0.0, %v2755
      %v2757 = vpop.f32.mrb[0].mxu0
      %v2758 = vpop.f32.mrb[0].mxu0
      %v2759 = vadd.f32 0.0, %v2758
      %v2760 = vpop.f32.mrb[0].mxu0
      %2761 = vmatprep.mubr.bf16.mxu0 %v2279
      %2762 = vmatmul.mubr.bf16.gmra.mrb[0].mxu0 %v2177
      %v2763 = vpop.f32.mrb[0].mxu0
      %v2764 = vadd.f32 0.0, %v2763
      %v2765 = vpop.f32.mrb[0].mxu0
      %v2766 = vpop.f32.mrb[0].mxu0
      %v2767 = vadd.f32 0.0, %v2766
      %v2768 = vpop.f32.mrb[0].mxu0
      %2769 = vmatprep.mubr.bf16.mxu0 %v2291
      %2770 = vmatmul.mubr.bf16.gmra.mrb[0].mxu0 %v2178
      %v2771 = vpop.f32.mrb[0].mxu0
      %v2772 = vadd.f32 0.0, %v2771
      %v2773 = vpop.f32.mrb[0].mxu0
      %v2774 = vpop.f32.mrb[0].mxu0
      %v2775 = vadd.f32 0.0, %v2774
      %v2776 = vpop.f32.mrb[0].mxu0
      %2777 = vmatprep.mubr.bf16.mxu0 %v2303
      %2778 = vmatmul.mubr.bf16.gmra.mrb[0].mxu0 %v2179
      %v2779 = vpop.f32.mrb[0].mxu0
      %v2780 = vadd.f32 0.0, %v2779
      %v2781 = vpop.f32.mrb[0].mxu0
      %v2782 = vpop.f32.mrb[0].mxu0
      %v2783 = vadd.f32 0.0, %v2782
      %v2784 = vpop.f32.mrb[0].mxu0
      %2785 = vmatprep.mubr.bf16.mxu0 %v2315
      %2786 = vmatmul.mubr.bf16.gmra.mrb[0].mxu0 %v2180
      %v2787 = vpop.f32.mrb[0].mxu0
      %v2788 = vadd.f32 0.0, %v2787
      %v2789 = vpop.f32.mrb[0].mxu0
      %v2790 = vpop.f32.mrb[0].mxu0
      %v2791 = vadd.f32 0.0, %v2790
      %v2792 = vpop.f32.mrb[0].mxu0
      %2793 = vmatprep.mubr.bf16.mxu0 %v2327
      %2794 = vmatmul.mubr.bf16.gmra.mrb[0].mxu0 %v2181
      %v2795 = vpop.f32.mrb[0].mxu0
      %v2796 = vadd.f32 0.0, %v2795
      %v2797 = vpop.f32.mrb[0].mxu0
      %v2798 = vpop.f32.mrb[0].mxu0
      %v2799 = vadd.f32 0.0, %v2798
      %v2800 = vpop.f32.mrb[0].mxu0
      %2801 = vmatprep.mubr.bf16.mxu0 %v2339
      %2802 = vmatmul.mubr.bf16.gmra.mrb[0].mxu0 %v2182
      %v2803 = vpop.f32.mrb[0].mxu0
      %v2804 = vadd.f32 0.0, %v2803
      %v2805 = vpop.f32.mrb[0].mxu0
      %v2806 = vpop.f32.mrb[0].mxu0
      %v2807 = vadd.f32 0.0, %v2806
      %v2808 = vpop.f32.mrb[0].mxu0
      %2809 = vmatprep.mubr.bf16.mxu0 %v2351
      %2810 = vmatmul.mubr.bf16.gmra.mrb[0].mxu0 %v2183
      %v2811 = vpop.f32.mrb[0].mxu0
      %v2812 = vadd.f32 0.0, %v2811
      %v2813 = vpop.f32.mrb[0].mxu0
      %v2814 = vpop.f32.mrb[0].mxu0
      %v2815 = vadd.f32 0.0, %v2814
      %v2816 = vpop.f32.mrb[0].mxu0
      %2817 = vmatprep.mubr.bf16.mxu0 %v2363
      %2818 = vmatmul.mubr.bf16.gmra.mrb[0].mxu0 %v2184
      %v2819 = vpop.f32.mrb[0].mxu0
      %v2820 = vadd.f32 0.0, %v2819
      %v2821 = vpop.f32.mrb[0].mxu0
      %v2822 = vpop.f32.mrb[0].mxu0
      %v2823 = vadd.f32 0.0, %v2822
      %v2824 = vpop.f32.mrb[0].mxu0
      %2825 = vmatprep.mubr.bf16.mxu0 %v2375
      %2826 = vmatmul.mubr.bf16.gmra.mrb[0].mxu0 %v2185
      %v2827 = vpop.f32.mrb[0].mxu0
      %v2828 = vadd.f32 0.0, %v2827
      %v2829 = vpop.f32.mrb[0].mxu0
      %v2830 = vpop.f32.mrb[0].mxu0
      %v2831 = vadd.f32 0.0, %v2830
      %v2832 = vpop.f32.mrb[0].mxu0
      %2833 = vmatprep.mubr.bf16.mxu0 %v2387
      %2834 = vmatmul.mubr.bf16.gmra.mrb[0].mxu0 %v2186
      %v2835 = vpop.f32.mrb[0].mxu0
      %v2836 = vadd.f32 0.0, %v2835
      %v2837 = vpop.f32.mrb[0].mxu0
      %v2838 = vpop.f32.mrb[0].mxu0
      %v2839 = vadd.f32 0.0, %v2838
      %v2840 = vpop.f32.mrb[0].mxu0
      %2841 = vmatprep.mubr.bf16.mxu0 %v2399
      %2842 = vmatmul.mubr.bf16.gmra.mrb[0].mxu0 %v2187
      %v2843 = vpop.f32.mrb[0].mxu0
      %v2844 = vadd.f32 0.0, %v2843
      %v2845 = vpop.f32.mrb[0].mxu0
      %v2846 = vpop.f32.mrb[0].mxu0
      %v2847 = vadd.f32 0.0, %v2846
      %v2848 = vpop.f32.mrb[0].mxu0
      %2849 = vmatprep.mubr.bf16.mxu0 %v2411
      %2850 = vmatmul.mubr.bf16.gmra.mrb[0].mxu0 %v2188
      %v2851 = vpop.f32.mrb[0].mxu0
      %v2852 = vadd.f32 0.0, %v2851
      %v2853 = vpop.f32.mrb[0].mxu0
      %v2854 = vpop.f32.mrb[0].mxu0
      %v2855 = vadd.f32 0.0, %v2854
      %v2856 = vpop.f32.mrb[0].mxu0
      %2857 = vmatprep.mubr.bf16.mxu0 %v2423
      %2858 = vmatmul.mubr.bf16.gmra.mrb[0].mxu0 %v2189
      %v2859 = vpop.f32.mrb[0].mxu0
      %v2860 = vadd.f32 0.0, %v2859
      %v2861 = vpop.f32.mrb[0].mxu0
      %v2862 = vpop.f32.mrb[0].mxu0
      %v2863 = vadd.f32 0.0, %v2862
      %v2864 = vpop.f32.mrb[0].mxu0
      %2865 = vmatprep.mubr.bf16.mxu0 %v2435
      %2866 = vmatmul.mubr.bf16.gmra.mrb[0].mxu0 %v2190
      %v2867 = vpop.f32.mrb[0].mxu0
      %v2868 = vadd.f32 0.0, %v2867
      %v2869 = vpop.f32.mrb[0].mxu0
      %v2870 = vpop.f32.mrb[0].mxu0
      %v2871 = vadd.f32 0.0, %v2870
      %v2872 = vpop.f32.mrb[0].mxu0
      %2873 = vmatprep.mubr.bf16.mxu0 %v2447
      %2874 = vmatmul.mubr.bf16.gmra.mrb[0].mxu0 %v2191
      %v2875 = vpop.f32.mrb[0].mxu0
      %v2876 = vadd.f32 0.0, %v2875
      %v2877 = vpop.f32.mrb[0].mxu0
      %v2878 = vpop.f32.mrb[0].mxu0
      %v2879 = vadd.f32 0.0, %v2878
      %v2880 = vpop.f32.mrb[0].mxu0
      %2881 = vdwg.mxu0
      %2882 = vmatprep.subr.bf16.mxu0 0
      %2883 = vmatpush1.bf16.msra.mxu0 %v2689
      %2884 = vmatprep.subr.bf16.mxu0 0
      %2885 = vmatpush1.bf16.msra.mxu0 %v2690
      %2886 = vmatprep.subr.bf16.mxu0 0
      %2887 = vmatpush1.bf16.msra.mxu0 %v2691
      %2888 = vmatprep.subr.bf16.mxu0 0
      %2889 = vmatpush1.bf16.msra.mxu0 %v2692
      %2890 = vmatprep.subr.bf16.mxu0 0
      %2891 = vmatpush1.bf16.msra.mxu0 %v2693
      %2892 = vmatprep.subr.bf16.mxu0 0
      %2893 = vmatpush1.bf16.msra.mxu0 %v2694
      %2894 = vmatprep.subr.bf16.mxu0 0
      %2895 = vmatpush1.bf16.msra.mxu0 %v2695
      %2896 = vmatprep.subr.bf16.mxu0 0
      %2897 = vmatpush1.bf16.msra.mxu0 %v2696
      %2898 = vmatprep.subr.bf16.mxu0 0
      %2899 = vmatpush1.bf16.msra.mxu0 0
      %2900 = vmatprep.subr.bf16.mxu0 0
      %2901 = vmatpush1.bf16.msra.mxu0 0
      %2902 = vmatprep.subr.bf16.mxu0 0
      %2903 = vmatpush1.bf16.msra.mxu0 0
      %2904 = vmatprep.subr.bf16.mxu0 0
      %2905 = vmatpush1.bf16.msra.mxu0 0
      %2906 = vmatprep.subr.bf16.mxu0 0
      %2907 = vmatpush1.bf16.msra.mxu0 0
      %2908 = vmatprep.subr.bf16.mxu0 0
      %2909 = vmatpush1.bf16.msra.mxu0 0
      %2910 = vmatprep.subr.bf16.mxu0 0
      %2911 = vmatpush1.bf16.msra.mxu0 0
      %2912 = vmatprep.subr.bf16.mxu0 0
      %2913 = vmatpush1.bf16.msra.mxu0 0
      %2914 = vmatprep.mubr.bf16.mxu0 0
      %2915 = vmatmul.mubr.bf16.gmra.mrb[0].mxu0 %v2466
      %v2916 = vpop.f32.mrb[0].mxu0
      %v2917 = vadd.f32 %v2756, %v2916
      %v2918 = vpop.f32.mrb[0].mxu0
      %v2919 = vpop.f32.mrb[0].mxu0
      %v2920 = vadd.f32 %v2759, %v2919
      %v2921 = vpop.f32.mrb[0].mxu0
      %2922 = vmatprep.mubr.bf16.mxu0 0
      %2923 = vmatmul.mubr.bf16.gmra.mrb[0].mxu0 %v2469
      %v2924 = vpop.f32.mrb[0].mxu0
      %v2925 = vadd.f32 %v2764, %v2924
      %v2926 = vpop.f32.mrb[0].mxu0
      %v2927 = vpop.f32.mrb[0].mxu0
      %v2928 = vadd.f32 %v2767, %v2927
      %v2929 = vpop.f32.mrb[0].mxu0
      %2930 = vmatprep.mubr.bf16.mxu0 0
      %2931 = vmatmul.mubr.bf16.gmra.mrb[0].mxu0 %v2472
      %v2932 = vpop.f32.mrb[0].mxu0
      %v2933 = vadd.f32 %v2772, %v2932
      %v2934 = vpop.f32.mrb[0].mxu0
      %v2935 = vpop.f32.mrb[0].mxu0
      %v2936 = vadd.f32 %v2775, %v2935
      %v2937 = vpop.f32.mrb[0].mxu0
      %2938 = vmatprep.mubr.bf16.mxu0 0
      %2939 = vmatmul.mubr.bf16.gmra.mrb[0].mxu0 %v2475
      %v2940 = vpop.f32.mrb[0].mxu0
      %v2941 = vadd.f32 %v2780, %v2940
      %v2942 = vpop.f32.mrb[0].mxu0
      %v2943 = vpop.f32.mrb[0].mxu0
      %v2944 = vadd.f32 %v2783, %v2943
      %v2945 = vpop.f32.mrb[0].mxu0
      %2946 = vmatprep.mubr.bf16.mxu0 0
      %2947 = vmatmul.mubr.bf16.gmra.mrb[0].mxu0 %v2478
      %v2948 = vpop.f32.mrb[0].mxu0
      %v2949 = vadd.f32 %v2788, %v2948
      %v2950 = vpop.f32.mrb[0].mxu0
      %v2951 = vpop.f32.mrb[0].mxu0
      %v2952 = vadd.f32 %v2791, %v2951
      %v2953 = vpop.f32.mrb[0].mxu0
      %2954 = vmatprep.mubr.bf16.mxu0 0
      %2955 = vmatmul.mubr.bf16.gmra.mrb[0].mxu0 %v2481
      %v2956 = vpop.f32.mrb[0].mxu0
      %v2957 = vadd.f32 %v2796, %v2956
      %v2958 = vpop.f32.mrb[0].mxu0
      %v2959 = vpop.f32.mrb[0].mxu0
      %v2960 = vadd.f32 %v2799, %v2959
      %v2961 = vpop.f32.mrb[0].mxu0
      %2962 = vmatprep.mubr.bf16.mxu0 0
      %2963 = vmatmul.mubr.bf16.gmra.mrb[0].mxu0 %v2484
      %v2964 = vpop.f32.mrb[0].mxu0
      %v2965 = vadd.f32 %v2804, %v2964
      %v2966 = vpop.f32.mrb[0].mxu0
      %v2967 = vpop.f32.mrb[0].mxu0
      %v2968 = vadd.f32 %v2807, %v2967
      %v2969 = vpop.f32.mrb[0].mxu0
      %2970 = vmatprep.mubr.bf16.mxu0 0
      %2971 = vmatmul.mubr.bf16.gmra.mrb[0].mxu0 %v2487
      %v2972 = vpop.f32.mrb[0].mxu0
      %v2973 = vadd.f32 %v2812, %v2972
      %v2974 = vpop.f32.mrb[0].mxu0
      %v2975 = vpop.f32.mrb[0].mxu0
      %v2976 = vadd.f32 %v2815, %v2975
      %v2977 = vpop.f32.mrb[0].mxu0
      %2978 = vmatprep.mubr.bf16.mxu0 0
      %2979 = vmatmul.mubr.bf16.gmra.mrb[0].mxu0 %v2490
      %v2980 = vpop.f32.mrb[0].mxu0
      %v2981 = vadd.f32 %v2820, %v2980
      %v2982 = vpop.f32.mrb[0].mxu0
      %v2983 = vpop.f32.mrb[0].mxu0
      %v2984 = vadd.f32 %v2823, %v2983
      %v2985 = vpop.f32.mrb[0].mxu0
      %2986 = vmatprep.mubr.bf16.mxu0 0
      %2987 = vmatmul.mubr.bf16.gmra.mrb[0].mxu0 %v2493
      %v2988 = vpop.f32.mrb[0].mxu0
      %v2989 = vadd.f32 %v2828, %v2988
      %v2990 = vpop.f32.mrb[0].mxu0
      %v2991 = vpop.f32.mrb[0].mxu0
      %v2992 = vadd.f32 %v2831, %v2991
      %v2993 = vpop.f32.mrb[0].mxu0
      %2994 = vmatprep.mubr.bf16.mxu0 0
      %2995 = vmatmul.mubr.bf16.gmra.mrb[0].mxu0 %v2496
      %v2996 = vpop.f32.mrb[0].mxu0
      %v2997 = vadd.f32 %v2836, %v2996
      %v2998 = vpop.f32.mrb[0].mxu0
      %v2999 = vpop.f32.mrb[0].mxu0
      %v3000 = vadd.f32 %v2839, %v2999
      %v3001 = vpop.f32.mrb[0].mxu0
      %3002 = vmatprep.mubr.bf16.mxu0 0
      %3003 = vmatmul.mubr.bf16.gmra.mrb[0].mxu0 %v2499
      %v3004 = vpop.f32.mrb[0].mxu0
      %v3005 = vadd.f32 %v2844, %v3004
      %v3006 = vpop.f32.mrb[0].mxu0
      %v3007 = vpop.f32.mrb[0].mxu0
      %v3008 = vadd.f32 %v2847, %v3007
      %v3009 = vpop.f32.mrb[0].mxu0
      %3010 = vmatprep.mubr.bf16.mxu0 0
      %3011 = vmatmul.mubr.bf16.gmra.mrb[0].mxu0 %v2502
      %v3012 = vpop.f32.mrb[0].mxu0
      %v3013 = vadd.f32 %v2852, %v3012
      %v3014 = vpop.f32.mrb[0].mxu0
      %v3015 = vpop.f32.mrb[0].mxu0
      %v3016 = vadd.f32 %v2855, %v3015
      %v3017 = vpop.f32.mrb[0].mxu0
      %3018 = vmatprep.mubr.bf16.mxu0 0
      %3019 = vmatmul.mubr.bf16.gmra.mrb[0].mxu0 %v2505
      %v3020 = vpop.f32.mrb[0].mxu0
      %v3021 = vadd.f32 %v2860, %v3020
      %v3022 = vpop.f32.mrb[0].mxu0
      %v3023 = vpop.f32.mrb[0].mxu0
      %v3024 = vadd.f32 %v2863, %v3023
      %v3025 = vpop.f32.mrb[0].mxu0
      %3026 = vmatprep.mubr.bf16.mxu0 0
      %3027 = vmatmul.mubr.bf16.gmra.mrb[0].mxu0 %v2508
      %v3028 = vpop.f32.mrb[0].mxu0
      %v3029 = vadd.f32 %v2868, %v3028
      %v3030 = vpop.f32.mrb[0].mxu0
      %v3031 = vpop.f32.mrb[0].mxu0
      %v3032 = vadd.f32 %v2871, %v3031
      %v3033 = vpop.f32.mrb[0].mxu0
      %3034 = vmatprep.mubr.bf16.mxu0 0
      %3035 = vmatmul.mubr.bf16.gmra.mrb[0].mxu0 %v2511
      %v3036 = vpop.f32.mrb[0].mxu0
      %v3037 = vadd.f32 %v2876, %v3036
      %v3038 = vpop.f32.mrb[0].mxu0
      %v3039 = vpop.f32.mrb[0].mxu0
      %v3040 = vadd.f32 %v2879, %v3039
      %v3041 = vpop.f32.mrb[0].mxu0
      %3042 = vdwg.mxu0
      %v3043 = vld [vmem:[#allocation3] sm:$0xff]
      %v3044 = vld [vmem:[#allocation3 + $0x8] sm:$0xff]
      %v3045 = vld [vmem:[#allocation3 + $0x10] sm:$0xff]
      %v3046 = vld [vmem:[#allocation3 + $0x18] sm:$0xff]
      %v3047 = vld [vmem:[#allocation3 + $0x20] sm:$0xff]
      %v3048 = vld [vmem:[#allocation3 + $0x28] sm:$0xff]
      %v3049 = vld [vmem:[#allocation3 + $0x30] sm:$0xff]
      %v3050 = vld [vmem:[#allocation3 + $0x38] sm:$0xff]
      %v3051 = vld [vmem:[#allocation3 + $0x40] sm:$0xff]
      %v3052 = vld [vmem:[#allocation3 + $0x48] sm:$0xff]
      %v3053 = vld [vmem:[#allocation3 + $0x50] sm:$0xff]
      %v3054 = vld [vmem:[#allocation3 + $0x58] sm:$0xff]
      %v3055 = vld [vmem:[#allocation3 + $0x60] sm:$0xff]
      %v3056 = vld [vmem:[#allocation3 + $0x68] sm:$0xff]
      %v3057 = vld [vmem:[#allocation3 + $0x70] sm:$0xff]
      %v3058 = vld [vmem:[#allocation3 + $0x78] sm:$0xff]
      %v3059 = vld [vmem:[#allocation3 + $0x80] sm:$0xff]
      %v3060 = vld [vmem:[#allocation3 + $0x88] sm:$0xff]
      %v3061 = vld [vmem:[#allocation3 + $0x90] sm:$0xff]
      %v3062 = vld [vmem:[#allocation3 + $0x98] sm:$0xff]
      %v3063 = vld [vmem:[#allocation3 + $0xa0] sm:$0xff]
      %v3064 = vld [vmem:[#allocation3 + $0xa8] sm:$0xff]
      %v3065 = vld [vmem:[#allocation3 + $0xb0] sm:$0xff]
      %v3066 = vld [vmem:[#allocation3 + $0xb8] sm:$0xff]
      %v3067 = vld [vmem:[#allocation3 + $0xc0] sm:$0xff]
      %v3068 = vld [vmem:[#allocation3 + $0xc8] sm:$0xff]
      %v3069 = vld [vmem:[#allocation3 + $0xd0] sm:$0xff]
      %v3070 = vld [vmem:[#allocation3 + $0xd8] sm:$0xff]
      %v3071 = vld [vmem:[#allocation3 + $0xe0] sm:$0xff]
      %v3072 = vld [vmem:[#allocation3 + $0xe8] sm:$0xff]
      %v3073 = vld [vmem:[#allocation3 + $0xf0] sm:$0xff]
      %v3074 = vld [vmem:[#allocation3 + $0xf8] sm:$0xff]
      %v3075 = vadd.f32 %v3043, %v2917
      %v3076 = vadd.f32 %v3044, %v2920
      %v3077 = vadd.f32 %v3045, %v2925
      %v3078 = vadd.f32 %v3046, %v2928
      %v3079 = vadd.f32 %v3047, %v2933
      %v3080 = vadd.f32 %v3048, %v2936
      %v3081 = vadd.f32 %v3049, %v2941
      %v3082 = vadd.f32 %v3050, %v2944
      %v3083 = vadd.f32 %v3051, %v2949
      %v3084 = vadd.f32 %v3052, %v2952
      %v3085 = vadd.f32 %v3053, %v2957
      %v3086 = vadd.f32 %v3054, %v2960
      %v3087 = vadd.f32 %v3055, %v2965
      %v3088 = vadd.f32 %v3056, %v2968
      %v3089 = vadd.f32 %v3057, %v2973
      %v3090 = vadd.f32 %v3058, %v2976
      %v3091 = vadd.f32 %v3059, %v2981
      %v3092 = vadd.f32 %v3060, %v2984
      %v3093 = vadd.f32 %v3061, %v2989
      %v3094 = vadd.f32 %v3062, %v2992
      %v3095 = vadd.f32 %v3063, %v2997
      %v3096 = vadd.f32 %v3064, %v3000
      %v3097 = vadd.f32 %v3065, %v3005
      %v3098 = vadd.f32 %v3066, %v3008
      %v3099 = vadd.f32 %v3067, %v3013
      %v3100 = vadd.f32 %v3068, %v3016
      %v3101 = vadd.f32 %v3069, %v3021
      %v3102 = vadd.f32 %v3070, %v3024
      %v3103 = vadd.f32 %v3071, %v3029
      %v3104 = vadd.f32 %v3072, %v3032
      %v3105 = vadd.f32 %v3073, %v3037
      %v3106 = vadd.f32 %v3074, %v3040
      %3107 = vst [vmem:[#allocation3] sm:$0xff] %v3075
      %3108 = vst [vmem:[#allocation3 + $0x8] sm:$0xff] %v3076
      %3109 = vst [vmem:[#allocation3 + $0x10] sm:$0xff] %v3077
      %3110 = vst [vmem:[#allocation3 + $0x18] sm:$0xff] %v3078
      %3111 = vst [vmem:[#allocation3 + $0x20] sm:$0xff] %v3079
      %3112 = vst [vmem:[#allocation3 + $0x28] sm:$0xff] %v3080
      %3113 = vst [vmem:[#allocation3 + $0x30] sm:$0xff] %v3081
      %3114 = vst [vmem:[#allocation3 + $0x38] sm:$0xff] %v3082
      %3115 = vst [vmem:[#allocation3 + $0x40] sm:$0xff] %v3083
      %3116 = vst [vmem:[#allocation3 + $0x48] sm:$0xff] %v3084
      %3117 = vst [vmem:[#allocation3 + $0x50] sm:$0xff] %v3085
      %3118 = vst [vmem:[#allocation3 + $0x58] sm:$0xff] %v3086
      %3119 = vst [vmem:[#allocation3 + $0x60] sm:$0xff] %v3087
      %3120 = vst [vmem:[#allocation3 + $0x68] sm:$0xff] %v3088
      %3121 = vst [vmem:[#allocation3 + $0x70] sm:$0xff] %v3089
      %3122 = vst [vmem:[#allocation3 + $0x78] sm:$0xff] %v3090
      %3123 = vst [vmem:[#allocation3 + $0x80] sm:$0xff] %v3091
      %3124 = vst [vmem:[#allocation3 + $0x88] sm:$0xff] %v3092
      %3125 = vst [vmem:[#allocation3 + $0x90] sm:$0xff] %v3093
      %3126 = vst [vmem:[#allocation3 + $0x98] sm:$0xff] %v3094
      %3127 = vst [vmem:[#allocation3 + $0xa0] sm:$0xff] %v3095
      %3128 = vst [vmem:[#allocation3 + $0xa8] sm:$0xff] %v3096
      %3129 = vst [vmem:[#allocation3 + $0xb0] sm:$0xff] %v3097
      %3130 = vst [vmem:[#allocation3 + $0xb8] sm:$0xff] %v3098
      %3131 = vst [vmem:[#allocation3 + $0xc0] sm:$0xff] %v3099
      %3132 = vst [vmem:[#allocation3 + $0xc8] sm:$0xff] %v3100
      %3133 = vst [vmem:[#allocation3 + $0xd0] sm:$0xff] %v3101
      %3134 = vst [vmem:[#allocation3 + $0xd8] sm:$0xff] %v3102
      %3135 = vst [vmem:[#allocation3 + $0xe0] sm:$0xff] %v3103
      %3136 = vst [vmem:[#allocation3 + $0xe8] sm:$0xff] %v3104
      %3137 = vst [vmem:[#allocation3 + $0xf0] sm:$0xff] %v3105
      %3138 = vst [vmem:[#allocation3 + $0xf8] sm:$0xff] %v3106
      %s3139 = scalar_lea.vmem [#allocation2], 24
      %v3140 = vld [vmem:[%s3139] sm:$0xf]
      %v3141 = vld [vmem:[%s3139 + $0x4] sm:$0xf]
      %v3142 = vld [vmem:[%s3139 + $0x8] sm:$0x1]
      %v3143 = vld [vmem:[%s3139 + $0xc] sm:$0xf]
      %v3144 = vld [vmem:[%s3139 + $0x10] sm:$0xf]
      %v3145 = vld [vmem:[%s3139 + $0x14] sm:$0x1]
      %v3146 = vld [vmem:[%s3139 + $0x18] sm:$0xf]
      %v3147 = vld [vmem:[%s3139 + $0x1c] sm:$0xf]
      %v3148 = vld [vmem:[%s3139 + $0x20] sm:$0x1]
      %v3149 = vld [vmem:[%s3139 + $0x24] sm:$0xf]
      %v3150 = vld [vmem:[%s3139 + $0x28] sm:$0xf]
      %v3151 = vld [vmem:[%s3139 + $0x2c] sm:$0x1]
      %v3152 = vld [vmem:[%s3139 + $0x30] sm:$0xf]
      %v3153 = vld [vmem:[%s3139 + $0x34] sm:$0xf]
      %v3154 = vld [vmem:[%s3139 + $0x38] sm:$0x1]
      %v3155 = vld [vmem:[%s3139 + $0x3c] sm:$0xf]
      %v3156 = vld [vmem:[%s3139 + $0x40] sm:$0xf]
      %v3157 = vld [vmem:[%s3139 + $0x44] sm:$0x1]
      %v3158 = vld [vmem:[%s3139 + $0x48] sm:$0xf]
      %v3159 = vld [vmem:[%s3139 + $0x4c] sm:$0xf]
      %v3160 = vld [vmem:[%s3139 + $0x50] sm:$0x1]
      %v3161 = vld [vmem:[%s3139 + $0x54] sm:$0xf]
      %v3162 = vld [vmem:[%s3139 + $0x58] sm:$0xf]
      %v3163 = vld [vmem:[%s3139 + $0x5c] sm:$0x1]
      %v3164 = vld [vmem:[%s3139 + $0x60] sm:$0xf]
      %v3165 = vld [vmem:[%s3139 + $0x64] sm:$0xf]
      %v3166 = vld [vmem:[%s3139 + $0x68] sm:$0x1]
      %v3167 = vld [vmem:[%s3139 + $0x6c] sm:$0xf]
      %v3168 = vld [vmem:[%s3139 + $0x70] sm:$0xf]
      %v3169 = vld [vmem:[%s3139 + $0x74] sm:$0x1]
      %v3170 = vld [vmem:[%s3139 + $0x78] sm:$0xf]
      %v3171 = vld [vmem:[%s3139 + $0x7c] sm:$0xf]
      %v3172 = vld [vmem:[%s3139 + $0x80] sm:$0x1]
      %v3173 = vld [vmem:[%s3139 + $0x84] sm:$0xf]
      %v3174 = vld [vmem:[%s3139 + $0x88] sm:$0xf]
      %v3175 = vld [vmem:[%s3139 + $0x8c] sm:$0x1]
      %v3176 = vld [vmem:[%s3139 + $0x90] sm:$0xf]
      %v3177 = vld [vmem:[%s3139 + $0x94] sm:$0xf]
      %v3178 = vld [vmem:[%s3139 + $0x98] sm:$0x1]
      %v3179 = vld [vmem:[%s3139 + $0x9c] sm:$0xf]
      %v3180 = vld [vmem:[%s3139 + $0xa0] sm:$0xf]
      %v3181 = vld [vmem:[%s3139 + $0xa4] sm:$0x1]
      %v3182 = vld [vmem:[%s3139 + $0xa8] sm:$0xf]
      %v3183 = vld [vmem:[%s3139 + $0xac] sm:$0xf]
      %v3184 = vld [vmem:[%s3139 + $0xb0] sm:$0x1]
      %v3185 = vld [vmem:[%s3139 + $0xb4] sm:$0xf]
      %v3186 = vld [vmem:[%s3139 + $0xb8] sm:$0xf]
      %v3187 = vld [vmem:[%s3139 + $0xbc] sm:$0x1]
      %v3220 = vunpack.c.l.b16 %v3140
      %v3221 = vunpack.c.l.b16 %v3141
      %v3222 = vunpack.c.l.b16 %v3143
      %v3223 = vunpack.c.l.b16 %v3144
      %v3224 = vunpack.c.l.b16 %v3146
      %v3225 = vunpack.c.l.b16 %v3147
      %v3226 = vunpack.c.l.b16 %v3149
      %v3227 = vunpack.c.l.b16 %v3150
      %v3228 = vunpack.c.l.b16 %v3152
      %v3229 = vunpack.c.l.b16 %v3153
      %v3230 = vunpack.c.l.b16 %v3155
      %v3231 = vunpack.c.l.b16 %v3156
      %v3232 = vunpack.c.l.b16 %v3158
      %v3233 = vunpack.c.l.b16 %v3159
      %v3234 = vunpack.c.l.b16 %v3161
      %v3235 = vunpack.c.l.b16 %v3162
      %v3236 = vunpack.c.l.b16 %v3164
      %v3237 = vunpack.c.l.b16 %v3165
      %v3238 = vunpack.c.l.b16 %v3167
      %v3239 = vunpack.c.l.b16 %v3168
      %v3240 = vunpack.c.l.b16 %v3170
      %v3241 = vunpack.c.l.b16 %v3171
      %v3242 = vunpack.c.l.b16 %v3173
      %v3243 = vunpack.c.l.b16 %v3174
      %v3244 = vunpack.c.l.b16 %v3176
      %v3245 = vunpack.c.l.b16 %v3177
      %v3246 = vunpack.c.l.b16 %v3179
      %v3247 = vunpack.c.l.b16 %v3180
      %v3248 = vunpack.c.l.b16 %v3182
      %v3249 = vunpack.c.l.b16 %v3183
      %v3250 = vunpack.c.l.b16 %v3185
      %v3251 = vunpack.c.l.b16 %v3186
      %v3252 = vpack.c.b16 %v3221, %v3220
      %v3253 = vpack.c.b16 %v3223, %v3222
      %v3254 = vpack.c.b16 %v3225, %v3224
      %v3255 = vpack.c.b16 %v3227, %v3226
      %v3256 = vpack.c.b16 %v3229, %v3228
      %v3257 = vpack.c.b16 %v3231, %v3230
      %v3258 = vpack.c.b16 %v3233, %v3232
      %v3259 = vpack.c.b16 %v3235, %v3234
      %v3260 = vpack.c.b16 %v3237, %v3236
      %v3261 = vpack.c.b16 %v3239, %v3238
      %v3262 = vpack.c.b16 %v3241, %v3240
      %v3263 = vpack.c.b16 %v3243, %v3242
      %v3264 = vpack.c.b16 %v3245, %v3244
      %v3265 = vpack.c.b16 %v3247, %v3246
      %v3266 = vpack.c.b16 %v3249, %v3248
      %v3267 = vpack.c.b16 %v3251, %v3250
      %v3300 = vunpack.c.l.b16 %v3142
      %v3301 = vunpack.c.l.b16 %v3145
      %v3302 = vunpack.c.l.b16 %v3148
      %v3303 = vunpack.c.l.b16 %v3151
      %v3304 = vunpack.c.l.b16 %v3154
      %v3305 = vunpack.c.l.b16 %v3157
      %v3306 = vunpack.c.l.b16 %v3160
      %v3307 = vunpack.c.l.b16 %v3163
      %v3308 = vunpack.c.l.b16 %v3166
      %v3309 = vunpack.c.l.b16 %v3169
      %v3310 = vunpack.c.l.b16 %v3172
      %v3311 = vunpack.c.l.b16 %v3175
      %v3312 = vunpack.c.l.b16 %v3178
      %v3313 = vunpack.c.l.b16 %v3181
      %v3314 = vunpack.c.l.b16 %v3184
      %v3315 = vunpack.c.l.b16 %v3187
      %v3316 = vpack.c.b16 %v3300, %v3300
      %v3317 = vpack.c.b16 %v3301, %v3301
      %v3318 = vpack.c.b16 %v3302, %v3302
      %v3319 = vpack.c.b16 %v3303, %v3303
      %v3320 = vpack.c.b16 %v3304, %v3304
      %v3321 = vpack.c.b16 %v3305, %v3305
      %v3322 = vpack.c.b16 %v3306, %v3306
      %v3323 = vpack.c.b16 %v3307, %v3307
      %v3324 = vpack.c.b16 %v3308, %v3308
      %v3325 = vpack.c.b16 %v3309, %v3309
      %v3326 = vpack.c.b16 %v3310, %v3310
      %v3327 = vpack.c.b16 %v3311, %v3311
      %v3328 = vpack.c.b16 %v3312, %v3312
      %v3329 = vpack.c.b16 %v3313, %v3313
      %v3330 = vpack.c.b16 %v3314, %v3314
      %v3331 = vpack.c.b16 %v3315, %v3315
      %v3333 = vshrl.u32 %v3252, 16
      %v3335 = vshll.u32 %v3252, 16
      %v3337 = vrot.slane %v3335, 1
      %v3338 = vor.u32 %v3333, %v3337
      %v3340 = vshll.u32 %v3316, 16
      %v3342 = vrot.slane %v3340, 1
      %v3343 = vsel %vm1244, %v3338, %v3342
      %v3345 = vshrl.u32 %v3253, 16
      %v3347 = vshll.u32 %v3253, 16
      %v3349 = vrot.slane %v3347, 1
      %v3350 = vor.u32 %v3345, %v3349
      %v3352 = vshll.u32 %v3317, 16
      %v3354 = vrot.slane %v3352, 1
      %v3355 = vsel %vm1244, %v3350, %v3354
      %v3357 = vshrl.u32 %v3254, 16
      %v3359 = vshll.u32 %v3254, 16
      %v3361 = vrot.slane %v3359, 1
      %v3362 = vor.u32 %v3357, %v3361
      %v3364 = vshll.u32 %v3318, 16
      %v3366 = vrot.slane %v3364, 1
      %v3367 = vsel %vm1244, %v3362, %v3366
      %v3369 = vshrl.u32 %v3255, 16
      %v3371 = vshll.u32 %v3255, 16
      %v3373 = vrot.slane %v3371, 1
      %v3374 = vor.u32 %v3369, %v3373
      %v3376 = vshll.u32 %v3319, 16
      %v3378 = vrot.slane %v3376, 1
      %v3379 = vsel %vm1244, %v3374, %v3378
      %v3381 = vshrl.u32 %v3256, 16
      %v3383 = vshll.u32 %v3256, 16
      %v3385 = vrot.slane %v3383, 1
      %v3386 = vor.u32 %v3381, %v3385
      %v3388 = vshll.u32 %v3320, 16
      %v3390 = vrot.slane %v3388, 1
      %v3391 = vsel %vm1244, %v3386, %v3390
      %v3393 = vshrl.u32 %v3257, 16
      %v3395 = vshll.u32 %v3257, 16
      %v3397 = vrot.slane %v3395, 1
      %v3398 = vor.u32 %v3393, %v3397
      %v3400 = vshll.u32 %v3321, 16
      %v3402 = vrot.slane %v3400, 1
      %v3403 = vsel %vm1244, %v3398, %v3402
      %v3405 = vshrl.u32 %v3258, 16
      %v3407 = vshll.u32 %v3258, 16
      %v3409 = vrot.slane %v3407, 1
      %v3410 = vor.u32 %v3405, %v3409
      %v3412 = vshll.u32 %v3322, 16
      %v3414 = vrot.slane %v3412, 1
      %v3415 = vsel %vm1244, %v3410, %v3414
      %v3417 = vshrl.u32 %v3259, 16
      %v3419 = vshll.u32 %v3259, 16
      %v3421 = vrot.slane %v3419, 1
      %v3422 = vor.u32 %v3417, %v3421
      %v3424 = vshll.u32 %v3323, 16
      %v3426 = vrot.slane %v3424, 1
      %v3427 = vsel %vm1244, %v3422, %v3426
      %v3429 = vshrl.u32 %v3260, 16
      %v3431 = vshll.u32 %v3260, 16
      %v3433 = vrot.slane %v3431, 1
      %v3434 = vor.u32 %v3429, %v3433
      %v3436 = vshll.u32 %v3324, 16
      %v3438 = vrot.slane %v3436, 1
      %v3439 = vsel %vm1244, %v3434, %v3438
      %v3441 = vshrl.u32 %v3261, 16
      %v3443 = vshll.u32 %v3261, 16
      %v3445 = vrot.slane %v3443, 1
      %v3446 = vor.u32 %v3441, %v3445
      %v3448 = vshll.u32 %v3325, 16
      %v3450 = vrot.slane %v3448, 1
      %v3451 = vsel %vm1244, %v3446, %v3450
      %v3453 = vshrl.u32 %v3262, 16
      %v3455 = vshll.u32 %v3262, 16
      %v3457 = vrot.slane %v3455, 1
      %v3458 = vor.u32 %v3453, %v3457
      %v3460 = vshll.u32 %v3326, 16
      %v3462 = vrot.slane %v3460, 1
      %v3463 = vsel %vm1244, %v3458, %v3462
      %v3465 = vshrl.u32 %v3263, 16
      %v3467 = vshll.u32 %v3263, 16
      %v3469 = vrot.slane %v3467, 1
      %v3470 = vor.u32 %v3465, %v3469
      %v3472 = vshll.u32 %v3327, 16
      %v3474 = vrot.slane %v3472, 1
      %v3475 = vsel %vm1244, %v3470, %v3474
      %v3477 = vshrl.u32 %v3264, 16
      %v3479 = vshll.u32 %v3264, 16
      %v3481 = vrot.slane %v3479, 1
      %v3482 = vor.u32 %v3477, %v3481
      %v3484 = vshll.u32 %v3328, 16
      %v3486 = vrot.slane %v3484, 1
      %v3487 = vsel %vm1244, %v3482, %v3486
      %v3489 = vshrl.u32 %v3265, 16
      %v3491 = vshll.u32 %v3265, 16
      %v3493 = vrot.slane %v3491, 1
      %v3494 = vor.u32 %v3489, %v3493
      %v3496 = vshll.u32 %v3329, 16
      %v3498 = vrot.slane %v3496, 1
      %v3499 = vsel %vm1244, %v3494, %v3498
      %v3501 = vshrl.u32 %v3266, 16
      %v3503 = vshll.u32 %v3266, 16
      %v3505 = vrot.slane %v3503, 1
      %v3506 = vor.u32 %v3501, %v3505
      %v3508 = vshll.u32 %v3330, 16
      %v3510 = vrot.slane %v3508, 1
      %v3511 = vsel %vm1244, %v3506, %v3510
      %v3513 = vshrl.u32 %v3267, 16
      %v3515 = vshll.u32 %v3267, 16
      %v3517 = vrot.slane %v3515, 1
      %v3518 = vor.u32 %v3513, %v3517
      %v3520 = vshll.u32 %v3331, 16
      %v3522 = vrot.slane %v3520, 1
      %v3523 = vsel %vm1244, %v3518, %v3522
      %v3540 = vrot.slane %v3252, 1
      %v3541 = vrot.slane %v3316, 1
      %v3542 = vsel %vm1453, %v3540, %v3541
      %v3543 = vrot.slane %v3253, 1
      %v3544 = vrot.slane %v3317, 1
      %v3545 = vsel %vm1453, %v3543, %v3544
      %v3546 = vrot.slane %v3254, 1
      %v3547 = vrot.slane %v3318, 1
      %v3548 = vsel %vm1453, %v3546, %v3547
      %v3549 = vrot.slane %v3255, 1
      %v3550 = vrot.slane %v3319, 1
      %v3551 = vsel %vm1453, %v3549, %v3550
      %v3552 = vrot.slane %v3256, 1
      %v3553 = vrot.slane %v3320, 1
      %v3554 = vsel %vm1453, %v3552, %v3553
      %v3555 = vrot.slane %v3257, 1
      %v3556 = vrot.slane %v3321, 1
      %v3557 = vsel %vm1453, %v3555, %v3556
      %v3558 = vrot.slane %v3258, 1
      %v3559 = vrot.slane %v3322, 1
      %v3560 = vsel %vm1453, %v3558, %v3559
      %v3561 = vrot.slane %v3259, 1
      %v3562 = vrot.slane %v3323, 1
      %v3563 = vsel %vm1453, %v3561, %v3562
      %v3564 = vrot.slane %v3260, 1
      %v3565 = vrot.slane %v3324, 1
      %v3566 = vsel %vm1453, %v3564, %v3565
      %v3567 = vrot.slane %v3261, 1
      %v3568 = vrot.slane %v3325, 1
      %v3569 = vsel %vm1453, %v3567, %v3568
      %v3570 = vrot.slane %v3262, 1
      %v3571 = vrot.slane %v3326, 1
      %v3572 = vsel %vm1453, %v3570, %v3571
      %v3573 = vrot.slane %v3263, 1
      %v3574 = vrot.slane %v3327, 1
      %v3575 = vsel %vm1453, %v3573, %v3574
      %v3576 = vrot.slane %v3264, 1
      %v3577 = vrot.slane %v3328, 1
      %v3578 = vsel %vm1453, %v3576, %v3577
      %v3579 = vrot.slane %v3265, 1
      %v3580 = vrot.slane %v3329, 1
      %v3581 = vsel %vm1453, %v3579, %v3580
      %v3582 = vrot.slane %v3266, 1
      %v3583 = vrot.slane %v3330, 1
      %v3584 = vsel %vm1453, %v3582, %v3583
      %v3585 = vrot.slane %v3267, 1
      %v3586 = vrot.slane %v3331, 1
      %v3587 = vsel %vm1453, %v3585, %v3586
      %s3604 = scalar_lea.vmem %s3, 384
      %v3605 = vld [vmem:[%s3604] sm:$0xf]
      %v3606 = vld [vmem:[%s3604 + $0x4] sm:$0xf]
      %v3607 = vld [vmem:[%s3604 + $0x8] sm:$0xf]
      %v3608 = vld [vmem:[%s3604 + $0xc] sm:$0xf]
      %v3609 = vld [vmem:[%s3604 + $0x10] sm:$0xf]
      %v3610 = vld [vmem:[%s3604 + $0x14] sm:$0xf]
      %v3611 = vld [vmem:[%s3604 + $0x18] sm:$0xf]
      %v3612 = vld [vmem:[%s3604 + $0x1c] sm:$0xf]
      %v3613 = vld [vmem:[%s3604 + $0x20] sm:$0xf]
      %v3614 = vld [vmem:[%s3604 + $0x24] sm:$0xf]
      %v3615 = vld [vmem:[%s3604 + $0x28] sm:$0xf]
      %v3616 = vld [vmem:[%s3604 + $0x2c] sm:$0xf]
      %v3617 = vld [vmem:[%s3604 + $0x30] sm:$0xf]
      %v3618 = vld [vmem:[%s3604 + $0x34] sm:$0xf]
      %v3619 = vld [vmem:[%s3604 + $0x38] sm:$0xf]
      %v3620 = vld [vmem:[%s3604 + $0x3c] sm:$0xf]
      %v3621 = vld [vmem:[%s3604 + $0x40] sm:$0xf]
      %v3622 = vld [vmem:[%s3604 + $0x44] sm:$0xf]
      %v3623 = vld [vmem:[%s3604 + $0x48] sm:$0xf]
      %v3624 = vld [vmem:[%s3604 + $0x4c] sm:$0xf]
      %v3625 = vld [vmem:[%s3604 + $0x50] sm:$0xf]
      %v3626 = vld [vmem:[%s3604 + $0x54] sm:$0xf]
      %v3627 = vld [vmem:[%s3604 + $0x58] sm:$0xf]
      %v3628 = vld [vmem:[%s3604 + $0x5c] sm:$0xf]
      %v3629 = vld [vmem:[%s3604 + $0x60] sm:$0xf]
      %v3630 = vld [vmem:[%s3604 + $0x64] sm:$0xf]
      %v3631 = vld [vmem:[%s3604 + $0x68] sm:$0xf]
      %v3632 = vld [vmem:[%s3604 + $0x6c] sm:$0xf]
      %v3633 = vld [vmem:[%s3604 + $0x70] sm:$0xf]
      %v3634 = vld [vmem:[%s3604 + $0x74] sm:$0xf]
      %v3635 = vld [vmem:[%s3604 + $0x78] sm:$0xf]
      %v3636 = vld [vmem:[%s3604 + $0x7c] sm:$0xf]
      %v3637 = vld [vmem:[%s3604 + $0x80] sm:$0xf]
      %v3638 = vld [vmem:[%s3604 + $0x84] sm:$0xf]
      %v3639 = vld [vmem:[%s3604 + $0x88] sm:$0xf]
      %v3640 = vld [vmem:[%s3604 + $0x8c] sm:$0xf]
      %v3641 = vld [vmem:[%s3604 + $0x90] sm:$0xf]
      %v3642 = vld [vmem:[%s3604 + $0x94] sm:$0xf]
      %v3643 = vld [vmem:[%s3604 + $0x98] sm:$0xf]
      %v3644 = vld [vmem:[%s3604 + $0x9c] sm:$0xf]
      %v3645 = vld [vmem:[%s3604 + $0xa0] sm:$0xf]
      %v3646 = vld [vmem:[%s3604 + $0xa4] sm:$0xf]
      %v3647 = vld [vmem:[%s3604 + $0xa8] sm:$0xf]
      %v3648 = vld [vmem:[%s3604 + $0xac] sm:$0xf]
      %v3649 = vld [vmem:[%s3604 + $0xb0] sm:$0xf]
      %v3650 = vld [vmem:[%s3604 + $0xb4] sm:$0xf]
      %v3651 = vld [vmem:[%s3604 + $0xb8] sm:$0xf]
      %v3652 = vld [vmem:[%s3604 + $0xbc] sm:$0xf]
      %v3701 = vunpack.c.l.b16 %v3605
      %v3702 = vunpack.c.l.b16 %v3606
      %v3703 = vunpack.c.l.b16 %v3607
      %v3704 = vunpack.c.l.b16 %v3608
      %v3705 = vunpack.c.l.b16 %v3609
      %v3706 = vunpack.c.l.b16 %v3610
      %v3707 = vunpack.c.l.b16 %v3611
      %v3708 = vunpack.c.l.b16 %v3612
      %v3709 = vunpack.c.l.b16 %v3613
      %v3710 = vunpack.c.l.b16 %v3614
      %v3711 = vunpack.c.l.b16 %v3615
      %v3712 = vunpack.c.l.b16 %v3616
      %v3713 = vunpack.c.l.b16 %v3617
      %v3714 = vunpack.c.l.b16 %v3618
      %v3715 = vunpack.c.l.b16 %v3619
      %v3716 = vunpack.c.l.b16 %v3620
      %v3717 = vunpack.c.l.b16 %v3621
      %v3718 = vunpack.c.l.b16 %v3622
      %v3719 = vunpack.c.l.b16 %v3623
      %v3720 = vunpack.c.l.b16 %v3624
      %v3721 = vunpack.c.l.b16 %v3625
      %v3722 = vunpack.c.l.b16 %v3626
      %v3723 = vunpack.c.l.b16 %v3627
      %v3724 = vunpack.c.l.b16 %v3628
      %v3725 = vunpack.c.l.b16 %v3629
      %v3726 = vunpack.c.l.b16 %v3630
      %v3727 = vunpack.c.l.b16 %v3631
      %v3728 = vunpack.c.l.b16 %v3632
      %v3729 = vunpack.c.l.b16 %v3633
      %v3730 = vunpack.c.l.b16 %v3634
      %v3731 = vunpack.c.l.b16 %v3635
      %v3732 = vunpack.c.l.b16 %v3636
      %v3733 = vunpack.c.l.b16 %v3637
      %v3734 = vunpack.c.l.b16 %v3638
      %v3735 = vunpack.c.l.b16 %v3639
      %v3736 = vunpack.c.l.b16 %v3640
      %v3737 = vunpack.c.l.b16 %v3641
      %v3738 = vunpack.c.l.b16 %v3642
      %v3739 = vunpack.c.l.b16 %v3643
      %v3740 = vunpack.c.l.b16 %v3644
      %v3741 = vunpack.c.l.b16 %v3645
      %v3742 = vunpack.c.l.b16 %v3646
      %v3743 = vunpack.c.l.b16 %v3647
      %v3744 = vunpack.c.l.b16 %v3648
      %v3745 = vunpack.c.l.b16 %v3649
      %v3746 = vunpack.c.l.b16 %v3650
      %v3747 = vunpack.c.l.b16 %v3651
      %v3748 = vunpack.c.l.b16 %v3652
      %v3749 = vpack.c.b16 %v3702, %v3701
      %v3750 = vpack.c.b16 %v3704, %v3703
      %v3751 = vpack.c.b16 %v3706, %v3705
      %v3752 = vpack.c.b16 %v3708, %v3707
      %v3753 = vpack.c.b16 %v3710, %v3709
      %v3754 = vpack.c.b16 %v3712, %v3711
      %v3755 = vpack.c.b16 %v3714, %v3713
      %v3756 = vpack.c.b16 %v3716, %v3715
      %v3757 = vpack.c.b16 %v3718, %v3717
      %v3758 = vpack.c.b16 %v3720, %v3719
      %v3759 = vpack.c.b16 %v3722, %v3721
      %v3760 = vpack.c.b16 %v3724, %v3723
      %v3761 = vpack.c.b16 %v3726, %v3725
      %v3762 = vpack.c.b16 %v3728, %v3727
      %v3763 = vpack.c.b16 %v3730, %v3729
      %v3764 = vpack.c.b16 %v3732, %v3731
      %v3765 = vpack.c.b16 %v3734, %v3733
      %v3766 = vpack.c.b16 %v3736, %v3735
      %v3767 = vpack.c.b16 %v3738, %v3737
      %v3768 = vpack.c.b16 %v3740, %v3739
      %v3769 = vpack.c.b16 %v3742, %v3741
      %v3770 = vpack.c.b16 %v3744, %v3743
      %v3771 = vpack.c.b16 %v3746, %v3745
      %v3772 = vpack.c.b16 %v3748, %v3747
      %3797 = vmatprep.subr.bf16.mxu0 0
      %3798 = vmatpush1.bf16.msra.mxu0 %v3749
      %3799 = vmatprep.subr.bf16.mxu0 0
      %3800 = vmatpush1.bf16.msra.mxu0 %v3750
      %3801 = vmatprep.subr.bf16.mxu0 0
      %3802 = vmatpush1.bf16.msra.mxu0 %v3751
      %3803 = vmatprep.subr.bf16.mxu0 0
      %3804 = vmatpush1.bf16.msra.mxu0 %v3752
      %3805 = vmatprep.subr.bf16.mxu0 0
      %3806 = vmatpush1.bf16.msra.mxu0 %v3753
      %3807 = vmatprep.subr.bf16.mxu0 0
      %3808 = vmatpush1.bf16.msra.mxu0 %v3754
      %3809 = vmatprep.subr.bf16.mxu0 0
      %3810 = vmatpush1.bf16.msra.mxu0 %v3755
      %3811 = vmatprep.subr.bf16.mxu0 0
      %3812 = vmatpush1.bf16.msra.mxu0 %v3756
      %3813 = vmatprep.subr.bf16.mxu0 0
      %3814 = vmatpush1.bf16.msra.mxu0 %v3757
      %3815 = vmatprep.subr.bf16.mxu0 0
      %3816 = vmatpush1.bf16.msra.mxu0 %v3758
      %3817 = vmatprep.subr.bf16.mxu0 0
      %3818 = vmatpush1.bf16.msra.mxu0 %v3759
      %3819 = vmatprep.subr.bf16.mxu0 0
      %3820 = vmatpush1.bf16.msra.mxu0 %v3760
      %3821 = vmatprep.subr.bf16.mxu0 0
      %3822 = vmatpush1.bf16.msra.mxu0 %v3761
      %3823 = vmatprep.subr.bf16.mxu0 0
      %3824 = vmatpush1.bf16.msra.mxu0 %v3762
      %3825 = vmatprep.subr.bf16.mxu0 0
      %3826 = vmatpush1.bf16.msra.mxu0 %v3763
      %3827 = vmatprep.subr.bf16.mxu0 0
      %3828 = vmatpush1.bf16.msra.mxu0 %v3764
      %3829 = vmatprep.mubr.bf16.mxu0 %v3343
      %3830 = vmatmul.mubr.bf16.gmra.mrb[0].mxu0 %v3252
      %v3831 = vpop.f32.mrb[0].mxu0
      %v3832 = vadd.f32 0.0, %v3831
      %v3833 = vpop.f32.mrb[0].mxu0
      %v3834 = vpop.f32.mrb[0].mxu0
      %v3835 = vadd.f32 0.0, %v3834
      %v3836 = vpop.f32.mrb[0].mxu0
      %3837 = vmatprep.mubr.bf16.mxu0 %v3355
      %3838 = vmatmul.mubr.bf16.gmra.mrb[0].mxu0 %v3253
      %v3839 = vpop.f32.mrb[0].mxu0
      %v3840 = vadd.f32 0.0, %v3839
      %v3841 = vpop.f32.mrb[0].mxu0
      %v3842 = vpop.f32.mrb[0].mxu0
      %v3843 = vadd.f32 0.0, %v3842
      %v3844 = vpop.f32.mrb[0].mxu0
      %3845 = vmatprep.mubr.bf16.mxu0 %v3367
      %3846 = vmatmul.mubr.bf16.gmra.mrb[0].mxu0 %v3254
      %v3847 = vpop.f32.mrb[0].mxu0
      %v3848 = vadd.f32 0.0, %v3847
      %v3849 = vpop.f32.mrb[0].mxu0
      %v3850 = vpop.f32.mrb[0].mxu0
      %v3851 = vadd.f32 0.0, %v3850
      %v3852 = vpop.f32.mrb[0].mxu0
      %3853 = vmatprep.mubr.bf16.mxu0 %v3379
      %3854 = vmatmul.mubr.bf16.gmra.mrb[0].mxu0 %v3255
      %v3855 = vpop.f32.mrb[0].mxu0
      %v3856 = vadd.f32 0.0, %v3855
      %v3857 = vpop.f32.mrb[0].mxu0
      %v3858 = vpop.f32.mrb[0].mxu0
      %v3859 = vadd.f32 0.0, %v3858
      %v3860 = vpop.f32.mrb[0].mxu0
      %3861 = vmatprep.mubr.bf16.mxu0 %v3391
      %3862 = vmatmul.mubr.bf16.gmra.mrb[0].mxu0 %v3256
      %v3863 = vpop.f32.mrb[0].mxu0
      %v3864 = vadd.f32 0.0, %v3863
      %v3865 = vpop.f32.mrb[0].mxu0
      %v3866 = vpop.f32.mrb[0].mxu0
      %v3867 = vadd.f32 0.0, %v3866
      %v3868 = vpop.f32.mrb[0].mxu0
      %3869 = vmatprep.mubr.bf16.mxu0 %v3403
      %3870 = vmatmul.mubr.bf16.gmra.mrb[0].mxu0 %v3257
      %v3871 = vpop.f32.mrb[0].mxu0
      %v3872 = vadd.f32 0.0, %v3871
      %v3873 = vpop.f32.mrb[0].mxu0
      %v3874 = vpop.f32.mrb[0].mxu0
      %v3875 = vadd.f32 0.0, %v3874
      %v3876 = vpop.f32.mrb[0].mxu0
      %3877 = vmatprep.mubr.bf16.mxu0 %v3415
      %3878 = vmatmul.mubr.bf16.gmra.mrb[0].mxu0 %v3258
      %v3879 = vpop.f32.mrb[0].mxu0
      %v3880 = vadd.f32 0.0, %v3879
      %v3881 = vpop.f32.mrb[0].mxu0
      %v3882 = vpop.f32.mrb[0].mxu0
      %v3883 = vadd.f32 0.0, %v3882
      %v3884 = vpop.f32.mrb[0].mxu0
      %3885 = vmatprep.mubr.bf16.mxu0 %v3427
      %3886 = vmatmul.mubr.bf16.gmra.mrb[0].mxu0 %v3259
      %v3887 = vpop.f32.mrb[0].mxu0
      %v3888 = vadd.f32 0.0, %v3887
      %v3889 = vpop.f32.mrb[0].mxu0
      %v3890 = vpop.f32.mrb[0].mxu0
      %v3891 = vadd.f32 0.0, %v3890
      %v3892 = vpop.f32.mrb[0].mxu0
      %3893 = vmatprep.mubr.bf16.mxu0 %v3439
      %3894 = vmatmul.mubr.bf16.gmra.mrb[0].mxu0 %v3260
      %v3895 = vpop.f32.mrb[0].mxu0
      %v3896 = vadd.f32 0.0, %v3895
      %v3897 = vpop.f32.mrb[0].mxu0
      %v3898 = vpop.f32.mrb[0].mxu0
      %v3899 = vadd.f32 0.0, %v3898
      %v3900 = vpop.f32.mrb[0].mxu0
      %3901 = vmatprep.mubr.bf16.mxu0 %v3451
      %3902 = vmatmul.mubr.bf16.gmra.mrb[0].mxu0 %v3261
      %v3903 = vpop.f32.mrb[0].mxu0
      %v3904 = vadd.f32 0.0, %v3903
      %v3905 = vpop.f32.mrb[0].mxu0
      %v3906 = vpop.f32.mrb[0].mxu0
      %v3907 = vadd.f32 0.0, %v3906
      %v3908 = vpop.f32.mrb[0].mxu0
      %3909 = vmatprep.mubr.bf16.mxu0 %v3463
      %3910 = vmatmul.mubr.bf16.gmra.mrb[0].mxu0 %v3262
      %v3911 = vpop.f32.mrb[0].mxu0
      %v3912 = vadd.f32 0.0, %v3911
      %v3913 = vpop.f32.mrb[0].mxu0
      %v3914 = vpop.f32.mrb[0].mxu0
      %v3915 = vadd.f32 0.0, %v3914
      %v3916 = vpop.f32.mrb[0].mxu0
      %3917 = vmatprep.mubr.bf16.mxu0 %v3475
      %3918 = vmatmul.mubr.bf16.gmra.mrb[0].mxu0 %v3263
      %v3919 = vpop.f32.mrb[0].mxu0
      %v3920 = vadd.f32 0.0, %v3919
      %v3921 = vpop.f32.mrb[0].mxu0
      %v3922 = vpop.f32.mrb[0].mxu0
      %v3923 = vadd.f32 0.0, %v3922
      %v3924 = vpop.f32.mrb[0].mxu0
      %3925 = vmatprep.mubr.bf16.mxu0 %v3487
      %3926 = vmatmul.mubr.bf16.gmra.mrb[0].mxu0 %v3264
      %v3927 = vpop.f32.mrb[0].mxu0
      %v3928 = vadd.f32 0.0, %v3927
      %v3929 = vpop.f32.mrb[0].mxu0
      %v3930 = vpop.f32.mrb[0].mxu0
      %v3931 = vadd.f32 0.0, %v3930
      %v3932 = vpop.f32.mrb[0].mxu0
      %3933 = vmatprep.mubr.bf16.mxu0 %v3499
      %3934 = vmatmul.mubr.bf16.gmra.mrb[0].mxu0 %v3265
      %v3935 = vpop.f32.mrb[0].mxu0
      %v3936 = vadd.f32 0.0, %v3935
      %v3937 = vpop.f32.mrb[0].mxu0
      %v3938 = vpop.f32.mrb[0].mxu0
      %v3939 = vadd.f32 0.0, %v3938
      %v3940 = vpop.f32.mrb[0].mxu0
      %3941 = vmatprep.mubr.bf16.mxu0 %v3511
      %3942 = vmatmul.mubr.bf16.gmra.mrb[0].mxu0 %v3266
      %v3943 = vpop.f32.mrb[0].mxu0
      %v3944 = vadd.f32 0.0, %v3943
      %v3945 = vpop.f32.mrb[0].mxu0
      %v3946 = vpop.f32.mrb[0].mxu0
      %v3947 = vadd.f32 0.0, %v3946
      %v3948 = vpop.f32.mrb[0].mxu0
      %3949 = vmatprep.mubr.bf16.mxu0 %v3523
      %3950 = vmatmul.mubr.bf16.gmra.mrb[0].mxu0 %v3267
      %v3951 = vpop.f32.mrb[0].mxu0
      %v3952 = vadd.f32 0.0, %v3951
      %v3953 = vpop.f32.mrb[0].mxu0
      %v3954 = vpop.f32.mrb[0].mxu0
      %v3955 = vadd.f32 0.0, %v3954
      %v3956 = vpop.f32.mrb[0].mxu0
      %3957 = vdwg.mxu0
      %3958 = vmatprep.subr.bf16.mxu0 0
      %3959 = vmatpush1.bf16.msra.mxu0 %v3765
      %3960 = vmatprep.subr.bf16.mxu0 0
      %3961 = vmatpush1.bf16.msra.mxu0 %v3766
      %3962 = vmatprep.subr.bf16.mxu0 0
      %3963 = vmatpush1.bf16.msra.mxu0 %v3767
      %3964 = vmatprep.subr.bf16.mxu0 0
      %3965 = vmatpush1.bf16.msra.mxu0 %v3768
      %3966 = vmatprep.subr.bf16.mxu0 0
      %3967 = vmatpush1.bf16.msra.mxu0 %v3769
      %3968 = vmatprep.subr.bf16.mxu0 0
      %3969 = vmatpush1.bf16.msra.mxu0 %v3770
      %3970 = vmatprep.subr.bf16.mxu0 0
      %3971 = vmatpush1.bf16.msra.mxu0 %v3771
      %3972 = vmatprep.subr.bf16.mxu0 0
      %3973 = vmatpush1.bf16.msra.mxu0 %v3772
      %3974 = vmatprep.subr.bf16.mxu0 0
      %3975 = vmatpush1.bf16.msra.mxu0 0
      %3976 = vmatprep.subr.bf16.mxu0 0
      %3977 = vmatpush1.bf16.msra.mxu0 0
      %3978 = vmatprep.subr.bf16.mxu0 0
      %3979 = vmatpush1.bf16.msra.mxu0 0
      %3980 = vmatprep.subr.bf16.mxu0 0
      %3981 = vmatpush1.bf16.msra.mxu0 0
      %3982 = vmatprep.subr.bf16.mxu0 0
      %3983 = vmatpush1.bf16.msra.mxu0 0
      %3984 = vmatprep.subr.bf16.mxu0 0
      %3985 = vmatpush1.bf16.msra.mxu0 0
      %3986 = vmatprep.subr.bf16.mxu0 0
      %3987 = vmatpush1.bf16.msra.mxu0 0
      %3988 = vmatprep.subr.bf16.mxu0 0
      %3989 = vmatpush1.bf16.msra.mxu0 0
      %3990 = vmatprep.mubr.bf16.mxu0 0
      %3991 = vmatmul.mubr.bf16.gmra.mrb[0].mxu0 %v3542
      %v3992 = vpop.f32.mrb[0].mxu0
      %v3993 = vadd.f32 %v3832, %v3992
      %v3994 = vpop.f32.mrb[0].mxu0
      %v3995 = vpop.f32.mrb[0].mxu0
      %v3996 = vadd.f32 %v3835, %v3995
      %v3997 = vpop.f32.mrb[0].mxu0
      %3998 = vmatprep.mubr.bf16.mxu0 0
      %3999 = vmatmul.mubr.bf16.gmra.mrb[0].mxu0 %v3545
      %v4000 = vpop.f32.mrb[0].mxu0
      %v4001 = vadd.f32 %v3840, %v4000
      %v4002 = vpop.f32.mrb[0].mxu0
      %v4003 = vpop.f32.mrb[0].mxu0
      %v4004 = vadd.f32 %v3843, %v4003
      %v4005 = vpop.f32.mrb[0].mxu0
      %4006 = vmatprep.mubr.bf16.mxu0 0
      %4007 = vmatmul.mubr.bf16.gmra.mrb[0].mxu0 %v3548
      %v4008 = vpop.f32.mrb[0].mxu0
      %v4009 = vadd.f32 %v3848, %v4008
      %v4010 = vpop.f32.mrb[0].mxu0
      %v4011 = vpop.f32.mrb[0].mxu0
      %v4012 = vadd.f32 %v3851, %v4011
      %v4013 = vpop.f32.mrb[0].mxu0
      %4014 = vmatprep.mubr.bf16.mxu0 0
      %4015 = vmatmul.mubr.bf16.gmra.mrb[0].mxu0 %v3551
      %v4016 = vpop.f32.mrb[0].mxu0
      %v4017 = vadd.f32 %v3856, %v4016
      %v4018 = vpop.f32.mrb[0].mxu0
      %v4019 = vpop.f32.mrb[0].mxu0
      %v4020 = vadd.f32 %v3859, %v4019
      %v4021 = vpop.f32.mrb[0].mxu0
      %4022 = vmatprep.mubr.bf16.mxu0 0
      %4023 = vmatmul.mubr.bf16.gmra.mrb[0].mxu0 %v3554
      %v4024 = vpop.f32.mrb[0].mxu0
      %v4025 = vadd.f32 %v3864, %v4024
      %v4026 = vpop.f32.mrb[0].mxu0
      %v4027 = vpop.f32.mrb[0].mxu0
      %v4028 = vadd.f32 %v3867, %v4027
      %v4029 = vpop.f32.mrb[0].mxu0
      %4030 = vmatprep.mubr.bf16.mxu0 0
      %4031 = vmatmul.mubr.bf16.gmra.mrb[0].mxu0 %v3557
      %v4032 = vpop.f32.mrb[0].mxu0
      %v4033 = vadd.f32 %v3872, %v4032
      %v4034 = vpop.f32.mrb[0].mxu0
      %v4035 = vpop.f32.mrb[0].mxu0
      %v4036 = vadd.f32 %v3875, %v4035
      %v4037 = vpop.f32.mrb[0].mxu0
      %4038 = vmatprep.mubr.bf16.mxu0 0
      %4039 = vmatmul.mubr.bf16.gmra.mrb[0].mxu0 %v3560
      %v4040 = vpop.f32.mrb[0].mxu0
      %v4041 = vadd.f32 %v3880, %v4040
      %v4042 = vpop.f32.mrb[0].mxu0
      %v4043 = vpop.f32.mrb[0].mxu0
      %v4044 = vadd.f32 %v3883, %v4043
      %v4045 = vpop.f32.mrb[0].mxu0
      %4046 = vmatprep.mubr.bf16.mxu0 0
      %4047 = vmatmul.mubr.bf16.gmra.mrb[0].mxu0 %v3563
      %v4048 = vpop.f32.mrb[0].mxu0
      %v4049 = vadd.f32 %v3888, %v4048
      %v4050 = vpop.f32.mrb[0].mxu0
      %v4051 = vpop.f32.mrb[0].mxu0
      %v4052 = vadd.f32 %v3891, %v4051
      %v4053 = vpop.f32.mrb[0].mxu0
      %4054 = vmatprep.mubr.bf16.mxu0 0
      %4055 = vmatmul.mubr.bf16.gmra.mrb[0].mxu0 %v3566
      %v4056 = vpop.f32.mrb[0].mxu0
      %v4057 = vadd.f32 %v3896, %v4056
      %v4058 = vpop.f32.mrb[0].mxu0
      %v4059 = vpop.f32.mrb[0].mxu0
      %v4060 = vadd.f32 %v3899, %v4059
      %v4061 = vpop.f32.mrb[0].mxu0
      %4062 = vmatprep.mubr.bf16.mxu0 0
      %4063 = vmatmul.mubr.bf16.gmra.mrb[0].mxu0 %v3569
      %v4064 = vpop.f32.mrb[0].mxu0
      %v4065 = vadd.f32 %v3904, %v4064
      %v4066 = vpop.f32.mrb[0].mxu0
      %v4067 = vpop.f32.mrb[0].mxu0
      %v4068 = vadd.f32 %v3907, %v4067
      %v4069 = vpop.f32.mrb[0].mxu0
      %4070 = vmatprep.mubr.bf16.mxu0 0
      %4071 = vmatmul.mubr.bf16.gmra.mrb[0].mxu0 %v3572
      %v4072 = vpop.f32.mrb[0].mxu0
      %v4073 = vadd.f32 %v3912, %v4072
      %v4074 = vpop.f32.mrb[0].mxu0
      %v4075 = vpop.f32.mrb[0].mxu0
      %v4076 = vadd.f32 %v3915, %v4075
      %v4077 = vpop.f32.mrb[0].mxu0
      %4078 = vmatprep.mubr.bf16.mxu0 0
      %4079 = vmatmul.mubr.bf16.gmra.mrb[0].mxu0 %v3575
      %v4080 = vpop.f32.mrb[0].mxu0
      %v4081 = vadd.f32 %v3920, %v4080
      %v4082 = vpop.f32.mrb[0].mxu0
      %v4083 = vpop.f32.mrb[0].mxu0
      %v4084 = vadd.f32 %v3923, %v4083
      %v4085 = vpop.f32.mrb[0].mxu0
      %4086 = vmatprep.mubr.bf16.mxu0 0
      %4087 = vmatmul.mubr.bf16.gmra.mrb[0].mxu0 %v3578
      %v4088 = vpop.f32.mrb[0].mxu0
      %v4089 = vadd.f32 %v3928, %v4088
      %v4090 = vpop.f32.mrb[0].mxu0
      %v4091 = vpop.f32.mrb[0].mxu0
      %v4092 = vadd.f32 %v3931, %v4091
      %v4093 = vpop.f32.mrb[0].mxu0
      %4094 = vmatprep.mubr.bf16.mxu0 0
      %4095 = vmatmul.mubr.bf16.gmra.mrb[0].mxu0 %v3581
      %v4096 = vpop.f32.mrb[0].mxu0
      %v4097 = vadd.f32 %v3936, %v4096
      %v4098 = vpop.f32.mrb[0].mxu0
      %v4099 = vpop.f32.mrb[0].mxu0
      %v4100 = vadd.f32 %v3939, %v4099
      %v4101 = vpop.f32.mrb[0].mxu0
      %4102 = vmatprep.mubr.bf16.mxu0 0
      %4103 = vmatmul.mubr.bf16.gmra.mrb[0].mxu0 %v3584
      %v4104 = vpop.f32.mrb[0].mxu0
      %v4105 = vadd.f32 %v3944, %v4104
      %v4106 = vpop.f32.mrb[0].mxu0
      %v4107 = vpop.f32.mrb[0].mxu0
      %v4108 = vadd.f32 %v3947, %v4107
      %v4109 = vpop.f32.mrb[0].mxu0
      %4110 = vmatprep.mubr.bf16.mxu0 0
      %4111 = vmatmul.mubr.bf16.gmra.mrb[0].mxu0 %v3587
      %v4112 = vpop.f32.mrb[0].mxu0
      %v4113 = vadd.f32 %v3952, %v4112
      %v4114 = vpop.f32.mrb[0].mxu0
      %v4115 = vpop.f32.mrb[0].mxu0
      %v4116 = vadd.f32 %v3955, %v4115
      %v4117 = vpop.f32.mrb[0].mxu0
      %4118 = vdwg.mxu0
      %v4119 = vld [vmem:[#allocation3] sm:$0xff]
      %v4120 = vld [vmem:[#allocation3 + $0x8] sm:$0xff]
      %v4121 = vld [vmem:[#allocation3 + $0x10] sm:$0xff]
      %v4122 = vld [vmem:[#allocation3 + $0x18] sm:$0xff]
      %v4123 = vld [vmem:[#allocation3 + $0x20] sm:$0xff]
      %v4124 = vld [vmem:[#allocation3 + $0x28] sm:$0xff]
      %v4125 = vld [vmem:[#allocation3 + $0x30] sm:$0xff]
      %v4126 = vld [vmem:[#allocation3 + $0x38] sm:$0xff]
      %v4127 = vld [vmem:[#allocation3 + $0x40] sm:$0xff]
      %v4128 = vld [vmem:[#allocation3 + $0x48] sm:$0xff]
      %v4129 = vld [vmem:[#allocation3 + $0x50] sm:$0xff]
      %v4130 = vld [vmem:[#allocation3 + $0x58] sm:$0xff]
      %v4131 = vld [vmem:[#allocation3 + $0x60] sm:$0xff]
      %v4132 = vld [vmem:[#allocation3 + $0x68] sm:$0xff]
      %v4133 = vld [vmem:[#allocation3 + $0x70] sm:$0xff]
      %v4134 = vld [vmem:[#allocation3 + $0x78] sm:$0xff]
      %v4135 = vld [vmem:[#allocation3 + $0x80] sm:$0xff]
      %v4136 = vld [vmem:[#allocation3 + $0x88] sm:$0xff]
      %v4137 = vld [vmem:[#allocation3 + $0x90] sm:$0xff]
      %v4138 = vld [vmem:[#allocation3 + $0x98] sm:$0xff]
      %v4139 = vld [vmem:[#allocation3 + $0xa0] sm:$0xff]
      %v4140 = vld [vmem:[#allocation3 + $0xa8] sm:$0xff]
      %v4141 = vld [vmem:[#allocation3 + $0xb0] sm:$0xff]
      %v4142 = vld [vmem:[#allocation3 + $0xb8] sm:$0xff]
      %v4143 = vld [vmem:[#allocation3 + $0xc0] sm:$0xff]
      %v4144 = vld [vmem:[#allocation3 + $0xc8] sm:$0xff]
      %v4145 = vld [vmem:[#allocation3 + $0xd0] sm:$0xff]
      %v4146 = vld [vmem:[#allocation3 + $0xd8] sm:$0xff]
      %v4147 = vld [vmem:[#allocation3 + $0xe0] sm:$0xff]
      %v4148 = vld [vmem:[#allocation3 + $0xe8] sm:$0xff]
      %v4149 = vld [vmem:[#allocation3 + $0xf0] sm:$0xff]
      %v4150 = vld [vmem:[#allocation3 + $0xf8] sm:$0xff]
      %v4151 = vadd.f32 %v4119, %v3993
      %v4152 = vadd.f32 %v4120, %v3996
      %v4153 = vadd.f32 %v4121, %v4001
      %v4154 = vadd.f32 %v4122, %v4004
      %v4155 = vadd.f32 %v4123, %v4009
      %v4156 = vadd.f32 %v4124, %v4012
      %v4157 = vadd.f32 %v4125, %v4017
      %v4158 = vadd.f32 %v4126, %v4020
      %v4159 = vadd.f32 %v4127, %v4025
      %v4160 = vadd.f32 %v4128, %v4028
      %v4161 = vadd.f32 %v4129, %v4033
      %v4162 = vadd.f32 %v4130, %v4036
      %v4163 = vadd.f32 %v4131, %v4041
      %v4164 = vadd.f32 %v4132, %v4044
      %v4165 = vadd.f32 %v4133, %v4049
      %v4166 = vadd.f32 %v4134, %v4052
      %v4167 = vadd.f32 %v4135, %v4057
      %v4168 = vadd.f32 %v4136, %v4060
      %v4169 = vadd.f32 %v4137, %v4065
      %v4170 = vadd.f32 %v4138, %v4068
      %v4171 = vadd.f32 %v4139, %v4073
      %v4172 = vadd.f32 %v4140, %v4076
      %v4173 = vadd.f32 %v4141, %v4081
      %v4174 = vadd.f32 %v4142, %v4084
      %v4175 = vadd.f32 %v4143, %v4089
      %v4176 = vadd.f32 %v4144, %v4092
      %v4177 = vadd.f32 %v4145, %v4097
      %v4178 = vadd.f32 %v4146, %v4100
      %v4179 = vadd.f32 %v4147, %v4105
      %v4180 = vadd.f32 %v4148, %v4108
      %v4181 = vadd.f32 %v4149, %v4113
      %v4182 = vadd.f32 %v4150, %v4116
      %4183 = vst [vmem:[#allocation3] sm:$0xff] %v4151
      %4184 = vst [vmem:[#allocation3 + $0x8] sm:$0xff] %v4152
      %4185 = vst [vmem:[#allocation3 + $0x10] sm:$0xff] %v4153
      %4186 = vst [vmem:[#allocation3 + $0x18] sm:$0xff] %v4154
      %4187 = vst [vmem:[#allocation3 + $0x20] sm:$0xff] %v4155
      %4188 = vst [vmem:[#allocation3 + $0x28] sm:$0xff] %v4156
      %4189 = vst [vmem:[#allocation3 + $0x30] sm:$0xff] %v4157
      %4190 = vst [vmem:[#allocation3 + $0x38] sm:$0xff] %v4158
      %4191 = vst [vmem:[#allocation3 + $0x40] sm:$0xff] %v4159
      %4192 = vst [vmem:[#allocation3 + $0x48] sm:$0xff] %v4160
      %4193 = vst [vmem:[#allocation3 + $0x50] sm:$0xff] %v4161
      %4194 = vst [vmem:[#allocation3 + $0x58] sm:$0xff] %v4162
      %4195 = vst [vmem:[#allocation3 + $0x60] sm:$0xff] %v4163
      %4196 = vst [vmem:[#allocation3 + $0x68] sm:$0xff] %v4164
      %4197 = vst [vmem:[#allocation3 + $0x70] sm:$0xff] %v4165
      %4198 = vst [vmem:[#allocation3 + $0x78] sm:$0xff] %v4166
      %4199 = vst [vmem:[#allocation3 + $0x80] sm:$0xff] %v4167
      %4200 = vst [vmem:[#allocation3 + $0x88] sm:$0xff] %v4168
      %4201 = vst [vmem:[#allocation3 + $0x90] sm:$0xff] %v4169
      %4202 = vst [vmem:[#allocation3 + $0x98] sm:$0xff] %v4170
      %4203 = vst [vmem:[#allocation3 + $0xa0] sm:$0xff] %v4171
      %4204 = vst [vmem:[#allocation3 + $0xa8] sm:$0xff] %v4172
      %4205 = vst [vmem:[#allocation3 + $0xb0] sm:$0xff] %v4173
      %4206 = vst [vmem:[#allocation3 + $0xb8] sm:$0xff] %v4174
      %4207 = vst [vmem:[#allocation3 + $0xc0] sm:$0xff] %v4175
      %4208 = vst [vmem:[#allocation3 + $0xc8] sm:$0xff] %v4176
      %4209 = vst [vmem:[#allocation3 + $0xd0] sm:$0xff] %v4177
      %4210 = vst [vmem:[#allocation3 + $0xd8] sm:$0xff] %v4178
      %4211 = vst [vmem:[#allocation3 + $0xe0] sm:$0xff] %v4179
      %4212 = vst [vmem:[#allocation3 + $0xe8] sm:$0xff] %v4180
      %4213 = vst [vmem:[#allocation3 + $0xf0] sm:$0xff] %v4181
      %4214 = vst [vmem:[#allocation3 + $0xf8] sm:$0xff] %v4182
      %v4215 = vld [vmem:[#allocation3] sm:$0xff]
      %v4216 = vld [vmem:[#allocation3 + $0x8] sm:$0xff]
      %v4217 = vld [vmem:[#allocation3 + $0x10] sm:$0xff]
      %v4218 = vld [vmem:[#allocation3 + $0x18] sm:$0xff]
      %v4219 = vld [vmem:[#allocation3 + $0x20] sm:$0xff]
      %v4220 = vld [vmem:[#allocation3 + $0x28] sm:$0xff]
      %v4221 = vld [vmem:[#allocation3 + $0x30] sm:$0xff]
      %v4222 = vld [vmem:[#allocation3 + $0x38] sm:$0xff]
      %v4223 = vld [vmem:[#allocation3 + $0x40] sm:$0xff]
      %v4224 = vld [vmem:[#allocation3 + $0x48] sm:$0xff]
      %v4225 = vld [vmem:[#allocation3 + $0x50] sm:$0xff]
      %v4226 = vld [vmem:[#allocation3 + $0x58] sm:$0xff]
      %v4227 = vld [vmem:[#allocation3 + $0x60] sm:$0xff]
      %v4228 = vld [vmem:[#allocation3 + $0x68] sm:$0xff]
      %v4229 = vld [vmem:[#allocation3 + $0x70] sm:$0xff]
      %v4230 = vld [vmem:[#allocation3 + $0x78] sm:$0xff]
      %v4231 = vld [vmem:[#allocation3 + $0x80] sm:$0xff]
      %v4232 = vld [vmem:[#allocation3 + $0x88] sm:$0xff]
      %v4233 = vld [vmem:[#allocation3 + $0x90] sm:$0xff]
      %v4234 = vld [vmem:[#allocation3 + $0x98] sm:$0xff]
      %v4235 = vld [vmem:[#allocation3 + $0xa0] sm:$0xff]
      %v4236 = vld [vmem:[#allocation3 + $0xa8] sm:$0xff]
      %v4237 = vld [vmem:[#allocation3 + $0xb0] sm:$0xff]
      %v4238 = vld [vmem:[#allocation3 + $0xb8] sm:$0xff]
      %v4239 = vld [vmem:[#allocation3 + $0xc0] sm:$0xff]
      %v4240 = vld [vmem:[#allocation3 + $0xc8] sm:$0xff]
      %v4241 = vld [vmem:[#allocation3 + $0xd0] sm:$0xff]
      %v4242 = vld [vmem:[#allocation3 + $0xd8] sm:$0xff]
      %v4243 = vld [vmem:[#allocation3 + $0xe0] sm:$0xff]
      %v4244 = vld [vmem:[#allocation3 + $0xe8] sm:$0xff]
      %v4245 = vld [vmem:[#allocation3 + $0xf0] sm:$0xff]
      %v4246 = vld [vmem:[#allocation3 + $0xf8] sm:$0xff]
      %v4247 = vpack.c.bf16 %v4216, %v4215
      %v4248 = vpack.c.bf16 %v4218, %v4217
      %v4249 = vpack.c.bf16 %v4220, %v4219
      %v4250 = vpack.c.bf16 %v4222, %v4221
      %v4251 = vpack.c.bf16 %v4224, %v4223
      %v4252 = vpack.c.bf16 %v4226, %v4225
      %v4253 = vpack.c.bf16 %v4228, %v4227
      %v4254 = vpack.c.bf16 %v4230, %v4229
      %v4255 = vpack.c.bf16 %v4232, %v4231
      %v4256 = vpack.c.bf16 %v4234, %v4233
      %v4257 = vpack.c.bf16 %v4236, %v4235
      %v4258 = vpack.c.bf16 %v4238, %v4237
      %v4259 = vpack.c.bf16 %v4240, %v4239
      %v4260 = vpack.c.bf16 %v4242, %v4241
      %v4261 = vpack.c.bf16 %v4244, %v4243
      %v4262 = vpack.c.bf16 %v4246, %v4245
      %v4279 = vunpack.c.l.b16 %v4247
      %v4280 = vunpack.c.h.b16 %v4247
      %v4281 = vunpack.c.l.b16 %v4248
      %v4282 = vunpack.c.h.b16 %v4248
      %v4283 = vunpack.c.l.b16 %v4249
      %v4284 = vunpack.c.h.b16 %v4249
      %v4285 = vunpack.c.l.b16 %v4250
      %v4286 = vunpack.c.h.b16 %v4250
      %v4287 = vunpack.c.l.b16 %v4251
      %v4288 = vunpack.c.h.b16 %v4251
      %v4289 = vunpack.c.l.b16 %v4252
      %v4290 = vunpack.c.h.b16 %v4252
      %v4291 = vunpack.c.l.b16 %v4253
      %v4292 = vunpack.c.h.b16 %v4253
      %v4293 = vunpack.c.l.b16 %v4254
      %v4294 = vunpack.c.h.b16 %v4254
      %v4295 = vunpack.c.l.b16 %v4255
      %v4296 = vunpack.c.h.b16 %v4255
      %v4297 = vunpack.c.l.b16 %v4256
      %v4298 = vunpack.c.h.b16 %v4256
      %v4299 = vunpack.c.l.b16 %v4257
      %v4300 = vunpack.c.h.b16 %v4257
      %v4301 = vunpack.c.l.b16 %v4258
      %v4302 = vunpack.c.h.b16 %v4258
      %v4303 = vunpack.c.l.b16 %v4259
      %v4304 = vunpack.c.h.b16 %v4259
      %v4305 = vunpack.c.l.b16 %v4260
      %v4306 = vunpack.c.h.b16 %v4260
      %v4307 = vunpack.c.l.b16 %v4261
      %v4308 = vunpack.c.h.b16 %v4261
      %v4309 = vunpack.c.l.b16 %v4262
      %v4310 = vunpack.c.h.b16 %v4262
      %v4311 = vpack.c.b16 %v4279, %v4279
      %v4312 = vpack.c.b16 %v4280, %v4280
      %v4313 = vpack.c.b16 %v4281, %v4281
      %v4314 = vpack.c.b16 %v4282, %v4282
      %v4315 = vpack.c.b16 %v4283, %v4283
      %v4316 = vpack.c.b16 %v4284, %v4284
      %v4317 = vpack.c.b16 %v4285, %v4285
      %v4318 = vpack.c.b16 %v4286, %v4286
      %v4319 = vpack.c.b16 %v4287, %v4287
      %v4320 = vpack.c.b16 %v4288, %v4288
      %v4321 = vpack.c.b16 %v4289, %v4289
      %v4322 = vpack.c.b16 %v4290, %v4290
      %v4323 = vpack.c.b16 %v4291, %v4291
      %v4324 = vpack.c.b16 %v4292, %v4292
      %v4325 = vpack.c.b16 %v4293, %v4293
      %v4326 = vpack.c.b16 %v4294, %v4294
      %v4327 = vpack.c.b16 %v4295, %v4295
      %v4328 = vpack.c.b16 %v4296, %v4296
      %v4329 = vpack.c.b16 %v4297, %v4297
      %v4330 = vpack.c.b16 %v4298, %v4298
      %v4331 = vpack.c.b16 %v4299, %v4299
      %v4332 = vpack.c.b16 %v4300, %v4300
      %v4333 = vpack.c.b16 %v4301, %v4301
      %v4334 = vpack.c.b16 %v4302, %v4302
      %v4335 = vpack.c.b16 %v4303, %v4303
      %v4336 = vpack.c.b16 %v4304, %v4304
      %v4337 = vpack.c.b16 %v4305, %v4305
      %v4338 = vpack.c.b16 %v4306, %v4306
      %v4339 = vpack.c.b16 %v4307, %v4307
      %v4340 = vpack.c.b16 %v4308, %v4308
      %v4341 = vpack.c.b16 %v4309, %v4309
      %v4342 = vpack.c.b16 %v4310, %v4310
      %4375 = vst [vmem:[%s231] sm:$0xf] %v4311
      %4376 = vst [vmem:[%s231 + $0x4] sm:$0xf] %v4312
      %4377 = vst [vmem:[%s231 + $0x8] sm:$0xf] %v4313
      %4378 = vst [vmem:[%s231 + $0xc] sm:$0xf] %v4314
      %4379 = vst [vmem:[%s231 + $0x10] sm:$0xf] %v4315
      %4380 = vst [vmem:[%s231 + $0x14] sm:$0xf] %v4316
      %4381 = vst [vmem:[%s231 + $0x18] sm:$0xf] %v4317
      %4382 = vst [vmem:[%s231 + $0x1c] sm:$0xf] %v4318
      %4383 = vst [vmem:[%s231 + $0x20] sm:$0xf] %v4319
      %4384 = vst [vmem:[%s231 + $0x24] sm:$0xf] %v4320
      %4385 = vst [vmem:[%s231 + $0x28] sm:$0xf] %v4321
      %4386 = vst [vmem:[%s231 + $0x2c] sm:$0xf] %v4322
      %4387 = vst [vmem:[%s231 + $0x30] sm:$0xf] %v4323
      %4388 = vst [vmem:[%s231 + $0x34] sm:$0xf] %v4324
      %4389 = vst [vmem:[%s231 + $0x38] sm:$0xf] %v4325
      %4390 = vst [vmem:[%s231 + $0x3c] sm:$0xf] %v4326
      %4391 = vst [vmem:[%s231 + $0x40] sm:$0xf] %v4327
      %4392 = vst [vmem:[%s231 + $0x44] sm:$0xf] %v4328
      %4393 = vst [vmem:[%s231 + $0x48] sm:$0xf] %v4329
      %4394 = vst [vmem:[%s231 + $0x4c] sm:$0xf] %v4330
      %4395 = vst [vmem:[%s231 + $0x50] sm:$0xf] %v4331
      %4396 = vst [vmem:[%s231 + $0x54] sm:$0xf] %v4332
      %4397 = vst [vmem:[%s231 + $0x58] sm:$0xf] %v4333
      %4398 = vst [vmem:[%s231 + $0x5c] sm:$0xf] %v4334
      %4399 = vst [vmem:[%s231 + $0x60] sm:$0xf] %v4335
      %4400 = vst [vmem:[%s231 + $0x64] sm:$0xf] %v4336
      %4401 = vst [vmem:[%s231 + $0x68] sm:$0xf] %v4337
      %4402 = vst [vmem:[%s231 + $0x6c] sm:$0xf] %v4338
      %4403 = vst [vmem:[%s231 + $0x70] sm:$0xf] %v4339
      %4404 = vst [vmem:[%s231 + $0x74] sm:$0xf] %v4340
      %4405 = vst [vmem:[%s231 + $0x78] sm:$0xf] %v4341
      %4406 = vst [vmem:[%s231 + $0x7c] sm:$0xf] %v4342
      %v4407 = vadd.f32 %v4215, %v4216
      %v4408 = vadd.f32 %v4407, %v4217
      %v4409 = vadd.f32 %v4408, %v4218
      %v4410 = vadd.f32 %v4409, %v4219
      %v4411 = vadd.f32 %v4410, %v4220
      %v4412 = vadd.f32 %v4411, %v4221
      %v4413 = vadd.f32 %v4412, %v4222
      %v4414 = vadd.f32 %v4413, %v4223
      %v4415 = vadd.f32 %v4414, %v4224
      %v4416 = vadd.f32 %v4415, %v4225
      %v4417 = vadd.f32 %v4416, %v4226
      %v4418 = vadd.f32 %v4417, %v4227
      %v4419 = vadd.f32 %v4418, %v4228
      %v4420 = vadd.f32 %v4419, %v4229
      %v4421 = vadd.f32 %v4420, %v4230
      %v4422 = vadd.f32 %v4421, %v4231
      %v4423 = vadd.f32 %v4422, %v4232
      %v4424 = vadd.f32 %v4423, %v4233
      %v4425 = vadd.f32 %v4424, %v4234
      %v4426 = vadd.f32 %v4425, %v4235
      %v4427 = vadd.f32 %v4426, %v4236
      %v4428 = vadd.f32 %v4427, %v4237
      %v4429 = vadd.f32 %v4428, %v4238
      %v4430 = vadd.f32 %v4429, %v4239
      %v4431 = vadd.f32 %v4430, %v4240
      %v4432 = vadd.f32 %v4431, %v4241
      %v4433 = vadd.f32 %v4432, %v4242
      %v4434 = vadd.f32 %v4433, %v4243
      %v4435 = vadd.f32 %v4434, %v4244
      %v4436 = vadd.f32 %v4435, %v4245
      %v4437 = vadd.f32 %v4436, %v4246
      %v4438 = vrot.slane %v4437, 4
      %v4439 = vadd.f32 %v4437, %v4438
      %v4440 = vrot.slane %v4439, 2
      %v4441 = vadd.f32 %v4439, %v4440
      %v4442 = vrot.slane %v4441, 1
      %v4443 = vadd.f32 %v4441, %v4442
      %v4444 = vmul.f32 %v4215, %v4215
      %v4445 = vmul.f32 %v4216, %v4216
      %v4446 = vmul.f32 %v4217, %v4217
      %v4447 = vmul.f32 %v4218, %v4218
      %v4448 = vmul.f32 %v4219, %v4219
      %v4449 = vmul.f32 %v4220, %v4220
      %v4450 = vmul.f32 %v4221, %v4221
      %v4451 = vmul.f32 %v4222, %v4222
      %v4452 = vmul.f32 %v4223, %v4223
      %v4453 = vmul.f32 %v4224, %v4224
      %v4454 = vmul.f32 %v4225, %v4225
      %v4455 = vmul.f32 %v4226, %v4226
      %v4456 = vmul.f32 %v4227, %v4227
      %v4457 = vmul.f32 %v4228, %v4228
      %v4458 = vmul.f32 %v4229, %v4229
      %v4459 = vmul.f32 %v4230, %v4230
      %v4460 = vmul.f32 %v4231, %v4231
      %v4461 = vmul.f32 %v4232, %v4232
      %v4462 = vmul.f32 %v4233, %v4233
      %v4463 = vmul.f32 %v4234, %v4234
      %v4464 = vmul.f32 %v4235, %v4235
      %v4465 = vmul.f32 %v4236, %v4236
      %v4466 = vmul.f32 %v4237, %v4237
      %v4467 = vmul.f32 %v4238, %v4238
      %v4468 = vmul.f32 %v4239, %v4239
      %v4469 = vmul.f32 %v4240, %v4240
      %v4470 = vmul.f32 %v4241, %v4241
      %v4471 = vmul.f32 %v4242, %v4242
      %v4472 = vmul.f32 %v4243, %v4243
      %v4473 = vmul.f32 %v4244, %v4244
      %v4474 = vmul.f32 %v4245, %v4245
      %v4475 = vmul.f32 %v4246, %v4246
      %v4476 = vadd.f32 %v4444, %v4445
      %v4477 = vadd.f32 %v4476, %v4446
      %v4478 = vadd.f32 %v4477, %v4447
      %v4479 = vadd.f32 %v4478, %v4448
      %v4480 = vadd.f32 %v4479, %v4449
      %v4481 = vadd.f32 %v4480, %v4450
      %v4482 = vadd.f32 %v4481, %v4451
      %v4483 = vadd.f32 %v4482, %v4452
      %v4484 = vadd.f32 %v4483, %v4453
      %v4485 = vadd.f32 %v4484, %v4454
      %v4486 = vadd.f32 %v4485, %v4455
      %v4487 = vadd.f32 %v4486, %v4456
      %v4488 = vadd.f32 %v4487, %v4457
      %v4489 = vadd.f32 %v4488, %v4458
      %v4490 = vadd.f32 %v4489, %v4459
      %v4491 = vadd.f32 %v4490, %v4460
      %v4492 = vadd.f32 %v4491, %v4461
      %v4493 = vadd.f32 %v4492, %v4462
      %v4494 = vadd.f32 %v4493, %v4463
      %v4495 = vadd.f32 %v4494, %v4464
      %v4496 = vadd.f32 %v4495, %v4465
      %v4497 = vadd.f32 %v4496, %v4466
      %v4498 = vadd.f32 %v4497, %v4467
      %v4499 = vadd.f32 %v4498, %v4468
      %v4500 = vadd.f32 %v4499, %v4469
      %v4501 = vadd.f32 %v4500, %v4470
      %v4502 = vadd.f32 %v4501, %v4471
      %v4503 = vadd.f32 %v4502, %v4472
      %v4504 = vadd.f32 %v4503, %v4473
      %v4505 = vadd.f32 %v4504, %v4474
      %v4506 = vadd.f32 %v4505, %v4475
      %v4507 = vrot.slane %v4506, 4
      %v4508 = vadd.f32 %v4506, %v4507
      %v4509 = vrot.slane %v4508, 2
      %v4510 = vadd.f32 %v4508, %v4509
      %v4511 = vrot.slane %v4510, 1
      %v4512 = vadd.f32 %v4510, %v4511
      %vm4513 = vcmask 1040384
      %v4514 = vsel %vm4513, %v4443, %v4512
      %vm4515 = vcmask 1041408
      %v4516 = vsel %vm4515, %v4514, 0.0
      %4517 = vst [vmem:[%s235] sm:$0xff] %v4516
      %p4518 = scmp.lt.s32.totalorder %s17, 1
      %s4519 = scalar_select %p4518, %s17, 1
      %s4520 = smul.addr %s4519, 32
      %s4521 = smul.addr %s4520, 4
      %s4522 = scalar_lea.vmem %s4, %s4521
      %p4523 = scmp.lt.s32.totalorder %s17, 1
      %s4524 = scalar_select %p4523, %s17, 1
      %s4525 = smul.addr %s4524, 8
      %s4526 = scalar_lea.vmem %s5, %s4525
      // Predicated region
      $region37: #{basic_cell_forward.4} parent=35 // pred_check
        %p4527 = pneg %p124
      $region38: #{basic_cell_forward.4} parent=35 // pred_check_branch
        %4529 = sbr.rel (%p4527) target = $region40
      $region39: #{basic_cell_forward.4} parent=35 // pred_region
        _
      $region40: #{basic_cell_forward.4} parent=35 // pred_fallthru
        _
      // Predicated region
      $region41: #{basic_cell_forward.4} parent=35 // pred_check
        %p4530 = pneg %p150
      $region42: #{basic_cell_forward.4} parent=35 // pred_check_branch
        %4532 = sbr.rel (%p4530) target = $region44
      $region43: #{basic_cell_forward.4} parent=35 // pred_region
        _
      $region44: #{basic_cell_forward.4} parent=35 // pred_fallthru
        _
    $region36: #{basic_cell_forward.4} parent=5 // pred_fallthru
      _
    %p4533 = scmp.le.s32.totalorder 2, %s12
    // Predicated region
    $region45: #{basic_cell_forward.4} parent=5 // pred_check
      %p4534 = pneg %p4533
    $region46: #{basic_cell_forward.4} parent=5 // pred_check_branch
      %4536 = sbr.rel (%p4534) target = $region48
    $region47: #{basic_cell_forward.4} parent=5 // pred_region
      %s4537 = ssub.s32 %s12, 2
      // Predicated region
      $region49: #{basic_cell_forward.4} parent=47 // pred_check
        %p4538 = pneg %p130
      $region50: #{basic_cell_forward.4} parent=47 // pred_check_branch
        %4540 = sbr.rel (%p4538) target = $region52
      $region51: #{basic_cell_forward.4} parent=47 // pred_region
        %p4541 = scmp.lt.s32.totalorder %s18, 1
        %s4542 = scalar_select %p4541, %s18, 1
        %s4543 = smul.addr %s4542, 32
        %s4544 = smul.addr %s4543, 4
        %s4545 = scalar_lea.vmem %s4, %s4544
      $region52: #{basic_cell_forward.4} parent=47 // pred_fallthru
        _
      // Predicated region
      $region53: #{basic_cell_forward.4} parent=47 // pred_check
        %p4546 = pneg %p156
      $region54: #{basic_cell_forward.4} parent=47 // pred_check_branch
        %4548 = sbr.rel (%p4546) target = $region56
      $region55: #{basic_cell_forward.4} parent=47 // pred_region
        %p4549 = scmp.lt.s32.totalorder %s18, 1
        %s4550 = scalar_select %p4549, %s18, 1
        %s4551 = smul.addr %s4550, 8
        %s4552 = scalar_lea.vmem %s5, %s4551
      $region56: #{basic_cell_forward.4} parent=47 // pred_fallthru
        _
    $region48: #{basic_cell_forward.4} parent=5 // pred_fallthru
      _
  $region6: #{basic_cell_forward.4} parent=0 // loop_footer
    %s16 = sadd.s32 1, %s12
  $region7: #{basic_cell_forward.4} parent=0 // loop_footer_branch
    %11 = sbr.rel target = $region3
  $region8: #{basic_cell_forward.4} parent=0 // loop_exit
    _

</llo_original>
